<compile_context>
chip_gen: v6e
topology: v6e:2x2x1
jax: 0.10.0
libtpu: 0.0.40
codegen_flags: <defaults>
</compile_context>

<pallas_src>
import functools

import jax
import jax.numpy as jnp
from jax.experimental import pallas as pl
from jax.experimental.pallas import tpu as pltpu

CLASSES = 2
SAMPLE_CHANNEL = 12
SAMPLE_LENGTH = 384
N1 = 10
D = 2
KERNEL_LENGTH = 64
BN_EPS = 1e-5

CH = D * N1                                    # 20 conv output channels
CPAD = ((SAMPLE_CHANNEL + 7) // 8) * 8         # channel dim padded to a sublane multiple (16)


def pseudo_label_kernel(x_ref, wc_ref, bc_ref, gamma_ref, beta_ref,
                        wfct_ref, bfct_ref, outT_ref, col_scr,
                        *, klen, t_out, cpad, eps):
    """Single-invocation kernel.

    x_ref:      (B, CPAD, T)       input, channels zero-padded 12 -> 16
    wc_ref:     (CH, klen*CPAD)    fused conv1*conv2 weight (zero at padded channels)
    bc_ref:     (CH, 1)            fused conv bias
    gamma/beta: (CH, 1)            BatchNorm affine
    wfct_ref:   (CLASSES, CH)      FC weight, transposed
    bfct_ref:   (CLASSES, 1)       FC bias
    outT_ref:   (CLASSES, B)       softmax output, transposed (wrapper flips it back)
    col_scr:    (klen*CPAD, t_out) im2col scratch, reused per batch
    """
    B = x_ref.shape[0]

    s1_cols = []
    s2_cols = []
    for b in range(B):                                     # B is tiny & static
        # im2col: col[k*cpad + c, t] = x[b, c, t + k].  Aligned 16-row slab stores; the padded
        # channel rows multiply against zero columns of wc, so no scratch zero-init is needed.
        for k in range(klen):
            col_scr[k * cpad:(k + 1) * cpad, :] = x_ref[b, :, k:k + t_out]

        # Fused pointwise + depthwise conv == one MXU matmul, then fused bias + ReLU.
        act = jnp.maximum(
            jnp.dot(wc_ref[...], col_scr[...], preferred_element_type=jnp.float32)
            + bc_ref[...],
            0.0)                                            # (ch, t_out)

        # Sufficient statistics for the fused BatchNorm + global average pool.
        s1_cols.append(jnp.sum(act, axis=1, keepdims=True))          # (ch, 1)  sum_t act
        s2_cols.append(jnp.sum(act * act, axis=1, keepdims=True))    # (ch, 1)  sum_t act^2

    s1 = jnp.concatenate(s1_cols, axis=1)                  # (ch, B)
    s2 = jnp.concatenate(s2_cols, axis=1)                  # (ch, B)

    # BatchNorm2d(track_running_stats=False): biased batch statistics over (B, t_out).
    inv_bn = 1.0 / float(B * t_out)
    mean = jnp.sum(s1, axis=1, keepdims=True) * inv_bn                  # (ch, 1)
    var = jnp.sum(s2, axis=1, keepdims=True) * inv_bn - mean * mean     # E[x^2] - mean^2
    scale = gamma_ref[...] * jax.lax.rsqrt(var + eps)                   # (ch, 1)

    # AvgPool over time, with BN applied to the pooled value (exact by linearity of the pool).
    pooledT = s1 * (1.0 / float(t_out))                                 # (ch, B)
    normedT = (pooledT - mean) * scale + beta_ref[...]                  # (ch, B)

    # Linear + Softmax, computed transposed: (classes, B).
    logitsT = jnp.dot(wfct_ref[...], normedT,
                      preferred_element_type=jnp.float32) + bfct_ref[...]
    logitsT = logitsT - jnp.max(logitsT, axis=0, keepdims=True)
    e = jnp.exp(logitsT)
    outT_ref[...] = (e / jnp.sum(e, axis=0, keepdims=True)).astype(outT_ref.dtype)


def _fuse_params(params):
    """Fold conv1 into conv2 and lay every parameter out for the kernel."""
    w1 = params["w1"]                                # (N1, C)
    b1 = params["b1"].reshape(N1)
    w2 = params["w2"]                                # (D*N1, klen)
    b2 = params["b2"].reshape(CH)

    # PyTorch grouped-conv ordering: output channel o reads input channel o // d.
    w1e = jnp.repeat(w1, D, axis=0)                  # (CH, C)   w1e[o] = w1[o // d]
    b1e = jnp.repeat(b1, D)                          # (CH,)

    wc3 = w2[:, :, None] * w1e[:, None, :]           # (CH, klen, C): w2[o,k] * w1[o//d, c]
    wc3 = jnp.pad(wc3, ((0, 0), (0, 0), (0, CPAD - w1.shape[1])))
    wc = wc3.reshape(CH, KERNEL_LENGTH * CPAD)       # matches col[k*CPAD + c, t]

    bc = (b2 + b1e * jnp.sum(w2, axis=1)).reshape(CH, 1)
    gamma = params["gamma"].reshape(CH, 1)
    beta = params["beta"].reshape(CH, 1)
    wfct = params["wfc_t"].T                         # (CLASSES, CH)
    bfct = params["bfc"].reshape(CLASSES, 1)
    return wc, bc, gamma, beta, wfct, bfct


def pseudo_label_forward(x, params):
    B, C, T = x.shape
    t_out = T - KERNEL_LENGTH + 1
    wc, bc, gamma, beta, wfct, bfct = _fuse_params(params)
    x_pad = jnp.pad(x, ((0, 0), (0, CPAD - C), (0, 0)))

    kernel = functools.partial(pseudo_label_kernel, klen=KERNEL_LENGTH,
                               t_out=t_out, cpad=CPAD, eps=BN_EPS)
    vmem = pl.BlockSpec(memory_space=pltpu.MemorySpace.VMEM)
    # Working set < 2 MB: single invocation, whole-array VMEM residency, no grid.
    # (A v7x 2-core channel split was considered but skipped: the kernel runs in a few
    #  microseconds and the cross-core FC gather costs more complexity than it saves.)
    outT = pl.pallas_call(
        kernel,
        out_shape=jax.ShapeDtypeStruct((CLASSES, B), jnp.float32),
        in_specs=[vmem] * 7,
        out_specs=vmem,
        scratch_shapes=[pltpu.VMEM((KERNEL_LENGTH * CPAD, t_out), jnp.float32)],
    )(x_pad, wc, bc, gamma, beta, wfct, bfct)
    return outT.T                                    # (B, CLASSES)


def reference_forward(x, params):
    """Pure-JAX reference mirroring the PyTorch module (NCHW convs)."""
    B, C, T = x.shape
    xin = x[:, None, :, :]                                  # (B, 1, C, T)
    w1 = params["w1"].reshape(N1, 1, C, 1)
    y = jax.lax.conv_general_dilated(xin, w1, (1, 1), "VALID",
                                     dimension_numbers=("NCHW", "OIHW", "NCHW"),
                                     precision=jax.lax.Precision.HIGHEST)
    y = y + params["b1"].reshape(1, N1, 1, 1)
    w2 = params["w2"].reshape(D * N1, 1, 1, KERNEL_LENGTH)
    y = jax.lax.conv_general_dilated(y, w2, (1, 1), "VALID",
                                     dimension_numbers=("NCHW", "OIHW", "NCHW"),
                                     feature_group_count=N1,
                                     precision=jax.lax.Precision.HIGHEST)
    y = y + params["b2"].reshape(1, D * N1, 1, 1)
    y = jnp.maximum(y, 0.0)
    mean = jnp.mean(y, axis=(0, 2, 3), keepdims=True)
    var = jnp.mean(jnp.square(y - mean), axis=(0, 2, 3), keepdims=True)
    y = (y - mean) * jax.lax.rsqrt(var + BN_EPS)
    y = y * params["gamma"].reshape(1, -1, 1, 1) + params["beta"].reshape(1, -1, 1, 1)
    y = jnp.mean(y, axis=(2, 3))                            # GAP + flatten -> (B, d*N1)
    logits = y @ params["wfc_t"] + params["bfc"]
    return jax.nn.softmax(logits, axis=1)


if __name__ == "__main__":
    B = 2
    key = jax.random.PRNGKey(0)
    ks = jax.random.split(key, 7)
    params = {
        "w1": jax.random.normal(ks[0], (N1, SAMPLE_CHANNEL), jnp.float32) * 0.3,
        "b1": jax.random.normal(ks[1], (1, N1), jnp.float32) * 0.1,
        "w2": jax.random.normal(ks[2], (D * N1, KERNEL_LENGTH), jnp.float32) * 0.1,
        "b2": jax.random.normal(ks[3], (1, D * N1), jnp.float32) * 0.1,
        "gamma": jnp.ones((1, D * N1), jnp.float32),        # BatchNorm affine init (weight=1)
        "beta": jnp.zeros((1, D * N1), jnp.float32),        # BatchNorm affine init (bias=0)
        "wfc_t": jax.random.normal(ks[4], (D * N1, CLASSES), jnp.float32) * 0.2,  # fc weight (pre-transposed)
        "bfc": jax.random.normal(ks[5], (1, CLASSES), jnp.float32) * 0.1,
    }
    x = jax.random.normal(ks[6], (B, SAMPLE_CHANNEL, SAMPLE_LENGTH), jnp.float32)

    out = jax.block_until_ready(pseudo_label_forward(x, params))
    ref = jax.block_until_ready(reference_forward(x, params))

    assert out.shape == (B, CLASSES)
    assert bool(jnp.all(jnp.isfinite(out)))
    assert bool(jnp.allclose(jnp.sum(out, axis=1), 1.0, atol=1e-4))
    assert bool(jnp.allclose(out, ref, atol=1e-2, rtol=1e-2))
    print("KERNEL_OK")
</pallas_src>

<mosaic_0001>
module attributes {stable_mosaic.version = 11 : i64} {
  func.func @pseudo_label_kernel(%arg0: memref<2x16x384xf32, #tpu.memory_space<vmem>>, %arg1: memref<20x1024xf32, #tpu.memory_space<vmem>>, %arg2: memref<20x1xf32, #tpu.memory_space<vmem>>, %arg3: memref<20x1xf32, #tpu.memory_space<vmem>>, %arg4: memref<20x1xf32, #tpu.memory_space<vmem>>, %arg5: memref<2x20xf32, #tpu.memory_space<vmem>>, %arg6: memref<2x1xf32, #tpu.memory_space<vmem>>, %arg7: memref<2x2xf32, #tpu.memory_space<vmem>>, %arg8: memref<1024x321xf32, #tpu.memory_space<vmem>>) attributes {dimension_semantics = [], scalar_prefetch = 0 : i64, scratch_operands = 1 : i64, tpu.core_type = #tpu.core_type<tc>} {
    %c0 = arith.constant 0 : index
    %c0_0 = arith.constant 0 : index
    %c0_1 = arith.constant 0 : index
    %0 = vector.load %arg0[%c0, %c0_0, %c0_1] : memref<2x16x384xf32, #tpu.memory_space<vmem>>, vector<1x16x321xf32>
    %1 = vector.shape_cast %0 : vector<1x16x321xf32> to vector<16x321xf32>
    %c0_2 = arith.constant 0 : index
    %c0_3 = arith.constant 0 : index
    %2 = vector.load %arg8[%c0_2, %c0_3] : memref<1024x321xf32, #tpu.memory_space<vmem>>, vector<16x321xf32>
    tpu.vector_store %arg8[%c0_2, %c0_3], %1 {strides = array<i32>} : memref<1024x321xf32, #tpu.memory_space<vmem>>, vector<16x321xf32>,
    %c0_4 = arith.constant 0 : index
    %c0_5 = arith.constant 0 : index
    %c1 = arith.constant 1 : index
    %3 = vector.load %arg0[%c0_4, %c0_5, %c1] : memref<2x16x384xf32, #tpu.memory_space<vmem>>, vector<1x16x321xf32>
    %4 = vector.shape_cast %3 : vector<1x16x321xf32> to vector<16x321xf32>
    %c16 = arith.constant 16 : index
    %c0_6 = arith.constant 0 : index
    %5 = vector.load %arg8[%c16, %c0_6] : memref<1024x321xf32, #tpu.memory_space<vmem>>, vector<16x321xf32>
    tpu.vector_store %arg8[%c16, %c0_6], %4 {strides = array<i32>} : memref<1024x321xf32, #tpu.memory_space<vmem>>, vector<16x321xf32>,
    %c0_7 = arith.constant 0 : index
    %c0_8 = arith.constant 0 : index
    %c2 = arith.constant 2 : index
    %6 = vector.load %arg0[%c0_7, %c0_8, %c2] : memref<2x16x384xf32, #tpu.memory_space<vmem>>, vector<1x16x321xf32>
    %7 = vector.shape_cast %6 : vector<1x16x321xf32> to vector<16x321xf32>
    %c32 = arith.constant 32 : index
    %c0_9 = arith.constant 0 : index
    %8 = vector.load %arg8[%c32, %c0_9] : memref<1024x321xf32, #tpu.memory_space<vmem>>, vector<16x321xf32>
    tpu.vector_store %arg8[%c32, %c0_9], %7 {strides = array<i32>} : memref<1024x321xf32, #tpu.memory_space<vmem>>, vector<16x321xf32>,
    %c0_10 = arith.constant 0 : index
    %c0_11 = arith.constant 0 : index
    %c3 = arith.constant 3 : index
    %9 = vector.load %arg0[%c0_10, %c0_11, %c3] : memref<2x16x384xf32, #tpu.memory_space<vmem>>, vector<1x16x321xf32>
    %10 = vector.shape_cast %9 : vector<1x16x321xf32> to vector<16x321xf32>
    %c48 = arith.constant 48 : index
    %c0_12 = arith.constant 0 : index
    %11 = vector.load %arg8[%c48, %c0_12] : memref<1024x321xf32, #tpu.memory_space<vmem>>, vector<16x321xf32>
    tpu.vector_store %arg8[%c48, %c0_12], %10 {strides = array<i32>} : memref<1024x321xf32, #tpu.memory_space<vmem>>, vector<16x321xf32>,
    %c0_13 = arith.constant 0 : index
    %c0_14 = arith.constant 0 : index
    %c4 = arith.constant 4 : index
    %12 = vector.load %arg0[%c0_13, %c0_14, %c4] : memref<2x16x384xf32, #tpu.memory_space<vmem>>, vector<1x16x321xf32>
    %13 = vector.shape_cast %12 : vector<1x16x321xf32> to vector<16x321xf32>
    %c64 = arith.constant 64 : index
    %c0_15 = arith.constant 0 : index
    %14 = vector.load %arg8[%c64, %c0_15] : memref<1024x321xf32, #tpu.memory_space<vmem>>, vector<16x321xf32>
    tpu.vector_store %arg8[%c64, %c0_15], %13 {strides = array<i32>} : memref<1024x321xf32, #tpu.memory_space<vmem>>, vector<16x321xf32>,
    %c0_16 = arith.constant 0 : index
    %c0_17 = arith.constant 0 : index
    %c5 = arith.constant 5 : index
    %15 = vector.load %arg0[%c0_16, %c0_17, %c5] : memref<2x16x384xf32, #tpu.memory_space<vmem>>, vector<1x16x321xf32>
    %16 = vector.shape_cast %15 : vector<1x16x321xf32> to vector<16x321xf32>
    %c80 = arith.constant 80 : index
    %c0_18 = arith.constant 0 : index
    %17 = vector.load %arg8[%c80, %c0_18] : memref<1024x321xf32, #tpu.memory_space<vmem>>, vector<16x321xf32>
    tpu.vector_store %arg8[%c80, %c0_18], %16 {strides = array<i32>} : memref<1024x321xf32, #tpu.memory_space<vmem>>, vector<16x321xf32>,
    %c0_19 = arith.constant 0 : index
    %c0_20 = arith.constant 0 : index
    %c6 = arith.constant 6 : index
    %18 = vector.load %arg0[%c0_19, %c0_20, %c6] : memref<2x16x384xf32, #tpu.memory_space<vmem>>, vector<1x16x321xf32>
    %19 = vector.shape_cast %18 : vector<1x16x321xf32> to vector<16x321xf32>
    %c96 = arith.constant 96 : index
    %c0_21 = arith.constant 0 : index
    %20 = vector.load %arg8[%c96, %c0_21] : memref<1024x321xf32, #tpu.memory_space<vmem>>, vector<16x321xf32>
    tpu.vector_store %arg8[%c96, %c0_21], %19 {strides = array<i32>} : memref<1024x321xf32, #tpu.memory_space<vmem>>, vector<16x321xf32>,
    %c0_22 = arith.constant 0 : index
    %c0_23 = arith.constant 0 : index
    %c7 = arith.constant 7 : index
    %21 = vector.load %arg0[%c0_22, %c0_23, %c7] : memref<2x16x384xf32, #tpu.memory_space<vmem>>, vector<1x16x321xf32>
    %22 = vector.shape_cast %21 : vector<1x16x321xf32> to vector<16x321xf32>
    %c112 = arith.constant 112 : index
    %c0_24 = arith.constant 0 : index
    %23 = vector.load %arg8[%c112, %c0_24] : memref<1024x321xf32, #tpu.memory_space<vmem>>, vector<16x321xf32>
    tpu.vector_store %arg8[%c112, %c0_24], %22 {strides = array<i32>} : memref<1024x321xf32, #tpu.memory_space<vmem>>, vector<16x321xf32>,
    %c0_25 = arith.constant 0 : index
    %c0_26 = arith.constant 0 : index
    %c8 = arith.constant 8 : index
    %24 = vector.load %arg0[%c0_25, %c0_26, %c8] : memref<2x16x384xf32, #tpu.memory_space<vmem>>, vector<1x16x321xf32>
    %25 = vector.shape_cast %24 : vector<1x16x321xf32> to vector<16x321xf32>
    %c128 = arith.constant 128 : index
    %c0_27 = arith.constant 0 : index
    %26 = vector.load %arg8[%c128, %c0_27] : memref<1024x321xf32, #tpu.memory_space<vmem>>, vector<16x321xf32>
    tpu.vector_store %arg8[%c128, %c0_27], %25 {strides = array<i32>} : memref<1024x321xf32, #tpu.memory_space<vmem>>, vector<16x321xf32>,
    %c0_28 = arith.constant 0 : index
    %c0_29 = arith.constant 0 : index
    %c9 = arith.constant 9 : index
    %27 = vector.load %arg0[%c0_28, %c0_29, %c9] : memref<2x16x384xf32, #tpu.memory_space<vmem>>, vector<1x16x321xf32>
    %28 = vector.shape_cast %27 : vector<1x16x321xf32> to vector<16x321xf32>
    %c144 = arith.constant 144 : index
    %c0_30 = arith.constant 0 : index
    %29 = vector.load %arg8[%c144, %c0_30] : memref<1024x321xf32, #tpu.memory_space<vmem>>, vector<16x321xf32>
    tpu.vector_store %arg8[%c144, %c0_30], %28 {strides = array<i32>} : memref<1024x321xf32, #tpu.memory_space<vmem>>, vector<16x321xf32>,
    %c0_31 = arith.constant 0 : index
    %c0_32 = arith.constant 0 : index
    %c10 = arith.constant 10 : index
    %30 = vector.load %arg0[%c0_31, %c0_32, %c10] : memref<2x16x384xf32, #tpu.memory_space<vmem>>, vector<1x16x321xf32>
    %31 = vector.shape_cast %30 : vector<1x16x321xf32> to vector<16x321xf32>
    %c160 = arith.constant 160 : index
    %c0_33 = arith.constant 0 : index
    %32 = vector.load %arg8[%c160, %c0_33] : memref<1024x321xf32, #tpu.memory_space<vmem>>, vector<16x321xf32>
    tpu.vector_store %arg8[%c160, %c0_33], %31 {strides = array<i32>} : memref<1024x321xf32, #tpu.memory_space<vmem>>, vector<16x321xf32>,
    %c0_34 = arith.constant 0 : index
    %c0_35 = arith.constant 0 : index
    %c11 = arith.constant 11 : index
    %33 = vector.load %arg0[%c0_34, %c0_35, %c11] : memref<2x16x384xf32, #tpu.memory_space<vmem>>, vector<1x16x321xf32>
    %34 = vector.shape_cast %33 : vector<1x16x321xf32> to vector<16x321xf32>
    %c176 = arith.constant 176 : index
    %c0_36 = arith.constant 0 : index
    %35 = vector.load %arg8[%c176, %c0_36] : memref<1024x321xf32, #tpu.memory_space<vmem>>, vector<16x321xf32>
    tpu.vector_store %arg8[%c176, %c0_36], %34 {strides = array<i32>} : memref<1024x321xf32, #tpu.memory_space<vmem>>, vector<16x321xf32>,
    %c0_37 = arith.constant 0 : index
    %c0_38 = arith.constant 0 : index
    %c12 = arith.constant 12 : index
    %36 = vector.load %arg0[%c0_37, %c0_38, %c12] : memref<2x16x384xf32, #tpu.memory_space<vmem>>, vector<1x16x321xf32>
    %37 = vector.shape_cast %36 : vector<1x16x321xf32> to vector<16x321xf32>
    %c192 = arith.constant 192 : index
    %c0_39 = arith.constant 0 : index
    %38 = vector.load %arg8[%c192, %c0_39] : memref<1024x321xf32, #tpu.memory_space<vmem>>, vector<16x321xf32>
    tpu.vector_store %arg8[%c192, %c0_39], %37 {strides = array<i32>} : memref<1024x321xf32, #tpu.memory_space<vmem>>, vector<16x321xf32>,
    %c0_40 = arith.constant 0 : index
    %c0_41 = arith.constant 0 : index
    %c13 = arith.constant 13 : index
    %39 = vector.load %arg0[%c0_40, %c0_41, %c13] : memref<2x16x384xf32, #tpu.memory_space<vmem>>, vector<1x16x321xf32>
    %40 = vector.shape_cast %39 : vector<1x16x321xf32> to vector<16x321xf32>
    %c208 = arith.constant 208 : index
    %c0_42 = arith.constant 0 : index
    %41 = vector.load %arg8[%c208, %c0_42] : memref<1024x321xf32, #tpu.memory_space<vmem>>, vector<16x321xf32>
    tpu.vector_store %arg8[%c208, %c0_42], %40 {strides = array<i32>} : memref<1024x321xf32, #tpu.memory_space<vmem>>, vector<16x321xf32>,
    %c0_43 = arith.constant 0 : index
    %c0_44 = arith.constant 0 : index
    %c14 = arith.constant 14 : index
    %42 = vector.load %arg0[%c0_43, %c0_44, %c14] : memref<2x16x384xf32, #tpu.memory_space<vmem>>, vector<1x16x321xf32>
    %43 = vector.shape_cast %42 : vector<1x16x321xf32> to vector<16x321xf32>
    %c224 = arith.constant 224 : index
    %c0_45 = arith.constant 0 : index
    %44 = vector.load %arg8[%c224, %c0_45] : memref<1024x321xf32, #tpu.memory_space<vmem>>, vector<16x321xf32>
    tpu.vector_store %arg8[%c224, %c0_45], %43 {strides = array<i32>} : memref<1024x321xf32, #tpu.memory_space<vmem>>, vector<16x321xf32>,
    %c0_46 = arith.constant 0 : index
    %c0_47 = arith.constant 0 : index
    %c15 = arith.constant 15 : index
    %45 = vector.load %arg0[%c0_46, %c0_47, %c15] : memref<2x16x384xf32, #tpu.memory_space<vmem>>, vector<1x16x321xf32>
    %46 = vector.shape_cast %45 : vector<1x16x321xf32> to vector<16x321xf32>
    %c240 = arith.constant 240 : index
    %c0_48 = arith.constant 0 : index
    %47 = vector.load %arg8[%c240, %c0_48] : memref<1024x321xf32, #tpu.memory_space<vmem>>, vector<16x321xf32>
    tpu.vector_store %arg8[%c240, %c0_48], %46 {strides = array<i32>} : memref<1024x321xf32, #tpu.memory_space<vmem>>, vector<16x321xf32>,
    %c0_49 = arith.constant 0 : index
    %c0_50 = arith.constant 0 : index
    %c16_51 = arith.constant 16 : index
    %48 = vector.load %arg0[%c0_49, %c0_50, %c16_51] : memref<2x16x384xf32, #tpu.memory_space<vmem>>, vector<1x16x321xf32>
    %49 = vector.shape_cast %48 : vector<1x16x321xf32> to vector<16x321xf32>
    %c256 = arith.constant 256 : index
    %c0_52 = arith.constant 0 : index
    %50 = vector.load %arg8[%c256, %c0_52] : memref<1024x321xf32, #tpu.memory_space<vmem>>, vector<16x321xf32>
    tpu.vector_store %arg8[%c256, %c0_52], %49 {strides = array<i32>} : memref<1024x321xf32, #tpu.memory_space<vmem>>, vector<16x321xf32>,
    %c0_53 = arith.constant 0 : index
    %c0_54 = arith.constant 0 : index
    %c17 = arith.constant 17 : index
    %51 = vector.load %arg0[%c0_53, %c0_54, %c17] : memref<2x16x384xf32, #tpu.memory_space<vmem>>, vector<1x16x321xf32>
    %52 = vector.shape_cast %51 : vector<1x16x321xf32> to vector<16x321xf32>
    %c272 = arith.constant 272 : index
    %c0_55 = arith.constant 0 : index
    %53 = vector.load %arg8[%c272, %c0_55] : memref<1024x321xf32, #tpu.memory_space<vmem>>, vector<16x321xf32>
    tpu.vector_store %arg8[%c272, %c0_55], %52 {strides = array<i32>} : memref<1024x321xf32, #tpu.memory_space<vmem>>, vector<16x321xf32>,
    %c0_56 = arith.constant 0 : index
    %c0_57 = arith.constant 0 : index
    %c18 = arith.constant 18 : index
    %54 = vector.load %arg0[%c0_56, %c0_57, %c18] : memref<2x16x384xf32, #tpu.memory_space<vmem>>, vector<1x16x321xf32>
    %55 = vector.shape_cast %54 : vector<1x16x321xf32> to vector<16x321xf32>
    %c288 = arith.constant 288 : index
    %c0_58 = arith.constant 0 : index
    %56 = vector.load %arg8[%c288, %c0_58] : memref<1024x321xf32, #tpu.memory_space<vmem>>, vector<16x321xf32>
    tpu.vector_store %arg8[%c288, %c0_58], %55 {strides = array<i32>} : memref<1024x321xf32, #tpu.memory_space<vmem>>, vector<16x321xf32>,
    %c0_59 = arith.constant 0 : index
    %c0_60 = arith.constant 0 : index
    %c19 = arith.constant 19 : index
    %57 = vector.load %arg0[%c0_59, %c0_60, %c19] : memref<2x16x384xf32, #tpu.memory_space<vmem>>, vector<1x16x321xf32>
    %58 = vector.shape_cast %57 : vector<1x16x321xf32> to vector<16x321xf32>
    %c304 = arith.constant 304 : index
    %c0_61 = arith.constant 0 : index
    %59 = vector.load %arg8[%c304, %c0_61] : memref<1024x321xf32, #tpu.memory_space<vmem>>, vector<16x321xf32>
    tpu.vector_store %arg8[%c304, %c0_61], %58 {strides = array<i32>} : memref<1024x321xf32, #tpu.memory_space<vmem>>, vector<16x321xf32>,
    %c0_62 = arith.constant 0 : index
    %c0_63 = arith.constant 0 : index
    %c20 = arith.constant 20 : index
    %60 = vector.load %arg0[%c0_62, %c0_63, %c20] : memref<2x16x384xf32, #tpu.memory_space<vmem>>, vector<1x16x321xf32>
    %61 = vector.shape_cast %60 : vector<1x16x321xf32> to vector<16x321xf32>
    %c320 = arith.constant 320 : index
    %c0_64 = arith.constant 0 : index
    %62 = vector.load %arg8[%c320, %c0_64] : memref<1024x321xf32, #tpu.memory_space<vmem>>, vector<16x321xf32>
    tpu.vector_store %arg8[%c320, %c0_64], %61 {strides = array<i32>} : memref<1024x321xf32, #tpu.memory_space<vmem>>, vector<16x321xf32>,
    %c0_65 = arith.constant 0 : index
    %c0_66 = arith.constant 0 : index
    %c21 = arith.constant 21 : index
    %63 = vector.load %arg0[%c0_65, %c0_66, %c21] : memref<2x16x384xf32, #tpu.memory_space<vmem>>, vector<1x16x321xf32>
    %64 = vector.shape_cast %63 : vector<1x16x321xf32> to vector<16x321xf32>
    %c336 = arith.constant 336 : index
    %c0_67 = arith.constant 0 : index
    %65 = vector.load %arg8[%c336, %c0_67] : memref<1024x321xf32, #tpu.memory_space<vmem>>, vector<16x321xf32>
    tpu.vector_store %arg8[%c336, %c0_67], %64 {strides = array<i32>} : memref<1024x321xf32, #tpu.memory_space<vmem>>, vector<16x321xf32>,
    %c0_68 = arith.constant 0 : index
    %c0_69 = arith.constant 0 : index
    %c22 = arith.constant 22 : index
    %66 = vector.load %arg0[%c0_68, %c0_69, %c22] : memref<2x16x384xf32, #tpu.memory_space<vmem>>, vector<1x16x321xf32>
    %67 = vector.shape_cast %66 : vector<1x16x321xf32> to vector<16x321xf32>
    %c352 = arith.constant 352 : index
    %c0_70 = arith.constant 0 : index
    %68 = vector.load %arg8[%c352, %c0_70] : memref<1024x321xf32, #tpu.memory_space<vmem>>, vector<16x321xf32>
    tpu.vector_store %arg8[%c352, %c0_70], %67 {strides = array<i32>} : memref<1024x321xf32, #tpu.memory_space<vmem>>, vector<16x321xf32>,
    %c0_71 = arith.constant 0 : index
    %c0_72 = arith.constant 0 : index
    %c23 = arith.constant 23 : index
    %69 = vector.load %arg0[%c0_71, %c0_72, %c23] : memref<2x16x384xf32, #tpu.memory_space<vmem>>, vector<1x16x321xf32>
    %70 = vector.shape_cast %69 : vector<1x16x321xf32> to vector<16x321xf32>
    %c368 = arith.constant 368 : index
    %c0_73 = arith.constant 0 : index
    %71 = vector.load %arg8[%c368, %c0_73] : memref<1024x321xf32, #tpu.memory_space<vmem>>, vector<16x321xf32>
    tpu.vector_store %arg8[%c368, %c0_73], %70 {strides = array<i32>} : memref<1024x321xf32, #tpu.memory_space<vmem>>, vector<16x321xf32>,
    %c0_74 = arith.constant 0 : index
    %c0_75 = arith.constant 0 : index
    %c24 = arith.constant 24 : index
    %72 = vector.load %arg0[%c0_74, %c0_75, %c24] : memref<2x16x384xf32, #tpu.memory_space<vmem>>, vector<1x16x321xf32>
    %73 = vector.shape_cast %72 : vector<1x16x321xf32> to vector<16x321xf32>
    %c384 = arith.constant 384 : index
    %c0_76 = arith.constant 0 : index
    %74 = vector.load %arg8[%c384, %c0_76] : memref<1024x321xf32, #tpu.memory_space<vmem>>, vector<16x321xf32>
    tpu.vector_store %arg8[%c384, %c0_76], %73 {strides = array<i32>} : memref<1024x321xf32, #tpu.memory_space<vmem>>, vector<16x321xf32>,
    %c0_77 = arith.constant 0 : index
    %c0_78 = arith.constant 0 : index
    %c25 = arith.constant 25 : index
    %75 = vector.load %arg0[%c0_77, %c0_78, %c25] : memref<2x16x384xf32, #tpu.memory_space<vmem>>, vector<1x16x321xf32>
    %76 = vector.shape_cast %75 : vector<1x16x321xf32> to vector<16x321xf32>
    %c400 = arith.constant 400 : index
    %c0_79 = arith.constant 0 : index
    %77 = vector.load %arg8[%c400, %c0_79] : memref<1024x321xf32, #tpu.memory_space<vmem>>, vector<16x321xf32>
    tpu.vector_store %arg8[%c400, %c0_79], %76 {strides = array<i32>} : memref<1024x321xf32, #tpu.memory_space<vmem>>, vector<16x321xf32>,
    %c0_80 = arith.constant 0 : index
    %c0_81 = arith.constant 0 : index
    %c26 = arith.constant 26 : index
    %78 = vector.load %arg0[%c0_80, %c0_81, %c26] : memref<2x16x384xf32, #tpu.memory_space<vmem>>, vector<1x16x321xf32>
    %79 = vector.shape_cast %78 : vector<1x16x321xf32> to vector<16x321xf32>
    %c416 = arith.constant 416 : index
    %c0_82 = arith.constant 0 : index
    %80 = vector.load %arg8[%c416, %c0_82] : memref<1024x321xf32, #tpu.memory_space<vmem>>, vector<16x321xf32>
    tpu.vector_store %arg8[%c416, %c0_82], %79 {strides = array<i32>} : memref<1024x321xf32, #tpu.memory_space<vmem>>, vector<16x321xf32>,
    %c0_83 = arith.constant 0 : index
    %c0_84 = arith.constant 0 : index
    %c27 = arith.constant 27 : index
    %81 = vector.load %arg0[%c0_83, %c0_84, %c27] : memref<2x16x384xf32, #tpu.memory_space<vmem>>, vector<1x16x321xf32>
    %82 = vector.shape_cast %81 : vector<1x16x321xf32> to vector<16x321xf32>
    %c432 = arith.constant 432 : index
    %c0_85 = arith.constant 0 : index
    %83 = vector.load %arg8[%c432, %c0_85] : memref<1024x321xf32, #tpu.memory_space<vmem>>, vector<16x321xf32>
    tpu.vector_store %arg8[%c432, %c0_85], %82 {strides = array<i32>} : memref<1024x321xf32, #tpu.memory_space<vmem>>, vector<16x321xf32>,
    %c0_86 = arith.constant 0 : index
    %c0_87 = arith.constant 0 : index
    %c28 = arith.constant 28 : index
    %84 = vector.load %arg0[%c0_86, %c0_87, %c28] : memref<2x16x384xf32, #tpu.memory_space<vmem>>, vector<1x16x321xf32>
    %85 = vector.shape_cast %84 : vector<1x16x321xf32> to vector<16x321xf32>
    %c448 = arith.constant 448 : index
    %c0_88 = arith.constant 0 : index
    %86 = vector.load %arg8[%c448, %c0_88] : memref<1024x321xf32, #tpu.memory_space<vmem>>, vector<16x321xf32>
    tpu.vector_store %arg8[%c448, %c0_88], %85 {strides = array<i32>} : memref<1024x321xf32, #tpu.memory_space<vmem>>, vector<16x321xf32>,
    %c0_89 = arith.constant 0 : index
    %c0_90 = arith.constant 0 : index
    %c29 = arith.constant 29 : index
    %87 = vector.load %arg0[%c0_89, %c0_90, %c29] : memref<2x16x384xf32, #tpu.memory_space<vmem>>, vector<1x16x321xf32>
    %88 = vector.shape_cast %87 : vector<1x16x321xf32> to vector<16x321xf32>
    %c464 = arith.constant 464 : index
    %c0_91 = arith.constant 0 : index
    %89 = vector.load %arg8[%c464, %c0_91] : memref<1024x321xf32, #tpu.memory_space<vmem>>, vector<16x321xf32>
    tpu.vector_store %arg8[%c464, %c0_91], %88 {strides = array<i32>} : memref<1024x321xf32, #tpu.memory_space<vmem>>, vector<16x321xf32>,
    %c0_92 = arith.constant 0 : index
    %c0_93 = arith.constant 0 : index
    %c30 = arith.constant 30 : index
    %90 = vector.load %arg0[%c0_92, %c0_93, %c30] : memref<2x16x384xf32, #tpu.memory_space<vmem>>, vector<1x16x321xf32>
    %91 = vector.shape_cast %90 : vector<1x16x321xf32> to vector<16x321xf32>
    %c480 = arith.constant 480 : index
    %c0_94 = arith.constant 0 : index
    %92 = vector.load %arg8[%c480, %c0_94] : memref<1024x321xf32, #tpu.memory_space<vmem>>, vector<16x321xf32>
    tpu.vector_store %arg8[%c480, %c0_94], %91 {strides = array<i32>} : memref<1024x321xf32, #tpu.memory_space<vmem>>, vector<16x321xf32>,
    %c0_95 = arith.constant 0 : index
    %c0_96 = arith.constant 0 : index
    %c31 = arith.constant 31 : index
    %93 = vector.load %arg0[%c0_95, %c0_96, %c31] : memref<2x16x384xf32, #tpu.memory_space<vmem>>, vector<1x16x321xf32>
    %94 = vector.shape_cast %93 : vector<1x16x321xf32> to vector<16x321xf32>
    %c496 = arith.constant 496 : index
    %c0_97 = arith.constant 0 : index
    %95 = vector.load %arg8[%c496, %c0_97] : memref<1024x321xf32, #tpu.memory_space<vmem>>, vector<16x321xf32>
    tpu.vector_store %arg8[%c496, %c0_97], %94 {strides = array<i32>} : memref<1024x321xf32, #tpu.memory_space<vmem>>, vector<16x321xf32>,
    %c0_98 = arith.constant 0 : index
    %c0_99 = arith.constant 0 : index
    %c32_100 = arith.constant 32 : index
    %96 = vector.load %arg0[%c0_98, %c0_99, %c32_100] : memref<2x16x384xf32, #tpu.memory_space<vmem>>, vector<1x16x321xf32>
    %97 = vector.shape_cast %96 : vector<1x16x321xf32> to vector<16x321xf32>
    %c512 = arith.constant 512 : index
    %c0_101 = arith.constant 0 : index
    %98 = vector.load %arg8[%c512, %c0_101] : memref<1024x321xf32, #tpu.memory_space<vmem>>, vector<16x321xf32>
    tpu.vector_store %arg8[%c512, %c0_101], %97 {strides = array<i32>} : memref<1024x321xf32, #tpu.memory_space<vmem>>, vector<16x321xf32>,
    %c0_102 = arith.constant 0 : index
    %c0_103 = arith.constant 0 : index
    %c33 = arith.constant 33 : index
    %99 = vector.load %arg0[%c0_102, %c0_103, %c33] : memref<2x16x384xf32, #tpu.memory_space<vmem>>, vector<1x16x321xf32>
    %100 = vector.shape_cast %99 : vector<1x16x321xf32> to vector<16x321xf32>
    %c528 = arith.constant 528 : index
    %c0_104 = arith.constant 0 : index
    %101 = vector.load %arg8[%c528, %c0_104] : memref<1024x321xf32, #tpu.memory_space<vmem>>, vector<16x321xf32>
    tpu.vector_store %arg8[%c528, %c0_104], %100 {strides = array<i32>} : memref<1024x321xf32, #tpu.memory_space<vmem>>, vector<16x321xf32>,
    %c0_105 = arith.constant 0 : index
    %c0_106 = arith.constant 0 : index
    %c34 = arith.constant 34 : index
    %102 = vector.load %arg0[%c0_105, %c0_106, %c34] : memref<2x16x384xf32, #tpu.memory_space<vmem>>, vector<1x16x321xf32>
    %103 = vector.shape_cast %102 : vector<1x16x321xf32> to vector<16x321xf32>
    %c544 = arith.constant 544 : index
    %c0_107 = arith.constant 0 : index
    %104 = vector.load %arg8[%c544, %c0_107] : memref<1024x321xf32, #tpu.memory_space<vmem>>, vector<16x321xf32>
    tpu.vector_store %arg8[%c544, %c0_107], %103 {strides = array<i32>} : memref<1024x321xf32, #tpu.memory_space<vmem>>, vector<16x321xf32>,
    %c0_108 = arith.constant 0 : index
    %c0_109 = arith.constant 0 : index
    %c35 = arith.constant 35 : index
    %105 = vector.load %arg0[%c0_108, %c0_109, %c35] : memref<2x16x384xf32, #tpu.memory_space<vmem>>, vector<1x16x321xf32>
    %106 = vector.shape_cast %105 : vector<1x16x321xf32> to vector<16x321xf32>
    %c560 = arith.constant 560 : index
    %c0_110 = arith.constant 0 : index
    %107 = vector.load %arg8[%c560, %c0_110] : memref<1024x321xf32, #tpu.memory_space<vmem>>, vector<16x321xf32>
    tpu.vector_store %arg8[%c560, %c0_110], %106 {strides = array<i32>} : memref<1024x321xf32, #tpu.memory_space<vmem>>, vector<16x321xf32>,
    %c0_111 = arith.constant 0 : index
    %c0_112 = arith.constant 0 : index
    %c36 = arith.constant 36 : index
    %108 = vector.load %arg0[%c0_111, %c0_112, %c36] : memref<2x16x384xf32, #tpu.memory_space<vmem>>, vector<1x16x321xf32>
    %109 = vector.shape_cast %108 : vector<1x16x321xf32> to vector<16x321xf32>
    %c576 = arith.constant 576 : index
    %c0_113 = arith.constant 0 : index
    %110 = vector.load %arg8[%c576, %c0_113] : memref<1024x321xf32, #tpu.memory_space<vmem>>, vector<16x321xf32>
    tpu.vector_store %arg8[%c576, %c0_113], %109 {strides = array<i32>} : memref<1024x321xf32, #tpu.memory_space<vmem>>, vector<16x321xf32>,
    %c0_114 = arith.constant 0 : index
    %c0_115 = arith.constant 0 : index
    %c37 = arith.constant 37 : index
    %111 = vector.load %arg0[%c0_114, %c0_115, %c37] : memref<2x16x384xf32, #tpu.memory_space<vmem>>, vector<1x16x321xf32>
    %112 = vector.shape_cast %111 : vector<1x16x321xf32> to vector<16x321xf32>
    %c592 = arith.constant 592 : index
    %c0_116 = arith.constant 0 : index
    %113 = vector.load %arg8[%c592, %c0_116] : memref<1024x321xf32, #tpu.memory_space<vmem>>, vector<16x321xf32>
    tpu.vector_store %arg8[%c592, %c0_116], %112 {strides = array<i32>} : memref<1024x321xf32, #tpu.memory_space<vmem>>, vector<16x321xf32>,
    %c0_117 = arith.constant 0 : index
    %c0_118 = arith.constant 0 : index
    %c38 = arith.constant 38 : index
    %114 = vector.load %arg0[%c0_117, %c0_118, %c38] : memref<2x16x384xf32, #tpu.memory_space<vmem>>, vector<1x16x321xf32>
    %115 = vector.shape_cast %114 : vector<1x16x321xf32> to vector<16x321xf32>
    %c608 = arith.constant 608 : index
    %c0_119 = arith.constant 0 : index
    %116 = vector.load %arg8[%c608, %c0_119] : memref<1024x321xf32, #tpu.memory_space<vmem>>, vector<16x321xf32>
    tpu.vector_store %arg8[%c608, %c0_119], %115 {strides = array<i32>} : memref<1024x321xf32, #tpu.memory_space<vmem>>, vector<16x321xf32>,
    %c0_120 = arith.constant 0 : index
    %c0_121 = arith.constant 0 : index
    %c39 = arith.constant 39 : index
    %117 = vector.load %arg0[%c0_120, %c0_121, %c39] : memref<2x16x384xf32, #tpu.memory_space<vmem>>, vector<1x16x321xf32>
    %118 = vector.shape_cast %117 : vector<1x16x321xf32> to vector<16x321xf32>
    %c624 = arith.constant 624 : index
    %c0_122 = arith.constant 0 : index
    %119 = vector.load %arg8[%c624, %c0_122] : memref<1024x321xf32, #tpu.memory_space<vmem>>, vector<16x321xf32>
    tpu.vector_store %arg8[%c624, %c0_122], %118 {strides = array<i32>} : memref<1024x321xf32, #tpu.memory_space<vmem>>, vector<16x321xf32>,
    %c0_123 = arith.constant 0 : index
    %c0_124 = arith.constant 0 : index
    %c40 = arith.constant 40 : index
    %120 = vector.load %arg0[%c0_123, %c0_124, %c40] : memref<2x16x384xf32, #tpu.memory_space<vmem>>, vector<1x16x321xf32>
    %121 = vector.shape_cast %120 : vector<1x16x321xf32> to vector<16x321xf32>
    %c640 = arith.constant 640 : index
    %c0_125 = arith.constant 0 : index
    %122 = vector.load %arg8[%c640, %c0_125] : memref<1024x321xf32, #tpu.memory_space<vmem>>, vector<16x321xf32>
    tpu.vector_store %arg8[%c640, %c0_125], %121 {strides = array<i32>} : memref<1024x321xf32, #tpu.memory_space<vmem>>, vector<16x321xf32>,
    %c0_126 = arith.constant 0 : index
    %c0_127 = arith.constant 0 : index
    %c41 = arith.constant 41 : index
    %123 = vector.load %arg0[%c0_126, %c0_127, %c41] : memref<2x16x384xf32, #tpu.memory_space<vmem>>, vector<1x16x321xf32>
    %124 = vector.shape_cast %123 : vector<1x16x321xf32> to vector<16x321xf32>
    %c656 = arith.constant 656 : index
    %c0_128 = arith.constant 0 : index
    %125 = vector.load %arg8[%c656, %c0_128] : memref<1024x321xf32, #tpu.memory_space<vmem>>, vector<16x321xf32>
    tpu.vector_store %arg8[%c656, %c0_128], %124 {strides = array<i32>} : memref<1024x321xf32, #tpu.memory_space<vmem>>, vector<16x321xf32>,
    %c0_129 = arith.constant 0 : index
    %c0_130 = arith.constant 0 : index
    %c42 = arith.constant 42 : index
    %126 = vector.load %arg0[%c0_129, %c0_130, %c42] : memref<2x16x384xf32, #tpu.memory_space<vmem>>, vector<1x16x321xf32>
    %127 = vector.shape_cast %126 : vector<1x16x321xf32> to vector<16x321xf32>
    %c672 = arith.constant 672 : index
    %c0_131 = arith.constant 0 : index
    %128 = vector.load %arg8[%c672, %c0_131] : memref<1024x321xf32, #tpu.memory_space<vmem>>, vector<16x321xf32>
    tpu.vector_store %arg8[%c672, %c0_131], %127 {strides = array<i32>} : memref<1024x321xf32, #tpu.memory_space<vmem>>, vector<16x321xf32>,
    %c0_132 = arith.constant 0 : index
    %c0_133 = arith.constant 0 : index
    %c43 = arith.constant 43 : index
    %129 = vector.load %arg0[%c0_132, %c0_133, %c43] : memref<2x16x384xf32, #tpu.memory_space<vmem>>, vector<1x16x321xf32>
    %130 = vector.shape_cast %129 : vector<1x16x321xf32> to vector<16x321xf32>
    %c688 = arith.constant 688 : index
    %c0_134 = arith.constant 0 : index
    %131 = vector.load %arg8[%c688, %c0_134] : memref<1024x321xf32, #tpu.memory_space<vmem>>, vector<16x321xf32>
    tpu.vector_store %arg8[%c688, %c0_134], %130 {strides = array<i32>} : memref<1024x321xf32, #tpu.memory_space<vmem>>, vector<16x321xf32>,
    %c0_135 = arith.constant 0 : index
    %c0_136 = arith.constant 0 : index
    %c44 = arith.constant 44 : index
    %132 = vector.load %arg0[%c0_135, %c0_136, %c44] : memref<2x16x384xf32, #tpu.memory_space<vmem>>, vector<1x16x321xf32>
    %133 = vector.shape_cast %132 : vector<1x16x321xf32> to vector<16x321xf32>
    %c704 = arith.constant 704 : index
    %c0_137 = arith.constant 0 : index
    %134 = vector.load %arg8[%c704, %c0_137] : memref<1024x321xf32, #tpu.memory_space<vmem>>, vector<16x321xf32>
    tpu.vector_store %arg8[%c704, %c0_137], %133 {strides = array<i32>} : memref<1024x321xf32, #tpu.memory_space<vmem>>, vector<16x321xf32>,
    %c0_138 = arith.constant 0 : index
    %c0_139 = arith.constant 0 : index
    %c45 = arith.constant 45 : index
    %135 = vector.load %arg0[%c0_138, %c0_139, %c45] : memref<2x16x384xf32, #tpu.memory_space<vmem>>, vector<1x16x321xf32>
    %136 = vector.shape_cast %135 : vector<1x16x321xf32> to vector<16x321xf32>
    %c720 = arith.constant 720 : index
    %c0_140 = arith.constant 0 : index
    %137 = vector.load %arg8[%c720, %c0_140] : memref<1024x321xf32, #tpu.memory_space<vmem>>, vector<16x321xf32>
    tpu.vector_store %arg8[%c720, %c0_140], %136 {strides = array<i32>} : memref<1024x321xf32, #tpu.memory_space<vmem>>, vector<16x321xf32>,
    %c0_141 = arith.constant 0 : index
    %c0_142 = arith.constant 0 : index
    %c46 = arith.constant 46 : index
    %138 = vector.load %arg0[%c0_141, %c0_142, %c46] : memref<2x16x384xf32, #tpu.memory_space<vmem>>, vector<1x16x321xf32>
    %139 = vector.shape_cast %138 : vector<1x16x321xf32> to vector<16x321xf32>
    %c736 = arith.constant 736 : index
    %c0_143 = arith.constant 0 : index
    %140 = vector.load %arg8[%c736, %c0_143] : memref<1024x321xf32, #tpu.memory_space<vmem>>, vector<16x321xf32>
    tpu.vector_store %arg8[%c736, %c0_143], %139 {strides = array<i32>} : memref<1024x321xf32, #tpu.memory_space<vmem>>, vector<16x321xf32>,
    %c0_144 = arith.constant 0 : index
    %c0_145 = arith.constant 0 : index
    %c47 = arith.constant 47 : index
    %141 = vector.load %arg0[%c0_144, %c0_145, %c47] : memref<2x16x384xf32, #tpu.memory_space<vmem>>, vector<1x16x321xf32>
    %142 = vector.shape_cast %141 : vector<1x16x321xf32> to vector<16x321xf32>
    %c752 = arith.constant 752 : index
    %c0_146 = arith.constant 0 : index
    %143 = vector.load %arg8[%c752, %c0_146] : memref<1024x321xf32, #tpu.memory_space<vmem>>, vector<16x321xf32>
    tpu.vector_store %arg8[%c752, %c0_146], %142 {strides = array<i32>} : memref<1024x321xf32, #tpu.memory_space<vmem>>, vector<16x321xf32>,
    %c0_147 = arith.constant 0 : index
    %c0_148 = arith.constant 0 : index
    %c48_149 = arith.constant 48 : index
    %144 = vector.load %arg0[%c0_147, %c0_148, %c48_149] : memref<2x16x384xf32, #tpu.memory_space<vmem>>, vector<1x16x321xf32>
    %145 = vector.shape_cast %144 : vector<1x16x321xf32> to vector<16x321xf32>
    %c768 = arith.constant 768 : index
    %c0_150 = arith.constant 0 : index
    %146 = vector.load %arg8[%c768, %c0_150] : memref<1024x321xf32, #tpu.memory_space<vmem>>, vector<16x321xf32>
    tpu.vector_store %arg8[%c768, %c0_150], %145 {strides = array<i32>} : memref<1024x321xf32, #tpu.memory_space<vmem>>, vector<16x321xf32>,
    %c0_151 = arith.constant 0 : index
    %c0_152 = arith.constant 0 : index
    %c49 = arith.constant 49 : index
    %147 = vector.load %arg0[%c0_151, %c0_152, %c49] : memref<2x16x384xf32, #tpu.memory_space<vmem>>, vector<1x16x321xf32>
    %148 = vector.shape_cast %147 : vector<1x16x321xf32> to vector<16x321xf32>
    %c784 = arith.constant 784 : index
    %c0_153 = arith.constant 0 : index
    %149 = vector.load %arg8[%c784, %c0_153] : memref<1024x321xf32, #tpu.memory_space<vmem>>, vector<16x321xf32>
    tpu.vector_store %arg8[%c784, %c0_153], %148 {strides = array<i32>} : memref<1024x321xf32, #tpu.memory_space<vmem>>, vector<16x321xf32>,
    %c0_154 = arith.constant 0 : index
    %c0_155 = arith.constant 0 : index
    %c50 = arith.constant 50 : index
    %150 = vector.load %arg0[%c0_154, %c0_155, %c50] : memref<2x16x384xf32, #tpu.memory_space<vmem>>, vector<1x16x321xf32>
    %151 = vector.shape_cast %150 : vector<1x16x321xf32> to vector<16x321xf32>
    %c800 = arith.constant 800 : index
    %c0_156 = arith.constant 0 : index
    %152 = vector.load %arg8[%c800, %c0_156] : memref<1024x321xf32, #tpu.memory_space<vmem>>, vector<16x321xf32>
    tpu.vector_store %arg8[%c800, %c0_156], %151 {strides = array<i32>} : memref<1024x321xf32, #tpu.memory_space<vmem>>, vector<16x321xf32>,
    %c0_157 = arith.constant 0 : index
    %c0_158 = arith.constant 0 : index
    %c51 = arith.constant 51 : index
    %153 = vector.load %arg0[%c0_157, %c0_158, %c51] : memref<2x16x384xf32, #tpu.memory_space<vmem>>, vector<1x16x321xf32>
    %154 = vector.shape_cast %153 : vector<1x16x321xf32> to vector<16x321xf32>
    %c816 = arith.constant 816 : index
    %c0_159 = arith.constant 0 : index
    %155 = vector.load %arg8[%c816, %c0_159] : memref<1024x321xf32, #tpu.memory_space<vmem>>, vector<16x321xf32>
    tpu.vector_store %arg8[%c816, %c0_159], %154 {strides = array<i32>} : memref<1024x321xf32, #tpu.memory_space<vmem>>, vector<16x321xf32>,
    %c0_160 = arith.constant 0 : index
    %c0_161 = arith.constant 0 : index
    %c52 = arith.constant 52 : index
    %156 = vector.load %arg0[%c0_160, %c0_161, %c52] : memref<2x16x384xf32, #tpu.memory_space<vmem>>, vector<1x16x321xf32>
    %157 = vector.shape_cast %156 : vector<1x16x321xf32> to vector<16x321xf32>
    %c832 = arith.constant 832 : index
    %c0_162 = arith.constant 0 : index
    %158 = vector.load %arg8[%c832, %c0_162] : memref<1024x321xf32, #tpu.memory_space<vmem>>, vector<16x321xf32>
    tpu.vector_store %arg8[%c832, %c0_162], %157 {strides = array<i32>} : memref<1024x321xf32, #tpu.memory_space<vmem>>, vector<16x321xf32>,
    %c0_163 = arith.constant 0 : index
    %c0_164 = arith.constant 0 : index
    %c53 = arith.constant 53 : index
    %159 = vector.load %arg0[%c0_163, %c0_164, %c53] : memref<2x16x384xf32, #tpu.memory_space<vmem>>, vector<1x16x321xf32>
    %160 = vector.shape_cast %159 : vector<1x16x321xf32> to vector<16x321xf32>
    %c848 = arith.constant 848 : index
    %c0_165 = arith.constant 0 : index
    %161 = vector.load %arg8[%c848, %c0_165] : memref<1024x321xf32, #tpu.memory_space<vmem>>, vector<16x321xf32>
    tpu.vector_store %arg8[%c848, %c0_165], %160 {strides = array<i32>} : memref<1024x321xf32, #tpu.memory_space<vmem>>, vector<16x321xf32>,
    %c0_166 = arith.constant 0 : index
    %c0_167 = arith.constant 0 : index
    %c54 = arith.constant 54 : index
    %162 = vector.load %arg0[%c0_166, %c0_167, %c54] : memref<2x16x384xf32, #tpu.memory_space<vmem>>, vector<1x16x321xf32>
    %163 = vector.shape_cast %162 : vector<1x16x321xf32> to vector<16x321xf32>
    %c864 = arith.constant 864 : index
    %c0_168 = arith.constant 0 : index
    %164 = vector.load %arg8[%c864, %c0_168] : memref<1024x321xf32, #tpu.memory_space<vmem>>, vector<16x321xf32>
    tpu.vector_store %arg8[%c864, %c0_168], %163 {strides = array<i32>} : memref<1024x321xf32, #tpu.memory_space<vmem>>, vector<16x321xf32>,
    %c0_169 = arith.constant 0 : index
    %c0_170 = arith.constant 0 : index
    %c55 = arith.constant 55 : index
    %165 = vector.load %arg0[%c0_169, %c0_170, %c55] : memref<2x16x384xf32, #tpu.memory_space<vmem>>, vector<1x16x321xf32>
    %166 = vector.shape_cast %165 : vector<1x16x321xf32> to vector<16x321xf32>
    %c880 = arith.constant 880 : index
    %c0_171 = arith.constant 0 : index
    %167 = vector.load %arg8[%c880, %c0_171] : memref<1024x321xf32, #tpu.memory_space<vmem>>, vector<16x321xf32>
    tpu.vector_store %arg8[%c880, %c0_171], %166 {strides = array<i32>} : memref<1024x321xf32, #tpu.memory_space<vmem>>, vector<16x321xf32>,
    %c0_172 = arith.constant 0 : index
    %c0_173 = arith.constant 0 : index
    %c56 = arith.constant 56 : index
    %168 = vector.load %arg0[%c0_172, %c0_173, %c56] : memref<2x16x384xf32, #tpu.memory_space<vmem>>, vector<1x16x321xf32>
    %169 = vector.shape_cast %168 : vector<1x16x321xf32> to vector<16x321xf32>
    %c896 = arith.constant 896 : index
    %c0_174 = arith.constant 0 : index
    %170 = vector.load %arg8[%c896, %c0_174] : memref<1024x321xf32, #tpu.memory_space<vmem>>, vector<16x321xf32>
    tpu.vector_store %arg8[%c896, %c0_174], %169 {strides = array<i32>} : memref<1024x321xf32, #tpu.memory_space<vmem>>, vector<16x321xf32>,
    %c0_175 = arith.constant 0 : index
    %c0_176 = arith.constant 0 : index
    %c57 = arith.constant 57 : index
    %171 = vector.load %arg0[%c0_175, %c0_176, %c57] : memref<2x16x384xf32, #tpu.memory_space<vmem>>, vector<1x16x321xf32>
    %172 = vector.shape_cast %171 : vector<1x16x321xf32> to vector<16x321xf32>
    %c912 = arith.constant 912 : index
    %c0_177 = arith.constant 0 : index
    %173 = vector.load %arg8[%c912, %c0_177] : memref<1024x321xf32, #tpu.memory_space<vmem>>, vector<16x321xf32>
    tpu.vector_store %arg8[%c912, %c0_177], %172 {strides = array<i32>} : memref<1024x321xf32, #tpu.memory_space<vmem>>, vector<16x321xf32>,
    %c0_178 = arith.constant 0 : index
    %c0_179 = arith.constant 0 : index
    %c58 = arith.constant 58 : index
    %174 = vector.load %arg0[%c0_178, %c0_179, %c58] : memref<2x16x384xf32, #tpu.memory_space<vmem>>, vector<1x16x321xf32>
    %175 = vector.shape_cast %174 : vector<1x16x321xf32> to vector<16x321xf32>
    %c928 = arith.constant 928 : index
    %c0_180 = arith.constant 0 : index
    %176 = vector.load %arg8[%c928, %c0_180] : memref<1024x321xf32, #tpu.memory_space<vmem>>, vector<16x321xf32>
    tpu.vector_store %arg8[%c928, %c0_180], %175 {strides = array<i32>} : memref<1024x321xf32, #tpu.memory_space<vmem>>, vector<16x321xf32>,
    %c0_181 = arith.constant 0 : index
    %c0_182 = arith.constant 0 : index
    %c59 = arith.constant 59 : index
    %177 = vector.load %arg0[%c0_181, %c0_182, %c59] : memref<2x16x384xf32, #tpu.memory_space<vmem>>, vector<1x16x321xf32>
    %178 = vector.shape_cast %177 : vector<1x16x321xf32> to vector<16x321xf32>
    %c944 = arith.constant 944 : index
    %c0_183 = arith.constant 0 : index
    %179 = vector.load %arg8[%c944, %c0_183] : memref<1024x321xf32, #tpu.memory_space<vmem>>, vector<16x321xf32>
    tpu.vector_store %arg8[%c944, %c0_183], %178 {strides = array<i32>} : memref<1024x321xf32, #tpu.memory_space<vmem>>, vector<16x321xf32>,
    %c0_184 = arith.constant 0 : index
    %c0_185 = arith.constant 0 : index
    %c60 = arith.constant 60 : index
    %180 = vector.load %arg0[%c0_184, %c0_185, %c60] : memref<2x16x384xf32, #tpu.memory_space<vmem>>, vector<1x16x321xf32>
    %181 = vector.shape_cast %180 : vector<1x16x321xf32> to vector<16x321xf32>
    %c960 = arith.constant 960 : index
    %c0_186 = arith.constant 0 : index
    %182 = vector.load %arg8[%c960, %c0_186] : memref<1024x321xf32, #tpu.memory_space<vmem>>, vector<16x321xf32>
    tpu.vector_store %arg8[%c960, %c0_186], %181 {strides = array<i32>} : memref<1024x321xf32, #tpu.memory_space<vmem>>, vector<16x321xf32>,
    %c0_187 = arith.constant 0 : index
    %c0_188 = arith.constant 0 : index
    %c61 = arith.constant 61 : index
    %183 = vector.load %arg0[%c0_187, %c0_188, %c61] : memref<2x16x384xf32, #tpu.memory_space<vmem>>, vector<1x16x321xf32>
    %184 = vector.shape_cast %183 : vector<1x16x321xf32> to vector<16x321xf32>
    %c976 = arith.constant 976 : index
    %c0_189 = arith.constant 0 : index
    %185 = vector.load %arg8[%c976, %c0_189] : memref<1024x321xf32, #tpu.memory_space<vmem>>, vector<16x321xf32>
    tpu.vector_store %arg8[%c976, %c0_189], %184 {strides = array<i32>} : memref<1024x321xf32, #tpu.memory_space<vmem>>, vector<16x321xf32>,
    %c0_190 = arith.constant 0 : index
    %c0_191 = arith.constant 0 : index
    %c62 = arith.constant 62 : index
    %186 = vector.load %arg0[%c0_190, %c0_191, %c62] : memref<2x16x384xf32, #tpu.memory_space<vmem>>, vector<1x16x321xf32>
    %187 = vector.shape_cast %186 : vector<1x16x321xf32> to vector<16x321xf32>
    %c992 = arith.constant 992 : index
    %c0_192 = arith.constant 0 : index
    %188 = vector.load %arg8[%c992, %c0_192] : memref<1024x321xf32, #tpu.memory_space<vmem>>, vector<16x321xf32>
    tpu.vector_store %arg8[%c992, %c0_192], %187 {strides = array<i32>} : memref<1024x321xf32, #tpu.memory_space<vmem>>, vector<16x321xf32>,
    %c0_193 = arith.constant 0 : index
    %c0_194 = arith.constant 0 : index
    %c63 = arith.constant 63 : index
    %189 = vector.load %arg0[%c0_193, %c0_194, %c63] : memref<2x16x384xf32, #tpu.memory_space<vmem>>, vector<1x16x321xf32>
    %190 = vector.shape_cast %189 : vector<1x16x321xf32> to vector<16x321xf32>
    %c1008 = arith.constant 1008 : index
    %c0_195 = arith.constant 0 : index
    %191 = vector.load %arg8[%c1008, %c0_195] : memref<1024x321xf32, #tpu.memory_space<vmem>>, vector<16x321xf32>
    tpu.vector_store %arg8[%c1008, %c0_195], %190 {strides = array<i32>} : memref<1024x321xf32, #tpu.memory_space<vmem>>, vector<16x321xf32>,
    %c0_196 = arith.constant 0 : index
    %c0_197 = arith.constant 0 : index
    %192 = vector.load %arg1[%c0_196, %c0_197] : memref<20x1024xf32, #tpu.memory_space<vmem>>, vector<20x1024xf32>
    %c0_198 = arith.constant 0 : index
    %c0_199 = arith.constant 0 : index
    %193 = vector.load %arg8[%c0_198, %c0_199] : memref<1024x321xf32, #tpu.memory_space<vmem>>, vector<1024x321xf32>
    %cst = arith.constant dense<0.000000e+00> : vector<20x321xf32>
    %194 = tpu.matmul %192, %193, %cst {dimension_numbers = #tpu.dot_dimension_numbers<[1], [0], [0], [1], [0, 0, 1, 1], [], []>} : vector<20x1024xf32>, vector<1024x321xf32>, vector<20x321xf32> -> vector<20x321xf32>
    %c0_200 = arith.constant 0 : index
    %c0_201 = arith.constant 0 : index
    %195 = vector.load %arg2[%c0_200, %c0_201] : memref<20x1xf32, #tpu.memory_space<vmem>>, vector<20x1xf32>
    %196 = vector.broadcast %195 : vector<20x1xf32> to vector<20x321xf32>
    %197 = arith.addf %194, %196 : vector<20x321xf32>
    %cst_202 = arith.constant 0.000000e+00 : f32
    %198 = vector.broadcast %cst_202 : f32 to vector<20x321xf32>
    %199 = arith.maximumf %197, %198 : vector<20x321xf32>
    %cst_203 = arith.constant dense<0.000000e+00> : vector<20xf32>
    %200 = vector.multi_reduction <add>, %199, %cst_203 [1] : vector<20x321xf32> to vector<20xf32>
    %201 = vector.shape_cast %200 : vector<20xf32> to vector<20x1xf32>
    %202 = arith.mulf %199, %199 : vector<20x321xf32>
    %cst_204 = arith.constant dense<0.000000e+00> : vector<20xf32>
    %203 = vector.multi_reduction <add>, %202, %cst_204 [1] : vector<20x321xf32> to vector<20xf32>
    %204 = vector.shape_cast %203 : vector<20xf32> to vector<20x1xf32>
    %c1_205 = arith.constant 1 : index
    %c0_206 = arith.constant 0 : index
    %c0_207 = arith.constant 0 : index
    %205 = vector.load %arg0[%c1_205, %c0_206, %c0_207] : memref<2x16x384xf32, #tpu.memory_space<vmem>>, vector<1x16x321xf32>
    %206 = vector.shape_cast %205 : vector<1x16x321xf32> to vector<16x321xf32>
    %c0_208 = arith.constant 0 : index
    %c0_209 = arith.constant 0 : index
    %207 = vector.load %arg8[%c0_208, %c0_209] : memref<1024x321xf32, #tpu.memory_space<vmem>>, vector<16x321xf32>
    tpu.vector_store %arg8[%c0_208, %c0_209], %206 {strides = array<i32>} : memref<1024x321xf32, #tpu.memory_space<vmem>>, vector<16x321xf32>,
    %c1_210 = arith.constant 1 : index
    %c0_211 = arith.constant 0 : index
    %c1_212 = arith.constant 1 : index
    %208 = vector.load %arg0[%c1_210, %c0_211, %c1_212] : memref<2x16x384xf32, #tpu.memory_space<vmem>>, vector<1x16x321xf32>
    %209 = vector.shape_cast %208 : vector<1x16x321xf32> to vector<16x321xf32>
    %c16_213 = arith.constant 16 : index
    %c0_214 = arith.constant 0 : index
    %210 = vector.load %arg8[%c16_213, %c0_214] : memref<1024x321xf32, #tpu.memory_space<vmem>>, vector<16x321xf32>
    tpu.vector_store %arg8[%c16_213, %c0_214], %209 {strides = array<i32>} : memref<1024x321xf32, #tpu.memory_space<vmem>>, vector<16x321xf32>,
    %c1_215 = arith.constant 1 : index
    %c0_216 = arith.constant 0 : index
    %c2_217 = arith.constant 2 : index
    %211 = vector.load %arg0[%c1_215, %c0_216, %c2_217] : memref<2x16x384xf32, #tpu.memory_space<vmem>>, vector<1x16x321xf32>
    %212 = vector.shape_cast %211 : vector<1x16x321xf32> to vector<16x321xf32>
    %c32_218 = arith.constant 32 : index
    %c0_219 = arith.constant 0 : index
    %213 = vector.load %arg8[%c32_218, %c0_219] : memref<1024x321xf32, #tpu.memory_space<vmem>>, vector<16x321xf32>
    tpu.vector_store %arg8[%c32_218, %c0_219], %212 {strides = array<i32>} : memref<1024x321xf32, #tpu.memory_space<vmem>>, vector<16x321xf32>,
    %c1_220 = arith.constant 1 : index
    %c0_221 = arith.constant 0 : index
    %c3_222 = arith.constant 3 : index
    %214 = vector.load %arg0[%c1_220, %c0_221, %c3_222] : memref<2x16x384xf32, #tpu.memory_space<vmem>>, vector<1x16x321xf32>
    %215 = vector.shape_cast %214 : vector<1x16x321xf32> to vector<16x321xf32>
    %c48_223 = arith.constant 48 : index
    %c0_224 = arith.constant 0 : index
    %216 = vector.load %arg8[%c48_223, %c0_224] : memref<1024x321xf32, #tpu.memory_space<vmem>>, vector<16x321xf32>
    tpu.vector_store %arg8[%c48_223, %c0_224], %215 {strides = array<i32>} : memref<1024x321xf32, #tpu.memory_space<vmem>>, vector<16x321xf32>,
    %c1_225 = arith.constant 1 : index
    %c0_226 = arith.constant 0 : index
    %c4_227 = arith.constant 4 : index
    %217 = vector.load %arg0[%c1_225, %c0_226, %c4_227] : memref<2x16x384xf32, #tpu.memory_space<vmem>>, vector<1x16x321xf32>
    %218 = vector.shape_cast %217 : vector<1x16x321xf32> to vector<16x321xf32>
    %c64_228 = arith.constant 64 : index
    %c0_229 = arith.constant 0 : index
    %219 = vector.load %arg8[%c64_228, %c0_229] : memref<1024x321xf32, #tpu.memory_space<vmem>>, vector<16x321xf32>
    tpu.vector_store %arg8[%c64_228, %c0_229], %218 {strides = array<i32>} : memref<1024x321xf32, #tpu.memory_space<vmem>>, vector<16x321xf32>,
    %c1_230 = arith.constant 1 : index
    %c0_231 = arith.constant 0 : index
    %c5_232 = arith.constant 5 : index
    %220 = vector.load %arg0[%c1_230, %c0_231, %c5_232] : memref<2x16x384xf32, #tpu.memory_space<vmem>>, vector<1x16x321xf32>
    %221 = vector.shape_cast %220 : vector<1x16x321xf32> to vector<16x321xf32>
    %c80_233 = arith.constant 80 : index
    %c0_234 = arith.constant 0 : index
    %222 = vector.load %arg8[%c80_233, %c0_234] : memref<1024x321xf32, #tpu.memory_space<vmem>>, vector<16x321xf32>
    tpu.vector_store %arg8[%c80_233, %c0_234], %221 {strides = array<i32>} : memref<1024x321xf32, #tpu.memory_space<vmem>>, vector<16x321xf32>,
    %c1_235 = arith.constant 1 : index
    %c0_236 = arith.constant 0 : index
    %c6_237 = arith.constant 6 : index
    %223 = vector.load %arg0[%c1_235, %c0_236, %c6_237] : memref<2x16x384xf32, #tpu.memory_space<vmem>>, vector<1x16x321xf32>
    %224 = vector.shape_cast %223 : vector<1x16x321xf32> to vector<16x321xf32>
    %c96_238 = arith.constant 96 : index
    %c0_239 = arith.constant 0 : index
    %225 = vector.load %arg8[%c96_238, %c0_239] : memref<1024x321xf32, #tpu.memory_space<vmem>>, vector<16x321xf32>
    tpu.vector_store %arg8[%c96_238, %c0_239], %224 {strides = array<i32>} : memref<1024x321xf32, #tpu.memory_space<vmem>>, vector<16x321xf32>,
    %c1_240 = arith.constant 1 : index
    %c0_241 = arith.constant 0 : index
    %c7_242 = arith.constant 7 : index
    %226 = vector.load %arg0[%c1_240, %c0_241, %c7_242] : memref<2x16x384xf32, #tpu.memory_space<vmem>>, vector<1x16x321xf32>
    %227 = vector.shape_cast %226 : vector<1x16x321xf32> to vector<16x321xf32>
    %c112_243 = arith.constant 112 : index
    %c0_244 = arith.constant 0 : index
    %228 = vector.load %arg8[%c112_243, %c0_244] : memref<1024x321xf32, #tpu.memory_space<vmem>>, vector<16x321xf32>
    tpu.vector_store %arg8[%c112_243, %c0_244], %227 {strides = array<i32>} : memref<1024x321xf32, #tpu.memory_space<vmem>>, vector<16x321xf32>,
    %c1_245 = arith.constant 1 : index
    %c0_246 = arith.constant 0 : index
    %c8_247 = arith.constant 8 : index
    %229 = vector.load %arg0[%c1_245, %c0_246, %c8_247] : memref<2x16x384xf32, #tpu.memory_space<vmem>>, vector<1x16x321xf32>
    %230 = vector.shape_cast %229 : vector<1x16x321xf32> to vector<16x321xf32>
    %c128_248 = arith.constant 128 : index
    %c0_249 = arith.constant 0 : index
    %231 = vector.load %arg8[%c128_248, %c0_249] : memref<1024x321xf32, #tpu.memory_space<vmem>>, vector<16x321xf32>
    tpu.vector_store %arg8[%c128_248, %c0_249], %230 {strides = array<i32>} : memref<1024x321xf32, #tpu.memory_space<vmem>>, vector<16x321xf32>,
    %c1_250 = arith.constant 1 : index
    %c0_251 = arith.constant 0 : index
    %c9_252 = arith.constant 9 : index
    %232 = vector.load %arg0[%c1_250, %c0_251, %c9_252] : memref<2x16x384xf32, #tpu.memory_space<vmem>>, vector<1x16x321xf32>
    %233 = vector.shape_cast %232 : vector<1x16x321xf32> to vector<16x321xf32>
    %c144_253 = arith.constant 144 : index
    %c0_254 = arith.constant 0 : index
    %234 = vector.load %arg8[%c144_253, %c0_254] : memref<1024x321xf32, #tpu.memory_space<vmem>>, vector<16x321xf32>
    tpu.vector_store %arg8[%c144_253, %c0_254], %233 {strides = array<i32>} : memref<1024x321xf32, #tpu.memory_space<vmem>>, vector<16x321xf32>,
    %c1_255 = arith.constant 1 : index
    %c0_256 = arith.constant 0 : index
    %c10_257 = arith.constant 10 : index
    %235 = vector.load %arg0[%c1_255, %c0_256, %c10_257] : memref<2x16x384xf32, #tpu.memory_space<vmem>>, vector<1x16x321xf32>
    %236 = vector.shape_cast %235 : vector<1x16x321xf32> to vector<16x321xf32>
    %c160_258 = arith.constant 160 : index
    %c0_259 = arith.constant 0 : index
    %237 = vector.load %arg8[%c160_258, %c0_259] : memref<1024x321xf32, #tpu.memory_space<vmem>>, vector<16x321xf32>
    tpu.vector_store %arg8[%c160_258, %c0_259], %236 {strides = array<i32>} : memref<1024x321xf32, #tpu.memory_space<vmem>>, vector<16x321xf32>,
    %c1_260 = arith.constant 1 : index
    %c0_261 = arith.constant 0 : index
    %c11_262 = arith.constant 11 : index
    %238 = vector.load %arg0[%c1_260, %c0_261, %c11_262] : memref<2x16x384xf32, #tpu.memory_space<vmem>>, vector<1x16x321xf32>
    %239 = vector.shape_cast %238 : vector<1x16x321xf32> to vector<16x321xf32>
    %c176_263 = arith.constant 176 : index
    %c0_264 = arith.constant 0 : index
    %240 = vector.load %arg8[%c176_263, %c0_264] : memref<1024x321xf32, #tpu.memory_space<vmem>>, vector<16x321xf32>
    tpu.vector_store %arg8[%c176_263, %c0_264], %239 {strides = array<i32>} : memref<1024x321xf32, #tpu.memory_space<vmem>>, vector<16x321xf32>,
    %c1_265 = arith.constant 1 : index
    %c0_266 = arith.constant 0 : index
    %c12_267 = arith.constant 12 : index
    %241 = vector.load %arg0[%c1_265, %c0_266, %c12_267] : memref<2x16x384xf32, #tpu.memory_space<vmem>>, vector<1x16x321xf32>
    %242 = vector.shape_cast %241 : vector<1x16x321xf32> to vector<16x321xf32>
    %c192_268 = arith.constant 192 : index
    %c0_269 = arith.constant 0 : index
    %243 = vector.load %arg8[%c192_268, %c0_269] : memref<1024x321xf32, #tpu.memory_space<vmem>>, vector<16x321xf32>
    tpu.vector_store %arg8[%c192_268, %c0_269], %242 {strides = array<i32>} : memref<1024x321xf32, #tpu.memory_space<vmem>>, vector<16x321xf32>,
    %c1_270 = arith.constant 1 : index
    %c0_271 = arith.constant 0 : index
    %c13_272 = arith.constant 13 : index
    %244 = vector.load %arg0[%c1_270, %c0_271, %c13_272] : memref<2x16x384xf32, #tpu.memory_space<vmem>>, vector<1x16x321xf32>
    %245 = vector.shape_cast %244 : vector<1x16x321xf32> to vector<16x321xf32>
    %c208_273 = arith.constant 208 : index
    %c0_274 = arith.constant 0 : index
    %246 = vector.load %arg8[%c208_273, %c0_274] : memref<1024x321xf32, #tpu.memory_space<vmem>>, vector<16x321xf32>
    tpu.vector_store %arg8[%c208_273, %c0_274], %245 {strides = array<i32>} : memref<1024x321xf32, #tpu.memory_space<vmem>>, vector<16x321xf32>,
    %c1_275 = arith.constant 1 : index
    %c0_276 = arith.constant 0 : index
    %c14_277 = arith.constant 14 : index
    %247 = vector.load %arg0[%c1_275, %c0_276, %c14_277] : memref<2x16x384xf32, #tpu.memory_space<vmem>>, vector<1x16x321xf32>
    %248 = vector.shape_cast %247 : vector<1x16x321xf32> to vector<16x321xf32>
    %c224_278 = arith.constant 224 : index
    %c0_279 = arith.constant 0 : index
    %249 = vector.load %arg8[%c224_278, %c0_279] : memref<1024x321xf32, #tpu.memory_space<vmem>>, vector<16x321xf32>
    tpu.vector_store %arg8[%c224_278, %c0_279], %248 {strides = array<i32>} : memref<1024x321xf32, #tpu.memory_space<vmem>>, vector<16x321xf32>,
    %c1_280 = arith.constant 1 : index
    %c0_281 = arith.constant 0 : index
    %c15_282 = arith.constant 15 : index
    %250 = vector.load %arg0[%c1_280, %c0_281, %c15_282] : memref<2x16x384xf32, #tpu.memory_space<vmem>>, vector<1x16x321xf32>
    %251 = vector.shape_cast %250 : vector<1x16x321xf32> to vector<16x321xf32>
    %c240_283 = arith.constant 240 : index
    %c0_284 = arith.constant 0 : index
    %252 = vector.load %arg8[%c240_283, %c0_284] : memref<1024x321xf32, #tpu.memory_space<vmem>>, vector<16x321xf32>
    tpu.vector_store %arg8[%c240_283, %c0_284], %251 {strides = array<i32>} : memref<1024x321xf32, #tpu.memory_space<vmem>>, vector<16x321xf32>,
    %c1_285 = arith.constant 1 : index
    %c0_286 = arith.constant 0 : index
    %c16_287 = arith.constant 16 : index
    %253 = vector.load %arg0[%c1_285, %c0_286, %c16_287] : memref<2x16x384xf32, #tpu.memory_space<vmem>>, vector<1x16x321xf32>
    %254 = vector.shape_cast %253 : vector<1x16x321xf32> to vector<16x321xf32>
    %c256_288 = arith.constant 256 : index
    %c0_289 = arith.constant 0 : index
    %255 = vector.load %arg8[%c256_288, %c0_289] : memref<1024x321xf32, #tpu.memory_space<vmem>>, vector<16x321xf32>
    tpu.vector_store %arg8[%c256_288, %c0_289], %254 {strides = array<i32>} : memref<1024x321xf32, #tpu.memory_space<vmem>>, vector<16x321xf32>,
    %c1_290 = arith.constant 1 : index
    %c0_291 = arith.constant 0 : index
    %c17_292 = arith.constant 17 : index
    %256 = vector.load %arg0[%c1_290, %c0_291, %c17_292] : memref<2x16x384xf32, #tpu.memory_space<vmem>>, vector<1x16x321xf32>
    %257 = vector.shape_cast %256 : vector<1x16x321xf32> to vector<16x321xf32>
    %c272_293 = arith.constant 272 : index
    %c0_294 = arith.constant 0 : index
    %258 = vector.load %arg8[%c272_293, %c0_294] : memref<1024x321xf32, #tpu.memory_space<vmem>>, vector<16x321xf32>
    tpu.vector_store %arg8[%c272_293, %c0_294], %257 {strides = array<i32>} : memref<1024x321xf32, #tpu.memory_space<vmem>>, vector<16x321xf32>,
    %c1_295 = arith.constant 1 : index
    %c0_296 = arith.constant 0 : index
    %c18_297 = arith.constant 18 : index
    %259 = vector.load %arg0[%c1_295, %c0_296, %c18_297] : memref<2x16x384xf32, #tpu.memory_space<vmem>>, vector<1x16x321xf32>
    %260 = vector.shape_cast %259 : vector<1x16x321xf32> to vector<16x321xf32>
    %c288_298 = arith.constant 288 : index
    %c0_299 = arith.constant 0 : index
    %261 = vector.load %arg8[%c288_298, %c0_299] : memref<1024x321xf32, #tpu.memory_space<vmem>>, vector<16x321xf32>
    tpu.vector_store %arg8[%c288_298, %c0_299], %260 {strides = array<i32>} : memref<1024x321xf32, #tpu.memory_space<vmem>>, vector<16x321xf32>,
    %c1_300 = arith.constant 1 : index
    %c0_301 = arith.constant 0 : index
    %c19_302 = arith.constant 19 : index
    %262 = vector.load %arg0[%c1_300, %c0_301, %c19_302] : memref<2x16x384xf32, #tpu.memory_space<vmem>>, vector<1x16x321xf32>
    %263 = vector.shape_cast %262 : vector<1x16x321xf32> to vector<16x321xf32>
    %c304_303 = arith.constant 304 : index
    %c0_304 = arith.constant 0 : index
    %264 = vector.load %arg8[%c304_303, %c0_304] : memref<1024x321xf32, #tpu.memory_space<vmem>>, vector<16x321xf32>
    tpu.vector_store %arg8[%c304_303, %c0_304], %263 {strides = array<i32>} : memref<1024x321xf32, #tpu.memory_space<vmem>>, vector<16x321xf32>,
    %c1_305 = arith.constant 1 : index
    %c0_306 = arith.constant 0 : index
    %c20_307 = arith.constant 20 : index
    %265 = vector.load %arg0[%c1_305, %c0_306, %c20_307] : memref<2x16x384xf32, #tpu.memory_space<vmem>>, vector<1x16x321xf32>
    %266 = vector.shape_cast %265 : vector<1x16x321xf32> to vector<16x321xf32>
    %c320_308 = arith.constant 320 : index
    %c0_309 = arith.constant 0 : index
    %267 = vector.load %arg8[%c320_308, %c0_309] : memref<1024x321xf32, #tpu.memory_space<vmem>>, vector<16x321xf32>
    tpu.vector_store %arg8[%c320_308, %c0_309], %266 {strides = array<i32>} : memref<1024x321xf32, #tpu.memory_space<vmem>>, vector<16x321xf32>,
    %c1_310 = arith.constant 1 : index
    %c0_311 = arith.constant 0 : index
    %c21_312 = arith.constant 21 : index
    %268 = vector.load %arg0[%c1_310, %c0_311, %c21_312] : memref<2x16x384xf32, #tpu.memory_space<vmem>>, vector<1x16x321xf32>
    %269 = vector.shape_cast %268 : vector<1x16x321xf32> to vector<16x321xf32>
    %c336_313 = arith.constant 336 : index
    %c0_314 = arith.constant 0 : index
    %270 = vector.load %arg8[%c336_313, %c0_314] : memref<1024x321xf32, #tpu.memory_space<vmem>>, vector<16x321xf32>
    tpu.vector_store %arg8[%c336_313, %c0_314], %269 {strides = array<i32>} : memref<1024x321xf32, #tpu.memory_space<vmem>>, vector<16x321xf32>,
    %c1_315 = arith.constant 1 : index
    %c0_316 = arith.constant 0 : index
    %c22_317 = arith.constant 22 : index
    %271 = vector.load %arg0[%c1_315, %c0_316, %c22_317] : memref<2x16x384xf32, #tpu.memory_space<vmem>>, vector<1x16x321xf32>
    %272 = vector.shape_cast %271 : vector<1x16x321xf32> to vector<16x321xf32>
    %c352_318 = arith.constant 352 : index
    %c0_319 = arith.constant 0 : index
    %273 = vector.load %arg8[%c352_318, %c0_319] : memref<1024x321xf32, #tpu.memory_space<vmem>>, vector<16x321xf32>
    tpu.vector_store %arg8[%c352_318, %c0_319], %272 {strides = array<i32>} : memref<1024x321xf32, #tpu.memory_space<vmem>>, vector<16x321xf32>,
    %c1_320 = arith.constant 1 : index
    %c0_321 = arith.constant 0 : index
    %c23_322 = arith.constant 23 : index
    %274 = vector.load %arg0[%c1_320, %c0_321, %c23_322] : memref<2x16x384xf32, #tpu.memory_space<vmem>>, vector<1x16x321xf32>
    %275 = vector.shape_cast %274 : vector<1x16x321xf32> to vector<16x321xf32>
    %c368_323 = arith.constant 368 : index
    %c0_324 = arith.constant 0 : index
    %276 = vector.load %arg8[%c368_323, %c0_324] : memref<1024x321xf32, #tpu.memory_space<vmem>>, vector<16x321xf32>
    tpu.vector_store %arg8[%c368_323, %c0_324], %275 {strides = array<i32>} : memref<1024x321xf32, #tpu.memory_space<vmem>>, vector<16x321xf32>,
    %c1_325 = arith.constant 1 : index
    %c0_326 = arith.constant 0 : index
    %c24_327 = arith.constant 24 : index
    %277 = vector.load %arg0[%c1_325, %c0_326, %c24_327] : memref<2x16x384xf32, #tpu.memory_space<vmem>>, vector<1x16x321xf32>
    %278 = vector.shape_cast %277 : vector<1x16x321xf32> to vector<16x321xf32>
    %c384_328 = arith.constant 384 : index
    %c0_329 = arith.constant 0 : index
    %279 = vector.load %arg8[%c384_328, %c0_329] : memref<1024x321xf32, #tpu.memory_space<vmem>>, vector<16x321xf32>
    tpu.vector_store %arg8[%c384_328, %c0_329], %278 {strides = array<i32>} : memref<1024x321xf32, #tpu.memory_space<vmem>>, vector<16x321xf32>,
    %c1_330 = arith.constant 1 : index
    %c0_331 = arith.constant 0 : index
    %c25_332 = arith.constant 25 : index
    %280 = vector.load %arg0[%c1_330, %c0_331, %c25_332] : memref<2x16x384xf32, #tpu.memory_space<vmem>>, vector<1x16x321xf32>
    %281 = vector.shape_cast %280 : vector<1x16x321xf32> to vector<16x321xf32>
    %c400_333 = arith.constant 400 : index
    %c0_334 = arith.constant 0 : index
    %282 = vector.load %arg8[%c400_333, %c0_334] : memref<1024x321xf32, #tpu.memory_space<vmem>>, vector<16x321xf32>
    tpu.vector_store %arg8[%c400_333, %c0_334], %281 {strides = array<i32>} : memref<1024x321xf32, #tpu.memory_space<vmem>>, vector<16x321xf32>,
    %c1_335 = arith.constant 1 : index
    %c0_336 = arith.constant 0 : index
    %c26_337 = arith.constant 26 : index
    %283 = vector.load %arg0[%c1_335, %c0_336, %c26_337] : memref<2x16x384xf32, #tpu.memory_space<vmem>>, vector<1x16x321xf32>
    %284 = vector.shape_cast %283 : vector<1x16x321xf32> to vector<16x321xf32>
    %c416_338 = arith.constant 416 : index
    %c0_339 = arith.constant 0 : index
    %285 = vector.load %arg8[%c416_338, %c0_339] : memref<1024x321xf32, #tpu.memory_space<vmem>>, vector<16x321xf32>
    tpu.vector_store %arg8[%c416_338, %c0_339], %284 {strides = array<i32>} : memref<1024x321xf32, #tpu.memory_space<vmem>>, vector<16x321xf32>,
    %c1_340 = arith.constant 1 : index
    %c0_341 = arith.constant 0 : index
    %c27_342 = arith.constant 27 : index
    %286 = vector.load %arg0[%c1_340, %c0_341, %c27_342] : memref<2x16x384xf32, #tpu.memory_space<vmem>>, vector<1x16x321xf32>
    %287 = vector.shape_cast %286 : vector<1x16x321xf32> to vector<16x321xf32>
    %c432_343 = arith.constant 432 : index
    %c0_344 = arith.constant 0 : index
    %288 = vector.load %arg8[%c432_343, %c0_344] : memref<1024x321xf32, #tpu.memory_space<vmem>>, vector<16x321xf32>
    tpu.vector_store %arg8[%c432_343, %c0_344], %287 {strides = array<i32>} : memref<1024x321xf32, #tpu.memory_space<vmem>>, vector<16x321xf32>,
    %c1_345 = arith.constant 1 : index
    %c0_346 = arith.constant 0 : index
    %c28_347 = arith.constant 28 : index
    %289 = vector.load %arg0[%c1_345, %c0_346, %c28_347] : memref<2x16x384xf32, #tpu.memory_space<vmem>>, vector<1x16x321xf32>
    %290 = vector.shape_cast %289 : vector<1x16x321xf32> to vector<16x321xf32>
    %c448_348 = arith.constant 448 : index
    %c0_349 = arith.constant 0 : index
    %291 = vector.load %arg8[%c448_348, %c0_349] : memref<1024x321xf32, #tpu.memory_space<vmem>>, vector<16x321xf32>
    tpu.vector_store %arg8[%c448_348, %c0_349], %290 {strides = array<i32>} : memref<1024x321xf32, #tpu.memory_space<vmem>>, vector<16x321xf32>,
    %c1_350 = arith.constant 1 : index
    %c0_351 = arith.constant 0 : index
    %c29_352 = arith.constant 29 : index
    %292 = vector.load %arg0[%c1_350, %c0_351, %c29_352] : memref<2x16x384xf32, #tpu.memory_space<vmem>>, vector<1x16x321xf32>
    %293 = vector.shape_cast %292 : vector<1x16x321xf32> to vector<16x321xf32>
    %c464_353 = arith.constant 464 : index
    %c0_354 = arith.constant 0 : index
    %294 = vector.load %arg8[%c464_353, %c0_354] : memref<1024x321xf32, #tpu.memory_space<vmem>>, vector<16x321xf32>
    tpu.vector_store %arg8[%c464_353, %c0_354], %293 {strides = array<i32>} : memref<1024x321xf32, #tpu.memory_space<vmem>>, vector<16x321xf32>,
    %c1_355 = arith.constant 1 : index
    %c0_356 = arith.constant 0 : index
    %c30_357 = arith.constant 30 : index
    %295 = vector.load %arg0[%c1_355, %c0_356, %c30_357] : memref<2x16x384xf32, #tpu.memory_space<vmem>>, vector<1x16x321xf32>
    %296 = vector.shape_cast %295 : vector<1x16x321xf32> to vector<16x321xf32>
    %c480_358 = arith.constant 480 : index
    %c0_359 = arith.constant 0 : index
    %297 = vector.load %arg8[%c480_358, %c0_359] : memref<1024x321xf32, #tpu.memory_space<vmem>>, vector<16x321xf32>
    tpu.vector_store %arg8[%c480_358, %c0_359], %296 {strides = array<i32>} : memref<1024x321xf32, #tpu.memory_space<vmem>>, vector<16x321xf32>,
    %c1_360 = arith.constant 1 : index
    %c0_361 = arith.constant 0 : index
    %c31_362 = arith.constant 31 : index
    %298 = vector.load %arg0[%c1_360, %c0_361, %c31_362] : memref<2x16x384xf32, #tpu.memory_space<vmem>>, vector<1x16x321xf32>
    %299 = vector.shape_cast %298 : vector<1x16x321xf32> to vector<16x321xf32>
    %c496_363 = arith.constant 496 : index
    %c0_364 = arith.constant 0 : index
    %300 = vector.load %arg8[%c496_363, %c0_364] : memref<1024x321xf32, #tpu.memory_space<vmem>>, vector<16x321xf32>
    tpu.vector_store %arg8[%c496_363, %c0_364], %299 {strides = array<i32>} : memref<1024x321xf32, #tpu.memory_space<vmem>>, vector<16x321xf32>,
    %c1_365 = arith.constant 1 : index
    %c0_366 = arith.constant 0 : index
    %c32_367 = arith.constant 32 : index
    %301 = vector.load %arg0[%c1_365, %c0_366, %c32_367] : memref<2x16x384xf32, #tpu.memory_space<vmem>>, vector<1x16x321xf32>
    %302 = vector.shape_cast %301 : vector<1x16x321xf32> to vector<16x321xf32>
    %c512_368 = arith.constant 512 : index
    %c0_369 = arith.constant 0 : index
    %303 = vector.load %arg8[%c512_368, %c0_369] : memref<1024x321xf32, #tpu.memory_space<vmem>>, vector<16x321xf32>
    tpu.vector_store %arg8[%c512_368, %c0_369], %302 {strides = array<i32>} : memref<1024x321xf32, #tpu.memory_space<vmem>>, vector<16x321xf32>,
    %c1_370 = arith.constant 1 : index
    %c0_371 = arith.constant 0 : index
    %c33_372 = arith.constant 33 : index
    %304 = vector.load %arg0[%c1_370, %c0_371, %c33_372] : memref<2x16x384xf32, #tpu.memory_space<vmem>>, vector<1x16x321xf32>
    %305 = vector.shape_cast %304 : vector<1x16x321xf32> to vector<16x321xf32>
    %c528_373 = arith.constant 528 : index
    %c0_374 = arith.constant 0 : index
    %306 = vector.load %arg8[%c528_373, %c0_374] : memref<1024x321xf32, #tpu.memory_space<vmem>>, vector<16x321xf32>
    tpu.vector_store %arg8[%c528_373, %c0_374], %305 {strides = array<i32>} : memref<1024x321xf32, #tpu.memory_space<vmem>>, vector<16x321xf32>,
    %c1_375 = arith.constant 1 : index
    %c0_376 = arith.constant 0 : index
    %c34_377 = arith.constant 34 : index
    %307 = vector.load %arg0[%c1_375, %c0_376, %c34_377] : memref<2x16x384xf32, #tpu.memory_space<vmem>>, vector<1x16x321xf32>
    %308 = vector.shape_cast %307 : vector<1x16x321xf32> to vector<16x321xf32>
    %c544_378 = arith.constant 544 : index
    %c0_379 = arith.constant 0 : index
    %309 = vector.load %arg8[%c544_378, %c0_379] : memref<1024x321xf32, #tpu.memory_space<vmem>>, vector<16x321xf32>
    tpu.vector_store %arg8[%c544_378, %c0_379], %308 {strides = array<i32>} : memref<1024x321xf32, #tpu.memory_space<vmem>>, vector<16x321xf32>,
    %c1_380 = arith.constant 1 : index
    %c0_381 = arith.constant 0 : index
    %c35_382 = arith.constant 35 : index
    %310 = vector.load %arg0[%c1_380, %c0_381, %c35_382] : memref<2x16x384xf32, #tpu.memory_space<vmem>>, vector<1x16x321xf32>
    %311 = vector.shape_cast %310 : vector<1x16x321xf32> to vector<16x321xf32>
    %c560_383 = arith.constant 560 : index
    %c0_384 = arith.constant 0 : index
    %312 = vector.load %arg8[%c560_383, %c0_384] : memref<1024x321xf32, #tpu.memory_space<vmem>>, vector<16x321xf32>
    tpu.vector_store %arg8[%c560_383, %c0_384], %311 {strides = array<i32>} : memref<1024x321xf32, #tpu.memory_space<vmem>>, vector<16x321xf32>,
    %c1_385 = arith.constant 1 : index
    %c0_386 = arith.constant 0 : index
    %c36_387 = arith.constant 36 : index
    %313 = vector.load %arg0[%c1_385, %c0_386, %c36_387] : memref<2x16x384xf32, #tpu.memory_space<vmem>>, vector<1x16x321xf32>
    %314 = vector.shape_cast %313 : vector<1x16x321xf32> to vector<16x321xf32>
    %c576_388 = arith.constant 576 : index
    %c0_389 = arith.constant 0 : index
    %315 = vector.load %arg8[%c576_388, %c0_389] : memref<1024x321xf32, #tpu.memory_space<vmem>>, vector<16x321xf32>
    tpu.vector_store %arg8[%c576_388, %c0_389], %314 {strides = array<i32>} : memref<1024x321xf32, #tpu.memory_space<vmem>>, vector<16x321xf32>,
    %c1_390 = arith.constant 1 : index
    %c0_391 = arith.constant 0 : index
    %c37_392 = arith.constant 37 : index
    %316 = vector.load %arg0[%c1_390, %c0_391, %c37_392] : memref<2x16x384xf32, #tpu.memory_space<vmem>>, vector<1x16x321xf32>
    %317 = vector.shape_cast %316 : vector<1x16x321xf32> to vector<16x321xf32>
    %c592_393 = arith.constant 592 : index
    %c0_394 = arith.constant 0 : index
    %318 = vector.load %arg8[%c592_393, %c0_394] : memref<1024x321xf32, #tpu.memory_space<vmem>>, vector<16x321xf32>
    tpu.vector_store %arg8[%c592_393, %c0_394], %317 {strides = array<i32>} : memref<1024x321xf32, #tpu.memory_space<vmem>>, vector<16x321xf32>,
    %c1_395 = arith.constant 1 : index
    %c0_396 = arith.constant 0 : index
    %c38_397 = arith.constant 38 : index
    %319 = vector.load %arg0[%c1_395, %c0_396, %c38_397] : memref<2x16x384xf32, #tpu.memory_space<vmem>>, vector<1x16x321xf32>
    %320 = vector.shape_cast %319 : vector<1x16x321xf32> to vector<16x321xf32>
    %c608_398 = arith.constant 608 : index
    %c0_399 = arith.constant 0 : index
    %321 = vector.load %arg8[%c608_398, %c0_399] : memref<1024x321xf32, #tpu.memory_space<vmem>>, vector<16x321xf32>
    tpu.vector_store %arg8[%c608_398, %c0_399], %320 {strides = array<i32>} : memref<1024x321xf32, #tpu.memory_space<vmem>>, vector<16x321xf32>,
    %c1_400 = arith.constant 1 : index
    %c0_401 = arith.constant 0 : index
    %c39_402 = arith.constant 39 : index
    %322 = vector.load %arg0[%c1_400, %c0_401, %c39_402] : memref<2x16x384xf32, #tpu.memory_space<vmem>>, vector<1x16x321xf32>
    %323 = vector.shape_cast %322 : vector<1x16x321xf32> to vector<16x321xf32>
    %c624_403 = arith.constant 624 : index
    %c0_404 = arith.constant 0 : index
    %324 = vector.load %arg8[%c624_403, %c0_404] : memref<1024x321xf32, #tpu.memory_space<vmem>>, vector<16x321xf32>
    tpu.vector_store %arg8[%c624_403, %c0_404], %323 {strides = array<i32>} : memref<1024x321xf32, #tpu.memory_space<vmem>>, vector<16x321xf32>,
    %c1_405 = arith.constant 1 : index
    %c0_406 = arith.constant 0 : index
    %c40_407 = arith.constant 40 : index
    %325 = vector.load %arg0[%c1_405, %c0_406, %c40_407] : memref<2x16x384xf32, #tpu.memory_space<vmem>>, vector<1x16x321xf32>
    %326 = vector.shape_cast %325 : vector<1x16x321xf32> to vector<16x321xf32>
    %c640_408 = arith.constant 640 : index
    %c0_409 = arith.constant 0 : index
    %327 = vector.load %arg8[%c640_408, %c0_409] : memref<1024x321xf32, #tpu.memory_space<vmem>>, vector<16x321xf32>
    tpu.vector_store %arg8[%c640_408, %c0_409], %326 {strides = array<i32>} : memref<1024x321xf32, #tpu.memory_space<vmem>>, vector<16x321xf32>,
    %c1_410 = arith.constant 1 : index
    %c0_411 = arith.constant 0 : index
    %c41_412 = arith.constant 41 : index
    %328 = vector.load %arg0[%c1_410, %c0_411, %c41_412] : memref<2x16x384xf32, #tpu.memory_space<vmem>>, vector<1x16x321xf32>
    %329 = vector.shape_cast %328 : vector<1x16x321xf32> to vector<16x321xf32>
    %c656_413 = arith.constant 656 : index
    %c0_414 = arith.constant 0 : index
    %330 = vector.load %arg8[%c656_413, %c0_414] : memref<1024x321xf32, #tpu.memory_space<vmem>>, vector<16x321xf32>
    tpu.vector_store %arg8[%c656_413, %c0_414], %329 {strides = array<i32>} : memref<1024x321xf32, #tpu.memory_space<vmem>>, vector<16x321xf32>,
    %c1_415 = arith.constant 1 : index
    %c0_416 = arith.constant 0 : index
    %c42_417 = arith.constant 42 : index
    %331 = vector.load %arg0[%c1_415, %c0_416, %c42_417] : memref<2x16x384xf32, #tpu.memory_space<vmem>>, vector<1x16x321xf32>
    %332 = vector.shape_cast %331 : vector<1x16x321xf32> to vector<16x321xf32>
    %c672_418 = arith.constant 672 : index
    %c0_419 = arith.constant 0 : index
    %333 = vector.load %arg8[%c672_418, %c0_419] : memref<1024x321xf32, #tpu.memory_space<vmem>>, vector<16x321xf32>
    tpu.vector_store %arg8[%c672_418, %c0_419], %332 {strides = array<i32>} : memref<1024x321xf32, #tpu.memory_space<vmem>>, vector<16x321xf32>,
    %c1_420 = arith.constant 1 : index
    %c0_421 = arith.constant 0 : index
    %c43_422 = arith.constant 43 : index
    %334 = vector.load %arg0[%c1_420, %c0_421, %c43_422] : memref<2x16x384xf32, #tpu.memory_space<vmem>>, vector<1x16x321xf32>
    %335 = vector.shape_cast %334 : vector<1x16x321xf32> to vector<16x321xf32>
    %c688_423 = arith.constant 688 : index
    %c0_424 = arith.constant 0 : index
    %336 = vector.load %arg8[%c688_423, %c0_424] : memref<1024x321xf32, #tpu.memory_space<vmem>>, vector<16x321xf32>
    tpu.vector_store %arg8[%c688_423, %c0_424], %335 {strides = array<i32>} : memref<1024x321xf32, #tpu.memory_space<vmem>>, vector<16x321xf32>,
    %c1_425 = arith.constant 1 : index
    %c0_426 = arith.constant 0 : index
    %c44_427 = arith.constant 44 : index
    %337 = vector.load %arg0[%c1_425, %c0_426, %c44_427] : memref<2x16x384xf32, #tpu.memory_space<vmem>>, vector<1x16x321xf32>
    %338 = vector.shape_cast %337 : vector<1x16x321xf32> to vector<16x321xf32>
    %c704_428 = arith.constant 704 : index
    %c0_429 = arith.constant 0 : index
    %339 = vector.load %arg8[%c704_428, %c0_429] : memref<1024x321xf32, #tpu.memory_space<vmem>>, vector<16x321xf32>
    tpu.vector_store %arg8[%c704_428, %c0_429], %338 {strides = array<i32>} : memref<1024x321xf32, #tpu.memory_space<vmem>>, vector<16x321xf32>,
    %c1_430 = arith.constant 1 : index
    %c0_431 = arith.constant 0 : index
    %c45_432 = arith.constant 45 : index
    %340 = vector.load %arg0[%c1_430, %c0_431, %c45_432] : memref<2x16x384xf32, #tpu.memory_space<vmem>>, vector<1x16x321xf32>
    %341 = vector.shape_cast %340 : vector<1x16x321xf32> to vector<16x321xf32>
    %c720_433 = arith.constant 720 : index
    %c0_434 = arith.constant 0 : index
    %342 = vector.load %arg8[%c720_433, %c0_434] : memref<1024x321xf32, #tpu.memory_space<vmem>>, vector<16x321xf32>
    tpu.vector_store %arg8[%c720_433, %c0_434], %341 {strides = array<i32>} : memref<1024x321xf32, #tpu.memory_space<vmem>>, vector<16x321xf32>,
    %c1_435 = arith.constant 1 : index
    %c0_436 = arith.constant 0 : index
    %c46_437 = arith.constant 46 : index
    %343 = vector.load %arg0[%c1_435, %c0_436, %c46_437] : memref<2x16x384xf32, #tpu.memory_space<vmem>>, vector<1x16x321xf32>
    %344 = vector.shape_cast %343 : vector<1x16x321xf32> to vector<16x321xf32>
    %c736_438 = arith.constant 736 : index
    %c0_439 = arith.constant 0 : index
    %345 = vector.load %arg8[%c736_438, %c0_439] : memref<1024x321xf32, #tpu.memory_space<vmem>>, vector<16x321xf32>
    tpu.vector_store %arg8[%c736_438, %c0_439], %344 {strides = array<i32>} : memref<1024x321xf32, #tpu.memory_space<vmem>>, vector<16x321xf32>,
    %c1_440 = arith.constant 1 : index
    %c0_441 = arith.constant 0 : index
    %c47_442 = arith.constant 47 : index
    %346 = vector.load %arg0[%c1_440, %c0_441, %c47_442] : memref<2x16x384xf32, #tpu.memory_space<vmem>>, vector<1x16x321xf32>
    %347 = vector.shape_cast %346 : vector<1x16x321xf32> to vector<16x321xf32>
    %c752_443 = arith.constant 752 : index
    %c0_444 = arith.constant 0 : index
    %348 = vector.load %arg8[%c752_443, %c0_444] : memref<1024x321xf32, #tpu.memory_space<vmem>>, vector<16x321xf32>
    tpu.vector_store %arg8[%c752_443, %c0_444], %347 {strides = array<i32>} : memref<1024x321xf32, #tpu.memory_space<vmem>>, vector<16x321xf32>,
    %c1_445 = arith.constant 1 : index
    %c0_446 = arith.constant 0 : index
    %c48_447 = arith.constant 48 : index
    %349 = vector.load %arg0[%c1_445, %c0_446, %c48_447] : memref<2x16x384xf32, #tpu.memory_space<vmem>>, vector<1x16x321xf32>
    %350 = vector.shape_cast %349 : vector<1x16x321xf32> to vector<16x321xf32>
    %c768_448 = arith.constant 768 : index
    %c0_449 = arith.constant 0 : index
    %351 = vector.load %arg8[%c768_448, %c0_449] : memref<1024x321xf32, #tpu.memory_space<vmem>>, vector<16x321xf32>
    tpu.vector_store %arg8[%c768_448, %c0_449], %350 {strides = array<i32>} : memref<1024x321xf32, #tpu.memory_space<vmem>>, vector<16x321xf32>,
    %c1_450 = arith.constant 1 : index
    %c0_451 = arith.constant 0 : index
    %c49_452 = arith.constant 49 : index
    %352 = vector.load %arg0[%c1_450, %c0_451, %c49_452] : memref<2x16x384xf32, #tpu.memory_space<vmem>>, vector<1x16x321xf32>
    %353 = vector.shape_cast %352 : vector<1x16x321xf32> to vector<16x321xf32>
    %c784_453 = arith.constant 784 : index
    %c0_454 = arith.constant 0 : index
    %354 = vector.load %arg8[%c784_453, %c0_454] : memref<1024x321xf32, #tpu.memory_space<vmem>>, vector<16x321xf32>
    tpu.vector_store %arg8[%c784_453, %c0_454], %353 {strides = array<i32>} : memref<1024x321xf32, #tpu.memory_space<vmem>>, vector<16x321xf32>,
    %c1_455 = arith.constant 1 : index
    %c0_456 = arith.constant 0 : index
    %c50_457 = arith.constant 50 : index
    %355 = vector.load %arg0[%c1_455, %c0_456, %c50_457] : memref<2x16x384xf32, #tpu.memory_space<vmem>>, vector<1x16x321xf32>
    %356 = vector.shape_cast %355 : vector<1x16x321xf32> to vector<16x321xf32>
    %c800_458 = arith.constant 800 : index
    %c0_459 = arith.constant 0 : index
    %357 = vector.load %arg8[%c800_458, %c0_459] : memref<1024x321xf32, #tpu.memory_space<vmem>>, vector<16x321xf32>
    tpu.vector_store %arg8[%c800_458, %c0_459], %356 {strides = array<i32>} : memref<1024x321xf32, #tpu.memory_space<vmem>>, vector<16x321xf32>,
    %c1_460 = arith.constant 1 : index
    %c0_461 = arith.constant 0 : index
    %c51_462 = arith.constant 51 : index
    %358 = vector.load %arg0[%c1_460, %c0_461, %c51_462] : memref<2x16x384xf32, #tpu.memory_space<vmem>>, vector<1x16x321xf32>
    %359 = vector.shape_cast %358 : vector<1x16x321xf32> to vector<16x321xf32>
    %c816_463 = arith.constant 816 : index
    %c0_464 = arith.constant 0 : index
    %360 = vector.load %arg8[%c816_463, %c0_464] : memref<1024x321xf32, #tpu.memory_space<vmem>>, vector<16x321xf32>
    tpu.vector_store %arg8[%c816_463, %c0_464], %359 {strides = array<i32>} : memref<1024x321xf32, #tpu.memory_space<vmem>>, vector<16x321xf32>,
    %c1_465 = arith.constant 1 : index
    %c0_466 = arith.constant 0 : index
    %c52_467 = arith.constant 52 : index
    %361 = vector.load %arg0[%c1_465, %c0_466, %c52_467] : memref<2x16x384xf32, #tpu.memory_space<vmem>>, vector<1x16x321xf32>
    %362 = vector.shape_cast %361 : vector<1x16x321xf32> to vector<16x321xf32>
    %c832_468 = arith.constant 832 : index
    %c0_469 = arith.constant 0 : index
    %363 = vector.load %arg8[%c832_468, %c0_469] : memref<1024x321xf32, #tpu.memory_space<vmem>>, vector<16x321xf32>
    tpu.vector_store %arg8[%c832_468, %c0_469], %362 {strides = array<i32>} : memref<1024x321xf32, #tpu.memory_space<vmem>>, vector<16x321xf32>,
    %c1_470 = arith.constant 1 : index
    %c0_471 = arith.constant 0 : index
    %c53_472 = arith.constant 53 : index
    %364 = vector.load %arg0[%c1_470, %c0_471, %c53_472] : memref<2x16x384xf32, #tpu.memory_space<vmem>>, vector<1x16x321xf32>
    %365 = vector.shape_cast %364 : vector<1x16x321xf32> to vector<16x321xf32>
    %c848_473 = arith.constant 848 : index
    %c0_474 = arith.constant 0 : index
    %366 = vector.load %arg8[%c848_473, %c0_474] : memref<1024x321xf32, #tpu.memory_space<vmem>>, vector<16x321xf32>
    tpu.vector_store %arg8[%c848_473, %c0_474], %365 {strides = array<i32>} : memref<1024x321xf32, #tpu.memory_space<vmem>>, vector<16x321xf32>,
    %c1_475 = arith.constant 1 : index
    %c0_476 = arith.constant 0 : index
    %c54_477 = arith.constant 54 : index
    %367 = vector.load %arg0[%c1_475, %c0_476, %c54_477] : memref<2x16x384xf32, #tpu.memory_space<vmem>>, vector<1x16x321xf32>
    %368 = vector.shape_cast %367 : vector<1x16x321xf32> to vector<16x321xf32>
    %c864_478 = arith.constant 864 : index
    %c0_479 = arith.constant 0 : index
    %369 = vector.load %arg8[%c864_478, %c0_479] : memref<1024x321xf32, #tpu.memory_space<vmem>>, vector<16x321xf32>
    tpu.vector_store %arg8[%c864_478, %c0_479], %368 {strides = array<i32>} : memref<1024x321xf32, #tpu.memory_space<vmem>>, vector<16x321xf32>,
    %c1_480 = arith.constant 1 : index
    %c0_481 = arith.constant 0 : index
    %c55_482 = arith.constant 55 : index
    %370 = vector.load %arg0[%c1_480, %c0_481, %c55_482] : memref<2x16x384xf32, #tpu.memory_space<vmem>>, vector<1x16x321xf32>
    %371 = vector.shape_cast %370 : vector<1x16x321xf32> to vector<16x321xf32>
    %c880_483 = arith.constant 880 : index
    %c0_484 = arith.constant 0 : index
    %372 = vector.load %arg8[%c880_483, %c0_484] : memref<1024x321xf32, #tpu.memory_space<vmem>>, vector<16x321xf32>
    tpu.vector_store %arg8[%c880_483, %c0_484], %371 {strides = array<i32>} : memref<1024x321xf32, #tpu.memory_space<vmem>>, vector<16x321xf32>,
    %c1_485 = arith.constant 1 : index
    %c0_486 = arith.constant 0 : index
    %c56_487 = arith.constant 56 : index
    %373 = vector.load %arg0[%c1_485, %c0_486, %c56_487] : memref<2x16x384xf32, #tpu.memory_space<vmem>>, vector<1x16x321xf32>
    %374 = vector.shape_cast %373 : vector<1x16x321xf32> to vector<16x321xf32>
    %c896_488 = arith.constant 896 : index
    %c0_489 = arith.constant 0 : index
    %375 = vector.load %arg8[%c896_488, %c0_489] : memref<1024x321xf32, #tpu.memory_space<vmem>>, vector<16x321xf32>
    tpu.vector_store %arg8[%c896_488, %c0_489], %374 {strides = array<i32>} : memref<1024x321xf32, #tpu.memory_space<vmem>>, vector<16x321xf32>,
    %c1_490 = arith.constant 1 : index
    %c0_491 = arith.constant 0 : index
    %c57_492 = arith.constant 57 : index
    %376 = vector.load %arg0[%c1_490, %c0_491, %c57_492] : memref<2x16x384xf32, #tpu.memory_space<vmem>>, vector<1x16x321xf32>
    %377 = vector.shape_cast %376 : vector<1x16x321xf32> to vector<16x321xf32>
    %c912_493 = arith.constant 912 : index
    %c0_494 = arith.constant 0 : index
    %378 = vector.load %arg8[%c912_493, %c0_494] : memref<1024x321xf32, #tpu.memory_space<vmem>>, vector<16x321xf32>
    tpu.vector_store %arg8[%c912_493, %c0_494], %377 {strides = array<i32>} : memref<1024x321xf32, #tpu.memory_space<vmem>>, vector<16x321xf32>,
    %c1_495 = arith.constant 1 : index
    %c0_496 = arith.constant 0 : index
    %c58_497 = arith.constant 58 : index
    %379 = vector.load %arg0[%c1_495, %c0_496, %c58_497] : memref<2x16x384xf32, #tpu.memory_space<vmem>>, vector<1x16x321xf32>
    %380 = vector.shape_cast %379 : vector<1x16x321xf32> to vector<16x321xf32>
    %c928_498 = arith.constant 928 : index
    %c0_499 = arith.constant 0 : index
    %381 = vector.load %arg8[%c928_498, %c0_499] : memref<1024x321xf32, #tpu.memory_space<vmem>>, vector<16x321xf32>
    tpu.vector_store %arg8[%c928_498, %c0_499], %380 {strides = array<i32>} : memref<1024x321xf32, #tpu.memory_space<vmem>>, vector<16x321xf32>,
    %c1_500 = arith.constant 1 : index
    %c0_501 = arith.constant 0 : index
    %c59_502 = arith.constant 59 : index
    %382 = vector.load %arg0[%c1_500, %c0_501, %c59_502] : memref<2x16x384xf32, #tpu.memory_space<vmem>>, vector<1x16x321xf32>
    %383 = vector.shape_cast %382 : vector<1x16x321xf32> to vector<16x321xf32>
    %c944_503 = arith.constant 944 : index
    %c0_504 = arith.constant 0 : index
    %384 = vector.load %arg8[%c944_503, %c0_504] : memref<1024x321xf32, #tpu.memory_space<vmem>>, vector<16x321xf32>
    tpu.vector_store %arg8[%c944_503, %c0_504], %383 {strides = array<i32>} : memref<1024x321xf32, #tpu.memory_space<vmem>>, vector<16x321xf32>,
    %c1_505 = arith.constant 1 : index
    %c0_506 = arith.constant 0 : index
    %c60_507 = arith.constant 60 : index
    %385 = vector.load %arg0[%c1_505, %c0_506, %c60_507] : memref<2x16x384xf32, #tpu.memory_space<vmem>>, vector<1x16x321xf32>
    %386 = vector.shape_cast %385 : vector<1x16x321xf32> to vector<16x321xf32>
    %c960_508 = arith.constant 960 : index
    %c0_509 = arith.constant 0 : index
    %387 = vector.load %arg8[%c960_508, %c0_509] : memref<1024x321xf32, #tpu.memory_space<vmem>>, vector<16x321xf32>
    tpu.vector_store %arg8[%c960_508, %c0_509], %386 {strides = array<i32>} : memref<1024x321xf32, #tpu.memory_space<vmem>>, vector<16x321xf32>,
    %c1_510 = arith.constant 1 : index
    %c0_511 = arith.constant 0 : index
    %c61_512 = arith.constant 61 : index
    %388 = vector.load %arg0[%c1_510, %c0_511, %c61_512] : memref<2x16x384xf32, #tpu.memory_space<vmem>>, vector<1x16x321xf32>
    %389 = vector.shape_cast %388 : vector<1x16x321xf32> to vector<16x321xf32>
    %c976_513 = arith.constant 976 : index
    %c0_514 = arith.constant 0 : index
    %390 = vector.load %arg8[%c976_513, %c0_514] : memref<1024x321xf32, #tpu.memory_space<vmem>>, vector<16x321xf32>
    tpu.vector_store %arg8[%c976_513, %c0_514], %389 {strides = array<i32>} : memref<1024x321xf32, #tpu.memory_space<vmem>>, vector<16x321xf32>,
    %c1_515 = arith.constant 1 : index
    %c0_516 = arith.constant 0 : index
    %c62_517 = arith.constant 62 : index
    %391 = vector.load %arg0[%c1_515, %c0_516, %c62_517] : memref<2x16x384xf32, #tpu.memory_space<vmem>>, vector<1x16x321xf32>
    %392 = vector.shape_cast %391 : vector<1x16x321xf32> to vector<16x321xf32>
    %c992_518 = arith.constant 992 : index
    %c0_519 = arith.constant 0 : index
    %393 = vector.load %arg8[%c992_518, %c0_519] : memref<1024x321xf32, #tpu.memory_space<vmem>>, vector<16x321xf32>
    tpu.vector_store %arg8[%c992_518, %c0_519], %392 {strides = array<i32>} : memref<1024x321xf32, #tpu.memory_space<vmem>>, vector<16x321xf32>,
    %c1_520 = arith.constant 1 : index
    %c0_521 = arith.constant 0 : index
    %c63_522 = arith.constant 63 : index
    %394 = vector.load %arg0[%c1_520, %c0_521, %c63_522] : memref<2x16x384xf32, #tpu.memory_space<vmem>>, vector<1x16x321xf32>
    %395 = vector.shape_cast %394 : vector<1x16x321xf32> to vector<16x321xf32>
    %c1008_523 = arith.constant 1008 : index
    %c0_524 = arith.constant 0 : index
    %396 = vector.load %arg8[%c1008_523, %c0_524] : memref<1024x321xf32, #tpu.memory_space<vmem>>, vector<16x321xf32>
    tpu.vector_store %arg8[%c1008_523, %c0_524], %395 {strides = array<i32>} : memref<1024x321xf32, #tpu.memory_space<vmem>>, vector<16x321xf32>,
    %c0_525 = arith.constant 0 : index
    %c0_526 = arith.constant 0 : index
    %397 = vector.load %arg1[%c0_525, %c0_526] : memref<20x1024xf32, #tpu.memory_space<vmem>>, vector<20x1024xf32>
    %c0_527 = arith.constant 0 : index
    %c0_528 = arith.constant 0 : index
    %398 = vector.load %arg8[%c0_527, %c0_528] : memref<1024x321xf32, #tpu.memory_space<vmem>>, vector<1024x321xf32>
    %cst_529 = arith.constant dense<0.000000e+00> : vector<20x321xf32>
    %399 = tpu.matmul %397, %398, %cst_529 {dimension_numbers = #tpu.dot_dimension_numbers<[1], [0], [0], [1], [0, 0, 1, 1], [], []>} : vector<20x1024xf32>, vector<1024x321xf32>, vector<20x321xf32> -> vector<20x321xf32>
    %c0_530 = arith.constant 0 : index
    %c0_531 = arith.constant 0 : index
    %400 = vector.load %arg2[%c0_530, %c0_531] : memref<20x1xf32, #tpu.memory_space<vmem>>, vector<20x1xf32>
    %401 = vector.broadcast %400 : vector<20x1xf32> to vector<20x321xf32>
    %402 = arith.addf %399, %401 : vector<20x321xf32>
    %cst_532 = arith.constant 0.000000e+00 : f32
    %403 = vector.broadcast %cst_532 : f32 to vector<20x321xf32>
    %404 = arith.maximumf %402, %403 : vector<20x321xf32>
    %cst_533 = arith.constant dense<0.000000e+00> : vector<20xf32>
    %405 = vector.multi_reduction <add>, %404, %cst_533 [1] : vector<20x321xf32> to vector<20xf32>
    %406 = vector.shape_cast %405 : vector<20xf32> to vector<20x1xf32>
    %407 = arith.mulf %404, %404 : vector<20x321xf32>
    %cst_534 = arith.constant dense<0.000000e+00> : vector<20xf32>
    %408 = vector.multi_reduction <add>, %407, %cst_534 [1] : vector<20x321xf32> to vector<20xf32>
    %409 = vector.shape_cast %408 : vector<20xf32> to vector<20x1xf32>
    %410 = tpu.concatenate %201, %406 in 1 : vector<20x1xf32>, vector<20x1xf32> -> vector<20x2xf32>
    %411 = tpu.concatenate %204, %409 in 1 : vector<20x1xf32>, vector<20x1xf32> -> vector<20x2xf32>
    %cst_535 = arith.constant dense<0.000000e+00> : vector<20xf32>
    %412 = vector.multi_reduction <add>, %410, %cst_535 [1] : vector<20x2xf32> to vector<20xf32>
    %413 = vector.shape_cast %412 : vector<20xf32> to vector<20x1xf32>
    %cst_536 = arith.constant 0.00155763235 : f32
    %414 = vector.broadcast %cst_536 : f32 to vector<20x1xf32>
    %415 = arith.mulf %413, %414 : vector<20x1xf32>
    %cst_537 = arith.constant dense<0.000000e+00> : vector<20xf32>
    %416 = vector.multi_reduction <add>, %411, %cst_537 [1] : vector<20x2xf32> to vector<20xf32>
    %417 = vector.shape_cast %416 : vector<20xf32> to vector<20x1xf32>
    %cst_538 = arith.constant 0.00155763235 : f32
    %418 = vector.broadcast %cst_538 : f32 to vector<20x1xf32>
    %419 = arith.mulf %417, %418 : vector<20x1xf32>
    %420 = arith.mulf %415, %415 : vector<20x1xf32>
    %421 = arith.subf %419, %420 : vector<20x1xf32>
    %c0_539 = arith.constant 0 : index
    %c0_540 = arith.constant 0 : index
    %422 = vector.load %arg3[%c0_539, %c0_540] : memref<20x1xf32, #tpu.memory_space<vmem>>, vector<20x1xf32>
    %cst_541 = arith.constant 9.99999974E-6 : f32
    %423 = vector.broadcast %cst_541 : f32 to vector<20x1xf32>
    %424 = arith.addf %421, %423 : vector<20x1xf32>
    %425 = math.rsqrt %424 : vector<20x1xf32>
    %426 = arith.mulf %422, %425 : vector<20x1xf32>
    %cst_542 = arith.constant 0.0031152647 : f32
    %427 = vector.broadcast %cst_542 : f32 to vector<20x2xf32>
    %428 = arith.mulf %410, %427 : vector<20x2xf32>
    %429 = vector.broadcast %415 : vector<20x1xf32> to vector<20x2xf32>
    %430 = arith.subf %428, %429 : vector<20x2xf32>
    %431 = vector.broadcast %426 : vector<20x1xf32> to vector<20x2xf32>
    %432 = arith.mulf %430, %431 : vector<20x2xf32>
    %c0_543 = arith.constant 0 : index
    %c0_544 = arith.constant 0 : index
    %433 = vector.load %arg4[%c0_543, %c0_544] : memref<20x1xf32, #tpu.memory_space<vmem>>, vector<20x1xf32>
    %434 = vector.broadcast %433 : vector<20x1xf32> to vector<20x2xf32>
    %435 = arith.addf %432, %434 : vector<20x2xf32>
    %c0_545 = arith.constant 0 : index
    %c0_546 = arith.constant 0 : index
    %436 = vector.load %arg5[%c0_545, %c0_546] : memref<2x20xf32, #tpu.memory_space<vmem>>, vector<2x20xf32>
    %cst_547 = arith.constant dense<0.000000e+00> : vector<2x2xf32>
    %437 = tpu.matmul %436, %435, %cst_547 {dimension_numbers = #tpu.dot_dimension_numbers<[1], [0], [0], [1], [0, 0, 1, 1], [], []>} : vector<2x20xf32>, vector<20x2xf32>, vector<2x2xf32> -> vector<2x2xf32>
    %c0_548 = arith.constant 0 : index
    %c0_549 = arith.constant 0 : index
    %438 = vector.load %arg6[%c0_548, %c0_549] : memref<2x1xf32, #tpu.memory_space<vmem>>, vector<2x1xf32>
    %439 = vector.broadcast %438 : vector<2x1xf32> to vector<2x2xf32>
    %440 = arith.addf %437, %439 : vector<2x2xf32>
    %cst_550 = arith.constant dense<0xFF800000> : vector<2xf32>
    %441 = vector.multi_reduction <maximumf>, %440, %cst_550 [0] : vector<2x2xf32> to vector<2xf32>
    %442 = vector.shape_cast %441 : vector<2xf32> to vector<1x2xf32>
    %443 = vector.broadcast %442 : vector<1x2xf32> to vector<2x2xf32>
    %444 = arith.subf %440, %443 : vector<2x2xf32>
    %445 = math.exp %444 : vector<2x2xf32>
    %cst_551 = arith.constant dense<0.000000e+00> : vector<2xf32>
    %446 = vector.multi_reduction <add>, %445, %cst_551 [0] : vector<2x2xf32> to vector<2xf32>
    %447 = vector.shape_cast %446 : vector<2xf32> to vector<1x2xf32>
    %448 = vector.broadcast %447 : vector<1x2xf32> to vector<2x2xf32>
    %449 = arith.divf %445, %448 : vector<2x2xf32>
    %c0_552 = arith.constant 0 : index
    %c0_553 = arith.constant 0 : index
    %450 = vector.load %arg7[%c0_552, %c0_553] : memref<2x2xf32, #tpu.memory_space<vmem>>, vector<2x2xf32>
    tpu.vector_store %arg7[%c0_552, %c0_553], %449 {strides = array<i32>} : memref<2x2xf32, #tpu.memory_space<vmem>>, vector<2x2xf32>,
    return
  }
}

</mosaic_0001>

<llo_original>
// kernel: tpu_custom_call.1
$region0: #{tpu_custom_call.1}
  #allocation0 [shape = 'u32[]', space=smem, size = 0x4, offset = 0x4, fixed_abs, tag = 'smem constant byte address 0x4 - core index']
  #allocation1 [shape = 'u32[144,128]{1,0:T(1,128)}', space=vmem, size = 0x12000, scoped, tag = 'internal scratch']
  #allocation2 [shape = 'f32[1024,321]{1,0:T(8,128)}', space=vmem, size = 0x180000, scoped, tag = 'scratch operand']
  %s0 = inlined_call_operand.hbm [shape: f32[2,16,384], index: 0, kind: input, shape index: {}]
  %s1 = inlined_call_operand.hbm [shape: f32[20,1024], index: 1, kind: input, shape index: {}]
  %s2 = inlined_call_operand.vmem [shape: f32[20,1], index: 2, kind: input, shape index: {}]
  %s3 = inlined_call_operand.vmem [shape: f32[20,1], index: 3, kind: input, shape index: {}]
  %s4 = inlined_call_operand.vmem [shape: f32[20,1], index: 4, kind: input, shape index: {}]
  %s5 = inlined_call_operand.vmem [shape: f32[2,20], index: 5, kind: input, shape index: {}]
  %s6 = inlined_call_operand.vmem [shape: f32[2,1], index: 6, kind: input, shape index: {}]
  %s7 = inlined_call_operand.hbm [shape: f32[2,2], index: 7, kind: output, shape index: {}]
  %s8 = sld [smem:[#allocation0]]
  $region46: #{tpu_custom_call.1} parent=0
    _
  %s10 = ssub.s32 1, %s8
  %s11 = scalar_select 0, %s10, %s8
  $region1: #{tpu_custom_call.1} parent=0
    #allocation3 [shape = 'u8[49152]{0}', space=vmem, size = 0xc000, scoped, tag = 'input window, operand 0, single buffered']
    #allocation4 [shape = 's32[1]{0}', space=sflag, size = 0x4, scoped, tag = 'scoped memory for tpu_custom_call.1']
    #allocation5 [shape = 's32[1]{0}', space=sflag, size = 0x4, scoped, tag = 'scoped memory for tpu_custom_call.1']
    #allocation6 [shape = 'u8[98304]{0}', space=vmem, size = 0x18000, scoped, tag = 'input window, operand 1, single buffered']
    #allocation7 [shape = 's32[1]{0}', space=sflag, size = 0x4, scoped, tag = 'scoped memory for tpu_custom_call.1']
    #allocation8 [shape = 'u8[1024]{0}', space=vmem, size = 0x400, scoped, tag = 'output window, operand 0, single buffered']
    %12 = vsyncpa [#allocation4], 0
    %13 = vsyncpa [#allocation7], 0
    %14 = vsyncpa [#allocation5], 0
    // Predicated region
    $region2: #{tpu_custom_call.1} parent=1 // pred_check
      _
    $region3: #{tpu_custom_call.1} parent=1 // pred_check_branch
      %16 = sbr.rel (0) target = $region5
    $region4: #{tpu_custom_call.1} parent=1 // pred_region
      %s18 = ssub.s32 1536, 1536
      %19 = vsyncadd [#allocation4], %s18
      %s20 = sshll.u32 [#allocation3], 4
      %s21 = int_to_ptr.vmem [resolvable:$true] %s20
      %26 = dma.hbm_to_vmem [thread:$0]  %s0, 1536, %s21, [#allocation4], 384, 384, 24
    $region5: #{tpu_custom_call.1} parent=1 // pred_fallthru
      _
    // Predicated region
    $region6: #{tpu_custom_call.1} parent=1 // pred_check
      _
    $region7: #{tpu_custom_call.1} parent=1 // pred_check_branch
      %28 = sbr.rel (0) target = $region9
    $region8: #{tpu_custom_call.1} parent=1 // pred_region
      %s30 = ssub.s32 3072, 3072
      %31 = vsyncadd [#allocation7], %s30
      %s32 = sshll.u32 [#allocation6], 4
      %s33 = int_to_ptr.vmem [resolvable:$true] %s32
      %38 = dma.hbm_to_vmem [thread:$0]  %s1, 3072, %s33, [#allocation7], 1024, 1024, 64
    $region9: #{tpu_custom_call.1} parent=1 // pred_fallthru
      _
    // Predicated region
    $region10: #{tpu_custom_call.1} parent=1 // pred_check
      _
    $region11: #{tpu_custom_call.1} parent=1 // pred_check_branch
      %40 = sbr.rel (0) target = $region13
    $region12: #{tpu_custom_call.1} parent=1 // pred_region
      _
    $region13: #{tpu_custom_call.1} parent=1 // pred_fallthru
      _
    // Predicated region
    $region14: #{tpu_custom_call.1} parent=1 // pred_check
      _
    $region15: #{tpu_custom_call.1} parent=1 // pred_check_branch
      %42 = sbr.rel (0) target = $region17
    $region16: #{tpu_custom_call.1} parent=1 // pred_region
      _
    $region17: #{tpu_custom_call.1} parent=1 // pred_fallthru
      _
    // Predicated region
    $region18: #{tpu_custom_call.1} parent=1 // pred_check
      _
    $region19: #{tpu_custom_call.1} parent=1 // pred_check_branch
      %44 = sbr.rel (0) target = $region21
    $region20: #{tpu_custom_call.1} parent=1 // pred_region
      _
    $region21: #{tpu_custom_call.1} parent=1 // pred_fallthru
      _
    // Predicated region
    $region22: #{tpu_custom_call.1} parent=1 // pred_check
      _
    $region23: #{tpu_custom_call.1} parent=1 // pred_check_branch
      %46 = sbr.rel (0) target = $region25
    $region24: #{tpu_custom_call.1} parent=1 // pred_region
      _
    $region25: #{tpu_custom_call.1} parent=1 // pred_fallthru
      _
    // Predicated region
    $region26: #{tpu_custom_call.1} parent=1 // pred_check
      _
    $region27: #{tpu_custom_call.1} parent=1 // pred_check_branch
      %48 = sbr.rel (0) target = $region29
    $region28: #{tpu_custom_call.1} parent=1 // pred_region
      _
    $region29: #{tpu_custom_call.1} parent=1 // pred_fallthru
      _
    // Predicated region
    $region30: #{tpu_custom_call.1} parent=1 // pred_check
      _
    $region31: #{tpu_custom_call.1} parent=1 // pred_check_branch
      %50 = sbr.rel (0) target = $region33
    $region32: #{tpu_custom_call.1} parent=1 // pred_region
      %51 = dma.done [#allocation4], 1536
    $region33: #{tpu_custom_call.1} parent=1 // pred_fallthru
      _
    // Predicated region
    $region34: #{tpu_custom_call.1} parent=1 // pred_check
      _
    $region35: #{tpu_custom_call.1} parent=1 // pred_check_branch
      %53 = sbr.rel (0) target = $region37
    $region36: #{tpu_custom_call.1} parent=1 // pred_region
      %54 = dma.done [#allocation7], 3072
    $region37: #{tpu_custom_call.1} parent=1 // pred_fallthru
      _
    %v55 = vld [vmem:[#allocation3] sm:$0xff]
    %v56 = vld [vmem:[#allocation3 + $0x8] sm:$0xff]
    %v57 = vld [vmem:[#allocation3 + $0x10] sm:$0xff]
    %v58 = vld [vmem:[#allocation3 + $0x18] sm:$0xff]
    %v59 = vld [vmem:[#allocation3 + $0x20] sm:$0xff]
    %v60 = vld [vmem:[#allocation3 + $0x28] sm:$0xff]
    %61 = vst [vmem:[#allocation2] sm:$0xff] %v55
    %62 = vst [vmem:[#allocation2 + $0x8] sm:$0xff] %v56
    %vm63 = vcmask 531456
    %64 = vst.msk [vmem:[#allocation2 + $0x10] sm:$0xff] %vm63, %v57
    %65 = vst [vmem:[#allocation2 + $0x18] sm:$0xff] %v58
    %66 = vst [vmem:[#allocation2 + $0x20] sm:$0xff] %v59
    %67 = vst.msk [vmem:[#allocation2 + $0x28] sm:$0xff] %vm63, %v60
    %v68 = vld [vmem:[#allocation3] sm:$0xff]
    %v69 = vld [vmem:[#allocation3 + $0x8] sm:$0xff]
    %v70 = vld [vmem:[#allocation3 + $0x10] sm:$0xff]
    %v71 = vld [vmem:[#allocation3 + $0x18] sm:$0xff]
    %v72 = vld [vmem:[#allocation3 + $0x20] sm:$0xff]
    %v73 = vld [vmem:[#allocation3 + $0x28] sm:$0xff]
    %80 = vrot.lane.b32.xlu0 %v68, 127
    %v81 = vpop.permute.xlu0 %80
    %82 = vrot.lane.b32.xlu0 %v69, 127
    %v83 = vpop.permute.xlu0 %82
    %84 = vrot.lane.b32.xlu0 %v70, 127
    %v85 = vpop.permute.xlu0 %84
    %86 = vrot.lane.b32.xlu0 %v71, 127
    %v87 = vpop.permute.xlu0 %86
    %88 = vrot.lane.b32.xlu0 %v72, 127
    %v89 = vpop.permute.xlu0 %88
    %90 = vrot.lane.b32.xlu0 %v73, 127
    %v91 = vpop.permute.xlu0 %90
    %vm92 = vcmask 1039360
    %v93 = vsel %vm92, %v81, %v83
    %v94 = vsel %vm92, %v83, %v85
    %v95 = vsel %vm92, %v87, %v89
    %v96 = vsel %vm92, %v89, %v91
    %103 = vst [vmem:[#allocation2 + $0x30] sm:$0xff] %v93
    %104 = vst [vmem:[#allocation2 + $0x38] sm:$0xff] %v94
    %105 = vst.msk [vmem:[#allocation2 + $0x40] sm:$0xff] %vm63, %v85
    %106 = vst [vmem:[#allocation2 + $0x48] sm:$0xff] %v95
    %107 = vst [vmem:[#allocation2 + $0x50] sm:$0xff] %v96
    %108 = vst.msk [vmem:[#allocation2 + $0x58] sm:$0xff] %vm63, %v91
    %v109 = vld [vmem:[#allocation3] sm:$0xff]
    %v110 = vld [vmem:[#allocation3 + $0x8] sm:$0xff]
    %v111 = vld [vmem:[#allocation3 + $0x10] sm:$0xff]
    %v112 = vld [vmem:[#allocation3 + $0x18] sm:$0xff]
    %v113 = vld [vmem:[#allocation3 + $0x20] sm:$0xff]
    %v114 = vld [vmem:[#allocation3 + $0x28] sm:$0xff]
    %121 = vrot.lane.b32.xlu0 %v109, 126
    %v122 = vpop.permute.xlu0 %121
    %123 = vrot.lane.b32.xlu0 %v110, 126
    %v124 = vpop.permute.xlu0 %123
    %125 = vrot.lane.b32.xlu0 %v111, 126
    %v126 = vpop.permute.xlu0 %125
    %127 = vrot.lane.b32.xlu0 %v112, 126
    %v128 = vpop.permute.xlu0 %127
    %129 = vrot.lane.b32.xlu0 %v113, 126
    %v130 = vpop.permute.xlu0 %129
    %131 = vrot.lane.b32.xlu0 %v114, 126
    %v132 = vpop.permute.xlu0 %131
    %vm133 = vcmask 1031168
    %v134 = vsel %vm133, %v122, %v124
    %v135 = vsel %vm133, %v124, %v126
    %v136 = vsel %vm133, %v128, %v130
    %v137 = vsel %vm133, %v130, %v132
    %144 = vst [vmem:[#allocation2 + $0x60] sm:$0xff] %v134
    %145 = vst [vmem:[#allocation2 + $0x68] sm:$0xff] %v135
    %146 = vst.msk [vmem:[#allocation2 + $0x70] sm:$0xff] %vm63, %v126
    %147 = vst [vmem:[#allocation2 + $0x78] sm:$0xff] %v136
    %148 = vst [vmem:[#allocation2 + $0x80] sm:$0xff] %v137
    %149 = vst.msk [vmem:[#allocation2 + $0x88] sm:$0xff] %vm63, %v132
    %v150 = vld [vmem:[#allocation3] sm:$0xff]
    %v151 = vld [vmem:[#allocation3 + $0x8] sm:$0xff]
    %v152 = vld [vmem:[#allocation3 + $0x10] sm:$0xff]
    %v153 = vld [vmem:[#allocation3 + $0x18] sm:$0xff]
    %v154 = vld [vmem:[#allocation3 + $0x20] sm:$0xff]
    %v155 = vld [vmem:[#allocation3 + $0x28] sm:$0xff]
    %162 = vrot.lane.b32.xlu0 %v150, 125
    %v163 = vpop.permute.xlu0 %162
    %164 = vrot.lane.b32.xlu0 %v151, 125
    %v165 = vpop.permute.xlu0 %164
    %166 = vrot.lane.b32.xlu0 %v152, 125
    %v167 = vpop.permute.xlu0 %166
    %168 = vrot.lane.b32.xlu0 %v153, 125
    %v169 = vpop.permute.xlu0 %168
    %170 = vrot.lane.b32.xlu0 %v154, 125
    %v171 = vpop.permute.xlu0 %170
    %172 = vrot.lane.b32.xlu0 %v155, 125
    %v173 = vpop.permute.xlu0 %172
    %vm174 = vcmask 1022976
    %v175 = vsel %vm174, %v163, %v165
    %v176 = vsel %vm174, %v165, %v167
    %v177 = vsel %vm174, %v169, %v171
    %v178 = vsel %vm174, %v171, %v173
    %185 = vst [vmem:[#allocation2 + $0x90] sm:$0xff] %v175
    %186 = vst [vmem:[#allocation2 + $0x98] sm:$0xff] %v176
    %187 = vst.msk [vmem:[#allocation2 + $0xa0] sm:$0xff] %vm63, %v167
    %188 = vst [vmem:[#allocation2 + $0xa8] sm:$0xff] %v177
    %189 = vst [vmem:[#allocation2 + $0xb0] sm:$0xff] %v178
    %190 = vst.msk [vmem:[#allocation2 + $0xb8] sm:$0xff] %vm63, %v173
    %v191 = vld [vmem:[#allocation3] sm:$0xff]
    %v192 = vld [vmem:[#allocation3 + $0x8] sm:$0xff]
    %v193 = vld [vmem:[#allocation3 + $0x10] sm:$0xff]
    %v194 = vld [vmem:[#allocation3 + $0x18] sm:$0xff]
    %v195 = vld [vmem:[#allocation3 + $0x20] sm:$0xff]
    %v196 = vld [vmem:[#allocation3 + $0x28] sm:$0xff]
    %203 = vrot.lane.b32.xlu0 %v191, 124
    %v204 = vpop.permute.xlu0 %203
    %205 = vrot.lane.b32.xlu0 %v192, 124
    %v206 = vpop.permute.xlu0 %205
    %207 = vrot.lane.b32.xlu0 %v193, 124
    %v208 = vpop.permute.xlu0 %207
    %209 = vrot.lane.b32.xlu0 %v194, 124
    %v210 = vpop.permute.xlu0 %209
    %211 = vrot.lane.b32.xlu0 %v195, 124
    %v212 = vpop.permute.xlu0 %211
    %213 = vrot.lane.b32.xlu0 %v196, 124
    %v214 = vpop.permute.xlu0 %213
    %vm215 = vcmask 1014784
    %v216 = vsel %vm215, %v204, %v206
    %v217 = vsel %vm215, %v206, %v208
    %v218 = vsel %vm215, %v210, %v212
    %v219 = vsel %vm215, %v212, %v214
    %226 = vst [vmem:[#allocation2 + $0xc0] sm:$0xff] %v216
    %227 = vst [vmem:[#allocation2 + $0xc8] sm:$0xff] %v217
    %228 = vst.msk [vmem:[#allocation2 + $0xd0] sm:$0xff] %vm63, %v208
    %229 = vst [vmem:[#allocation2 + $0xd8] sm:$0xff] %v218
    %230 = vst [vmem:[#allocation2 + $0xe0] sm:$0xff] %v219
    %231 = vst.msk [vmem:[#allocation2 + $0xe8] sm:$0xff] %vm63, %v214
    %v232 = vld [vmem:[#allocation3] sm:$0xff]
    %v233 = vld [vmem:[#allocation3 + $0x8] sm:$0xff]
    %v234 = vld [vmem:[#allocation3 + $0x10] sm:$0xff]
    %v235 = vld [vmem:[#allocation3 + $0x18] sm:$0xff]
    %v236 = vld [vmem:[#allocation3 + $0x20] sm:$0xff]
    %v237 = vld [vmem:[#allocation3 + $0x28] sm:$0xff]
    %244 = vrot.lane.b32.xlu0 %v232, 123
    %v245 = vpop.permute.xlu0 %244
    %246 = vrot.lane.b32.xlu0 %v233, 123
    %v247 = vpop.permute.xlu0 %246
    %248 = vrot.lane.b32.xlu0 %v234, 123
    %v249 = vpop.permute.xlu0 %248
    %250 = vrot.lane.b32.xlu0 %v235, 123
    %v251 = vpop.permute.xlu0 %250
    %252 = vrot.lane.b32.xlu0 %v236, 123
    %v253 = vpop.permute.xlu0 %252
    %254 = vrot.lane.b32.xlu0 %v237, 123
    %v255 = vpop.permute.xlu0 %254
    %vm256 = vcmask 1006592
    %v257 = vsel %vm256, %v245, %v247
    %v258 = vsel %vm256, %v247, %v249
    %v259 = vsel %vm256, %v251, %v253
    %v260 = vsel %vm256, %v253, %v255
    %267 = vst [vmem:[#allocation2 + $0xf0] sm:$0xff] %v257
    %268 = vst [vmem:[#allocation2 + $0xf8] sm:$0xff] %v258
    %269 = vst.msk [vmem:[#allocation2 + $0x100] sm:$0xff] %vm63, %v249
    %270 = vst [vmem:[#allocation2 + $0x108] sm:$0xff] %v259
    %271 = vst [vmem:[#allocation2 + $0x110] sm:$0xff] %v260
    %272 = vst.msk [vmem:[#allocation2 + $0x118] sm:$0xff] %vm63, %v255
    %v273 = vld [vmem:[#allocation3] sm:$0xff]
    %v274 = vld [vmem:[#allocation3 + $0x8] sm:$0xff]
    %v275 = vld [vmem:[#allocation3 + $0x10] sm:$0xff]
    %v276 = vld [vmem:[#allocation3 + $0x18] sm:$0xff]
    %v277 = vld [vmem:[#allocation3 + $0x20] sm:$0xff]
    %v278 = vld [vmem:[#allocation3 + $0x28] sm:$0xff]
    %285 = vrot.lane.b32.xlu0 %v273, 122
    %v286 = vpop.permute.xlu0 %285
    %287 = vrot.lane.b32.xlu0 %v274, 122
    %v288 = vpop.permute.xlu0 %287
    %289 = vrot.lane.b32.xlu0 %v275, 122
    %v290 = vpop.permute.xlu0 %289
    %291 = vrot.lane.b32.xlu0 %v276, 122
    %v292 = vpop.permute.xlu0 %291
    %293 = vrot.lane.b32.xlu0 %v277, 122
    %v294 = vpop.permute.xlu0 %293
    %295 = vrot.lane.b32.xlu0 %v278, 122
    %v296 = vpop.permute.xlu0 %295
    %vm297 = vcmask 998400
    %v298 = vsel %vm297, %v286, %v288
    %v299 = vsel %vm297, %v288, %v290
    %v300 = vsel %vm297, %v292, %v294
    %v301 = vsel %vm297, %v294, %v296
    %308 = vst [vmem:[#allocation2 + $0x120] sm:$0xff] %v298
    %309 = vst [vmem:[#allocation2 + $0x128] sm:$0xff] %v299
    %310 = vst.msk [vmem:[#allocation2 + $0x130] sm:$0xff] %vm63, %v290
    %311 = vst [vmem:[#allocation2 + $0x138] sm:$0xff] %v300
    %312 = vst [vmem:[#allocation2 + $0x140] sm:$0xff] %v301
    %313 = vst.msk [vmem:[#allocation2 + $0x148] sm:$0xff] %vm63, %v296
    %v314 = vld [vmem:[#allocation3] sm:$0xff]
    %v315 = vld [vmem:[#allocation3 + $0x8] sm:$0xff]
    %v316 = vld [vmem:[#allocation3 + $0x10] sm:$0xff]
    %v317 = vld [vmem:[#allocation3 + $0x18] sm:$0xff]
    %v318 = vld [vmem:[#allocation3 + $0x20] sm:$0xff]
    %v319 = vld [vmem:[#allocation3 + $0x28] sm:$0xff]
    %326 = vrot.lane.b32.xlu0 %v314, 121
    %v327 = vpop.permute.xlu0 %326
    %328 = vrot.lane.b32.xlu0 %v315, 121
    %v329 = vpop.permute.xlu0 %328
    %330 = vrot.lane.b32.xlu0 %v316, 121
    %v331 = vpop.permute.xlu0 %330
    %332 = vrot.lane.b32.xlu0 %v317, 121
    %v333 = vpop.permute.xlu0 %332
    %334 = vrot.lane.b32.xlu0 %v318, 121
    %v335 = vpop.permute.xlu0 %334
    %336 = vrot.lane.b32.xlu0 %v319, 121
    %v337 = vpop.permute.xlu0 %336
    %vm338 = vcmask 990208
    %v339 = vsel %vm338, %v327, %v329
    %v340 = vsel %vm338, %v329, %v331
    %v341 = vsel %vm338, %v333, %v335
    %v342 = vsel %vm338, %v335, %v337
    %349 = vst [vmem:[#allocation2 + $0x150] sm:$0xff] %v339
    %350 = vst [vmem:[#allocation2 + $0x158] sm:$0xff] %v340
    %351 = vst.msk [vmem:[#allocation2 + $0x160] sm:$0xff] %vm63, %v331
    %352 = vst [vmem:[#allocation2 + $0x168] sm:$0xff] %v341
    %353 = vst [vmem:[#allocation2 + $0x170] sm:$0xff] %v342
    %354 = vst.msk [vmem:[#allocation2 + $0x178] sm:$0xff] %vm63, %v337
    %v355 = vld [vmem:[#allocation3] sm:$0xff]
    %v356 = vld [vmem:[#allocation3 + $0x8] sm:$0xff]
    %v357 = vld [vmem:[#allocation3 + $0x10] sm:$0xff]
    %v358 = vld [vmem:[#allocation3 + $0x18] sm:$0xff]
    %v359 = vld [vmem:[#allocation3 + $0x20] sm:$0xff]
    %v360 = vld [vmem:[#allocation3 + $0x28] sm:$0xff]
    %367 = vrot.lane.b32.xlu0 %v355, 120
    %v368 = vpop.permute.xlu0 %367
    %369 = vrot.lane.b32.xlu0 %v356, 120
    %v370 = vpop.permute.xlu0 %369
    %371 = vrot.lane.b32.xlu0 %v357, 120
    %v372 = vpop.permute.xlu0 %371
    %373 = vrot.lane.b32.xlu0 %v358, 120
    %v374 = vpop.permute.xlu0 %373
    %375 = vrot.lane.b32.xlu0 %v359, 120
    %v376 = vpop.permute.xlu0 %375
    %377 = vrot.lane.b32.xlu0 %v360, 120
    %v378 = vpop.permute.xlu0 %377
    %vm379 = vcmask 982016
    %v380 = vsel %vm379, %v368, %v370
    %v381 = vsel %vm379, %v370, %v372
    %v382 = vsel %vm379, %v374, %v376
    %v383 = vsel %vm379, %v376, %v378
    %390 = vst [vmem:[#allocation2 + $0x180] sm:$0xff] %v380
    %391 = vst [vmem:[#allocation2 + $0x188] sm:$0xff] %v381
    %392 = vst.msk [vmem:[#allocation2 + $0x190] sm:$0xff] %vm63, %v372
    %393 = vst [vmem:[#allocation2 + $0x198] sm:$0xff] %v382
    %394 = vst [vmem:[#allocation2 + $0x1a0] sm:$0xff] %v383
    %395 = vst.msk [vmem:[#allocation2 + $0x1a8] sm:$0xff] %vm63, %v378
    %v396 = vld [vmem:[#allocation3] sm:$0xff]
    %v397 = vld [vmem:[#allocation3 + $0x8] sm:$0xff]
    %v398 = vld [vmem:[#allocation3 + $0x10] sm:$0xff]
    %v399 = vld [vmem:[#allocation3 + $0x18] sm:$0xff]
    %v400 = vld [vmem:[#allocation3 + $0x20] sm:$0xff]
    %v401 = vld [vmem:[#allocation3 + $0x28] sm:$0xff]
    %408 = vrot.lane.b32.xlu0 %v396, 119
    %v409 = vpop.permute.xlu0 %408
    %410 = vrot.lane.b32.xlu0 %v397, 119
    %v411 = vpop.permute.xlu0 %410
    %412 = vrot.lane.b32.xlu0 %v398, 119
    %v413 = vpop.permute.xlu0 %412
    %414 = vrot.lane.b32.xlu0 %v399, 119
    %v415 = vpop.permute.xlu0 %414
    %416 = vrot.lane.b32.xlu0 %v400, 119
    %v417 = vpop.permute.xlu0 %416
    %418 = vrot.lane.b32.xlu0 %v401, 119
    %v419 = vpop.permute.xlu0 %418
    %vm420 = vcmask 973824
    %v421 = vsel %vm420, %v409, %v411
    %v422 = vsel %vm420, %v411, %v413
    %v423 = vsel %vm420, %v415, %v417
    %v424 = vsel %vm420, %v417, %v419
    %431 = vst [vmem:[#allocation2 + $0x1b0] sm:$0xff] %v421
    %432 = vst [vmem:[#allocation2 + $0x1b8] sm:$0xff] %v422
    %433 = vst.msk [vmem:[#allocation2 + $0x1c0] sm:$0xff] %vm63, %v413
    %434 = vst [vmem:[#allocation2 + $0x1c8] sm:$0xff] %v423
    %435 = vst [vmem:[#allocation2 + $0x1d0] sm:$0xff] %v424
    %436 = vst.msk [vmem:[#allocation2 + $0x1d8] sm:$0xff] %vm63, %v419
    %v437 = vld [vmem:[#allocation3] sm:$0xff]
    %v438 = vld [vmem:[#allocation3 + $0x8] sm:$0xff]
    %v439 = vld [vmem:[#allocation3 + $0x10] sm:$0xff]
    %v440 = vld [vmem:[#allocation3 + $0x18] sm:$0xff]
    %v441 = vld [vmem:[#allocation3 + $0x20] sm:$0xff]
    %v442 = vld [vmem:[#allocation3 + $0x28] sm:$0xff]
    %449 = vrot.lane.b32.xlu0 %v437, 118
    %v450 = vpop.permute.xlu0 %449
    %451 = vrot.lane.b32.xlu0 %v438, 118
    %v452 = vpop.permute.xlu0 %451
    %453 = vrot.lane.b32.xlu0 %v439, 118
    %v454 = vpop.permute.xlu0 %453
    %455 = vrot.lane.b32.xlu0 %v440, 118
    %v456 = vpop.permute.xlu0 %455
    %457 = vrot.lane.b32.xlu0 %v441, 118
    %v458 = vpop.permute.xlu0 %457
    %459 = vrot.lane.b32.xlu0 %v442, 118
    %v460 = vpop.permute.xlu0 %459
    %vm461 = vcmask 965632
    %v462 = vsel %vm461, %v450, %v452
    %v463 = vsel %vm461, %v452, %v454
    %v464 = vsel %vm461, %v456, %v458
    %v465 = vsel %vm461, %v458, %v460
    %472 = vst [vmem:[#allocation2 + $0x1e0] sm:$0xff] %v462
    %473 = vst [vmem:[#allocation2 + $0x1e8] sm:$0xff] %v463
    %474 = vst.msk [vmem:[#allocation2 + $0x1f0] sm:$0xff] %vm63, %v454
    %475 = vst [vmem:[#allocation2 + $0x1f8] sm:$0xff] %v464
    %476 = vst [vmem:[#allocation2 + $0x200] sm:$0xff] %v465
    %477 = vst.msk [vmem:[#allocation2 + $0x208] sm:$0xff] %vm63, %v460
    %v478 = vld [vmem:[#allocation3] sm:$0xff]
    %v479 = vld [vmem:[#allocation3 + $0x8] sm:$0xff]
    %v480 = vld [vmem:[#allocation3 + $0x10] sm:$0xff]
    %v481 = vld [vmem:[#allocation3 + $0x18] sm:$0xff]
    %v482 = vld [vmem:[#allocation3 + $0x20] sm:$0xff]
    %v483 = vld [vmem:[#allocation3 + $0x28] sm:$0xff]
    %490 = vrot.lane.b32.xlu0 %v478, 117
    %v491 = vpop.permute.xlu0 %490
    %492 = vrot.lane.b32.xlu0 %v479, 117
    %v493 = vpop.permute.xlu0 %492
    %494 = vrot.lane.b32.xlu0 %v480, 117
    %v495 = vpop.permute.xlu0 %494
    %496 = vrot.lane.b32.xlu0 %v481, 117
    %v497 = vpop.permute.xlu0 %496
    %498 = vrot.lane.b32.xlu0 %v482, 117
    %v499 = vpop.permute.xlu0 %498
    %500 = vrot.lane.b32.xlu0 %v483, 117
    %v501 = vpop.permute.xlu0 %500
    %vm502 = vcmask 957440
    %v503 = vsel %vm502, %v491, %v493
    %v504 = vsel %vm502, %v493, %v495
    %v505 = vsel %vm502, %v497, %v499
    %v506 = vsel %vm502, %v499, %v501
    %513 = vst [vmem:[#allocation2 + $0x210] sm:$0xff] %v503
    %514 = vst [vmem:[#allocation2 + $0x218] sm:$0xff] %v504
    %515 = vst.msk [vmem:[#allocation2 + $0x220] sm:$0xff] %vm63, %v495
    %516 = vst [vmem:[#allocation2 + $0x228] sm:$0xff] %v505
    %517 = vst [vmem:[#allocation2 + $0x230] sm:$0xff] %v506
    %518 = vst.msk [vmem:[#allocation2 + $0x238] sm:$0xff] %vm63, %v501
    %v519 = vld [vmem:[#allocation3] sm:$0xff]
    %v520 = vld [vmem:[#allocation3 + $0x8] sm:$0xff]
    %v521 = vld [vmem:[#allocation3 + $0x10] sm:$0xff]
    %v522 = vld [vmem:[#allocation3 + $0x18] sm:$0xff]
    %v523 = vld [vmem:[#allocation3 + $0x20] sm:$0xff]
    %v524 = vld [vmem:[#allocation3 + $0x28] sm:$0xff]
    %531 = vrot.lane.b32.xlu0 %v519, 116
    %v532 = vpop.permute.xlu0 %531
    %533 = vrot.lane.b32.xlu0 %v520, 116
    %v534 = vpop.permute.xlu0 %533
    %535 = vrot.lane.b32.xlu0 %v521, 116
    %v536 = vpop.permute.xlu0 %535
    %537 = vrot.lane.b32.xlu0 %v522, 116
    %v538 = vpop.permute.xlu0 %537
    %539 = vrot.lane.b32.xlu0 %v523, 116
    %v540 = vpop.permute.xlu0 %539
    %541 = vrot.lane.b32.xlu0 %v524, 116
    %v542 = vpop.permute.xlu0 %541
    %vm543 = vcmask 949248
    %v544 = vsel %vm543, %v532, %v534
    %v545 = vsel %vm543, %v534, %v536
    %v546 = vsel %vm543, %v538, %v540
    %v547 = vsel %vm543, %v540, %v542
    %554 = vst [vmem:[#allocation2 + $0x240] sm:$0xff] %v544
    %555 = vst [vmem:[#allocation2 + $0x248] sm:$0xff] %v545
    %556 = vst.msk [vmem:[#allocation2 + $0x250] sm:$0xff] %vm63, %v536
    %557 = vst [vmem:[#allocation2 + $0x258] sm:$0xff] %v546
    %558 = vst [vmem:[#allocation2 + $0x260] sm:$0xff] %v547
    %559 = vst.msk [vmem:[#allocation2 + $0x268] sm:$0xff] %vm63, %v542
    %v560 = vld [vmem:[#allocation3] sm:$0xff]
    %v561 = vld [vmem:[#allocation3 + $0x8] sm:$0xff]
    %v562 = vld [vmem:[#allocation3 + $0x10] sm:$0xff]
    %v563 = vld [vmem:[#allocation3 + $0x18] sm:$0xff]
    %v564 = vld [vmem:[#allocation3 + $0x20] sm:$0xff]
    %v565 = vld [vmem:[#allocation3 + $0x28] sm:$0xff]
    %572 = vrot.lane.b32.xlu0 %v560, 115
    %v573 = vpop.permute.xlu0 %572
    %574 = vrot.lane.b32.xlu0 %v561, 115
    %v575 = vpop.permute.xlu0 %574
    %576 = vrot.lane.b32.xlu0 %v562, 115
    %v577 = vpop.permute.xlu0 %576
    %578 = vrot.lane.b32.xlu0 %v563, 115
    %v579 = vpop.permute.xlu0 %578
    %580 = vrot.lane.b32.xlu0 %v564, 115
    %v581 = vpop.permute.xlu0 %580
    %582 = vrot.lane.b32.xlu0 %v565, 115
    %v583 = vpop.permute.xlu0 %582
    %vm584 = vcmask 941056
    %v585 = vsel %vm584, %v573, %v575
    %v586 = vsel %vm584, %v575, %v577
    %v587 = vsel %vm584, %v579, %v581
    %v588 = vsel %vm584, %v581, %v583
    %595 = vst [vmem:[#allocation2 + $0x270] sm:$0xff] %v585
    %596 = vst [vmem:[#allocation2 + $0x278] sm:$0xff] %v586
    %597 = vst.msk [vmem:[#allocation2 + $0x280] sm:$0xff] %vm63, %v577
    %598 = vst [vmem:[#allocation2 + $0x288] sm:$0xff] %v587
    %599 = vst [vmem:[#allocation2 + $0x290] sm:$0xff] %v588
    %600 = vst.msk [vmem:[#allocation2 + $0x298] sm:$0xff] %vm63, %v583
    %v601 = vld [vmem:[#allocation3] sm:$0xff]
    %v602 = vld [vmem:[#allocation3 + $0x8] sm:$0xff]
    %v603 = vld [vmem:[#allocation3 + $0x10] sm:$0xff]
    %v604 = vld [vmem:[#allocation3 + $0x18] sm:$0xff]
    %v605 = vld [vmem:[#allocation3 + $0x20] sm:$0xff]
    %v606 = vld [vmem:[#allocation3 + $0x28] sm:$0xff]
    %613 = vrot.lane.b32.xlu0 %v601, 114
    %v614 = vpop.permute.xlu0 %613
    %615 = vrot.lane.b32.xlu0 %v602, 114
    %v616 = vpop.permute.xlu0 %615
    %617 = vrot.lane.b32.xlu0 %v603, 114
    %v618 = vpop.permute.xlu0 %617
    %619 = vrot.lane.b32.xlu0 %v604, 114
    %v620 = vpop.permute.xlu0 %619
    %621 = vrot.lane.b32.xlu0 %v605, 114
    %v622 = vpop.permute.xlu0 %621
    %623 = vrot.lane.b32.xlu0 %v606, 114
    %v624 = vpop.permute.xlu0 %623
    %vm625 = vcmask 932864
    %v626 = vsel %vm625, %v614, %v616
    %v627 = vsel %vm625, %v616, %v618
    %v628 = vsel %vm625, %v620, %v622
    %v629 = vsel %vm625, %v622, %v624
    %636 = vst [vmem:[#allocation2 + $0x2a0] sm:$0xff] %v626
    %637 = vst [vmem:[#allocation2 + $0x2a8] sm:$0xff] %v627
    %638 = vst.msk [vmem:[#allocation2 + $0x2b0] sm:$0xff] %vm63, %v618
    %639 = vst [vmem:[#allocation2 + $0x2b8] sm:$0xff] %v628
    %640 = vst [vmem:[#allocation2 + $0x2c0] sm:$0xff] %v629
    %641 = vst.msk [vmem:[#allocation2 + $0x2c8] sm:$0xff] %vm63, %v624
    %v642 = vld [vmem:[#allocation3] sm:$0xff]
    %v643 = vld [vmem:[#allocation3 + $0x8] sm:$0xff]
    %v644 = vld [vmem:[#allocation3 + $0x10] sm:$0xff]
    %v645 = vld [vmem:[#allocation3 + $0x18] sm:$0xff]
    %v646 = vld [vmem:[#allocation3 + $0x20] sm:$0xff]
    %v647 = vld [vmem:[#allocation3 + $0x28] sm:$0xff]
    %654 = vrot.lane.b32.xlu0 %v642, 113
    %v655 = vpop.permute.xlu0 %654
    %656 = vrot.lane.b32.xlu0 %v643, 113
    %v657 = vpop.permute.xlu0 %656
    %658 = vrot.lane.b32.xlu0 %v644, 113
    %v659 = vpop.permute.xlu0 %658
    %660 = vrot.lane.b32.xlu0 %v645, 113
    %v661 = vpop.permute.xlu0 %660
    %662 = vrot.lane.b32.xlu0 %v646, 113
    %v663 = vpop.permute.xlu0 %662
    %664 = vrot.lane.b32.xlu0 %v647, 113
    %v665 = vpop.permute.xlu0 %664
    %vm666 = vcmask 924672
    %v667 = vsel %vm666, %v655, %v657
    %v668 = vsel %vm666, %v657, %v659
    %v669 = vsel %vm666, %v661, %v663
    %v670 = vsel %vm666, %v663, %v665
    %677 = vst [vmem:[#allocation2 + $0x2d0] sm:$0xff] %v667
    %678 = vst [vmem:[#allocation2 + $0x2d8] sm:$0xff] %v668
    %679 = vst.msk [vmem:[#allocation2 + $0x2e0] sm:$0xff] %vm63, %v659
    %680 = vst [vmem:[#allocation2 + $0x2e8] sm:$0xff] %v669
    %681 = vst [vmem:[#allocation2 + $0x2f0] sm:$0xff] %v670
    %682 = vst.msk [vmem:[#allocation2 + $0x2f8] sm:$0xff] %vm63, %v665
    %v683 = vld [vmem:[#allocation3] sm:$0xff]
    %v684 = vld [vmem:[#allocation3 + $0x8] sm:$0xff]
    %v685 = vld [vmem:[#allocation3 + $0x10] sm:$0xff]
    %v686 = vld [vmem:[#allocation3 + $0x18] sm:$0xff]
    %v687 = vld [vmem:[#allocation3 + $0x20] sm:$0xff]
    %v688 = vld [vmem:[#allocation3 + $0x28] sm:$0xff]
    %695 = vrot.lane.b32.xlu0 %v683, 112
    %v696 = vpop.permute.xlu0 %695
    %697 = vrot.lane.b32.xlu0 %v684, 112
    %v698 = vpop.permute.xlu0 %697
    %699 = vrot.lane.b32.xlu0 %v685, 112
    %v700 = vpop.permute.xlu0 %699
    %701 = vrot.lane.b32.xlu0 %v686, 112
    %v702 = vpop.permute.xlu0 %701
    %703 = vrot.lane.b32.xlu0 %v687, 112
    %v704 = vpop.permute.xlu0 %703
    %705 = vrot.lane.b32.xlu0 %v688, 112
    %v706 = vpop.permute.xlu0 %705
    %vm707 = vcmask 916480
    %v708 = vsel %vm707, %v696, %v698
    %v709 = vsel %vm707, %v698, %v700
    %v710 = vsel %vm707, %v702, %v704
    %v711 = vsel %vm707, %v704, %v706
    %718 = vst [vmem:[#allocation2 + $0x300] sm:$0xff] %v708
    %719 = vst [vmem:[#allocation2 + $0x308] sm:$0xff] %v709
    %720 = vst.msk [vmem:[#allocation2 + $0x310] sm:$0xff] %vm63, %v700
    %721 = vst [vmem:[#allocation2 + $0x318] sm:$0xff] %v710
    %722 = vst [vmem:[#allocation2 + $0x320] sm:$0xff] %v711
    %723 = vst.msk [vmem:[#allocation2 + $0x328] sm:$0xff] %vm63, %v706
    %v724 = vld [vmem:[#allocation3] sm:$0xff]
    %v725 = vld [vmem:[#allocation3 + $0x8] sm:$0xff]
    %v726 = vld [vmem:[#allocation3 + $0x10] sm:$0xff]
    %v727 = vld [vmem:[#allocation3 + $0x18] sm:$0xff]
    %v728 = vld [vmem:[#allocation3 + $0x20] sm:$0xff]
    %v729 = vld [vmem:[#allocation3 + $0x28] sm:$0xff]
    %736 = vrot.lane.b32.xlu0 %v724, 111
    %v737 = vpop.permute.xlu0 %736
    %738 = vrot.lane.b32.xlu0 %v725, 111
    %v739 = vpop.permute.xlu0 %738
    %740 = vrot.lane.b32.xlu0 %v726, 111
    %v741 = vpop.permute.xlu0 %740
    %742 = vrot.lane.b32.xlu0 %v727, 111
    %v743 = vpop.permute.xlu0 %742
    %744 = vrot.lane.b32.xlu0 %v728, 111
    %v745 = vpop.permute.xlu0 %744
    %746 = vrot.lane.b32.xlu0 %v729, 111
    %v747 = vpop.permute.xlu0 %746
    %vm748 = vcmask 908288
    %v749 = vsel %vm748, %v737, %v739
    %v750 = vsel %vm748, %v739, %v741
    %v751 = vsel %vm748, %v743, %v745
    %v752 = vsel %vm748, %v745, %v747
    %759 = vst [vmem:[#allocation2 + $0x330] sm:$0xff] %v749
    %760 = vst [vmem:[#allocation2 + $0x338] sm:$0xff] %v750
    %761 = vst.msk [vmem:[#allocation2 + $0x340] sm:$0xff] %vm63, %v741
    %762 = vst [vmem:[#allocation2 + $0x348] sm:$0xff] %v751
    %763 = vst [vmem:[#allocation2 + $0x350] sm:$0xff] %v752
    %764 = vst.msk [vmem:[#allocation2 + $0x358] sm:$0xff] %vm63, %v747
    %v765 = vld [vmem:[#allocation3] sm:$0xff]
    %v766 = vld [vmem:[#allocation3 + $0x8] sm:$0xff]
    %v767 = vld [vmem:[#allocation3 + $0x10] sm:$0xff]
    %v768 = vld [vmem:[#allocation3 + $0x18] sm:$0xff]
    %v769 = vld [vmem:[#allocation3 + $0x20] sm:$0xff]
    %v770 = vld [vmem:[#allocation3 + $0x28] sm:$0xff]
    %777 = vrot.lane.b32.xlu0 %v765, 110
    %v778 = vpop.permute.xlu0 %777
    %779 = vrot.lane.b32.xlu0 %v766, 110
    %v780 = vpop.permute.xlu0 %779
    %781 = vrot.lane.b32.xlu0 %v767, 110
    %v782 = vpop.permute.xlu0 %781
    %783 = vrot.lane.b32.xlu0 %v768, 110
    %v784 = vpop.permute.xlu0 %783
    %785 = vrot.lane.b32.xlu0 %v769, 110
    %v786 = vpop.permute.xlu0 %785
    %787 = vrot.lane.b32.xlu0 %v770, 110
    %v788 = vpop.permute.xlu0 %787
    %vm789 = vcmask 900096
    %v790 = vsel %vm789, %v778, %v780
    %v791 = vsel %vm789, %v780, %v782
    %v792 = vsel %vm789, %v784, %v786
    %v793 = vsel %vm789, %v786, %v788
    %800 = vst [vmem:[#allocation2 + $0x360] sm:$0xff] %v790
    %801 = vst [vmem:[#allocation2 + $0x368] sm:$0xff] %v791
    %802 = vst.msk [vmem:[#allocation2 + $0x370] sm:$0xff] %vm63, %v782
    %803 = vst [vmem:[#allocation2 + $0x378] sm:$0xff] %v792
    %804 = vst [vmem:[#allocation2 + $0x380] sm:$0xff] %v793
    %805 = vst.msk [vmem:[#allocation2 + $0x388] sm:$0xff] %vm63, %v788
    %v806 = vld [vmem:[#allocation3] sm:$0xff]
    %v807 = vld [vmem:[#allocation3 + $0x8] sm:$0xff]
    %v808 = vld [vmem:[#allocation3 + $0x10] sm:$0xff]
    %v809 = vld [vmem:[#allocation3 + $0x18] sm:$0xff]
    %v810 = vld [vmem:[#allocation3 + $0x20] sm:$0xff]
    %v811 = vld [vmem:[#allocation3 + $0x28] sm:$0xff]
    %818 = vrot.lane.b32.xlu0 %v806, 109
    %v819 = vpop.permute.xlu0 %818
    %820 = vrot.lane.b32.xlu0 %v807, 109
    %v821 = vpop.permute.xlu0 %820
    %822 = vrot.lane.b32.xlu0 %v808, 109
    %v823 = vpop.permute.xlu0 %822
    %824 = vrot.lane.b32.xlu0 %v809, 109
    %v825 = vpop.permute.xlu0 %824
    %826 = vrot.lane.b32.xlu0 %v810, 109
    %v827 = vpop.permute.xlu0 %826
    %828 = vrot.lane.b32.xlu0 %v811, 109
    %v829 = vpop.permute.xlu0 %828
    %vm830 = vcmask 891904
    %v831 = vsel %vm830, %v819, %v821
    %v832 = vsel %vm830, %v821, %v823
    %v833 = vsel %vm830, %v825, %v827
    %v834 = vsel %vm830, %v827, %v829
    %841 = vst [vmem:[#allocation2 + $0x390] sm:$0xff] %v831
    %842 = vst [vmem:[#allocation2 + $0x398] sm:$0xff] %v832
    %843 = vst.msk [vmem:[#allocation2 + $0x3a0] sm:$0xff] %vm63, %v823
    %844 = vst [vmem:[#allocation2 + $0x3a8] sm:$0xff] %v833
    %845 = vst [vmem:[#allocation2 + $0x3b0] sm:$0xff] %v834
    %846 = vst.msk [vmem:[#allocation2 + $0x3b8] sm:$0xff] %vm63, %v829
    %v847 = vld [vmem:[#allocation3] sm:$0xff]
    %v848 = vld [vmem:[#allocation3 + $0x8] sm:$0xff]
    %v849 = vld [vmem:[#allocation3 + $0x10] sm:$0xff]
    %v850 = vld [vmem:[#allocation3 + $0x18] sm:$0xff]
    %v851 = vld [vmem:[#allocation3 + $0x20] sm:$0xff]
    %v852 = vld [vmem:[#allocation3 + $0x28] sm:$0xff]
    %859 = vrot.lane.b32.xlu0 %v847, 108
    %v860 = vpop.permute.xlu0 %859
    %861 = vrot.lane.b32.xlu0 %v848, 108
    %v862 = vpop.permute.xlu0 %861
    %863 = vrot.lane.b32.xlu0 %v849, 108
    %v864 = vpop.permute.xlu0 %863
    %865 = vrot.lane.b32.xlu0 %v850, 108
    %v866 = vpop.permute.xlu0 %865
    %867 = vrot.lane.b32.xlu0 %v851, 108
    %v868 = vpop.permute.xlu0 %867
    %869 = vrot.lane.b32.xlu0 %v852, 108
    %v870 = vpop.permute.xlu0 %869
    %vm871 = vcmask 883712
    %v872 = vsel %vm871, %v860, %v862
    %v873 = vsel %vm871, %v862, %v864
    %v874 = vsel %vm871, %v866, %v868
    %v875 = vsel %vm871, %v868, %v870
    %882 = vst [vmem:[#allocation2 + $0x3c0] sm:$0xff] %v872
    %883 = vst [vmem:[#allocation2 + $0x3c8] sm:$0xff] %v873
    %884 = vst.msk [vmem:[#allocation2 + $0x3d0] sm:$0xff] %vm63, %v864
    %885 = vst [vmem:[#allocation2 + $0x3d8] sm:$0xff] %v874
    %886 = vst [vmem:[#allocation2 + $0x3e0] sm:$0xff] %v875
    %887 = vst.msk [vmem:[#allocation2 + $0x3e8] sm:$0xff] %vm63, %v870
    %v888 = vld [vmem:[#allocation3] sm:$0xff]
    %v889 = vld [vmem:[#allocation3 + $0x8] sm:$0xff]
    %v890 = vld [vmem:[#allocation3 + $0x10] sm:$0xff]
    %v891 = vld [vmem:[#allocation3 + $0x18] sm:$0xff]
    %v892 = vld [vmem:[#allocation3 + $0x20] sm:$0xff]
    %v893 = vld [vmem:[#allocation3 + $0x28] sm:$0xff]
    %900 = vrot.lane.b32.xlu0 %v888, 107
    %v901 = vpop.permute.xlu0 %900
    %902 = vrot.lane.b32.xlu0 %v889, 107
    %v903 = vpop.permute.xlu0 %902
    %904 = vrot.lane.b32.xlu0 %v890, 107
    %v905 = vpop.permute.xlu0 %904
    %906 = vrot.lane.b32.xlu0 %v891, 107
    %v907 = vpop.permute.xlu0 %906
    %908 = vrot.lane.b32.xlu0 %v892, 107
    %v909 = vpop.permute.xlu0 %908
    %910 = vrot.lane.b32.xlu0 %v893, 107
    %v911 = vpop.permute.xlu0 %910
    %vm912 = vcmask 875520
    %v913 = vsel %vm912, %v901, %v903
    %v914 = vsel %vm912, %v903, %v905
    %v915 = vsel %vm912, %v907, %v909
    %v916 = vsel %vm912, %v909, %v911
    %923 = vst [vmem:[#allocation2 + $0x3f0] sm:$0xff] %v913
    %924 = vst [vmem:[#allocation2 + $0x3f8] sm:$0xff] %v914
    %925 = vst.msk [vmem:[#allocation2 + $0x400] sm:$0xff] %vm63, %v905
    %926 = vst [vmem:[#allocation2 + $0x408] sm:$0xff] %v915
    %927 = vst [vmem:[#allocation2 + $0x410] sm:$0xff] %v916
    %928 = vst.msk [vmem:[#allocation2 + $0x418] sm:$0xff] %vm63, %v911
    %v929 = vld [vmem:[#allocation3] sm:$0xff]
    %v930 = vld [vmem:[#allocation3 + $0x8] sm:$0xff]
    %v931 = vld [vmem:[#allocation3 + $0x10] sm:$0xff]
    %v932 = vld [vmem:[#allocation3 + $0x18] sm:$0xff]
    %v933 = vld [vmem:[#allocation3 + $0x20] sm:$0xff]
    %v934 = vld [vmem:[#allocation3 + $0x28] sm:$0xff]
    %941 = vrot.lane.b32.xlu0 %v929, 106
    %v942 = vpop.permute.xlu0 %941
    %943 = vrot.lane.b32.xlu0 %v930, 106
    %v944 = vpop.permute.xlu0 %943
    %945 = vrot.lane.b32.xlu0 %v931, 106
    %v946 = vpop.permute.xlu0 %945
    %947 = vrot.lane.b32.xlu0 %v932, 106
    %v948 = vpop.permute.xlu0 %947
    %949 = vrot.lane.b32.xlu0 %v933, 106
    %v950 = vpop.permute.xlu0 %949
    %951 = vrot.lane.b32.xlu0 %v934, 106
    %v952 = vpop.permute.xlu0 %951
    %vm953 = vcmask 867328
    %v954 = vsel %vm953, %v942, %v944
    %v955 = vsel %vm953, %v944, %v946
    %v956 = vsel %vm953, %v948, %v950
    %v957 = vsel %vm953, %v950, %v952
    %964 = vst [vmem:[#allocation2 + $0x420] sm:$0xff] %v954
    %965 = vst [vmem:[#allocation2 + $0x428] sm:$0xff] %v955
    %966 = vst.msk [vmem:[#allocation2 + $0x430] sm:$0xff] %vm63, %v946
    %967 = vst [vmem:[#allocation2 + $0x438] sm:$0xff] %v956
    %968 = vst [vmem:[#allocation2 + $0x440] sm:$0xff] %v957
    %969 = vst.msk [vmem:[#allocation2 + $0x448] sm:$0xff] %vm63, %v952
    %v970 = vld [vmem:[#allocation3] sm:$0xff]
    %v971 = vld [vmem:[#allocation3 + $0x8] sm:$0xff]
    %v972 = vld [vmem:[#allocation3 + $0x10] sm:$0xff]
    %v973 = vld [vmem:[#allocation3 + $0x18] sm:$0xff]
    %v974 = vld [vmem:[#allocation3 + $0x20] sm:$0xff]
    %v975 = vld [vmem:[#allocation3 + $0x28] sm:$0xff]
    %982 = vrot.lane.b32.xlu0 %v970, 105
    %v983 = vpop.permute.xlu0 %982
    %984 = vrot.lane.b32.xlu0 %v971, 105
    %v985 = vpop.permute.xlu0 %984
    %986 = vrot.lane.b32.xlu0 %v972, 105
    %v987 = vpop.permute.xlu0 %986
    %988 = vrot.lane.b32.xlu0 %v973, 105
    %v989 = vpop.permute.xlu0 %988
    %990 = vrot.lane.b32.xlu0 %v974, 105
    %v991 = vpop.permute.xlu0 %990
    %992 = vrot.lane.b32.xlu0 %v975, 105
    %v993 = vpop.permute.xlu0 %992
    %vm994 = vcmask 859136
    %v995 = vsel %vm994, %v983, %v985
    %v996 = vsel %vm994, %v985, %v987
    %v997 = vsel %vm994, %v989, %v991
    %v998 = vsel %vm994, %v991, %v993
    %1005 = vst [vmem:[#allocation2 + $0x450] sm:$0xff] %v995
    %1006 = vst [vmem:[#allocation2 + $0x458] sm:$0xff] %v996
    %1007 = vst.msk [vmem:[#allocation2 + $0x460] sm:$0xff] %vm63, %v987
    %1008 = vst [vmem:[#allocation2 + $0x468] sm:$0xff] %v997
    %1009 = vst [vmem:[#allocation2 + $0x470] sm:$0xff] %v998
    %1010 = vst.msk [vmem:[#allocation2 + $0x478] sm:$0xff] %vm63, %v993
    %v1011 = vld [vmem:[#allocation3] sm:$0xff]
    %v1012 = vld [vmem:[#allocation3 + $0x8] sm:$0xff]
    %v1013 = vld [vmem:[#allocation3 + $0x10] sm:$0xff]
    %v1014 = vld [vmem:[#allocation3 + $0x18] sm:$0xff]
    %v1015 = vld [vmem:[#allocation3 + $0x20] sm:$0xff]
    %v1016 = vld [vmem:[#allocation3 + $0x28] sm:$0xff]
    %1023 = vrot.lane.b32.xlu0 %v1011, 104
    %v1024 = vpop.permute.xlu0 %1023
    %1025 = vrot.lane.b32.xlu0 %v1012, 104
    %v1026 = vpop.permute.xlu0 %1025
    %1027 = vrot.lane.b32.xlu0 %v1013, 104
    %v1028 = vpop.permute.xlu0 %1027
    %1029 = vrot.lane.b32.xlu0 %v1014, 104
    %v1030 = vpop.permute.xlu0 %1029
    %1031 = vrot.lane.b32.xlu0 %v1015, 104
    %v1032 = vpop.permute.xlu0 %1031
    %1033 = vrot.lane.b32.xlu0 %v1016, 104
    %v1034 = vpop.permute.xlu0 %1033
    %vm1035 = vcmask 850944
    %v1036 = vsel %vm1035, %v1024, %v1026
    %v1037 = vsel %vm1035, %v1026, %v1028
    %v1038 = vsel %vm1035, %v1030, %v1032
    %v1039 = vsel %vm1035, %v1032, %v1034
    %1046 = vst [vmem:[#allocation2 + $0x480] sm:$0xff] %v1036
    %1047 = vst [vmem:[#allocation2 + $0x488] sm:$0xff] %v1037
    %1048 = vst.msk [vmem:[#allocation2 + $0x490] sm:$0xff] %vm63, %v1028
    %1049 = vst [vmem:[#allocation2 + $0x498] sm:$0xff] %v1038
    %1050 = vst [vmem:[#allocation2 + $0x4a0] sm:$0xff] %v1039
    %1051 = vst.msk [vmem:[#allocation2 + $0x4a8] sm:$0xff] %vm63, %v1034
    %v1052 = vld [vmem:[#allocation3] sm:$0xff]
    %v1053 = vld [vmem:[#allocation3 + $0x8] sm:$0xff]
    %v1054 = vld [vmem:[#allocation3 + $0x10] sm:$0xff]
    %v1055 = vld [vmem:[#allocation3 + $0x18] sm:$0xff]
    %v1056 = vld [vmem:[#allocation3 + $0x20] sm:$0xff]
    %v1057 = vld [vmem:[#allocation3 + $0x28] sm:$0xff]
    %1064 = vrot.lane.b32.xlu0 %v1052, 103
    %v1065 = vpop.permute.xlu0 %1064
    %1066 = vrot.lane.b32.xlu0 %v1053, 103
    %v1067 = vpop.permute.xlu0 %1066
    %1068 = vrot.lane.b32.xlu0 %v1054, 103
    %v1069 = vpop.permute.xlu0 %1068
    %1070 = vrot.lane.b32.xlu0 %v1055, 103
    %v1071 = vpop.permute.xlu0 %1070
    %1072 = vrot.lane.b32.xlu0 %v1056, 103
    %v1073 = vpop.permute.xlu0 %1072
    %1074 = vrot.lane.b32.xlu0 %v1057, 103
    %v1075 = vpop.permute.xlu0 %1074
    %vm1076 = vcmask 842752
    %v1077 = vsel %vm1076, %v1065, %v1067
    %v1078 = vsel %vm1076, %v1067, %v1069
    %v1079 = vsel %vm1076, %v1071, %v1073
    %v1080 = vsel %vm1076, %v1073, %v1075
    %1087 = vst [vmem:[#allocation2 + $0x4b0] sm:$0xff] %v1077
    %1088 = vst [vmem:[#allocation2 + $0x4b8] sm:$0xff] %v1078
    %1089 = vst.msk [vmem:[#allocation2 + $0x4c0] sm:$0xff] %vm63, %v1069
    %1090 = vst [vmem:[#allocation2 + $0x4c8] sm:$0xff] %v1079
    %1091 = vst [vmem:[#allocation2 + $0x4d0] sm:$0xff] %v1080
    %1092 = vst.msk [vmem:[#allocation2 + $0x4d8] sm:$0xff] %vm63, %v1075
    %v1093 = vld [vmem:[#allocation3] sm:$0xff]
    %v1094 = vld [vmem:[#allocation3 + $0x8] sm:$0xff]
    %v1095 = vld [vmem:[#allocation3 + $0x10] sm:$0xff]
    %v1096 = vld [vmem:[#allocation3 + $0x18] sm:$0xff]
    %v1097 = vld [vmem:[#allocation3 + $0x20] sm:$0xff]
    %v1098 = vld [vmem:[#allocation3 + $0x28] sm:$0xff]
    %1105 = vrot.lane.b32.xlu0 %v1093, 102
    %v1106 = vpop.permute.xlu0 %1105
    %1107 = vrot.lane.b32.xlu0 %v1094, 102
    %v1108 = vpop.permute.xlu0 %1107
    %1109 = vrot.lane.b32.xlu0 %v1095, 102
    %v1110 = vpop.permute.xlu0 %1109
    %1111 = vrot.lane.b32.xlu0 %v1096, 102
    %v1112 = vpop.permute.xlu0 %1111
    %1113 = vrot.lane.b32.xlu0 %v1097, 102
    %v1114 = vpop.permute.xlu0 %1113
    %1115 = vrot.lane.b32.xlu0 %v1098, 102
    %v1116 = vpop.permute.xlu0 %1115
    %vm1117 = vcmask 834560
    %v1118 = vsel %vm1117, %v1106, %v1108
    %v1119 = vsel %vm1117, %v1108, %v1110
    %v1120 = vsel %vm1117, %v1112, %v1114
    %v1121 = vsel %vm1117, %v1114, %v1116
    %1128 = vst [vmem:[#allocation2 + $0x4e0] sm:$0xff] %v1118
    %1129 = vst [vmem:[#allocation2 + $0x4e8] sm:$0xff] %v1119
    %1130 = vst.msk [vmem:[#allocation2 + $0x4f0] sm:$0xff] %vm63, %v1110
    %1131 = vst [vmem:[#allocation2 + $0x4f8] sm:$0xff] %v1120
    %1132 = vst [vmem:[#allocation2 + $0x500] sm:$0xff] %v1121
    %1133 = vst.msk [vmem:[#allocation2 + $0x508] sm:$0xff] %vm63, %v1116
    %v1134 = vld [vmem:[#allocation3] sm:$0xff]
    %v1135 = vld [vmem:[#allocation3 + $0x8] sm:$0xff]
    %v1136 = vld [vmem:[#allocation3 + $0x10] sm:$0xff]
    %v1137 = vld [vmem:[#allocation3 + $0x18] sm:$0xff]
    %v1138 = vld [vmem:[#allocation3 + $0x20] sm:$0xff]
    %v1139 = vld [vmem:[#allocation3 + $0x28] sm:$0xff]
    %1146 = vrot.lane.b32.xlu0 %v1134, 101
    %v1147 = vpop.permute.xlu0 %1146
    %1148 = vrot.lane.b32.xlu0 %v1135, 101
    %v1149 = vpop.permute.xlu0 %1148
    %1150 = vrot.lane.b32.xlu0 %v1136, 101
    %v1151 = vpop.permute.xlu0 %1150
    %1152 = vrot.lane.b32.xlu0 %v1137, 101
    %v1153 = vpop.permute.xlu0 %1152
    %1154 = vrot.lane.b32.xlu0 %v1138, 101
    %v1155 = vpop.permute.xlu0 %1154
    %1156 = vrot.lane.b32.xlu0 %v1139, 101
    %v1157 = vpop.permute.xlu0 %1156
    %vm1158 = vcmask 826368
    %v1159 = vsel %vm1158, %v1147, %v1149
    %v1160 = vsel %vm1158, %v1149, %v1151
    %v1161 = vsel %vm1158, %v1153, %v1155
    %v1162 = vsel %vm1158, %v1155, %v1157
    %1169 = vst [vmem:[#allocation2 + $0x510] sm:$0xff] %v1159
    %1170 = vst [vmem:[#allocation2 + $0x518] sm:$0xff] %v1160
    %1171 = vst.msk [vmem:[#allocation2 + $0x520] sm:$0xff] %vm63, %v1151
    %1172 = vst [vmem:[#allocation2 + $0x528] sm:$0xff] %v1161
    %1173 = vst [vmem:[#allocation2 + $0x530] sm:$0xff] %v1162
    %1174 = vst.msk [vmem:[#allocation2 + $0x538] sm:$0xff] %vm63, %v1157
    %v1175 = vld [vmem:[#allocation3] sm:$0xff]
    %v1176 = vld [vmem:[#allocation3 + $0x8] sm:$0xff]
    %v1177 = vld [vmem:[#allocation3 + $0x10] sm:$0xff]
    %v1178 = vld [vmem:[#allocation3 + $0x18] sm:$0xff]
    %v1179 = vld [vmem:[#allocation3 + $0x20] sm:$0xff]
    %v1180 = vld [vmem:[#allocation3 + $0x28] sm:$0xff]
    %1187 = vrot.lane.b32.xlu0 %v1175, 100
    %v1188 = vpop.permute.xlu0 %1187
    %1189 = vrot.lane.b32.xlu0 %v1176, 100
    %v1190 = vpop.permute.xlu0 %1189
    %1191 = vrot.lane.b32.xlu0 %v1177, 100
    %v1192 = vpop.permute.xlu0 %1191
    %1193 = vrot.lane.b32.xlu0 %v1178, 100
    %v1194 = vpop.permute.xlu0 %1193
    %1195 = vrot.lane.b32.xlu0 %v1179, 100
    %v1196 = vpop.permute.xlu0 %1195
    %1197 = vrot.lane.b32.xlu0 %v1180, 100
    %v1198 = vpop.permute.xlu0 %1197
    %vm1199 = vcmask 818176
    %v1200 = vsel %vm1199, %v1188, %v1190
    %v1201 = vsel %vm1199, %v1190, %v1192
    %v1202 = vsel %vm1199, %v1194, %v1196
    %v1203 = vsel %vm1199, %v1196, %v1198
    %1210 = vst [vmem:[#allocation2 + $0x540] sm:$0xff] %v1200
    %1211 = vst [vmem:[#allocation2 + $0x548] sm:$0xff] %v1201
    %1212 = vst.msk [vmem:[#allocation2 + $0x550] sm:$0xff] %vm63, %v1192
    %1213 = vst [vmem:[#allocation2 + $0x558] sm:$0xff] %v1202
    %1214 = vst [vmem:[#allocation2 + $0x560] sm:$0xff] %v1203
    %1215 = vst.msk [vmem:[#allocation2 + $0x568] sm:$0xff] %vm63, %v1198
    %v1216 = vld [vmem:[#allocation3] sm:$0xff]
    %v1217 = vld [vmem:[#allocation3 + $0x8] sm:$0xff]
    %v1218 = vld [vmem:[#allocation3 + $0x10] sm:$0xff]
    %v1219 = vld [vmem:[#allocation3 + $0x18] sm:$0xff]
    %v1220 = vld [vmem:[#allocation3 + $0x20] sm:$0xff]
    %v1221 = vld [vmem:[#allocation3 + $0x28] sm:$0xff]
    %1228 = vrot.lane.b32.xlu0 %v1216, 99
    %v1229 = vpop.permute.xlu0 %1228
    %1230 = vrot.lane.b32.xlu0 %v1217, 99
    %v1231 = vpop.permute.xlu0 %1230
    %1232 = vrot.lane.b32.xlu0 %v1218, 99
    %v1233 = vpop.permute.xlu0 %1232
    %1234 = vrot.lane.b32.xlu0 %v1219, 99
    %v1235 = vpop.permute.xlu0 %1234
    %1236 = vrot.lane.b32.xlu0 %v1220, 99
    %v1237 = vpop.permute.xlu0 %1236
    %1238 = vrot.lane.b32.xlu0 %v1221, 99
    %v1239 = vpop.permute.xlu0 %1238
    %vm1240 = vcmask 809984
    %v1241 = vsel %vm1240, %v1229, %v1231
    %v1242 = vsel %vm1240, %v1231, %v1233
    %v1243 = vsel %vm1240, %v1235, %v1237
    %v1244 = vsel %vm1240, %v1237, %v1239
    %1251 = vst [vmem:[#allocation2 + $0x570] sm:$0xff] %v1241
    %1252 = vst [vmem:[#allocation2 + $0x578] sm:$0xff] %v1242
    %1253 = vst.msk [vmem:[#allocation2 + $0x580] sm:$0xff] %vm63, %v1233
    %1254 = vst [vmem:[#allocation2 + $0x588] sm:$0xff] %v1243
    %1255 = vst [vmem:[#allocation2 + $0x590] sm:$0xff] %v1244
    %1256 = vst.msk [vmem:[#allocation2 + $0x598] sm:$0xff] %vm63, %v1239
    %v1257 = vld [vmem:[#allocation3] sm:$0xff]
    %v1258 = vld [vmem:[#allocation3 + $0x8] sm:$0xff]
    %v1259 = vld [vmem:[#allocation3 + $0x10] sm:$0xff]
    %v1260 = vld [vmem:[#allocation3 + $0x18] sm:$0xff]
    %v1261 = vld [vmem:[#allocation3 + $0x20] sm:$0xff]
    %v1262 = vld [vmem:[#allocation3 + $0x28] sm:$0xff]
    %1269 = vrot.lane.b32.xlu0 %v1257, 98
    %v1270 = vpop.permute.xlu0 %1269
    %1271 = vrot.lane.b32.xlu0 %v1258, 98
    %v1272 = vpop.permute.xlu0 %1271
    %1273 = vrot.lane.b32.xlu0 %v1259, 98
    %v1274 = vpop.permute.xlu0 %1273
    %1275 = vrot.lane.b32.xlu0 %v1260, 98
    %v1276 = vpop.permute.xlu0 %1275
    %1277 = vrot.lane.b32.xlu0 %v1261, 98
    %v1278 = vpop.permute.xlu0 %1277
    %1279 = vrot.lane.b32.xlu0 %v1262, 98
    %v1280 = vpop.permute.xlu0 %1279
    %vm1281 = vcmask 801792
    %v1282 = vsel %vm1281, %v1270, %v1272
    %v1283 = vsel %vm1281, %v1272, %v1274
    %v1284 = vsel %vm1281, %v1276, %v1278
    %v1285 = vsel %vm1281, %v1278, %v1280
    %1292 = vst [vmem:[#allocation2 + $0x5a0] sm:$0xff] %v1282
    %1293 = vst [vmem:[#allocation2 + $0x5a8] sm:$0xff] %v1283
    %1294 = vst.msk [vmem:[#allocation2 + $0x5b0] sm:$0xff] %vm63, %v1274
    %1295 = vst [vmem:[#allocation2 + $0x5b8] sm:$0xff] %v1284
    %1296 = vst [vmem:[#allocation2 + $0x5c0] sm:$0xff] %v1285
    %1297 = vst.msk [vmem:[#allocation2 + $0x5c8] sm:$0xff] %vm63, %v1280
    %v1298 = vld [vmem:[#allocation3] sm:$0xff]
    %v1299 = vld [vmem:[#allocation3 + $0x8] sm:$0xff]
    %v1300 = vld [vmem:[#allocation3 + $0x10] sm:$0xff]
    %v1301 = vld [vmem:[#allocation3 + $0x18] sm:$0xff]
    %v1302 = vld [vmem:[#allocation3 + $0x20] sm:$0xff]
    %v1303 = vld [vmem:[#allocation3 + $0x28] sm:$0xff]
    %1310 = vrot.lane.b32.xlu0 %v1298, 97
    %v1311 = vpop.permute.xlu0 %1310
    %1312 = vrot.lane.b32.xlu0 %v1299, 97
    %v1313 = vpop.permute.xlu0 %1312
    %1314 = vrot.lane.b32.xlu0 %v1300, 97
    %v1315 = vpop.permute.xlu0 %1314
    %1316 = vrot.lane.b32.xlu0 %v1301, 97
    %v1317 = vpop.permute.xlu0 %1316
    %1318 = vrot.lane.b32.xlu0 %v1302, 97
    %v1319 = vpop.permute.xlu0 %1318
    %1320 = vrot.lane.b32.xlu0 %v1303, 97
    %v1321 = vpop.permute.xlu0 %1320
    %vm1322 = vcmask 793600
    %v1323 = vsel %vm1322, %v1311, %v1313
    %v1324 = vsel %vm1322, %v1313, %v1315
    %v1325 = vsel %vm1322, %v1317, %v1319
    %v1326 = vsel %vm1322, %v1319, %v1321
    %1333 = vst [vmem:[#allocation2 + $0x5d0] sm:$0xff] %v1323
    %1334 = vst [vmem:[#allocation2 + $0x5d8] sm:$0xff] %v1324
    %1335 = vst.msk [vmem:[#allocation2 + $0x5e0] sm:$0xff] %vm63, %v1315
    %1336 = vst [vmem:[#allocation2 + $0x5e8] sm:$0xff] %v1325
    %1337 = vst [vmem:[#allocation2 + $0x5f0] sm:$0xff] %v1326
    %1338 = vst.msk [vmem:[#allocation2 + $0x5f8] sm:$0xff] %vm63, %v1321
    %v1339 = vld [vmem:[#allocation3] sm:$0xff]
    %v1340 = vld [vmem:[#allocation3 + $0x8] sm:$0xff]
    %v1341 = vld [vmem:[#allocation3 + $0x10] sm:$0xff]
    %v1342 = vld [vmem:[#allocation3 + $0x18] sm:$0xff]
    %v1343 = vld [vmem:[#allocation3 + $0x20] sm:$0xff]
    %v1344 = vld [vmem:[#allocation3 + $0x28] sm:$0xff]
    %1351 = vrot.lane.b32.xlu0 %v1339, 96
    %v1352 = vpop.permute.xlu0 %1351
    %1353 = vrot.lane.b32.xlu0 %v1340, 96
    %v1354 = vpop.permute.xlu0 %1353
    %1355 = vrot.lane.b32.xlu0 %v1341, 96
    %v1356 = vpop.permute.xlu0 %1355
    %1357 = vrot.lane.b32.xlu0 %v1342, 96
    %v1358 = vpop.permute.xlu0 %1357
    %1359 = vrot.lane.b32.xlu0 %v1343, 96
    %v1360 = vpop.permute.xlu0 %1359
    %1361 = vrot.lane.b32.xlu0 %v1344, 96
    %v1362 = vpop.permute.xlu0 %1361
    %vm1363 = vcmask 785408
    %v1364 = vsel %vm1363, %v1352, %v1354
    %v1365 = vsel %vm1363, %v1354, %v1356
    %v1366 = vsel %vm1363, %v1358, %v1360
    %v1367 = vsel %vm1363, %v1360, %v1362
    %1374 = vst [vmem:[#allocation2 + $0x600] sm:$0xff] %v1364
    %1375 = vst [vmem:[#allocation2 + $0x608] sm:$0xff] %v1365
    %1376 = vst.msk [vmem:[#allocation2 + $0x610] sm:$0xff] %vm63, %v1356
    %1377 = vst [vmem:[#allocation2 + $0x618] sm:$0xff] %v1366
    %1378 = vst [vmem:[#allocation2 + $0x620] sm:$0xff] %v1367
    %1379 = vst.msk [vmem:[#allocation2 + $0x628] sm:$0xff] %vm63, %v1362
    %v1380 = vld [vmem:[#allocation3] sm:$0xff]
    %v1381 = vld [vmem:[#allocation3 + $0x8] sm:$0xff]
    %v1382 = vld [vmem:[#allocation3 + $0x10] sm:$0xff]
    %v1383 = vld [vmem:[#allocation3 + $0x18] sm:$0xff]
    %v1384 = vld [vmem:[#allocation3 + $0x20] sm:$0xff]
    %v1385 = vld [vmem:[#allocation3 + $0x28] sm:$0xff]
    %1392 = vrot.lane.b32.xlu0 %v1380, 95
    %v1393 = vpop.permute.xlu0 %1392
    %1394 = vrot.lane.b32.xlu0 %v1381, 95
    %v1395 = vpop.permute.xlu0 %1394
    %1396 = vrot.lane.b32.xlu0 %v1382, 95
    %v1397 = vpop.permute.xlu0 %1396
    %1398 = vrot.lane.b32.xlu0 %v1383, 95
    %v1399 = vpop.permute.xlu0 %1398
    %1400 = vrot.lane.b32.xlu0 %v1384, 95
    %v1401 = vpop.permute.xlu0 %1400
    %1402 = vrot.lane.b32.xlu0 %v1385, 95
    %v1403 = vpop.permute.xlu0 %1402
    %vm1404 = vcmask 777216
    %v1405 = vsel %vm1404, %v1393, %v1395
    %v1406 = vsel %vm1404, %v1395, %v1397
    %v1407 = vsel %vm1404, %v1399, %v1401
    %v1408 = vsel %vm1404, %v1401, %v1403
    %1415 = vst [vmem:[#allocation2 + $0x630] sm:$0xff] %v1405
    %1416 = vst [vmem:[#allocation2 + $0x638] sm:$0xff] %v1406
    %1417 = vst.msk [vmem:[#allocation2 + $0x640] sm:$0xff] %vm63, %v1397
    %1418 = vst [vmem:[#allocation2 + $0x648] sm:$0xff] %v1407
    %1419 = vst [vmem:[#allocation2 + $0x650] sm:$0xff] %v1408
    %1420 = vst.msk [vmem:[#allocation2 + $0x658] sm:$0xff] %vm63, %v1403
    %v1421 = vld [vmem:[#allocation3] sm:$0xff]
    %v1422 = vld [vmem:[#allocation3 + $0x8] sm:$0xff]
    %v1423 = vld [vmem:[#allocation3 + $0x10] sm:$0xff]
    %v1424 = vld [vmem:[#allocation3 + $0x18] sm:$0xff]
    %v1425 = vld [vmem:[#allocation3 + $0x20] sm:$0xff]
    %v1426 = vld [vmem:[#allocation3 + $0x28] sm:$0xff]
    %1433 = vrot.lane.b32.xlu0 %v1421, 94
    %v1434 = vpop.permute.xlu0 %1433
    %1435 = vrot.lane.b32.xlu0 %v1422, 94
    %v1436 = vpop.permute.xlu0 %1435
    %1437 = vrot.lane.b32.xlu0 %v1423, 94
    %v1438 = vpop.permute.xlu0 %1437
    %1439 = vrot.lane.b32.xlu0 %v1424, 94
    %v1440 = vpop.permute.xlu0 %1439
    %1441 = vrot.lane.b32.xlu0 %v1425, 94
    %v1442 = vpop.permute.xlu0 %1441
    %1443 = vrot.lane.b32.xlu0 %v1426, 94
    %v1444 = vpop.permute.xlu0 %1443
    %vm1445 = vcmask 769024
    %v1446 = vsel %vm1445, %v1434, %v1436
    %v1447 = vsel %vm1445, %v1436, %v1438
    %v1448 = vsel %vm1445, %v1440, %v1442
    %v1449 = vsel %vm1445, %v1442, %v1444
    %1456 = vst [vmem:[#allocation2 + $0x660] sm:$0xff] %v1446
    %1457 = vst [vmem:[#allocation2 + $0x668] sm:$0xff] %v1447
    %1458 = vst.msk [vmem:[#allocation2 + $0x670] sm:$0xff] %vm63, %v1438
    %1459 = vst [vmem:[#allocation2 + $0x678] sm:$0xff] %v1448
    %1460 = vst [vmem:[#allocation2 + $0x680] sm:$0xff] %v1449
    %1461 = vst.msk [vmem:[#allocation2 + $0x688] sm:$0xff] %vm63, %v1444
    %v1462 = vld [vmem:[#allocation3] sm:$0xff]
    %v1463 = vld [vmem:[#allocation3 + $0x8] sm:$0xff]
    %v1464 = vld [vmem:[#allocation3 + $0x10] sm:$0xff]
    %v1465 = vld [vmem:[#allocation3 + $0x18] sm:$0xff]
    %v1466 = vld [vmem:[#allocation3 + $0x20] sm:$0xff]
    %v1467 = vld [vmem:[#allocation3 + $0x28] sm:$0xff]
    %1474 = vrot.lane.b32.xlu0 %v1462, 93
    %v1475 = vpop.permute.xlu0 %1474
    %1476 = vrot.lane.b32.xlu0 %v1463, 93
    %v1477 = vpop.permute.xlu0 %1476
    %1478 = vrot.lane.b32.xlu0 %v1464, 93
    %v1479 = vpop.permute.xlu0 %1478
    %1480 = vrot.lane.b32.xlu0 %v1465, 93
    %v1481 = vpop.permute.xlu0 %1480
    %1482 = vrot.lane.b32.xlu0 %v1466, 93
    %v1483 = vpop.permute.xlu0 %1482
    %1484 = vrot.lane.b32.xlu0 %v1467, 93
    %v1485 = vpop.permute.xlu0 %1484
    %vm1486 = vcmask 760832
    %v1487 = vsel %vm1486, %v1475, %v1477
    %v1488 = vsel %vm1486, %v1477, %v1479
    %v1489 = vsel %vm1486, %v1481, %v1483
    %v1490 = vsel %vm1486, %v1483, %v1485
    %1497 = vst [vmem:[#allocation2 + $0x690] sm:$0xff] %v1487
    %1498 = vst [vmem:[#allocation2 + $0x698] sm:$0xff] %v1488
    %1499 = vst.msk [vmem:[#allocation2 + $0x6a0] sm:$0xff] %vm63, %v1479
    %1500 = vst [vmem:[#allocation2 + $0x6a8] sm:$0xff] %v1489
    %1501 = vst [vmem:[#allocation2 + $0x6b0] sm:$0xff] %v1490
    %1502 = vst.msk [vmem:[#allocation2 + $0x6b8] sm:$0xff] %vm63, %v1485
    %v1503 = vld [vmem:[#allocation3] sm:$0xff]
    %v1504 = vld [vmem:[#allocation3 + $0x8] sm:$0xff]
    %v1505 = vld [vmem:[#allocation3 + $0x10] sm:$0xff]
    %v1506 = vld [vmem:[#allocation3 + $0x18] sm:$0xff]
    %v1507 = vld [vmem:[#allocation3 + $0x20] sm:$0xff]
    %v1508 = vld [vmem:[#allocation3 + $0x28] sm:$0xff]
    %1515 = vrot.lane.b32.xlu0 %v1503, 92
    %v1516 = vpop.permute.xlu0 %1515
    %1517 = vrot.lane.b32.xlu0 %v1504, 92
    %v1518 = vpop.permute.xlu0 %1517
    %1519 = vrot.lane.b32.xlu0 %v1505, 92
    %v1520 = vpop.permute.xlu0 %1519
    %1521 = vrot.lane.b32.xlu0 %v1506, 92
    %v1522 = vpop.permute.xlu0 %1521
    %1523 = vrot.lane.b32.xlu0 %v1507, 92
    %v1524 = vpop.permute.xlu0 %1523
    %1525 = vrot.lane.b32.xlu0 %v1508, 92
    %v1526 = vpop.permute.xlu0 %1525
    %vm1527 = vcmask 752640
    %v1528 = vsel %vm1527, %v1516, %v1518
    %v1529 = vsel %vm1527, %v1518, %v1520
    %v1530 = vsel %vm1527, %v1522, %v1524
    %v1531 = vsel %vm1527, %v1524, %v1526
    %1538 = vst [vmem:[#allocation2 + $0x6c0] sm:$0xff] %v1528
    %1539 = vst [vmem:[#allocation2 + $0x6c8] sm:$0xff] %v1529
    %1540 = vst.msk [vmem:[#allocation2 + $0x6d0] sm:$0xff] %vm63, %v1520
    %1541 = vst [vmem:[#allocation2 + $0x6d8] sm:$0xff] %v1530
    %1542 = vst [vmem:[#allocation2 + $0x6e0] sm:$0xff] %v1531
    %1543 = vst.msk [vmem:[#allocation2 + $0x6e8] sm:$0xff] %vm63, %v1526
    %v1544 = vld [vmem:[#allocation3] sm:$0xff]
    %v1545 = vld [vmem:[#allocation3 + $0x8] sm:$0xff]
    %v1546 = vld [vmem:[#allocation3 + $0x10] sm:$0xff]
    %v1547 = vld [vmem:[#allocation3 + $0x18] sm:$0xff]
    %v1548 = vld [vmem:[#allocation3 + $0x20] sm:$0xff]
    %v1549 = vld [vmem:[#allocation3 + $0x28] sm:$0xff]
    %1556 = vrot.lane.b32.xlu0 %v1544, 91
    %v1557 = vpop.permute.xlu0 %1556
    %1558 = vrot.lane.b32.xlu0 %v1545, 91
    %v1559 = vpop.permute.xlu0 %1558
    %1560 = vrot.lane.b32.xlu0 %v1546, 91
    %v1561 = vpop.permute.xlu0 %1560
    %1562 = vrot.lane.b32.xlu0 %v1547, 91
    %v1563 = vpop.permute.xlu0 %1562
    %1564 = vrot.lane.b32.xlu0 %v1548, 91
    %v1565 = vpop.permute.xlu0 %1564
    %1566 = vrot.lane.b32.xlu0 %v1549, 91
    %v1567 = vpop.permute.xlu0 %1566
    %vm1568 = vcmask 744448
    %v1569 = vsel %vm1568, %v1557, %v1559
    %v1570 = vsel %vm1568, %v1559, %v1561
    %v1571 = vsel %vm1568, %v1563, %v1565
    %v1572 = vsel %vm1568, %v1565, %v1567
    %1579 = vst [vmem:[#allocation2 + $0x6f0] sm:$0xff] %v1569
    %1580 = vst [vmem:[#allocation2 + $0x6f8] sm:$0xff] %v1570
    %1581 = vst.msk [vmem:[#allocation2 + $0x700] sm:$0xff] %vm63, %v1561
    %1582 = vst [vmem:[#allocation2 + $0x708] sm:$0xff] %v1571
    %1583 = vst [vmem:[#allocation2 + $0x710] sm:$0xff] %v1572
    %1584 = vst.msk [vmem:[#allocation2 + $0x718] sm:$0xff] %vm63, %v1567
    %v1585 = vld [vmem:[#allocation3] sm:$0xff]
    %v1586 = vld [vmem:[#allocation3 + $0x8] sm:$0xff]
    %v1587 = vld [vmem:[#allocation3 + $0x10] sm:$0xff]
    %v1588 = vld [vmem:[#allocation3 + $0x18] sm:$0xff]
    %v1589 = vld [vmem:[#allocation3 + $0x20] sm:$0xff]
    %v1590 = vld [vmem:[#allocation3 + $0x28] sm:$0xff]
    %1597 = vrot.lane.b32.xlu0 %v1585, 90
    %v1598 = vpop.permute.xlu0 %1597
    %1599 = vrot.lane.b32.xlu0 %v1586, 90
    %v1600 = vpop.permute.xlu0 %1599
    %1601 = vrot.lane.b32.xlu0 %v1587, 90
    %v1602 = vpop.permute.xlu0 %1601
    %1603 = vrot.lane.b32.xlu0 %v1588, 90
    %v1604 = vpop.permute.xlu0 %1603
    %1605 = vrot.lane.b32.xlu0 %v1589, 90
    %v1606 = vpop.permute.xlu0 %1605
    %1607 = vrot.lane.b32.xlu0 %v1590, 90
    %v1608 = vpop.permute.xlu0 %1607
    %vm1609 = vcmask 736256
    %v1610 = vsel %vm1609, %v1598, %v1600
    %v1611 = vsel %vm1609, %v1600, %v1602
    %v1612 = vsel %vm1609, %v1604, %v1606
    %v1613 = vsel %vm1609, %v1606, %v1608
    %1620 = vst [vmem:[#allocation2 + $0x720] sm:$0xff] %v1610
    %1621 = vst [vmem:[#allocation2 + $0x728] sm:$0xff] %v1611
    %1622 = vst.msk [vmem:[#allocation2 + $0x730] sm:$0xff] %vm63, %v1602
    %1623 = vst [vmem:[#allocation2 + $0x738] sm:$0xff] %v1612
    %1624 = vst [vmem:[#allocation2 + $0x740] sm:$0xff] %v1613
    %1625 = vst.msk [vmem:[#allocation2 + $0x748] sm:$0xff] %vm63, %v1608
    %v1626 = vld [vmem:[#allocation3] sm:$0xff]
    %v1627 = vld [vmem:[#allocation3 + $0x8] sm:$0xff]
    %v1628 = vld [vmem:[#allocation3 + $0x10] sm:$0xff]
    %v1629 = vld [vmem:[#allocation3 + $0x18] sm:$0xff]
    %v1630 = vld [vmem:[#allocation3 + $0x20] sm:$0xff]
    %v1631 = vld [vmem:[#allocation3 + $0x28] sm:$0xff]
    %1638 = vrot.lane.b32.xlu0 %v1626, 89
    %v1639 = vpop.permute.xlu0 %1638
    %1640 = vrot.lane.b32.xlu0 %v1627, 89
    %v1641 = vpop.permute.xlu0 %1640
    %1642 = vrot.lane.b32.xlu0 %v1628, 89
    %v1643 = vpop.permute.xlu0 %1642
    %1644 = vrot.lane.b32.xlu0 %v1629, 89
    %v1645 = vpop.permute.xlu0 %1644
    %1646 = vrot.lane.b32.xlu0 %v1630, 89
    %v1647 = vpop.permute.xlu0 %1646
    %1648 = vrot.lane.b32.xlu0 %v1631, 89
    %v1649 = vpop.permute.xlu0 %1648
    %vm1650 = vcmask 728064
    %v1651 = vsel %vm1650, %v1639, %v1641
    %v1652 = vsel %vm1650, %v1641, %v1643
    %v1653 = vsel %vm1650, %v1645, %v1647
    %v1654 = vsel %vm1650, %v1647, %v1649
    %1661 = vst [vmem:[#allocation2 + $0x750] sm:$0xff] %v1651
    %1662 = vst [vmem:[#allocation2 + $0x758] sm:$0xff] %v1652
    %1663 = vst.msk [vmem:[#allocation2 + $0x760] sm:$0xff] %vm63, %v1643
    %1664 = vst [vmem:[#allocation2 + $0x768] sm:$0xff] %v1653
    %1665 = vst [vmem:[#allocation2 + $0x770] sm:$0xff] %v1654
    %1666 = vst.msk [vmem:[#allocation2 + $0x778] sm:$0xff] %vm63, %v1649
    %v1667 = vld [vmem:[#allocation3] sm:$0xff]
    %v1668 = vld [vmem:[#allocation3 + $0x8] sm:$0xff]
    %v1669 = vld [vmem:[#allocation3 + $0x10] sm:$0xff]
    %v1670 = vld [vmem:[#allocation3 + $0x18] sm:$0xff]
    %v1671 = vld [vmem:[#allocation3 + $0x20] sm:$0xff]
    %v1672 = vld [vmem:[#allocation3 + $0x28] sm:$0xff]
    %1679 = vrot.lane.b32.xlu0 %v1667, 88
    %v1680 = vpop.permute.xlu0 %1679
    %1681 = vrot.lane.b32.xlu0 %v1668, 88
    %v1682 = vpop.permute.xlu0 %1681
    %1683 = vrot.lane.b32.xlu0 %v1669, 88
    %v1684 = vpop.permute.xlu0 %1683
    %1685 = vrot.lane.b32.xlu0 %v1670, 88
    %v1686 = vpop.permute.xlu0 %1685
    %1687 = vrot.lane.b32.xlu0 %v1671, 88
    %v1688 = vpop.permute.xlu0 %1687
    %1689 = vrot.lane.b32.xlu0 %v1672, 88
    %v1690 = vpop.permute.xlu0 %1689
    %vm1691 = vcmask 719872
    %v1692 = vsel %vm1691, %v1680, %v1682
    %v1693 = vsel %vm1691, %v1682, %v1684
    %v1694 = vsel %vm1691, %v1686, %v1688
    %v1695 = vsel %vm1691, %v1688, %v1690
    %1702 = vst [vmem:[#allocation2 + $0x780] sm:$0xff] %v1692
    %1703 = vst [vmem:[#allocation2 + $0x788] sm:$0xff] %v1693
    %1704 = vst.msk [vmem:[#allocation2 + $0x790] sm:$0xff] %vm63, %v1684
    %1705 = vst [vmem:[#allocation2 + $0x798] sm:$0xff] %v1694
    %1706 = vst [vmem:[#allocation2 + $0x7a0] sm:$0xff] %v1695
    %1707 = vst.msk [vmem:[#allocation2 + $0x7a8] sm:$0xff] %vm63, %v1690
    %v1708 = vld [vmem:[#allocation3] sm:$0xff]
    %v1709 = vld [vmem:[#allocation3 + $0x8] sm:$0xff]
    %v1710 = vld [vmem:[#allocation3 + $0x10] sm:$0xff]
    %v1711 = vld [vmem:[#allocation3 + $0x18] sm:$0xff]
    %v1712 = vld [vmem:[#allocation3 + $0x20] sm:$0xff]
    %v1713 = vld [vmem:[#allocation3 + $0x28] sm:$0xff]
    %1720 = vrot.lane.b32.xlu0 %v1708, 87
    %v1721 = vpop.permute.xlu0 %1720
    %1722 = vrot.lane.b32.xlu0 %v1709, 87
    %v1723 = vpop.permute.xlu0 %1722
    %1724 = vrot.lane.b32.xlu0 %v1710, 87
    %v1725 = vpop.permute.xlu0 %1724
    %1726 = vrot.lane.b32.xlu0 %v1711, 87
    %v1727 = vpop.permute.xlu0 %1726
    %1728 = vrot.lane.b32.xlu0 %v1712, 87
    %v1729 = vpop.permute.xlu0 %1728
    %1730 = vrot.lane.b32.xlu0 %v1713, 87
    %v1731 = vpop.permute.xlu0 %1730
    %vm1732 = vcmask 711680
    %v1733 = vsel %vm1732, %v1721, %v1723
    %v1734 = vsel %vm1732, %v1723, %v1725
    %v1735 = vsel %vm1732, %v1727, %v1729
    %v1736 = vsel %vm1732, %v1729, %v1731
    %1743 = vst [vmem:[#allocation2 + $0x7b0] sm:$0xff] %v1733
    %1744 = vst [vmem:[#allocation2 + $0x7b8] sm:$0xff] %v1734
    %1745 = vst.msk [vmem:[#allocation2 + $0x7c0] sm:$0xff] %vm63, %v1725
    %1746 = vst [vmem:[#allocation2 + $0x7c8] sm:$0xff] %v1735
    %1747 = vst [vmem:[#allocation2 + $0x7d0] sm:$0xff] %v1736
    %1748 = vst.msk [vmem:[#allocation2 + $0x7d8] sm:$0xff] %vm63, %v1731
    %v1749 = vld [vmem:[#allocation3] sm:$0xff]
    %v1750 = vld [vmem:[#allocation3 + $0x8] sm:$0xff]
    %v1751 = vld [vmem:[#allocation3 + $0x10] sm:$0xff]
    %v1752 = vld [vmem:[#allocation3 + $0x18] sm:$0xff]
    %v1753 = vld [vmem:[#allocation3 + $0x20] sm:$0xff]
    %v1754 = vld [vmem:[#allocation3 + $0x28] sm:$0xff]
    %1761 = vrot.lane.b32.xlu0 %v1749, 86
    %v1762 = vpop.permute.xlu0 %1761
    %1763 = vrot.lane.b32.xlu0 %v1750, 86
    %v1764 = vpop.permute.xlu0 %1763
    %1765 = vrot.lane.b32.xlu0 %v1751, 86
    %v1766 = vpop.permute.xlu0 %1765
    %1767 = vrot.lane.b32.xlu0 %v1752, 86
    %v1768 = vpop.permute.xlu0 %1767
    %1769 = vrot.lane.b32.xlu0 %v1753, 86
    %v1770 = vpop.permute.xlu0 %1769
    %1771 = vrot.lane.b32.xlu0 %v1754, 86
    %v1772 = vpop.permute.xlu0 %1771
    %vm1773 = vcmask 703488
    %v1774 = vsel %vm1773, %v1762, %v1764
    %v1775 = vsel %vm1773, %v1764, %v1766
    %v1776 = vsel %vm1773, %v1768, %v1770
    %v1777 = vsel %vm1773, %v1770, %v1772
    %1784 = vst [vmem:[#allocation2 + $0x7e0] sm:$0xff] %v1774
    %1785 = vst [vmem:[#allocation2 + $0x7e8] sm:$0xff] %v1775
    %1786 = vst.msk [vmem:[#allocation2 + $0x7f0] sm:$0xff] %vm63, %v1766
    %1787 = vst [vmem:[#allocation2 + $0x7f8] sm:$0xff] %v1776
    %1788 = vst [vmem:[#allocation2 + $0x800] sm:$0xff] %v1777
    %1789 = vst.msk [vmem:[#allocation2 + $0x808] sm:$0xff] %vm63, %v1772
    %v1790 = vld [vmem:[#allocation3] sm:$0xff]
    %v1791 = vld [vmem:[#allocation3 + $0x8] sm:$0xff]
    %v1792 = vld [vmem:[#allocation3 + $0x10] sm:$0xff]
    %v1793 = vld [vmem:[#allocation3 + $0x18] sm:$0xff]
    %v1794 = vld [vmem:[#allocation3 + $0x20] sm:$0xff]
    %v1795 = vld [vmem:[#allocation3 + $0x28] sm:$0xff]
    %1802 = vrot.lane.b32.xlu0 %v1790, 85
    %v1803 = vpop.permute.xlu0 %1802
    %1804 = vrot.lane.b32.xlu0 %v1791, 85
    %v1805 = vpop.permute.xlu0 %1804
    %1806 = vrot.lane.b32.xlu0 %v1792, 85
    %v1807 = vpop.permute.xlu0 %1806
    %1808 = vrot.lane.b32.xlu0 %v1793, 85
    %v1809 = vpop.permute.xlu0 %1808
    %1810 = vrot.lane.b32.xlu0 %v1794, 85
    %v1811 = vpop.permute.xlu0 %1810
    %1812 = vrot.lane.b32.xlu0 %v1795, 85
    %v1813 = vpop.permute.xlu0 %1812
    %vm1814 = vcmask 695296
    %v1815 = vsel %vm1814, %v1803, %v1805
    %v1816 = vsel %vm1814, %v1805, %v1807
    %v1817 = vsel %vm1814, %v1809, %v1811
    %v1818 = vsel %vm1814, %v1811, %v1813
    %1825 = vst [vmem:[#allocation2 + $0x810] sm:$0xff] %v1815
    %1826 = vst [vmem:[#allocation2 + $0x818] sm:$0xff] %v1816
    %1827 = vst.msk [vmem:[#allocation2 + $0x820] sm:$0xff] %vm63, %v1807
    %1828 = vst [vmem:[#allocation2 + $0x828] sm:$0xff] %v1817
    %1829 = vst [vmem:[#allocation2 + $0x830] sm:$0xff] %v1818
    %1830 = vst.msk [vmem:[#allocation2 + $0x838] sm:$0xff] %vm63, %v1813
    %v1831 = vld [vmem:[#allocation3] sm:$0xff]
    %v1832 = vld [vmem:[#allocation3 + $0x8] sm:$0xff]
    %v1833 = vld [vmem:[#allocation3 + $0x10] sm:$0xff]
    %v1834 = vld [vmem:[#allocation3 + $0x18] sm:$0xff]
    %v1835 = vld [vmem:[#allocation3 + $0x20] sm:$0xff]
    %v1836 = vld [vmem:[#allocation3 + $0x28] sm:$0xff]
    %1843 = vrot.lane.b32.xlu0 %v1831, 84
    %v1844 = vpop.permute.xlu0 %1843
    %1845 = vrot.lane.b32.xlu0 %v1832, 84
    %v1846 = vpop.permute.xlu0 %1845
    %1847 = vrot.lane.b32.xlu0 %v1833, 84
    %v1848 = vpop.permute.xlu0 %1847
    %1849 = vrot.lane.b32.xlu0 %v1834, 84
    %v1850 = vpop.permute.xlu0 %1849
    %1851 = vrot.lane.b32.xlu0 %v1835, 84
    %v1852 = vpop.permute.xlu0 %1851
    %1853 = vrot.lane.b32.xlu0 %v1836, 84
    %v1854 = vpop.permute.xlu0 %1853
    %vm1855 = vcmask 687104
    %v1856 = vsel %vm1855, %v1844, %v1846
    %v1857 = vsel %vm1855, %v1846, %v1848
    %v1858 = vsel %vm1855, %v1850, %v1852
    %v1859 = vsel %vm1855, %v1852, %v1854
    %1866 = vst [vmem:[#allocation2 + $0x840] sm:$0xff] %v1856
    %1867 = vst [vmem:[#allocation2 + $0x848] sm:$0xff] %v1857
    %1868 = vst.msk [vmem:[#allocation2 + $0x850] sm:$0xff] %vm63, %v1848
    %1869 = vst [vmem:[#allocation2 + $0x858] sm:$0xff] %v1858
    %1870 = vst [vmem:[#allocation2 + $0x860] sm:$0xff] %v1859
    %1871 = vst.msk [vmem:[#allocation2 + $0x868] sm:$0xff] %vm63, %v1854
    %v1872 = vld [vmem:[#allocation3] sm:$0xff]
    %v1873 = vld [vmem:[#allocation3 + $0x8] sm:$0xff]
    %v1874 = vld [vmem:[#allocation3 + $0x10] sm:$0xff]
    %v1875 = vld [vmem:[#allocation3 + $0x18] sm:$0xff]
    %v1876 = vld [vmem:[#allocation3 + $0x20] sm:$0xff]
    %v1877 = vld [vmem:[#allocation3 + $0x28] sm:$0xff]
    %1884 = vrot.lane.b32.xlu0 %v1872, 83
    %v1885 = vpop.permute.xlu0 %1884
    %1886 = vrot.lane.b32.xlu0 %v1873, 83
    %v1887 = vpop.permute.xlu0 %1886
    %1888 = vrot.lane.b32.xlu0 %v1874, 83
    %v1889 = vpop.permute.xlu0 %1888
    %1890 = vrot.lane.b32.xlu0 %v1875, 83
    %v1891 = vpop.permute.xlu0 %1890
    %1892 = vrot.lane.b32.xlu0 %v1876, 83
    %v1893 = vpop.permute.xlu0 %1892
    %1894 = vrot.lane.b32.xlu0 %v1877, 83
    %v1895 = vpop.permute.xlu0 %1894
    %vm1896 = vcmask 678912
    %v1897 = vsel %vm1896, %v1885, %v1887
    %v1898 = vsel %vm1896, %v1887, %v1889
    %v1899 = vsel %vm1896, %v1891, %v1893
    %v1900 = vsel %vm1896, %v1893, %v1895
    %1907 = vst [vmem:[#allocation2 + $0x870] sm:$0xff] %v1897
    %1908 = vst [vmem:[#allocation2 + $0x878] sm:$0xff] %v1898
    %1909 = vst.msk [vmem:[#allocation2 + $0x880] sm:$0xff] %vm63, %v1889
    %1910 = vst [vmem:[#allocation2 + $0x888] sm:$0xff] %v1899
    %1911 = vst [vmem:[#allocation2 + $0x890] sm:$0xff] %v1900
    %1912 = vst.msk [vmem:[#allocation2 + $0x898] sm:$0xff] %vm63, %v1895
    %v1913 = vld [vmem:[#allocation3] sm:$0xff]
    %v1914 = vld [vmem:[#allocation3 + $0x8] sm:$0xff]
    %v1915 = vld [vmem:[#allocation3 + $0x10] sm:$0xff]
    %v1916 = vld [vmem:[#allocation3 + $0x18] sm:$0xff]
    %v1917 = vld [vmem:[#allocation3 + $0x20] sm:$0xff]
    %v1918 = vld [vmem:[#allocation3 + $0x28] sm:$0xff]
    %1925 = vrot.lane.b32.xlu0 %v1913, 82
    %v1926 = vpop.permute.xlu0 %1925
    %1927 = vrot.lane.b32.xlu0 %v1914, 82
    %v1928 = vpop.permute.xlu0 %1927
    %1929 = vrot.lane.b32.xlu0 %v1915, 82
    %v1930 = vpop.permute.xlu0 %1929
    %1931 = vrot.lane.b32.xlu0 %v1916, 82
    %v1932 = vpop.permute.xlu0 %1931
    %1933 = vrot.lane.b32.xlu0 %v1917, 82
    %v1934 = vpop.permute.xlu0 %1933
    %1935 = vrot.lane.b32.xlu0 %v1918, 82
    %v1936 = vpop.permute.xlu0 %1935
    %vm1937 = vcmask 670720
    %v1938 = vsel %vm1937, %v1926, %v1928
    %v1939 = vsel %vm1937, %v1928, %v1930
    %v1940 = vsel %vm1937, %v1932, %v1934
    %v1941 = vsel %vm1937, %v1934, %v1936
    %1948 = vst [vmem:[#allocation2 + $0x8a0] sm:$0xff] %v1938
    %1949 = vst [vmem:[#allocation2 + $0x8a8] sm:$0xff] %v1939
    %1950 = vst.msk [vmem:[#allocation2 + $0x8b0] sm:$0xff] %vm63, %v1930
    %1951 = vst [vmem:[#allocation2 + $0x8b8] sm:$0xff] %v1940
    %1952 = vst [vmem:[#allocation2 + $0x8c0] sm:$0xff] %v1941
    %1953 = vst.msk [vmem:[#allocation2 + $0x8c8] sm:$0xff] %vm63, %v1936
    %v1954 = vld [vmem:[#allocation3] sm:$0xff]
    %v1955 = vld [vmem:[#allocation3 + $0x8] sm:$0xff]
    %v1956 = vld [vmem:[#allocation3 + $0x10] sm:$0xff]
    %v1957 = vld [vmem:[#allocation3 + $0x18] sm:$0xff]
    %v1958 = vld [vmem:[#allocation3 + $0x20] sm:$0xff]
    %v1959 = vld [vmem:[#allocation3 + $0x28] sm:$0xff]
    %1966 = vrot.lane.b32.xlu0 %v1954, 81
    %v1967 = vpop.permute.xlu0 %1966
    %1968 = vrot.lane.b32.xlu0 %v1955, 81
    %v1969 = vpop.permute.xlu0 %1968
    %1970 = vrot.lane.b32.xlu0 %v1956, 81
    %v1971 = vpop.permute.xlu0 %1970
    %1972 = vrot.lane.b32.xlu0 %v1957, 81
    %v1973 = vpop.permute.xlu0 %1972
    %1974 = vrot.lane.b32.xlu0 %v1958, 81
    %v1975 = vpop.permute.xlu0 %1974
    %1976 = vrot.lane.b32.xlu0 %v1959, 81
    %v1977 = vpop.permute.xlu0 %1976
    %vm1978 = vcmask 662528
    %v1979 = vsel %vm1978, %v1967, %v1969
    %v1980 = vsel %vm1978, %v1969, %v1971
    %v1981 = vsel %vm1978, %v1973, %v1975
    %v1982 = vsel %vm1978, %v1975, %v1977
    %1989 = vst [vmem:[#allocation2 + $0x8d0] sm:$0xff] %v1979
    %1990 = vst [vmem:[#allocation2 + $0x8d8] sm:$0xff] %v1980
    %1991 = vst.msk [vmem:[#allocation2 + $0x8e0] sm:$0xff] %vm63, %v1971
    %1992 = vst [vmem:[#allocation2 + $0x8e8] sm:$0xff] %v1981
    %1993 = vst [vmem:[#allocation2 + $0x8f0] sm:$0xff] %v1982
    %1994 = vst.msk [vmem:[#allocation2 + $0x8f8] sm:$0xff] %vm63, %v1977
    %v1995 = vld [vmem:[#allocation3] sm:$0xff]
    %v1996 = vld [vmem:[#allocation3 + $0x8] sm:$0xff]
    %v1997 = vld [vmem:[#allocation3 + $0x10] sm:$0xff]
    %v1998 = vld [vmem:[#allocation3 + $0x18] sm:$0xff]
    %v1999 = vld [vmem:[#allocation3 + $0x20] sm:$0xff]
    %v2000 = vld [vmem:[#allocation3 + $0x28] sm:$0xff]
    %2007 = vrot.lane.b32.xlu0 %v1995, 80
    %v2008 = vpop.permute.xlu0 %2007
    %2009 = vrot.lane.b32.xlu0 %v1996, 80
    %v2010 = vpop.permute.xlu0 %2009
    %2011 = vrot.lane.b32.xlu0 %v1997, 80
    %v2012 = vpop.permute.xlu0 %2011
    %2013 = vrot.lane.b32.xlu0 %v1998, 80
    %v2014 = vpop.permute.xlu0 %2013
    %2015 = vrot.lane.b32.xlu0 %v1999, 80
    %v2016 = vpop.permute.xlu0 %2015
    %2017 = vrot.lane.b32.xlu0 %v2000, 80
    %v2018 = vpop.permute.xlu0 %2017
    %vm2019 = vcmask 654336
    %v2020 = vsel %vm2019, %v2008, %v2010
    %v2021 = vsel %vm2019, %v2010, %v2012
    %v2022 = vsel %vm2019, %v2014, %v2016
    %v2023 = vsel %vm2019, %v2016, %v2018
    %2030 = vst [vmem:[#allocation2 + $0x900] sm:$0xff] %v2020
    %2031 = vst [vmem:[#allocation2 + $0x908] sm:$0xff] %v2021
    %2032 = vst.msk [vmem:[#allocation2 + $0x910] sm:$0xff] %vm63, %v2012
    %2033 = vst [vmem:[#allocation2 + $0x918] sm:$0xff] %v2022
    %2034 = vst [vmem:[#allocation2 + $0x920] sm:$0xff] %v2023
    %2035 = vst.msk [vmem:[#allocation2 + $0x928] sm:$0xff] %vm63, %v2018
    %v2036 = vld [vmem:[#allocation3] sm:$0xff]
    %v2037 = vld [vmem:[#allocation3 + $0x8] sm:$0xff]
    %v2038 = vld [vmem:[#allocation3 + $0x10] sm:$0xff]
    %v2039 = vld [vmem:[#allocation3 + $0x18] sm:$0xff]
    %v2040 = vld [vmem:[#allocation3 + $0x20] sm:$0xff]
    %v2041 = vld [vmem:[#allocation3 + $0x28] sm:$0xff]
    %2048 = vrot.lane.b32.xlu0 %v2036, 79
    %v2049 = vpop.permute.xlu0 %2048
    %2050 = vrot.lane.b32.xlu0 %v2037, 79
    %v2051 = vpop.permute.xlu0 %2050
    %2052 = vrot.lane.b32.xlu0 %v2038, 79
    %v2053 = vpop.permute.xlu0 %2052
    %2054 = vrot.lane.b32.xlu0 %v2039, 79
    %v2055 = vpop.permute.xlu0 %2054
    %2056 = vrot.lane.b32.xlu0 %v2040, 79
    %v2057 = vpop.permute.xlu0 %2056
    %2058 = vrot.lane.b32.xlu0 %v2041, 79
    %v2059 = vpop.permute.xlu0 %2058
    %vm2060 = vcmask 646144
    %v2061 = vsel %vm2060, %v2049, %v2051
    %v2062 = vsel %vm2060, %v2051, %v2053
    %v2063 = vsel %vm2060, %v2055, %v2057
    %v2064 = vsel %vm2060, %v2057, %v2059
    %2071 = vst [vmem:[#allocation2 + $0x930] sm:$0xff] %v2061
    %2072 = vst [vmem:[#allocation2 + $0x938] sm:$0xff] %v2062
    %2073 = vst.msk [vmem:[#allocation2 + $0x940] sm:$0xff] %vm63, %v2053
    %2074 = vst [vmem:[#allocation2 + $0x948] sm:$0xff] %v2063
    %2075 = vst [vmem:[#allocation2 + $0x950] sm:$0xff] %v2064
    %2076 = vst.msk [vmem:[#allocation2 + $0x958] sm:$0xff] %vm63, %v2059
    %v2077 = vld [vmem:[#allocation3] sm:$0xff]
    %v2078 = vld [vmem:[#allocation3 + $0x8] sm:$0xff]
    %v2079 = vld [vmem:[#allocation3 + $0x10] sm:$0xff]
    %v2080 = vld [vmem:[#allocation3 + $0x18] sm:$0xff]
    %v2081 = vld [vmem:[#allocation3 + $0x20] sm:$0xff]
    %v2082 = vld [vmem:[#allocation3 + $0x28] sm:$0xff]
    %2089 = vrot.lane.b32.xlu0 %v2077, 78
    %v2090 = vpop.permute.xlu0 %2089
    %2091 = vrot.lane.b32.xlu0 %v2078, 78
    %v2092 = vpop.permute.xlu0 %2091
    %2093 = vrot.lane.b32.xlu0 %v2079, 78
    %v2094 = vpop.permute.xlu0 %2093
    %2095 = vrot.lane.b32.xlu0 %v2080, 78
    %v2096 = vpop.permute.xlu0 %2095
    %2097 = vrot.lane.b32.xlu0 %v2081, 78
    %v2098 = vpop.permute.xlu0 %2097
    %2099 = vrot.lane.b32.xlu0 %v2082, 78
    %v2100 = vpop.permute.xlu0 %2099
    %vm2101 = vcmask 637952
    %v2102 = vsel %vm2101, %v2090, %v2092
    %v2103 = vsel %vm2101, %v2092, %v2094
    %v2104 = vsel %vm2101, %v2096, %v2098
    %v2105 = vsel %vm2101, %v2098, %v2100
    %2112 = vst [vmem:[#allocation2 + $0x960] sm:$0xff] %v2102
    %2113 = vst [vmem:[#allocation2 + $0x968] sm:$0xff] %v2103
    %2114 = vst.msk [vmem:[#allocation2 + $0x970] sm:$0xff] %vm63, %v2094
    %2115 = vst [vmem:[#allocation2 + $0x978] sm:$0xff] %v2104
    %2116 = vst [vmem:[#allocation2 + $0x980] sm:$0xff] %v2105
    %2117 = vst.msk [vmem:[#allocation2 + $0x988] sm:$0xff] %vm63, %v2100
    %v2118 = vld [vmem:[#allocation3] sm:$0xff]
    %v2119 = vld [vmem:[#allocation3 + $0x8] sm:$0xff]
    %v2120 = vld [vmem:[#allocation3 + $0x10] sm:$0xff]
    %v2121 = vld [vmem:[#allocation3 + $0x18] sm:$0xff]
    %v2122 = vld [vmem:[#allocation3 + $0x20] sm:$0xff]
    %v2123 = vld [vmem:[#allocation3 + $0x28] sm:$0xff]
    %2130 = vrot.lane.b32.xlu0 %v2118, 77
    %v2131 = vpop.permute.xlu0 %2130
    %2132 = vrot.lane.b32.xlu0 %v2119, 77
    %v2133 = vpop.permute.xlu0 %2132
    %2134 = vrot.lane.b32.xlu0 %v2120, 77
    %v2135 = vpop.permute.xlu0 %2134
    %2136 = vrot.lane.b32.xlu0 %v2121, 77
    %v2137 = vpop.permute.xlu0 %2136
    %2138 = vrot.lane.b32.xlu0 %v2122, 77
    %v2139 = vpop.permute.xlu0 %2138
    %2140 = vrot.lane.b32.xlu0 %v2123, 77
    %v2141 = vpop.permute.xlu0 %2140
    %vm2142 = vcmask 629760
    %v2143 = vsel %vm2142, %v2131, %v2133
    %v2144 = vsel %vm2142, %v2133, %v2135
    %v2145 = vsel %vm2142, %v2137, %v2139
    %v2146 = vsel %vm2142, %v2139, %v2141
    %2153 = vst [vmem:[#allocation2 + $0x990] sm:$0xff] %v2143
    %2154 = vst [vmem:[#allocation2 + $0x998] sm:$0xff] %v2144
    %2155 = vst.msk [vmem:[#allocation2 + $0x9a0] sm:$0xff] %vm63, %v2135
    %2156 = vst [vmem:[#allocation2 + $0x9a8] sm:$0xff] %v2145
    %2157 = vst [vmem:[#allocation2 + $0x9b0] sm:$0xff] %v2146
    %2158 = vst.msk [vmem:[#allocation2 + $0x9b8] sm:$0xff] %vm63, %v2141
    %v2159 = vld [vmem:[#allocation3] sm:$0xff]
    %v2160 = vld [vmem:[#allocation3 + $0x8] sm:$0xff]
    %v2161 = vld [vmem:[#allocation3 + $0x10] sm:$0xff]
    %v2162 = vld [vmem:[#allocation3 + $0x18] sm:$0xff]
    %v2163 = vld [vmem:[#allocation3 + $0x20] sm:$0xff]
    %v2164 = vld [vmem:[#allocation3 + $0x28] sm:$0xff]
    %2171 = vrot.lane.b32.xlu0 %v2159, 76
    %v2172 = vpop.permute.xlu0 %2171
    %2173 = vrot.lane.b32.xlu0 %v2160, 76
    %v2174 = vpop.permute.xlu0 %2173
    %2175 = vrot.lane.b32.xlu0 %v2161, 76
    %v2176 = vpop.permute.xlu0 %2175
    %2177 = vrot.lane.b32.xlu0 %v2162, 76
    %v2178 = vpop.permute.xlu0 %2177
    %2179 = vrot.lane.b32.xlu0 %v2163, 76
    %v2180 = vpop.permute.xlu0 %2179
    %2181 = vrot.lane.b32.xlu0 %v2164, 76
    %v2182 = vpop.permute.xlu0 %2181
    %vm2183 = vcmask 621568
    %v2184 = vsel %vm2183, %v2172, %v2174
    %v2185 = vsel %vm2183, %v2174, %v2176
    %v2186 = vsel %vm2183, %v2178, %v2180
    %v2187 = vsel %vm2183, %v2180, %v2182
    %2194 = vst [vmem:[#allocation2 + $0x9c0] sm:$0xff] %v2184
    %2195 = vst [vmem:[#allocation2 + $0x9c8] sm:$0xff] %v2185
    %2196 = vst.msk [vmem:[#allocation2 + $0x9d0] sm:$0xff] %vm63, %v2176
    %2197 = vst [vmem:[#allocation2 + $0x9d8] sm:$0xff] %v2186
    %2198 = vst [vmem:[#allocation2 + $0x9e0] sm:$0xff] %v2187
    %2199 = vst.msk [vmem:[#allocation2 + $0x9e8] sm:$0xff] %vm63, %v2182
    %v2200 = vld [vmem:[#allocation3] sm:$0xff]
    %v2201 = vld [vmem:[#allocation3 + $0x8] sm:$0xff]
    %v2202 = vld [vmem:[#allocation3 + $0x10] sm:$0xff]
    %v2203 = vld [vmem:[#allocation3 + $0x18] sm:$0xff]
    %v2204 = vld [vmem:[#allocation3 + $0x20] sm:$0xff]
    %v2205 = vld [vmem:[#allocation3 + $0x28] sm:$0xff]
    %2212 = vrot.lane.b32.xlu0 %v2200, 75
    %v2213 = vpop.permute.xlu0 %2212
    %2214 = vrot.lane.b32.xlu0 %v2201, 75
    %v2215 = vpop.permute.xlu0 %2214
    %2216 = vrot.lane.b32.xlu0 %v2202, 75
    %v2217 = vpop.permute.xlu0 %2216
    %2218 = vrot.lane.b32.xlu0 %v2203, 75
    %v2219 = vpop.permute.xlu0 %2218
    %2220 = vrot.lane.b32.xlu0 %v2204, 75
    %v2221 = vpop.permute.xlu0 %2220
    %2222 = vrot.lane.b32.xlu0 %v2205, 75
    %v2223 = vpop.permute.xlu0 %2222
    %vm2224 = vcmask 613376
    %v2225 = vsel %vm2224, %v2213, %v2215
    %v2226 = vsel %vm2224, %v2215, %v2217
    %v2227 = vsel %vm2224, %v2219, %v2221
    %v2228 = vsel %vm2224, %v2221, %v2223
    %2235 = vst [vmem:[#allocation2 + $0x9f0] sm:$0xff] %v2225
    %2236 = vst [vmem:[#allocation2 + $0x9f8] sm:$0xff] %v2226
    %2237 = vst.msk [vmem:[#allocation2 + $0xa00] sm:$0xff] %vm63, %v2217
    %2238 = vst [vmem:[#allocation2 + $0xa08] sm:$0xff] %v2227
    %2239 = vst [vmem:[#allocation2 + $0xa10] sm:$0xff] %v2228
    %2240 = vst.msk [vmem:[#allocation2 + $0xa18] sm:$0xff] %vm63, %v2223
    %v2241 = vld [vmem:[#allocation3] sm:$0xff]
    %v2242 = vld [vmem:[#allocation3 + $0x8] sm:$0xff]
    %v2243 = vld [vmem:[#allocation3 + $0x10] sm:$0xff]
    %v2244 = vld [vmem:[#allocation3 + $0x18] sm:$0xff]
    %v2245 = vld [vmem:[#allocation3 + $0x20] sm:$0xff]
    %v2246 = vld [vmem:[#allocation3 + $0x28] sm:$0xff]
    %2253 = vrot.lane.b32.xlu0 %v2241, 74
    %v2254 = vpop.permute.xlu0 %2253
    %2255 = vrot.lane.b32.xlu0 %v2242, 74
    %v2256 = vpop.permute.xlu0 %2255
    %2257 = vrot.lane.b32.xlu0 %v2243, 74
    %v2258 = vpop.permute.xlu0 %2257
    %2259 = vrot.lane.b32.xlu0 %v2244, 74
    %v2260 = vpop.permute.xlu0 %2259
    %2261 = vrot.lane.b32.xlu0 %v2245, 74
    %v2262 = vpop.permute.xlu0 %2261
    %2263 = vrot.lane.b32.xlu0 %v2246, 74
    %v2264 = vpop.permute.xlu0 %2263
    %vm2265 = vcmask 605184
    %v2266 = vsel %vm2265, %v2254, %v2256
    %v2267 = vsel %vm2265, %v2256, %v2258
    %v2268 = vsel %vm2265, %v2260, %v2262
    %v2269 = vsel %vm2265, %v2262, %v2264
    %2276 = vst [vmem:[#allocation2 + $0xa20] sm:$0xff] %v2266
    %2277 = vst [vmem:[#allocation2 + $0xa28] sm:$0xff] %v2267
    %2278 = vst.msk [vmem:[#allocation2 + $0xa30] sm:$0xff] %vm63, %v2258
    %2279 = vst [vmem:[#allocation2 + $0xa38] sm:$0xff] %v2268
    %2280 = vst [vmem:[#allocation2 + $0xa40] sm:$0xff] %v2269
    %2281 = vst.msk [vmem:[#allocation2 + $0xa48] sm:$0xff] %vm63, %v2264
    %v2282 = vld [vmem:[#allocation3] sm:$0xff]
    %v2283 = vld [vmem:[#allocation3 + $0x8] sm:$0xff]
    %v2284 = vld [vmem:[#allocation3 + $0x10] sm:$0xff]
    %v2285 = vld [vmem:[#allocation3 + $0x18] sm:$0xff]
    %v2286 = vld [vmem:[#allocation3 + $0x20] sm:$0xff]
    %v2287 = vld [vmem:[#allocation3 + $0x28] sm:$0xff]
    %2294 = vrot.lane.b32.xlu0 %v2282, 73
    %v2295 = vpop.permute.xlu0 %2294
    %2296 = vrot.lane.b32.xlu0 %v2283, 73
    %v2297 = vpop.permute.xlu0 %2296
    %2298 = vrot.lane.b32.xlu0 %v2284, 73
    %v2299 = vpop.permute.xlu0 %2298
    %2300 = vrot.lane.b32.xlu0 %v2285, 73
    %v2301 = vpop.permute.xlu0 %2300
    %2302 = vrot.lane.b32.xlu0 %v2286, 73
    %v2303 = vpop.permute.xlu0 %2302
    %2304 = vrot.lane.b32.xlu0 %v2287, 73
    %v2305 = vpop.permute.xlu0 %2304
    %vm2306 = vcmask 596992
    %v2307 = vsel %vm2306, %v2295, %v2297
    %v2308 = vsel %vm2306, %v2297, %v2299
    %v2309 = vsel %vm2306, %v2301, %v2303
    %v2310 = vsel %vm2306, %v2303, %v2305
    %2317 = vst [vmem:[#allocation2 + $0xa50] sm:$0xff] %v2307
    %2318 = vst [vmem:[#allocation2 + $0xa58] sm:$0xff] %v2308
    %2319 = vst.msk [vmem:[#allocation2 + $0xa60] sm:$0xff] %vm63, %v2299
    %2320 = vst [vmem:[#allocation2 + $0xa68] sm:$0xff] %v2309
    %2321 = vst [vmem:[#allocation2 + $0xa70] sm:$0xff] %v2310
    %2322 = vst.msk [vmem:[#allocation2 + $0xa78] sm:$0xff] %vm63, %v2305
    %v2323 = vld [vmem:[#allocation3] sm:$0xff]
    %v2324 = vld [vmem:[#allocation3 + $0x8] sm:$0xff]
    %v2325 = vld [vmem:[#allocation3 + $0x10] sm:$0xff]
    %v2326 = vld [vmem:[#allocation3 + $0x18] sm:$0xff]
    %v2327 = vld [vmem:[#allocation3 + $0x20] sm:$0xff]
    %v2328 = vld [vmem:[#allocation3 + $0x28] sm:$0xff]
    %2335 = vrot.lane.b32.xlu0 %v2323, 72
    %v2336 = vpop.permute.xlu0 %2335
    %2337 = vrot.lane.b32.xlu0 %v2324, 72
    %v2338 = vpop.permute.xlu0 %2337
    %2339 = vrot.lane.b32.xlu0 %v2325, 72
    %v2340 = vpop.permute.xlu0 %2339
    %2341 = vrot.lane.b32.xlu0 %v2326, 72
    %v2342 = vpop.permute.xlu0 %2341
    %2343 = vrot.lane.b32.xlu0 %v2327, 72
    %v2344 = vpop.permute.xlu0 %2343
    %2345 = vrot.lane.b32.xlu0 %v2328, 72
    %v2346 = vpop.permute.xlu0 %2345
    %vm2347 = vcmask 588800
    %v2348 = vsel %vm2347, %v2336, %v2338
    %v2349 = vsel %vm2347, %v2338, %v2340
    %v2350 = vsel %vm2347, %v2342, %v2344
    %v2351 = vsel %vm2347, %v2344, %v2346
    %2358 = vst [vmem:[#allocation2 + $0xa80] sm:$0xff] %v2348
    %2359 = vst [vmem:[#allocation2 + $0xa88] sm:$0xff] %v2349
    %2360 = vst.msk [vmem:[#allocation2 + $0xa90] sm:$0xff] %vm63, %v2340
    %2361 = vst [vmem:[#allocation2 + $0xa98] sm:$0xff] %v2350
    %2362 = vst [vmem:[#allocation2 + $0xaa0] sm:$0xff] %v2351
    %2363 = vst.msk [vmem:[#allocation2 + $0xaa8] sm:$0xff] %vm63, %v2346
    %v2364 = vld [vmem:[#allocation3] sm:$0xff]
    %v2365 = vld [vmem:[#allocation3 + $0x8] sm:$0xff]
    %v2366 = vld [vmem:[#allocation3 + $0x10] sm:$0xff]
    %v2367 = vld [vmem:[#allocation3 + $0x18] sm:$0xff]
    %v2368 = vld [vmem:[#allocation3 + $0x20] sm:$0xff]
    %v2369 = vld [vmem:[#allocation3 + $0x28] sm:$0xff]
    %2376 = vrot.lane.b32.xlu0 %v2364, 71
    %v2377 = vpop.permute.xlu0 %2376
    %2378 = vrot.lane.b32.xlu0 %v2365, 71
    %v2379 = vpop.permute.xlu0 %2378
    %2380 = vrot.lane.b32.xlu0 %v2366, 71
    %v2381 = vpop.permute.xlu0 %2380
    %2382 = vrot.lane.b32.xlu0 %v2367, 71
    %v2383 = vpop.permute.xlu0 %2382
    %2384 = vrot.lane.b32.xlu0 %v2368, 71
    %v2385 = vpop.permute.xlu0 %2384
    %2386 = vrot.lane.b32.xlu0 %v2369, 71
    %v2387 = vpop.permute.xlu0 %2386
    %vm2388 = vcmask 580608
    %v2389 = vsel %vm2388, %v2377, %v2379
    %v2390 = vsel %vm2388, %v2379, %v2381
    %v2391 = vsel %vm2388, %v2383, %v2385
    %v2392 = vsel %vm2388, %v2385, %v2387
    %2399 = vst [vmem:[#allocation2 + $0xab0] sm:$0xff] %v2389
    %2400 = vst [vmem:[#allocation2 + $0xab8] sm:$0xff] %v2390
    %2401 = vst.msk [vmem:[#allocation2 + $0xac0] sm:$0xff] %vm63, %v2381
    %2402 = vst [vmem:[#allocation2 + $0xac8] sm:$0xff] %v2391
    %2403 = vst [vmem:[#allocation2 + $0xad0] sm:$0xff] %v2392
    %2404 = vst.msk [vmem:[#allocation2 + $0xad8] sm:$0xff] %vm63, %v2387
    %v2405 = vld [vmem:[#allocation3] sm:$0xff]
    %v2406 = vld [vmem:[#allocation3 + $0x8] sm:$0xff]
    %v2407 = vld [vmem:[#allocation3 + $0x10] sm:$0xff]
    %v2408 = vld [vmem:[#allocation3 + $0x18] sm:$0xff]
    %v2409 = vld [vmem:[#allocation3 + $0x20] sm:$0xff]
    %v2410 = vld [vmem:[#allocation3 + $0x28] sm:$0xff]
    %2417 = vrot.lane.b32.xlu0 %v2405, 70
    %v2418 = vpop.permute.xlu0 %2417
    %2419 = vrot.lane.b32.xlu0 %v2406, 70
    %v2420 = vpop.permute.xlu0 %2419
    %2421 = vrot.lane.b32.xlu0 %v2407, 70
    %v2422 = vpop.permute.xlu0 %2421
    %2423 = vrot.lane.b32.xlu0 %v2408, 70
    %v2424 = vpop.permute.xlu0 %2423
    %2425 = vrot.lane.b32.xlu0 %v2409, 70
    %v2426 = vpop.permute.xlu0 %2425
    %2427 = vrot.lane.b32.xlu0 %v2410, 70
    %v2428 = vpop.permute.xlu0 %2427
    %vm2429 = vcmask 572416
    %v2430 = vsel %vm2429, %v2418, %v2420
    %v2431 = vsel %vm2429, %v2420, %v2422
    %v2432 = vsel %vm2429, %v2424, %v2426
    %v2433 = vsel %vm2429, %v2426, %v2428
    %2440 = vst [vmem:[#allocation2 + $0xae0] sm:$0xff] %v2430
    %2441 = vst [vmem:[#allocation2 + $0xae8] sm:$0xff] %v2431
    %2442 = vst.msk [vmem:[#allocation2 + $0xaf0] sm:$0xff] %vm63, %v2422
    %2443 = vst [vmem:[#allocation2 + $0xaf8] sm:$0xff] %v2432
    %2444 = vst [vmem:[#allocation2 + $0xb00] sm:$0xff] %v2433
    %2445 = vst.msk [vmem:[#allocation2 + $0xb08] sm:$0xff] %vm63, %v2428
    %v2446 = vld [vmem:[#allocation3] sm:$0xff]
    %v2447 = vld [vmem:[#allocation3 + $0x8] sm:$0xff]
    %v2448 = vld [vmem:[#allocation3 + $0x10] sm:$0xff]
    %v2449 = vld [vmem:[#allocation3 + $0x18] sm:$0xff]
    %v2450 = vld [vmem:[#allocation3 + $0x20] sm:$0xff]
    %v2451 = vld [vmem:[#allocation3 + $0x28] sm:$0xff]
    %2458 = vrot.lane.b32.xlu0 %v2446, 69
    %v2459 = vpop.permute.xlu0 %2458
    %2460 = vrot.lane.b32.xlu0 %v2447, 69
    %v2461 = vpop.permute.xlu0 %2460
    %2462 = vrot.lane.b32.xlu0 %v2448, 69
    %v2463 = vpop.permute.xlu0 %2462
    %2464 = vrot.lane.b32.xlu0 %v2449, 69
    %v2465 = vpop.permute.xlu0 %2464
    %2466 = vrot.lane.b32.xlu0 %v2450, 69
    %v2467 = vpop.permute.xlu0 %2466
    %2468 = vrot.lane.b32.xlu0 %v2451, 69
    %v2469 = vpop.permute.xlu0 %2468
    %vm2470 = vcmask 564224
    %v2471 = vsel %vm2470, %v2459, %v2461
    %v2472 = vsel %vm2470, %v2461, %v2463
    %v2473 = vsel %vm2470, %v2465, %v2467
    %v2474 = vsel %vm2470, %v2467, %v2469
    %2481 = vst [vmem:[#allocation2 + $0xb10] sm:$0xff] %v2471
    %2482 = vst [vmem:[#allocation2 + $0xb18] sm:$0xff] %v2472
    %2483 = vst.msk [vmem:[#allocation2 + $0xb20] sm:$0xff] %vm63, %v2463
    %2484 = vst [vmem:[#allocation2 + $0xb28] sm:$0xff] %v2473
    %2485 = vst [vmem:[#allocation2 + $0xb30] sm:$0xff] %v2474
    %2486 = vst.msk [vmem:[#allocation2 + $0xb38] sm:$0xff] %vm63, %v2469
    %v2487 = vld [vmem:[#allocation3] sm:$0xff]
    %v2488 = vld [vmem:[#allocation3 + $0x8] sm:$0xff]
    %v2489 = vld [vmem:[#allocation3 + $0x10] sm:$0xff]
    %v2490 = vld [vmem:[#allocation3 + $0x18] sm:$0xff]
    %v2491 = vld [vmem:[#allocation3 + $0x20] sm:$0xff]
    %v2492 = vld [vmem:[#allocation3 + $0x28] sm:$0xff]
    %2499 = vrot.lane.b32.xlu0 %v2487, 68
    %v2500 = vpop.permute.xlu0 %2499
    %2501 = vrot.lane.b32.xlu0 %v2488, 68
    %v2502 = vpop.permute.xlu0 %2501
    %2503 = vrot.lane.b32.xlu0 %v2489, 68
    %v2504 = vpop.permute.xlu0 %2503
    %2505 = vrot.lane.b32.xlu0 %v2490, 68
    %v2506 = vpop.permute.xlu0 %2505
    %2507 = vrot.lane.b32.xlu0 %v2491, 68
    %v2508 = vpop.permute.xlu0 %2507
    %2509 = vrot.lane.b32.xlu0 %v2492, 68
    %v2510 = vpop.permute.xlu0 %2509
    %vm2511 = vcmask 556032
    %v2512 = vsel %vm2511, %v2500, %v2502
    %v2513 = vsel %vm2511, %v2502, %v2504
    %v2514 = vsel %vm2511, %v2506, %v2508
    %v2515 = vsel %vm2511, %v2508, %v2510
    %2522 = vst [vmem:[#allocation2 + $0xb40] sm:$0xff] %v2512
    %2523 = vst [vmem:[#allocation2 + $0xb48] sm:$0xff] %v2513
    %2524 = vst.msk [vmem:[#allocation2 + $0xb50] sm:$0xff] %vm63, %v2504
    %2525 = vst [vmem:[#allocation2 + $0xb58] sm:$0xff] %v2514
    %2526 = vst [vmem:[#allocation2 + $0xb60] sm:$0xff] %v2515
    %2527 = vst.msk [vmem:[#allocation2 + $0xb68] sm:$0xff] %vm63, %v2510
    %v2528 = vld [vmem:[#allocation3] sm:$0xff]
    %v2529 = vld [vmem:[#allocation3 + $0x8] sm:$0xff]
    %v2530 = vld [vmem:[#allocation3 + $0x10] sm:$0xff]
    %v2531 = vld [vmem:[#allocation3 + $0x18] sm:$0xff]
    %v2532 = vld [vmem:[#allocation3 + $0x20] sm:$0xff]
    %v2533 = vld [vmem:[#allocation3 + $0x28] sm:$0xff]
    %2540 = vrot.lane.b32.xlu0 %v2528, 67
    %v2541 = vpop.permute.xlu0 %2540
    %2542 = vrot.lane.b32.xlu0 %v2529, 67
    %v2543 = vpop.permute.xlu0 %2542
    %2544 = vrot.lane.b32.xlu0 %v2530, 67
    %v2545 = vpop.permute.xlu0 %2544
    %2546 = vrot.lane.b32.xlu0 %v2531, 67
    %v2547 = vpop.permute.xlu0 %2546
    %2548 = vrot.lane.b32.xlu0 %v2532, 67
    %v2549 = vpop.permute.xlu0 %2548
    %2550 = vrot.lane.b32.xlu0 %v2533, 67
    %v2551 = vpop.permute.xlu0 %2550
    %vm2552 = vcmask 547840
    %v2553 = vsel %vm2552, %v2541, %v2543
    %v2554 = vsel %vm2552, %v2543, %v2545
    %v2555 = vsel %vm2552, %v2547, %v2549
    %v2556 = vsel %vm2552, %v2549, %v2551
    %2563 = vst [vmem:[#allocation2 + $0xb70] sm:$0xff] %v2553
    %2564 = vst [vmem:[#allocation2 + $0xb78] sm:$0xff] %v2554
    %2565 = vst.msk [vmem:[#allocation2 + $0xb80] sm:$0xff] %vm63, %v2545
    %2566 = vst [vmem:[#allocation2 + $0xb88] sm:$0xff] %v2555
    %2567 = vst [vmem:[#allocation2 + $0xb90] sm:$0xff] %v2556
    %2568 = vst.msk [vmem:[#allocation2 + $0xb98] sm:$0xff] %vm63, %v2551
    %v2569 = vld [vmem:[#allocation3] sm:$0xff]
    %v2570 = vld [vmem:[#allocation3 + $0x8] sm:$0xff]
    %v2571 = vld [vmem:[#allocation3 + $0x10] sm:$0xff]
    %v2572 = vld [vmem:[#allocation3 + $0x18] sm:$0xff]
    %v2573 = vld [vmem:[#allocation3 + $0x20] sm:$0xff]
    %v2574 = vld [vmem:[#allocation3 + $0x28] sm:$0xff]
    %2581 = vrot.lane.b32.xlu0 %v2569, 66
    %v2582 = vpop.permute.xlu0 %2581
    %2583 = vrot.lane.b32.xlu0 %v2570, 66
    %v2584 = vpop.permute.xlu0 %2583
    %2585 = vrot.lane.b32.xlu0 %v2571, 66
    %v2586 = vpop.permute.xlu0 %2585
    %2587 = vrot.lane.b32.xlu0 %v2572, 66
    %v2588 = vpop.permute.xlu0 %2587
    %2589 = vrot.lane.b32.xlu0 %v2573, 66
    %v2590 = vpop.permute.xlu0 %2589
    %2591 = vrot.lane.b32.xlu0 %v2574, 66
    %v2592 = vpop.permute.xlu0 %2591
    %vm2593 = vcmask 539648
    %v2594 = vsel %vm2593, %v2582, %v2584
    %v2595 = vsel %vm2593, %v2584, %v2586
    %v2596 = vsel %vm2593, %v2588, %v2590
    %v2597 = vsel %vm2593, %v2590, %v2592
    %2604 = vst [vmem:[#allocation2 + $0xba0] sm:$0xff] %v2594
    %2605 = vst [vmem:[#allocation2 + $0xba8] sm:$0xff] %v2595
    %2606 = vst.msk [vmem:[#allocation2 + $0xbb0] sm:$0xff] %vm63, %v2586
    %2607 = vst [vmem:[#allocation2 + $0xbb8] sm:$0xff] %v2596
    %2608 = vst [vmem:[#allocation2 + $0xbc0] sm:$0xff] %v2597
    %2609 = vst.msk [vmem:[#allocation2 + $0xbc8] sm:$0xff] %vm63, %v2592
    %v2610 = vld [vmem:[#allocation3] sm:$0xff]
    %v2611 = vld [vmem:[#allocation3 + $0x8] sm:$0xff]
    %v2612 = vld [vmem:[#allocation3 + $0x10] sm:$0xff]
    %v2613 = vld [vmem:[#allocation3 + $0x18] sm:$0xff]
    %v2614 = vld [vmem:[#allocation3 + $0x20] sm:$0xff]
    %v2615 = vld [vmem:[#allocation3 + $0x28] sm:$0xff]
    %2622 = vrot.lane.b32.xlu0 %v2610, 65
    %v2623 = vpop.permute.xlu0 %2622
    %2624 = vrot.lane.b32.xlu0 %v2611, 65
    %v2625 = vpop.permute.xlu0 %2624
    %2626 = vrot.lane.b32.xlu0 %v2612, 65
    %v2627 = vpop.permute.xlu0 %2626
    %2628 = vrot.lane.b32.xlu0 %v2613, 65
    %v2629 = vpop.permute.xlu0 %2628
    %2630 = vrot.lane.b32.xlu0 %v2614, 65
    %v2631 = vpop.permute.xlu0 %2630
    %2632 = vrot.lane.b32.xlu0 %v2615, 65
    %v2633 = vpop.permute.xlu0 %2632
    %v2634 = vsel %vm63, %v2623, %v2625
    %v2635 = vsel %vm63, %v2625, %v2627
    %v2636 = vsel %vm63, %v2629, %v2631
    %v2637 = vsel %vm63, %v2631, %v2633
    %2644 = vst [vmem:[#allocation2 + $0xbd0] sm:$0xff] %v2634
    %2645 = vst [vmem:[#allocation2 + $0xbd8] sm:$0xff] %v2635
    %2646 = vst.msk [vmem:[#allocation2 + $0xbe0] sm:$0xff] %vm63, %v2627
    %2647 = vst [vmem:[#allocation2 + $0xbe8] sm:$0xff] %v2636
    %2648 = vst [vmem:[#allocation2 + $0xbf0] sm:$0xff] %v2637
    %2649 = vst.msk [vmem:[#allocation2 + $0xbf8] sm:$0xff] %vm63, %v2633
    %v2650 = vld [vmem:[#allocation6] sm:$0xff]
    %v2651 = vld [vmem:[#allocation6 + $0x8] sm:$0xff]
    %v2652 = vld [vmem:[#allocation6 + $0x10] sm:$0xff]
    %v2653 = vld [vmem:[#allocation6 + $0x18] sm:$0xff]
    %v2654 = vld [vmem:[#allocation6 + $0x20] sm:$0xff]
    %v2655 = vld [vmem:[#allocation6 + $0x28] sm:$0xff]
    %v2656 = vld [vmem:[#allocation6 + $0x30] sm:$0xff]
    %v2657 = vld [vmem:[#allocation6 + $0x38] sm:$0xff]
    %v2658 = vld [vmem:[#allocation6 + $0x40] sm:$0xff]
    %v2659 = vld [vmem:[#allocation6 + $0x48] sm:$0xff]
    %v2660 = vld [vmem:[#allocation6 + $0x50] sm:$0xff]
    %v2661 = vld [vmem:[#allocation6 + $0x58] sm:$0xff]
    %v2662 = vld [vmem:[#allocation6 + $0x60] sm:$0xff]
    %v2663 = vld [vmem:[#allocation6 + $0x68] sm:$0xff]
    %v2664 = vld [vmem:[#allocation6 + $0x70] sm:$0xff]
    %v2665 = vld [vmem:[#allocation6 + $0x78] sm:$0xff]
    %v2666 = vld [vmem:[#allocation6 + $0x80] sm:$0xf]
    %v2667 = vld [vmem:[#allocation6 + $0x88] sm:$0xf]
    %v2668 = vld [vmem:[#allocation6 + $0x90] sm:$0xf]
    %v2669 = vld [vmem:[#allocation6 + $0x98] sm:$0xf]
    %v2670 = vld [vmem:[#allocation6 + $0xa0] sm:$0xf]
    %v2671 = vld [vmem:[#allocation6 + $0xa8] sm:$0xf]
    %v2672 = vld [vmem:[#allocation6 + $0xb0] sm:$0xf]
    %v2673 = vld [vmem:[#allocation6 + $0xb8] sm:$0xf]
    %v2674 = vld [vmem:[#allocation2] sm:$0xff]
    %v2675 = vld [vmem:[#allocation2 + $0x8] sm:$0xff]
    %v2676 = vld [vmem:[#allocation2 + $0x10] sm:$0xff]
    %v2677 = vld [vmem:[#allocation2 + $0x18] sm:$0xff]
    %v2678 = vld [vmem:[#allocation2 + $0x20] sm:$0xff]
    %v2679 = vld [vmem:[#allocation2 + $0x28] sm:$0xff]
    %v2680 = vld [vmem:[#allocation2 + $0x30] sm:$0xff]
    %v2681 = vld [vmem:[#allocation2 + $0x38] sm:$0xff]
    %v2682 = vld [vmem:[#allocation2 + $0x40] sm:$0xff]
    %v2683 = vld [vmem:[#allocation2 + $0x48] sm:$0xff]
    %v2684 = vld [vmem:[#allocation2 + $0x50] sm:$0xff]
    %v2685 = vld [vmem:[#allocation2 + $0x58] sm:$0xff]
    %v2686 = vld [vmem:[#allocation2 + $0x60] sm:$0xff]
    %v2687 = vld [vmem:[#allocation2 + $0x68] sm:$0xff]
    %v2688 = vld [vmem:[#allocation2 + $0x70] sm:$0xff]
    %v2689 = vld [vmem:[#allocation2 + $0x78] sm:$0xff]
    %v2690 = vld [vmem:[#allocation2 + $0x80] sm:$0xff]
    %v2691 = vld [vmem:[#allocation2 + $0x88] sm:$0xff]
    %v2692 = vld [vmem:[#allocation2 + $0x90] sm:$0xff]
    %v2693 = vld [vmem:[#allocation2 + $0x98] sm:$0xff]
    %v2694 = vld [vmem:[#allocation2 + $0xa0] sm:$0xff]
    %v2695 = vld [vmem:[#allocation2 + $0xa8] sm:$0xff]
    %v2696 = vld [vmem:[#allocation2 + $0xb0] sm:$0xff]
    %v2697 = vld [vmem:[#allocation2 + $0xb8] sm:$0xff]
    %v2698 = vld [vmem:[#allocation2 + $0xc0] sm:$0xff]
    %v2699 = vld [vmem:[#allocation2 + $0xc8] sm:$0xff]
    %v2700 = vld [vmem:[#allocation2 + $0xd0] sm:$0xff]
    %v2701 = vld [vmem:[#allocation2 + $0xd8] sm:$0xff]
    %v2702 = vld [vmem:[#allocation2 + $0xe0] sm:$0xff]
    %v2703 = vld [vmem:[#allocation2 + $0xe8] sm:$0xff]
    %v2704 = vld [vmem:[#allocation2 + $0xf0] sm:$0xff]
    %v2705 = vld [vmem:[#allocation2 + $0xf8] sm:$0xff]
    %v2706 = vld [vmem:[#allocation2 + $0x100] sm:$0xff]
    %v2707 = vld [vmem:[#allocation2 + $0x108] sm:$0xff]
    %v2708 = vld [vmem:[#allocation2 + $0x110] sm:$0xff]
    %v2709 = vld [vmem:[#allocation2 + $0x118] sm:$0xff]
    %v2710 = vld [vmem:[#allocation2 + $0x120] sm:$0xff]
    %v2711 = vld [vmem:[#allocation2 + $0x128] sm:$0xff]
    %v2712 = vld [vmem:[#allocation2 + $0x130] sm:$0xff]
    %v2713 = vld [vmem:[#allocation2 + $0x138] sm:$0xff]
    %v2714 = vld [vmem:[#allocation2 + $0x140] sm:$0xff]
    %v2715 = vld [vmem:[#allocation2 + $0x148] sm:$0xff]
    %v2716 = vld [vmem:[#allocation2 + $0x150] sm:$0xff]
    %v2717 = vld [vmem:[#allocation2 + $0x158] sm:$0xff]
    %v2718 = vld [vmem:[#allocation2 + $0x160] sm:$0xff]
    %v2719 = vld [vmem:[#allocation2 + $0x168] sm:$0xff]
    %v2720 = vld [vmem:[#allocation2 + $0x170] sm:$0xff]
    %v2721 = vld [vmem:[#allocation2 + $0x178] sm:$0xff]
    %v2722 = vld [vmem:[#allocation2 + $0x180] sm:$0xff]
    %v2723 = vld [vmem:[#allocation2 + $0x188] sm:$0xff]
    %v2724 = vld [vmem:[#allocation2 + $0x190] sm:$0xff]
    %v2725 = vld [vmem:[#allocation2 + $0x198] sm:$0xff]
    %v2726 = vld [vmem:[#allocation2 + $0x1a0] sm:$0xff]
    %v2727 = vld [vmem:[#allocation2 + $0x1a8] sm:$0xff]
    %v2728 = vld [vmem:[#allocation2 + $0x1b0] sm:$0xff]
    %v2729 = vld [vmem:[#allocation2 + $0x1b8] sm:$0xff]
    %v2730 = vld [vmem:[#allocation2 + $0x1c0] sm:$0xff]
    %v2731 = vld [vmem:[#allocation2 + $0x1c8] sm:$0xff]
    %v2732 = vld [vmem:[#allocation2 + $0x1d0] sm:$0xff]
    %v2733 = vld [vmem:[#allocation2 + $0x1d8] sm:$0xff]
    %v2734 = vld [vmem:[#allocation2 + $0x1e0] sm:$0xff]
    %v2735 = vld [vmem:[#allocation2 + $0x1e8] sm:$0xff]
    %v2736 = vld [vmem:[#allocation2 + $0x1f0] sm:$0xff]
    %v2737 = vld [vmem:[#allocation2 + $0x1f8] sm:$0xff]
    %v2738 = vld [vmem:[#allocation2 + $0x200] sm:$0xff]
    %v2739 = vld [vmem:[#allocation2 + $0x208] sm:$0xff]
    %v2740 = vld [vmem:[#allocation2 + $0x210] sm:$0xff]
    %v2741 = vld [vmem:[#allocation2 + $0x218] sm:$0xff]
    %v2742 = vld [vmem:[#allocation2 + $0x220] sm:$0xff]
    %v2743 = vld [vmem:[#allocation2 + $0x228] sm:$0xff]
    %v2744 = vld [vmem:[#allocation2 + $0x230] sm:$0xff]
    %v2745 = vld [vmem:[#allocation2 + $0x238] sm:$0xff]
    %v2746 = vld [vmem:[#allocation2 + $0x240] sm:$0xff]
    %v2747 = vld [vmem:[#allocation2 + $0x248] sm:$0xff]
    %v2748 = vld [vmem:[#allocation2 + $0x250] sm:$0xff]
    %v2749 = vld [vmem:[#allocation2 + $0x258] sm:$0xff]
    %v2750 = vld [vmem:[#allocation2 + $0x260] sm:$0xff]
    %v2751 = vld [vmem:[#allocation2 + $0x268] sm:$0xff]
    %v2752 = vld [vmem:[#allocation2 + $0x270] sm:$0xff]
    %v2753 = vld [vmem:[#allocation2 + $0x278] sm:$0xff]
    %v2754 = vld [vmem:[#allocation2 + $0x280] sm:$0xff]
    %v2755 = vld [vmem:[#allocation2 + $0x288] sm:$0xff]
    %v2756 = vld [vmem:[#allocation2 + $0x290] sm:$0xff]
    %v2757 = vld [vmem:[#allocation2 + $0x298] sm:$0xff]
    %v2758 = vld [vmem:[#allocation2 + $0x2a0] sm:$0xff]
    %v2759 = vld [vmem:[#allocation2 + $0x2a8] sm:$0xff]
    %v2760 = vld [vmem:[#allocation2 + $0x2b0] sm:$0xff]
    %v2761 = vld [vmem:[#allocation2 + $0x2b8] sm:$0xff]
    %v2762 = vld [vmem:[#allocation2 + $0x2c0] sm:$0xff]
    %v2763 = vld [vmem:[#allocation2 + $0x2c8] sm:$0xff]
    %v2764 = vld [vmem:[#allocation2 + $0x2d0] sm:$0xff]
    %v2765 = vld [vmem:[#allocation2 + $0x2d8] sm:$0xff]
    %v2766 = vld [vmem:[#allocation2 + $0x2e0] sm:$0xff]
    %v2767 = vld [vmem:[#allocation2 + $0x2e8] sm:$0xff]
    %v2768 = vld [vmem:[#allocation2 + $0x2f0] sm:$0xff]
    %v2769 = vld [vmem:[#allocation2 + $0x2f8] sm:$0xff]
    %v2770 = vld [vmem:[#allocation2 + $0x300] sm:$0xff]
    %v2771 = vld [vmem:[#allocation2 + $0x308] sm:$0xff]
    %v2772 = vld [vmem:[#allocation2 + $0x310] sm:$0xff]
    %v2773 = vld [vmem:[#allocation2 + $0x318] sm:$0xff]
    %v2774 = vld [vmem:[#allocation2 + $0x320] sm:$0xff]
    %v2775 = vld [vmem:[#allocation2 + $0x328] sm:$0xff]
    %v2776 = vld [vmem:[#allocation2 + $0x330] sm:$0xff]
    %v2777 = vld [vmem:[#allocation2 + $0x338] sm:$0xff]
    %v2778 = vld [vmem:[#allocation2 + $0x340] sm:$0xff]
    %v2779 = vld [vmem:[#allocation2 + $0x348] sm:$0xff]
    %v2780 = vld [vmem:[#allocation2 + $0x350] sm:$0xff]
    %v2781 = vld [vmem:[#allocation2 + $0x358] sm:$0xff]
    %v2782 = vld [vmem:[#allocation2 + $0x360] sm:$0xff]
    %v2783 = vld [vmem:[#allocation2 + $0x368] sm:$0xff]
    %v2784 = vld [vmem:[#allocation2 + $0x370] sm:$0xff]
    %v2785 = vld [vmem:[#allocation2 + $0x378] sm:$0xff]
    %v2786 = vld [vmem:[#allocation2 + $0x380] sm:$0xff]
    %v2787 = vld [vmem:[#allocation2 + $0x388] sm:$0xff]
    %v2788 = vld [vmem:[#allocation2 + $0x390] sm:$0xff]
    %v2789 = vld [vmem:[#allocation2 + $0x398] sm:$0xff]
    %v2790 = vld [vmem:[#allocation2 + $0x3a0] sm:$0xff]
    %v2791 = vld [vmem:[#allocation2 + $0x3a8] sm:$0xff]
    %v2792 = vld [vmem:[#allocation2 + $0x3b0] sm:$0xff]
    %v2793 = vld [vmem:[#allocation2 + $0x3b8] sm:$0xff]
    %v2794 = vld [vmem:[#allocation2 + $0x3c0] sm:$0xff]
    %v2795 = vld [vmem:[#allocation2 + $0x3c8] sm:$0xff]
    %v2796 = vld [vmem:[#allocation2 + $0x3d0] sm:$0xff]
    %v2797 = vld [vmem:[#allocation2 + $0x3d8] sm:$0xff]
    %v2798 = vld [vmem:[#allocation2 + $0x3e0] sm:$0xff]
    %v2799 = vld [vmem:[#allocation2 + $0x3e8] sm:$0xff]
    %v2800 = vld [vmem:[#allocation2 + $0x3f0] sm:$0xff]
    %v2801 = vld [vmem:[#allocation2 + $0x3f8] sm:$0xff]
    %v2802 = vld [vmem:[#allocation2 + $0x400] sm:$0xff]
    %v2803 = vld [vmem:[#allocation2 + $0x408] sm:$0xff]
    %v2804 = vld [vmem:[#allocation2 + $0x410] sm:$0xff]
    %v2805 = vld [vmem:[#allocation2 + $0x418] sm:$0xff]
    %v2806 = vld [vmem:[#allocation2 + $0x420] sm:$0xff]
    %v2807 = vld [vmem:[#allocation2 + $0x428] sm:$0xff]
    %v2808 = vld [vmem:[#allocation2 + $0x430] sm:$0xff]
    %v2809 = vld [vmem:[#allocation2 + $0x438] sm:$0xff]
    %v2810 = vld [vmem:[#allocation2 + $0x440] sm:$0xff]
    %v2811 = vld [vmem:[#allocation2 + $0x448] sm:$0xff]
    %v2812 = vld [vmem:[#allocation2 + $0x450] sm:$0xff]
    %v2813 = vld [vmem:[#allocation2 + $0x458] sm:$0xff]
    %v2814 = vld [vmem:[#allocation2 + $0x460] sm:$0xff]
    %v2815 = vld [vmem:[#allocation2 + $0x468] sm:$0xff]
    %v2816 = vld [vmem:[#allocation2 + $0x470] sm:$0xff]
    %v2817 = vld [vmem:[#allocation2 + $0x478] sm:$0xff]
    %v2818 = vld [vmem:[#allocation2 + $0x480] sm:$0xff]
    %v2819 = vld [vmem:[#allocation2 + $0x488] sm:$0xff]
    %v2820 = vld [vmem:[#allocation2 + $0x490] sm:$0xff]
    %v2821 = vld [vmem:[#allocation2 + $0x498] sm:$0xff]
    %v2822 = vld [vmem:[#allocation2 + $0x4a0] sm:$0xff]
    %v2823 = vld [vmem:[#allocation2 + $0x4a8] sm:$0xff]
    %v2824 = vld [vmem:[#allocation2 + $0x4b0] sm:$0xff]
    %v2825 = vld [vmem:[#allocation2 + $0x4b8] sm:$0xff]
    %v2826 = vld [vmem:[#allocation2 + $0x4c0] sm:$0xff]
    %v2827 = vld [vmem:[#allocation2 + $0x4c8] sm:$0xff]
    %v2828 = vld [vmem:[#allocation2 + $0x4d0] sm:$0xff]
    %v2829 = vld [vmem:[#allocation2 + $0x4d8] sm:$0xff]
    %v2830 = vld [vmem:[#allocation2 + $0x4e0] sm:$0xff]
    %v2831 = vld [vmem:[#allocation2 + $0x4e8] sm:$0xff]
    %v2832 = vld [vmem:[#allocation2 + $0x4f0] sm:$0xff]
    %v2833 = vld [vmem:[#allocation2 + $0x4f8] sm:$0xff]
    %v2834 = vld [vmem:[#allocation2 + $0x500] sm:$0xff]
    %v2835 = vld [vmem:[#allocation2 + $0x508] sm:$0xff]
    %v2836 = vld [vmem:[#allocation2 + $0x510] sm:$0xff]
    %v2837 = vld [vmem:[#allocation2 + $0x518] sm:$0xff]
    %v2838 = vld [vmem:[#allocation2 + $0x520] sm:$0xff]
    %v2839 = vld [vmem:[#allocation2 + $0x528] sm:$0xff]
    %v2840 = vld [vmem:[#allocation2 + $0x530] sm:$0xff]
    %v2841 = vld [vmem:[#allocation2 + $0x538] sm:$0xff]
    %v2842 = vld [vmem:[#allocation2 + $0x540] sm:$0xff]
    %v2843 = vld [vmem:[#allocation2 + $0x548] sm:$0xff]
    %v2844 = vld [vmem:[#allocation2 + $0x550] sm:$0xff]
    %v2845 = vld [vmem:[#allocation2 + $0x558] sm:$0xff]
    %v2846 = vld [vmem:[#allocation2 + $0x560] sm:$0xff]
    %v2847 = vld [vmem:[#allocation2 + $0x568] sm:$0xff]
    %v2848 = vld [vmem:[#allocation2 + $0x570] sm:$0xff]
    %v2849 = vld [vmem:[#allocation2 + $0x578] sm:$0xff]
    %v2850 = vld [vmem:[#allocation2 + $0x580] sm:$0xff]
    %v2851 = vld [vmem:[#allocation2 + $0x588] sm:$0xff]
    %v2852 = vld [vmem:[#allocation2 + $0x590] sm:$0xff]
    %v2853 = vld [vmem:[#allocation2 + $0x598] sm:$0xff]
    %v2854 = vld [vmem:[#allocation2 + $0x5a0] sm:$0xff]
    %v2855 = vld [vmem:[#allocation2 + $0x5a8] sm:$0xff]
    %v2856 = vld [vmem:[#allocation2 + $0x5b0] sm:$0xff]
    %v2857 = vld [vmem:[#allocation2 + $0x5b8] sm:$0xff]
    %v2858 = vld [vmem:[#allocation2 + $0x5c0] sm:$0xff]
    %v2859 = vld [vmem:[#allocation2 + $0x5c8] sm:$0xff]
    %v2860 = vld [vmem:[#allocation2 + $0x5d0] sm:$0xff]
    %v2861 = vld [vmem:[#allocation2 + $0x5d8] sm:$0xff]
    %v2862 = vld [vmem:[#allocation2 + $0x5e0] sm:$0xff]
    %v2863 = vld [vmem:[#allocation2 + $0x5e8] sm:$0xff]
    %v2864 = vld [vmem:[#allocation2 + $0x5f0] sm:$0xff]
    %v2865 = vld [vmem:[#allocation2 + $0x5f8] sm:$0xff]
    %v2866 = vld [vmem:[#allocation2 + $0x600] sm:$0xff]
    %v2867 = vld [vmem:[#allocation2 + $0x608] sm:$0xff]
    %v2868 = vld [vmem:[#allocation2 + $0x610] sm:$0xff]
    %v2869 = vld [vmem:[#allocation2 + $0x618] sm:$0xff]
    %v2870 = vld [vmem:[#allocation2 + $0x620] sm:$0xff]
    %v2871 = vld [vmem:[#allocation2 + $0x628] sm:$0xff]
    %v2872 = vld [vmem:[#allocation2 + $0x630] sm:$0xff]
    %v2873 = vld [vmem:[#allocation2 + $0x638] sm:$0xff]
    %v2874 = vld [vmem:[#allocation2 + $0x640] sm:$0xff]
    %v2875 = vld [vmem:[#allocation2 + $0x648] sm:$0xff]
    %v2876 = vld [vmem:[#allocation2 + $0x650] sm:$0xff]
    %v2877 = vld [vmem:[#allocation2 + $0x658] sm:$0xff]
    %v2878 = vld [vmem:[#allocation2 + $0x660] sm:$0xff]
    %v2879 = vld [vmem:[#allocation2 + $0x668] sm:$0xff]
    %v2880 = vld [vmem:[#allocation2 + $0x670] sm:$0xff]
    %v2881 = vld [vmem:[#allocation2 + $0x678] sm:$0xff]
    %v2882 = vld [vmem:[#allocation2 + $0x680] sm:$0xff]
    %v2883 = vld [vmem:[#allocation2 + $0x688] sm:$0xff]
    %v2884 = vld [vmem:[#allocation2 + $0x690] sm:$0xff]
    %v2885 = vld [vmem:[#allocation2 + $0x698] sm:$0xff]
    %v2886 = vld [vmem:[#allocation2 + $0x6a0] sm:$0xff]
    %v2887 = vld [vmem:[#allocation2 + $0x6a8] sm:$0xff]
    %v2888 = vld [vmem:[#allocation2 + $0x6b0] sm:$0xff]
    %v2889 = vld [vmem:[#allocation2 + $0x6b8] sm:$0xff]
    %v2890 = vld [vmem:[#allocation2 + $0x6c0] sm:$0xff]
    %v2891 = vld [vmem:[#allocation2 + $0x6c8] sm:$0xff]
    %v2892 = vld [vmem:[#allocation2 + $0x6d0] sm:$0xff]
    %v2893 = vld [vmem:[#allocation2 + $0x6d8] sm:$0xff]
    %v2894 = vld [vmem:[#allocation2 + $0x6e0] sm:$0xff]
    %v2895 = vld [vmem:[#allocation2 + $0x6e8] sm:$0xff]
    %v2896 = vld [vmem:[#allocation2 + $0x6f0] sm:$0xff]
    %v2897 = vld [vmem:[#allocation2 + $0x6f8] sm:$0xff]
    %v2898 = vld [vmem:[#allocation2 + $0x700] sm:$0xff]
    %v2899 = vld [vmem:[#allocation2 + $0x708] sm:$0xff]
    %v2900 = vld [vmem:[#allocation2 + $0x710] sm:$0xff]
    %v2901 = vld [vmem:[#allocation2 + $0x718] sm:$0xff]
    %v2902 = vld [vmem:[#allocation2 + $0x720] sm:$0xff]
    %v2903 = vld [vmem:[#allocation2 + $0x728] sm:$0xff]
    %v2904 = vld [vmem:[#allocation2 + $0x730] sm:$0xff]
    %v2905 = vld [vmem:[#allocation2 + $0x738] sm:$0xff]
    %v2906 = vld [vmem:[#allocation2 + $0x740] sm:$0xff]
    %v2907 = vld [vmem:[#allocation2 + $0x748] sm:$0xff]
    %v2908 = vld [vmem:[#allocation2 + $0x750] sm:$0xff]
    %v2909 = vld [vmem:[#allocation2 + $0x758] sm:$0xff]
    %v2910 = vld [vmem:[#allocation2 + $0x760] sm:$0xff]
    %v2911 = vld [vmem:[#allocation2 + $0x768] sm:$0xff]
    %v2912 = vld [vmem:[#allocation2 + $0x770] sm:$0xff]
    %v2913 = vld [vmem:[#allocation2 + $0x778] sm:$0xff]
    %v2914 = vld [vmem:[#allocation2 + $0x780] sm:$0xff]
    %v2915 = vld [vmem:[#allocation2 + $0x788] sm:$0xff]
    %v2916 = vld [vmem:[#allocation2 + $0x790] sm:$0xff]
    %v2917 = vld [vmem:[#allocation2 + $0x798] sm:$0xff]
    %v2918 = vld [vmem:[#allocation2 + $0x7a0] sm:$0xff]
    %v2919 = vld [vmem:[#allocation2 + $0x7a8] sm:$0xff]
    %v2920 = vld [vmem:[#allocation2 + $0x7b0] sm:$0xff]
    %v2921 = vld [vmem:[#allocation2 + $0x7b8] sm:$0xff]
    %v2922 = vld [vmem:[#allocation2 + $0x7c0] sm:$0xff]
    %v2923 = vld [vmem:[#allocation2 + $0x7c8] sm:$0xff]
    %v2924 = vld [vmem:[#allocation2 + $0x7d0] sm:$0xff]
    %v2925 = vld [vmem:[#allocation2 + $0x7d8] sm:$0xff]
    %v2926 = vld [vmem:[#allocation2 + $0x7e0] sm:$0xff]
    %v2927 = vld [vmem:[#allocation2 + $0x7e8] sm:$0xff]
    %v2928 = vld [vmem:[#allocation2 + $0x7f0] sm:$0xff]
    %v2929 = vld [vmem:[#allocation2 + $0x7f8] sm:$0xff]
    %v2930 = vld [vmem:[#allocation2 + $0x800] sm:$0xff]
    %v2931 = vld [vmem:[#allocation2 + $0x808] sm:$0xff]
    %v2932 = vld [vmem:[#allocation2 + $0x810] sm:$0xff]
    %v2933 = vld [vmem:[#allocation2 + $0x818] sm:$0xff]
    %v2934 = vld [vmem:[#allocation2 + $0x820] sm:$0xff]
    %v2935 = vld [vmem:[#allocation2 + $0x828] sm:$0xff]
    %v2936 = vld [vmem:[#allocation2 + $0x830] sm:$0xff]
    %v2937 = vld [vmem:[#allocation2 + $0x838] sm:$0xff]
    %v2938 = vld [vmem:[#allocation2 + $0x840] sm:$0xff]
    %v2939 = vld [vmem:[#allocation2 + $0x848] sm:$0xff]
    %v2940 = vld [vmem:[#allocation2 + $0x850] sm:$0xff]
    %v2941 = vld [vmem:[#allocation2 + $0x858] sm:$0xff]
    %v2942 = vld [vmem:[#allocation2 + $0x860] sm:$0xff]
    %v2943 = vld [vmem:[#allocation2 + $0x868] sm:$0xff]
    %v2944 = vld [vmem:[#allocation2 + $0x870] sm:$0xff]
    %v2945 = vld [vmem:[#allocation2 + $0x878] sm:$0xff]
    %v2946 = vld [vmem:[#allocation2 + $0x880] sm:$0xff]
    %v2947 = vld [vmem:[#allocation2 + $0x888] sm:$0xff]
    %v2948 = vld [vmem:[#allocation2 + $0x890] sm:$0xff]
    %v2949 = vld [vmem:[#allocation2 + $0x898] sm:$0xff]
    %v2950 = vld [vmem:[#allocation2 + $0x8a0] sm:$0xff]
    %v2951 = vld [vmem:[#allocation2 + $0x8a8] sm:$0xff]
    %v2952 = vld [vmem:[#allocation2 + $0x8b0] sm:$0xff]
    %v2953 = vld [vmem:[#allocation2 + $0x8b8] sm:$0xff]
    %v2954 = vld [vmem:[#allocation2 + $0x8c0] sm:$0xff]
    %v2955 = vld [vmem:[#allocation2 + $0x8c8] sm:$0xff]
    %v2956 = vld [vmem:[#allocation2 + $0x8d0] sm:$0xff]
    %v2957 = vld [vmem:[#allocation2 + $0x8d8] sm:$0xff]
    %v2958 = vld [vmem:[#allocation2 + $0x8e0] sm:$0xff]
    %v2959 = vld [vmem:[#allocation2 + $0x8e8] sm:$0xff]
    %v2960 = vld [vmem:[#allocation2 + $0x8f0] sm:$0xff]
    %v2961 = vld [vmem:[#allocation2 + $0x8f8] sm:$0xff]
    %v2962 = vld [vmem:[#allocation2 + $0x900] sm:$0xff]
    %v2963 = vld [vmem:[#allocation2 + $0x908] sm:$0xff]
    %v2964 = vld [vmem:[#allocation2 + $0x910] sm:$0xff]
    %v2965 = vld [vmem:[#allocation2 + $0x918] sm:$0xff]
    %v2966 = vld [vmem:[#allocation2 + $0x920] sm:$0xff]
    %v2967 = vld [vmem:[#allocation2 + $0x928] sm:$0xff]
    %v2968 = vld [vmem:[#allocation2 + $0x930] sm:$0xff]
    %v2969 = vld [vmem:[#allocation2 + $0x938] sm:$0xff]
    %v2970 = vld [vmem:[#allocation2 + $0x940] sm:$0xff]
    %v2971 = vld [vmem:[#allocation2 + $0x948] sm:$0xff]
    %v2972 = vld [vmem:[#allocation2 + $0x950] sm:$0xff]
    %v2973 = vld [vmem:[#allocation2 + $0x958] sm:$0xff]
    %v2974 = vld [vmem:[#allocation2 + $0x960] sm:$0xff]
    %v2975 = vld [vmem:[#allocation2 + $0x968] sm:$0xff]
    %v2976 = vld [vmem:[#allocation2 + $0x970] sm:$0xff]
    %v2977 = vld [vmem:[#allocation2 + $0x978] sm:$0xff]
    %v2978 = vld [vmem:[#allocation2 + $0x980] sm:$0xff]
    %v2979 = vld [vmem:[#allocation2 + $0x988] sm:$0xff]
    %v2980 = vld [vmem:[#allocation2 + $0x990] sm:$0xff]
    %v2981 = vld [vmem:[#allocation2 + $0x998] sm:$0xff]
    %v2982 = vld [vmem:[#allocation2 + $0x9a0] sm:$0xff]
    %v2983 = vld [vmem:[#allocation2 + $0x9a8] sm:$0xff]
    %v2984 = vld [vmem:[#allocation2 + $0x9b0] sm:$0xff]
    %v2985 = vld [vmem:[#allocation2 + $0x9b8] sm:$0xff]
    %v2986 = vld [vmem:[#allocation2 + $0x9c0] sm:$0xff]
    %v2987 = vld [vmem:[#allocation2 + $0x9c8] sm:$0xff]
    %v2988 = vld [vmem:[#allocation2 + $0x9d0] sm:$0xff]
    %v2989 = vld [vmem:[#allocation2 + $0x9d8] sm:$0xff]
    %v2990 = vld [vmem:[#allocation2 + $0x9e0] sm:$0xff]
    %v2991 = vld [vmem:[#allocation2 + $0x9e8] sm:$0xff]
    %v2992 = vld [vmem:[#allocation2 + $0x9f0] sm:$0xff]
    %v2993 = vld [vmem:[#allocation2 + $0x9f8] sm:$0xff]
    %v2994 = vld [vmem:[#allocation2 + $0xa00] sm:$0xff]
    %v2995 = vld [vmem:[#allocation2 + $0xa08] sm:$0xff]
    %v2996 = vld [vmem:[#allocation2 + $0xa10] sm:$0xff]
    %v2997 = vld [vmem:[#allocation2 + $0xa18] sm:$0xff]
    %v2998 = vld [vmem:[#allocation2 + $0xa20] sm:$0xff]
    %v2999 = vld [vmem:[#allocation2 + $0xa28] sm:$0xff]
    %v3000 = vld [vmem:[#allocation2 + $0xa30] sm:$0xff]
    %v3001 = vld [vmem:[#allocation2 + $0xa38] sm:$0xff]
    %v3002 = vld [vmem:[#allocation2 + $0xa40] sm:$0xff]
    %v3003 = vld [vmem:[#allocation2 + $0xa48] sm:$0xff]
    %v3004 = vld [vmem:[#allocation2 + $0xa50] sm:$0xff]
    %v3005 = vld [vmem:[#allocation2 + $0xa58] sm:$0xff]
    %v3006 = vld [vmem:[#allocation2 + $0xa60] sm:$0xff]
    %v3007 = vld [vmem:[#allocation2 + $0xa68] sm:$0xff]
    %v3008 = vld [vmem:[#allocation2 + $0xa70] sm:$0xff]
    %v3009 = vld [vmem:[#allocation2 + $0xa78] sm:$0xff]
    %v3010 = vld [vmem:[#allocation2 + $0xa80] sm:$0xff]
    %v3011 = vld [vmem:[#allocation2 + $0xa88] sm:$0xff]
    %v3012 = vld [vmem:[#allocation2 + $0xa90] sm:$0xff]
    %v3013 = vld [vmem:[#allocation2 + $0xa98] sm:$0xff]
    %v3014 = vld [vmem:[#allocation2 + $0xaa0] sm:$0xff]
    %v3015 = vld [vmem:[#allocation2 + $0xaa8] sm:$0xff]
    %v3016 = vld [vmem:[#allocation2 + $0xab0] sm:$0xff]
    %v3017 = vld [vmem:[#allocation2 + $0xab8] sm:$0xff]
    %v3018 = vld [vmem:[#allocation2 + $0xac0] sm:$0xff]
    %v3019 = vld [vmem:[#allocation2 + $0xac8] sm:$0xff]
    %v3020 = vld [vmem:[#allocation2 + $0xad0] sm:$0xff]
    %v3021 = vld [vmem:[#allocation2 + $0xad8] sm:$0xff]
    %v3022 = vld [vmem:[#allocation2 + $0xae0] sm:$0xff]
    %v3023 = vld [vmem:[#allocation2 + $0xae8] sm:$0xff]
    %v3024 = vld [vmem:[#allocation2 + $0xaf0] sm:$0xff]
    %v3025 = vld [vmem:[#allocation2 + $0xaf8] sm:$0xff]
    %v3026 = vld [vmem:[#allocation2 + $0xb00] sm:$0xff]
    %v3027 = vld [vmem:[#allocation2 + $0xb08] sm:$0xff]
    %v3028 = vld [vmem:[#allocation2 + $0xb10] sm:$0xff]
    %v3029 = vld [vmem:[#allocation2 + $0xb18] sm:$0xff]
    %v3030 = vld [vmem:[#allocation2 + $0xb20] sm:$0xff]
    %v3031 = vld [vmem:[#allocation2 + $0xb28] sm:$0xff]
    %v3032 = vld [vmem:[#allocation2 + $0xb30] sm:$0xff]
    %v3033 = vld [vmem:[#allocation2 + $0xb38] sm:$0xff]
    %v3034 = vld [vmem:[#allocation2 + $0xb40] sm:$0xff]
    %v3035 = vld [vmem:[#allocation2 + $0xb48] sm:$0xff]
    %v3036 = vld [vmem:[#allocation2 + $0xb50] sm:$0xff]
    %v3037 = vld [vmem:[#allocation2 + $0xb58] sm:$0xff]
    %v3038 = vld [vmem:[#allocation2 + $0xb60] sm:$0xff]
    %v3039 = vld [vmem:[#allocation2 + $0xb68] sm:$0xff]
    %v3040 = vld [vmem:[#allocation2 + $0xb70] sm:$0xff]
    %v3041 = vld [vmem:[#allocation2 + $0xb78] sm:$0xff]
    %v3042 = vld [vmem:[#allocation2 + $0xb80] sm:$0xff]
    %v3043 = vld [vmem:[#allocation2 + $0xb88] sm:$0xff]
    %v3044 = vld [vmem:[#allocation2 + $0xb90] sm:$0xff]
    %v3045 = vld [vmem:[#allocation2 + $0xb98] sm:$0xff]
    %v3046 = vld [vmem:[#allocation2 + $0xba0] sm:$0xff]
    %v3047 = vld [vmem:[#allocation2 + $0xba8] sm:$0xff]
    %v3048 = vld [vmem:[#allocation2 + $0xbb0] sm:$0xff]
    %v3049 = vld [vmem:[#allocation2 + $0xbb8] sm:$0xff]
    %v3050 = vld [vmem:[#allocation2 + $0xbc0] sm:$0xff]
    %v3051 = vld [vmem:[#allocation2 + $0xbc8] sm:$0xff]
    %v3052 = vld [vmem:[#allocation2 + $0xbd0] sm:$0xff]
    %v3053 = vld [vmem:[#allocation2 + $0xbd8] sm:$0xff]
    %v3054 = vld [vmem:[#allocation2 + $0xbe0] sm:$0xff]
    %v3055 = vld [vmem:[#allocation2 + $0xbe8] sm:$0xff]
    %v3056 = vld [vmem:[#allocation2 + $0xbf0] sm:$0xff]
    %v3057 = vld [vmem:[#allocation2 + $0xbf8] sm:$0xff]
    %v3058 = vld [vmem:[%s2] sm:$0xff]
    %v3059 = vld [vmem:[%s2 + $0x8] sm:$0xff]
    %v3060 = vld [vmem:[%s2 + $0x10] sm:$0xf]
    %3062 = vset.pattern.permute.xlu0 0
    %3063 = vperm.xlu0 %3062, %v3058
    %v3064 = vpop.permute.xlu0 %3063
    %3067 = vset.pattern.permute.xlu0 0
    %3068 = vperm.xlu0 %3067, %v3059
    %v3069 = vpop.permute.xlu0 %3068
    %3072 = vset.pattern.permute.xlu0 0
    %3073 = vperm.xlu0 %3072, %v3060
    %v3074 = vpop.permute.xlu0 %3073
    %3076 = vmatprep.subr.mxu0 %v2720
    %3077 = vmatpush1.msra.mxu0 %v2719
    %3078 = vmatprep.subr.mxu0 %v2717
    %3079 = vmatpush1.msra.mxu0 %v2716
    %3080 = vmatprep.subr.mxu0 %v2714
    %3081 = vmatpush1.msra.mxu0 %v2713
    %3082 = vmatprep.subr.mxu0 %v2711
    %3083 = vmatpush1.msra.mxu0 %v2710
    %3084 = vmatprep.subr.mxu0 %v2708
    %3085 = vmatpush1.msra.mxu0 %v2707
    %3086 = vmatprep.subr.mxu0 %v2705
    %3087 = vmatpush1.msra.mxu0 %v2704
    %3088 = vmatprep.subr.mxu0 %v2702
    %3089 = vmatpush1.msra.mxu0 %v2701
    %3090 = vmatprep.subr.mxu0 %v2699
    %3091 = vmatpush1.msra.mxu0 %v2698
    %3092 = vmatprep.subr.mxu0 %v2696
    %3093 = vmatpush1.msra.mxu0 %v2695
    %3094 = vmatprep.subr.mxu0 %v2693
    %3095 = vmatpush1.msra.mxu0 %v2692
    %3096 = vmatprep.subr.mxu0 %v2690
    %3097 = vmatpush1.msra.mxu0 %v2689
    %3098 = vmatprep.subr.mxu0 %v2687
    %3099 = vmatpush1.msra.mxu0 %v2686
    %3100 = vmatprep.subr.mxu0 %v2684
    %3101 = vmatpush1.msra.mxu0 %v2683
    %3102 = vmatprep.subr.mxu0 %v2681
    %3103 = vmatpush1.msra.mxu0 %v2680
    %3104 = vmatprep.subr.mxu0 %v2678
    %3105 = vmatpush1.msra.mxu0 %v2677
    %3106 = vmatprep.subr.mxu0 %v2675
    %3107 = vmatpush1.msra.mxu0 %v2674
    %3108 = vmatprep.subr.mxu0 %v2768
    %3109 = vmatpush2.msra.mxu0 %v2767
    %3110 = vmatprep.subr.mxu0 %v2765
    %3111 = vmatpush2.msra.mxu0 %v2764
    %3112 = vmatprep.subr.mxu0 %v2762
    %3113 = vmatpush2.msra.mxu0 %v2761
    %3114 = vmatprep.subr.mxu0 %v2759
    %3115 = vmatpush2.msra.mxu0 %v2758
    %3116 = vmatprep.subr.mxu0 %v2756
    %3117 = vmatpush2.msra.mxu0 %v2755
    %3118 = vmatprep.subr.mxu0 %v2753
    %3119 = vmatpush2.msra.mxu0 %v2752
    %3120 = vmatprep.subr.mxu0 %v2750
    %3121 = vmatpush2.msra.mxu0 %v2749
    %3122 = vmatprep.subr.mxu0 %v2747
    %3123 = vmatpush2.msra.mxu0 %v2746
    %3124 = vmatprep.subr.mxu0 %v2744
    %3125 = vmatpush2.msra.mxu0 %v2743
    %3126 = vmatprep.subr.mxu0 %v2741
    %3127 = vmatpush2.msra.mxu0 %v2740
    %3128 = vmatprep.subr.mxu0 %v2738
    %3129 = vmatpush2.msra.mxu0 %v2737
    %3130 = vmatprep.subr.mxu0 %v2735
    %3131 = vmatpush2.msra.mxu0 %v2734
    %3132 = vmatprep.subr.mxu0 %v2732
    %3133 = vmatpush2.msra.mxu0 %v2731
    %3134 = vmatprep.subr.mxu0 %v2729
    %3135 = vmatpush2.msra.mxu0 %v2728
    %3136 = vmatprep.subr.mxu0 %v2726
    %3137 = vmatpush2.msra.mxu0 %v2725
    %3138 = vmatprep.subr.mxu0 %v2723
    %3139 = vmatpush2.msra.mxu0 %v2722
    %3140 = vmatprep.mubr.f32.mxu0 %v2651
    %3141 = vmatmul.mubr.f32.gmra.mxu0 %v2650
    %v3142 = vpop.f32.mrf.mxu0
    %v3143 = vadd.f32 %v3064, %v3142
    %v3144 = vpop.f32.mrf.mxu0
    %v3145 = vadd.f32 %v3064, %v3144
    %3146 = vmatprep.mubr.f32.mxu0 %v2659
    %3147 = vmatmul.mubr.f32.gmra.mxu0 %v2658
    %v3148 = vpop.f32.mrf.mxu0
    %v3149 = vadd.f32 %v3069, %v3148
    %v3150 = vpop.f32.mrf.mxu0
    %v3151 = vadd.f32 %v3069, %v3150
    %3152 = vmatprep.mubr.f32.mxu0 %v2667
    %3153 = vmatmul.mubr.f32.gmra.mxu0 %v2666
    %v3154 = vpop.f32.mrf.mxu0
    %v3155 = vadd.f32 %v3074, %v3154
    %v3156 = vpop.f32.mrf.mxu0
    %v3157 = vadd.f32 %v3074, %v3156
    %3158 = vdwg.mxu0
    %3159 = vmatprep.subr.mxu0 %v2816
    %3160 = vmatpush1.msra.mxu0 %v2815
    %3161 = vmatprep.subr.mxu0 %v2813
    %3162 = vmatpush1.msra.mxu0 %v2812
    %3163 = vmatprep.subr.mxu0 %v2810
    %3164 = vmatpush1.msra.mxu0 %v2809
    %3165 = vmatprep.subr.mxu0 %v2807
    %3166 = vmatpush1.msra.mxu0 %v2806
    %3167 = vmatprep.subr.mxu0 %v2804
    %3168 = vmatpush1.msra.mxu0 %v2803
    %3169 = vmatprep.subr.mxu0 %v2801
    %3170 = vmatpush1.msra.mxu0 %v2800
    %3171 = vmatprep.subr.mxu0 %v2798
    %3172 = vmatpush1.msra.mxu0 %v2797
    %3173 = vmatprep.subr.mxu0 %v2795
    %3174 = vmatpush1.msra.mxu0 %v2794
    %3175 = vmatprep.subr.mxu0 %v2792
    %3176 = vmatpush1.msra.mxu0 %v2791
    %3177 = vmatprep.subr.mxu0 %v2789
    %3178 = vmatpush1.msra.mxu0 %v2788
    %3179 = vmatprep.subr.mxu0 %v2786
    %3180 = vmatpush1.msra.mxu0 %v2785
    %3181 = vmatprep.subr.mxu0 %v2783
    %3182 = vmatpush1.msra.mxu0 %v2782
    %3183 = vmatprep.subr.mxu0 %v2780
    %3184 = vmatpush1.msra.mxu0 %v2779
    %3185 = vmatprep.subr.mxu0 %v2777
    %3186 = vmatpush1.msra.mxu0 %v2776
    %3187 = vmatprep.subr.mxu0 %v2774
    %3188 = vmatpush1.msra.mxu0 %v2773
    %3189 = vmatprep.subr.mxu0 %v2771
    %3190 = vmatpush1.msra.mxu0 %v2770
    %3191 = vmatprep.subr.mxu0 %v2864
    %3192 = vmatpush2.msra.mxu0 %v2863
    %3193 = vmatprep.subr.mxu0 %v2861
    %3194 = vmatpush2.msra.mxu0 %v2860
    %3195 = vmatprep.subr.mxu0 %v2858
    %3196 = vmatpush2.msra.mxu0 %v2857
    %3197 = vmatprep.subr.mxu0 %v2855
    %3198 = vmatpush2.msra.mxu0 %v2854
    %3199 = vmatprep.subr.mxu0 %v2852
    %3200 = vmatpush2.msra.mxu0 %v2851
    %3201 = vmatprep.subr.mxu0 %v2849
    %3202 = vmatpush2.msra.mxu0 %v2848
    %3203 = vmatprep.subr.mxu0 %v2846
    %3204 = vmatpush2.msra.mxu0 %v2845
    %3205 = vmatprep.subr.mxu0 %v2843
    %3206 = vmatpush2.msra.mxu0 %v2842
    %3207 = vmatprep.subr.mxu0 %v2840
    %3208 = vmatpush2.msra.mxu0 %v2839
    %3209 = vmatprep.subr.mxu0 %v2837
    %3210 = vmatpush2.msra.mxu0 %v2836
    %3211 = vmatprep.subr.mxu0 %v2834
    %3212 = vmatpush2.msra.mxu0 %v2833
    %3213 = vmatprep.subr.mxu0 %v2831
    %3214 = vmatpush2.msra.mxu0 %v2830
    %3215 = vmatprep.subr.mxu0 %v2828
    %3216 = vmatpush2.msra.mxu0 %v2827
    %3217 = vmatprep.subr.mxu0 %v2825
    %3218 = vmatpush2.msra.mxu0 %v2824
    %3219 = vmatprep.subr.mxu0 %v2822
    %3220 = vmatpush2.msra.mxu0 %v2821
    %3221 = vmatprep.subr.mxu0 %v2819
    %3222 = vmatpush2.msra.mxu0 %v2818
    %3223 = vmatprep.mubr.f32.mxu0 %v2653
    %3224 = vmatmul.mubr.f32.gmra.mxu0 %v2652
    %v3225 = vpop.f32.mrf.mxu0
    %v3226 = vadd.f32 %v3143, %v3225
    %v3227 = vpop.f32.mrf.mxu0
    %v3228 = vadd.f32 %v3145, %v3227
    %3229 = vmatprep.mubr.f32.mxu0 %v2661
    %3230 = vmatmul.mubr.f32.gmra.mxu0 %v2660
    %v3231 = vpop.f32.mrf.mxu0
    %v3232 = vadd.f32 %v3149, %v3231
    %v3233 = vpop.f32.mrf.mxu0
    %v3234 = vadd.f32 %v3151, %v3233
    %3235 = vmatprep.mubr.f32.mxu0 %v2669
    %3236 = vmatmul.mubr.f32.gmra.mxu0 %v2668
    %v3237 = vpop.f32.mrf.mxu0
    %v3238 = vadd.f32 %v3155, %v3237
    %v3239 = vpop.f32.mrf.mxu0
    %v3240 = vadd.f32 %v3157, %v3239
    %3241 = vdwg.mxu0
    %3242 = vmatprep.subr.mxu0 %v2912
    %3243 = vmatpush1.msra.mxu0 %v2911
    %3244 = vmatprep.subr.mxu0 %v2909
    %3245 = vmatpush1.msra.mxu0 %v2908
    %3246 = vmatprep.subr.mxu0 %v2906
    %3247 = vmatpush1.msra.mxu0 %v2905
    %3248 = vmatprep.subr.mxu0 %v2903
    %3249 = vmatpush1.msra.mxu0 %v2902
    %3250 = vmatprep.subr.mxu0 %v2900
    %3251 = vmatpush1.msra.mxu0 %v2899
    %3252 = vmatprep.subr.mxu0 %v2897
    %3253 = vmatpush1.msra.mxu0 %v2896
    %3254 = vmatprep.subr.mxu0 %v2894
    %3255 = vmatpush1.msra.mxu0 %v2893
    %3256 = vmatprep.subr.mxu0 %v2891
    %3257 = vmatpush1.msra.mxu0 %v2890
    %3258 = vmatprep.subr.mxu0 %v2888
    %3259 = vmatpush1.msra.mxu0 %v2887
    %3260 = vmatprep.subr.mxu0 %v2885
    %3261 = vmatpush1.msra.mxu0 %v2884
    %3262 = vmatprep.subr.mxu0 %v2882
    %3263 = vmatpush1.msra.mxu0 %v2881
    %3264 = vmatprep.subr.mxu0 %v2879
    %3265 = vmatpush1.msra.mxu0 %v2878
    %3266 = vmatprep.subr.mxu0 %v2876
    %3267 = vmatpush1.msra.mxu0 %v2875
    %3268 = vmatprep.subr.mxu0 %v2873
    %3269 = vmatpush1.msra.mxu0 %v2872
    %3270 = vmatprep.subr.mxu0 %v2870
    %3271 = vmatpush1.msra.mxu0 %v2869
    %3272 = vmatprep.subr.mxu0 %v2867
    %3273 = vmatpush1.msra.mxu0 %v2866
    %3274 = vmatprep.subr.mxu0 %v2960
    %3275 = vmatpush2.msra.mxu0 %v2959
    %3276 = vmatprep.subr.mxu0 %v2957
    %3277 = vmatpush2.msra.mxu0 %v2956
    %3278 = vmatprep.subr.mxu0 %v2954
    %3279 = vmatpush2.msra.mxu0 %v2953
    %3280 = vmatprep.subr.mxu0 %v2951
    %3281 = vmatpush2.msra.mxu0 %v2950
    %3282 = vmatprep.subr.mxu0 %v2948
    %3283 = vmatpush2.msra.mxu0 %v2947
    %3284 = vmatprep.subr.mxu0 %v2945
    %3285 = vmatpush2.msra.mxu0 %v2944
    %3286 = vmatprep.subr.mxu0 %v2942
    %3287 = vmatpush2.msra.mxu0 %v2941
    %3288 = vmatprep.subr.mxu0 %v2939
    %3289 = vmatpush2.msra.mxu0 %v2938
    %3290 = vmatprep.subr.mxu0 %v2936
    %3291 = vmatpush2.msra.mxu0 %v2935
    %3292 = vmatprep.subr.mxu0 %v2933
    %3293 = vmatpush2.msra.mxu0 %v2932
    %3294 = vmatprep.subr.mxu0 %v2930
    %3295 = vmatpush2.msra.mxu0 %v2929
    %3296 = vmatprep.subr.mxu0 %v2927
    %3297 = vmatpush2.msra.mxu0 %v2926
    %3298 = vmatprep.subr.mxu0 %v2924
    %3299 = vmatpush2.msra.mxu0 %v2923
    %3300 = vmatprep.subr.mxu0 %v2921
    %3301 = vmatpush2.msra.mxu0 %v2920
    %3302 = vmatprep.subr.mxu0 %v2918
    %3303 = vmatpush2.msra.mxu0 %v2917
    %3304 = vmatprep.subr.mxu0 %v2915
    %3305 = vmatpush2.msra.mxu0 %v2914
    %3306 = vmatprep.mubr.f32.mxu0 %v2655
    %3307 = vmatmul.mubr.f32.gmra.mxu0 %v2654
    %v3308 = vpop.f32.mrf.mxu0
    %v3309 = vadd.f32 %v3226, %v3308
    %v3310 = vpop.f32.mrf.mxu0
    %v3311 = vadd.f32 %v3228, %v3310
    %3312 = vmatprep.mubr.f32.mxu0 %v2663
    %3313 = vmatmul.mubr.f32.gmra.mxu0 %v2662
    %v3314 = vpop.f32.mrf.mxu0
    %v3315 = vadd.f32 %v3232, %v3314
    %v3316 = vpop.f32.mrf.mxu0
    %v3317 = vadd.f32 %v3234, %v3316
    %3318 = vmatprep.mubr.f32.mxu0 %v2671
    %3319 = vmatmul.mubr.f32.gmra.mxu0 %v2670
    %v3320 = vpop.f32.mrf.mxu0
    %v3321 = vadd.f32 %v3238, %v3320
    %v3322 = vpop.f32.mrf.mxu0
    %v3323 = vadd.f32 %v3240, %v3322
    %3324 = vdwg.mxu0
    %3325 = vmatprep.subr.mxu0 %v3008
    %3326 = vmatpush1.msra.mxu0 %v3007
    %3327 = vmatprep.subr.mxu0 %v3005
    %3328 = vmatpush1.msra.mxu0 %v3004
    %3329 = vmatprep.subr.mxu0 %v3002
    %3330 = vmatpush1.msra.mxu0 %v3001
    %3331 = vmatprep.subr.mxu0 %v2999
    %3332 = vmatpush1.msra.mxu0 %v2998
    %3333 = vmatprep.subr.mxu0 %v2996
    %3334 = vmatpush1.msra.mxu0 %v2995
    %3335 = vmatprep.subr.mxu0 %v2993
    %3336 = vmatpush1.msra.mxu0 %v2992
    %3337 = vmatprep.subr.mxu0 %v2990
    %3338 = vmatpush1.msra.mxu0 %v2989
    %3339 = vmatprep.subr.mxu0 %v2987
    %3340 = vmatpush1.msra.mxu0 %v2986
    %3341 = vmatprep.subr.mxu0 %v2984
    %3342 = vmatpush1.msra.mxu0 %v2983
    %3343 = vmatprep.subr.mxu0 %v2981
    %3344 = vmatpush1.msra.mxu0 %v2980
    %3345 = vmatprep.subr.mxu0 %v2978
    %3346 = vmatpush1.msra.mxu0 %v2977
    %3347 = vmatprep.subr.mxu0 %v2975
    %3348 = vmatpush1.msra.mxu0 %v2974
    %3349 = vmatprep.subr.mxu0 %v2972
    %3350 = vmatpush1.msra.mxu0 %v2971
    %3351 = vmatprep.subr.mxu0 %v2969
    %3352 = vmatpush1.msra.mxu0 %v2968
    %3353 = vmatprep.subr.mxu0 %v2966
    %3354 = vmatpush1.msra.mxu0 %v2965
    %3355 = vmatprep.subr.mxu0 %v2963
    %3356 = vmatpush1.msra.mxu0 %v2962
    %3357 = vmatprep.subr.mxu0 %v3056
    %3358 = vmatpush2.msra.mxu0 %v3055
    %3359 = vmatprep.subr.mxu0 %v3053
    %3360 = vmatpush2.msra.mxu0 %v3052
    %3361 = vmatprep.subr.mxu0 %v3050
    %3362 = vmatpush2.msra.mxu0 %v3049
    %3363 = vmatprep.subr.mxu0 %v3047
    %3364 = vmatpush2.msra.mxu0 %v3046
    %3365 = vmatprep.subr.mxu0 %v3044
    %3366 = vmatpush2.msra.mxu0 %v3043
    %3367 = vmatprep.subr.mxu0 %v3041
    %3368 = vmatpush2.msra.mxu0 %v3040
    %3369 = vmatprep.subr.mxu0 %v3038
    %3370 = vmatpush2.msra.mxu0 %v3037
    %3371 = vmatprep.subr.mxu0 %v3035
    %3372 = vmatpush2.msra.mxu0 %v3034
    %3373 = vmatprep.subr.mxu0 %v3032
    %3374 = vmatpush2.msra.mxu0 %v3031
    %3375 = vmatprep.subr.mxu0 %v3029
    %3376 = vmatpush2.msra.mxu0 %v3028
    %3377 = vmatprep.subr.mxu0 %v3026
    %3378 = vmatpush2.msra.mxu0 %v3025
    %3379 = vmatprep.subr.mxu0 %v3023
    %3380 = vmatpush2.msra.mxu0 %v3022
    %3381 = vmatprep.subr.mxu0 %v3020
    %3382 = vmatpush2.msra.mxu0 %v3019
    %3383 = vmatprep.subr.mxu0 %v3017
    %3384 = vmatpush2.msra.mxu0 %v3016
    %3385 = vmatprep.subr.mxu0 %v3014
    %3386 = vmatpush2.msra.mxu0 %v3013
    %3387 = vmatprep.subr.mxu0 %v3011
    %3388 = vmatpush2.msra.mxu0 %v3010
    %3389 = vmatprep.mubr.f32.mxu0 %v2657
    %3390 = vmatmul.mubr.f32.gmra.mxu0 %v2656
    %v3391 = vpop.f32.mrf.mxu0
    %v3392 = vadd.f32 %v3309, %v3391
    %v3393 = vpop.f32.mrf.mxu0
    %v3394 = vadd.f32 %v3311, %v3393
    %3395 = vmatprep.mubr.f32.mxu0 %v2665
    %3396 = vmatmul.mubr.f32.gmra.mxu0 %v2664
    %v3397 = vpop.f32.mrf.mxu0
    %v3398 = vadd.f32 %v3315, %v3397
    %v3399 = vpop.f32.mrf.mxu0
    %v3400 = vadd.f32 %v3317, %v3399
    %3401 = vmatprep.mubr.f32.mxu0 %v2673
    %3402 = vmatmul.mubr.f32.gmra.mxu0 %v2672
    %v3403 = vpop.f32.mrf.mxu0
    %v3404 = vadd.f32 %v3321, %v3403
    %v3405 = vpop.f32.mrf.mxu0
    %v3406 = vadd.f32 %v3323, %v3405
    %3407 = vdwg.mxu0
    %3408 = vmatprep.subr.mxu0 0.0
    %3409 = vmatpush1.msra.mxu0 %v2721
    %3410 = vmatprep.subr.mxu0 0.0
    %3411 = vmatpush1.msra.mxu0 %v2718
    %3412 = vmatprep.subr.mxu0 0.0
    %3413 = vmatpush1.msra.mxu0 %v2715
    %3414 = vmatprep.subr.mxu0 0.0
    %3415 = vmatpush1.msra.mxu0 %v2712
    %3416 = vmatprep.subr.mxu0 0.0
    %3417 = vmatpush1.msra.mxu0 %v2709
    %3418 = vmatprep.subr.mxu0 0.0
    %3419 = vmatpush1.msra.mxu0 %v2706
    %3420 = vmatprep.subr.mxu0 0.0
    %3421 = vmatpush1.msra.mxu0 %v2703
    %3422 = vmatprep.subr.mxu0 0.0
    %3423 = vmatpush1.msra.mxu0 %v2700
    %3424 = vmatprep.subr.mxu0 0.0
    %3425 = vmatpush1.msra.mxu0 %v2697
    %3426 = vmatprep.subr.mxu0 0.0
    %3427 = vmatpush1.msra.mxu0 %v2694
    %3428 = vmatprep.subr.mxu0 0.0
    %3429 = vmatpush1.msra.mxu0 %v2691
    %3430 = vmatprep.subr.mxu0 0.0
    %3431 = vmatpush1.msra.mxu0 %v2688
    %3432 = vmatprep.subr.mxu0 0.0
    %3433 = vmatpush1.msra.mxu0 %v2685
    %3434 = vmatprep.subr.mxu0 0.0
    %3435 = vmatpush1.msra.mxu0 %v2682
    %3436 = vmatprep.subr.mxu0 0.0
    %3437 = vmatpush1.msra.mxu0 %v2679
    %3438 = vmatprep.subr.mxu0 0.0
    %3439 = vmatpush1.msra.mxu0 %v2676
    %3440 = vmatprep.subr.mxu0 0.0
    %3441 = vmatpush2.msra.mxu0 %v2769
    %3442 = vmatprep.subr.mxu0 0.0
    %3443 = vmatpush2.msra.mxu0 %v2766
    %3444 = vmatprep.subr.mxu0 0.0
    %3445 = vmatpush2.msra.mxu0 %v2763
    %3446 = vmatprep.subr.mxu0 0.0
    %3447 = vmatpush2.msra.mxu0 %v2760
    %3448 = vmatprep.subr.mxu0 0.0
    %3449 = vmatpush2.msra.mxu0 %v2757
    %3450 = vmatprep.subr.mxu0 0.0
    %3451 = vmatpush2.msra.mxu0 %v2754
    %3452 = vmatprep.subr.mxu0 0.0
    %3453 = vmatpush2.msra.mxu0 %v2751
    %3454 = vmatprep.subr.mxu0 0.0
    %3455 = vmatpush2.msra.mxu0 %v2748
    %3456 = vmatprep.subr.mxu0 0.0
    %3457 = vmatpush2.msra.mxu0 %v2745
    %3458 = vmatprep.subr.mxu0 0.0
    %3459 = vmatpush2.msra.mxu0 %v2742
    %3460 = vmatprep.subr.mxu0 0.0
    %3461 = vmatpush2.msra.mxu0 %v2739
    %3462 = vmatprep.subr.mxu0 0.0
    %3463 = vmatpush2.msra.mxu0 %v2736
    %3464 = vmatprep.subr.mxu0 0.0
    %3465 = vmatpush2.msra.mxu0 %v2733
    %3466 = vmatprep.subr.mxu0 0.0
    %3467 = vmatpush2.msra.mxu0 %v2730
    %3468 = vmatprep.subr.mxu0 0.0
    %3469 = vmatpush2.msra.mxu0 %v2727
    %3470 = vmatprep.subr.mxu0 0.0
    %3471 = vmatpush2.msra.mxu0 %v2724
    %3472 = vmatprep.mubr.f32.mxu0 %v2651
    %3473 = vmatmul.mubr.f32.gmra.mxu0 %v2650
    %v3474 = vpop.f32.mrf.mxu0
    %v3475 = vadd.f32 %v3064, %v3474
    %v3476 = vpop.f32.mrf.mxu0
    %3477 = vmatprep.mubr.f32.mxu0 %v2659
    %3478 = vmatmul.mubr.f32.gmra.mxu0 %v2658
    %v3479 = vpop.f32.mrf.mxu0
    %v3480 = vadd.f32 %v3069, %v3479
    %v3481 = vpop.f32.mrf.mxu0
    %3482 = vmatprep.mubr.f32.mxu0 %v2667
    %3483 = vmatmul.mubr.f32.gmra.mxu0 %v2666
    %v3484 = vpop.f32.mrf.mxu0
    %v3485 = vadd.f32 %v3074, %v3484
    %v3486 = vpop.f32.mrf.mxu0
    %3487 = vdwg.mxu0
    %3488 = vmatprep.subr.mxu0 0.0
    %3489 = vmatpush1.msra.mxu0 %v2817
    %3490 = vmatprep.subr.mxu0 0.0
    %3491 = vmatpush1.msra.mxu0 %v2814
    %3492 = vmatprep.subr.mxu0 0.0
    %3493 = vmatpush1.msra.mxu0 %v2811
    %3494 = vmatprep.subr.mxu0 0.0
    %3495 = vmatpush1.msra.mxu0 %v2808
    %3496 = vmatprep.subr.mxu0 0.0
    %3497 = vmatpush1.msra.mxu0 %v2805
    %3498 = vmatprep.subr.mxu0 0.0
    %3499 = vmatpush1.msra.mxu0 %v2802
    %3500 = vmatprep.subr.mxu0 0.0
    %3501 = vmatpush1.msra.mxu0 %v2799
    %3502 = vmatprep.subr.mxu0 0.0
    %3503 = vmatpush1.msra.mxu0 %v2796
    %3504 = vmatprep.subr.mxu0 0.0
    %3505 = vmatpush1.msra.mxu0 %v2793
    %3506 = vmatprep.subr.mxu0 0.0
    %3507 = vmatpush1.msra.mxu0 %v2790
    %3508 = vmatprep.subr.mxu0 0.0
    %3509 = vmatpush1.msra.mxu0 %v2787
    %3510 = vmatprep.subr.mxu0 0.0
    %3511 = vmatpush1.msra.mxu0 %v2784
    %3512 = vmatprep.subr.mxu0 0.0
    %3513 = vmatpush1.msra.mxu0 %v2781
    %3514 = vmatprep.subr.mxu0 0.0
    %3515 = vmatpush1.msra.mxu0 %v2778
    %3516 = vmatprep.subr.mxu0 0.0
    %3517 = vmatpush1.msra.mxu0 %v2775
    %3518 = vmatprep.subr.mxu0 0.0
    %3519 = vmatpush1.msra.mxu0 %v2772
    %3520 = vmatprep.subr.mxu0 0.0
    %3521 = vmatpush2.msra.mxu0 %v2865
    %3522 = vmatprep.subr.mxu0 0.0
    %3523 = vmatpush2.msra.mxu0 %v2862
    %3524 = vmatprep.subr.mxu0 0.0
    %3525 = vmatpush2.msra.mxu0 %v2859
    %3526 = vmatprep.subr.mxu0 0.0
    %3527 = vmatpush2.msra.mxu0 %v2856
    %3528 = vmatprep.subr.mxu0 0.0
    %3529 = vmatpush2.msra.mxu0 %v2853
    %3530 = vmatprep.subr.mxu0 0.0
    %3531 = vmatpush2.msra.mxu0 %v2850
    %3532 = vmatprep.subr.mxu0 0.0
    %3533 = vmatpush2.msra.mxu0 %v2847
    %3534 = vmatprep.subr.mxu0 0.0
    %3535 = vmatpush2.msra.mxu0 %v2844
    %3536 = vmatprep.subr.mxu0 0.0
    %3537 = vmatpush2.msra.mxu0 %v2841
    %3538 = vmatprep.subr.mxu0 0.0
    %3539 = vmatpush2.msra.mxu0 %v2838
    %3540 = vmatprep.subr.mxu0 0.0
    %3541 = vmatpush2.msra.mxu0 %v2835
    %3542 = vmatprep.subr.mxu0 0.0
    %3543 = vmatpush2.msra.mxu0 %v2832
    %3544 = vmatprep.subr.mxu0 0.0
    %3545 = vmatpush2.msra.mxu0 %v2829
    %3546 = vmatprep.subr.mxu0 0.0
    %3547 = vmatpush2.msra.mxu0 %v2826
    %3548 = vmatprep.subr.mxu0 0.0
    %3549 = vmatpush2.msra.mxu0 %v2823
    %3550 = vmatprep.subr.mxu0 0.0
    %3551 = vmatpush2.msra.mxu0 %v2820
    %3552 = vmatprep.mubr.f32.mxu0 %v2653
    %3553 = vmatmul.mubr.f32.gmra.mxu0 %v2652
    %v3554 = vpop.f32.mrf.mxu0
    %v3555 = vadd.f32 %v3475, %v3554
    %v3556 = vpop.f32.mrf.mxu0
    %3557 = vmatprep.mubr.f32.mxu0 %v2661
    %3558 = vmatmul.mubr.f32.gmra.mxu0 %v2660
    %v3559 = vpop.f32.mrf.mxu0
    %v3560 = vadd.f32 %v3480, %v3559
    %v3561 = vpop.f32.mrf.mxu0
    %3562 = vmatprep.mubr.f32.mxu0 %v2669
    %3563 = vmatmul.mubr.f32.gmra.mxu0 %v2668
    %v3564 = vpop.f32.mrf.mxu0
    %v3565 = vadd.f32 %v3485, %v3564
    %v3566 = vpop.f32.mrf.mxu0
    %3567 = vdwg.mxu0
    %3568 = vmatprep.subr.mxu0 0.0
    %3569 = vmatpush1.msra.mxu0 %v2913
    %3570 = vmatprep.subr.mxu0 0.0
    %3571 = vmatpush1.msra.mxu0 %v2910
    %3572 = vmatprep.subr.mxu0 0.0
    %3573 = vmatpush1.msra.mxu0 %v2907
    %3574 = vmatprep.subr.mxu0 0.0
    %3575 = vmatpush1.msra.mxu0 %v2904
    %3576 = vmatprep.subr.mxu0 0.0
    %3577 = vmatpush1.msra.mxu0 %v2901
    %3578 = vmatprep.subr.mxu0 0.0
    %3579 = vmatpush1.msra.mxu0 %v2898
    %3580 = vmatprep.subr.mxu0 0.0
    %3581 = vmatpush1.msra.mxu0 %v2895
    %3582 = vmatprep.subr.mxu0 0.0
    %3583 = vmatpush1.msra.mxu0 %v2892
    %3584 = vmatprep.subr.mxu0 0.0
    %3585 = vmatpush1.msra.mxu0 %v2889
    %3586 = vmatprep.subr.mxu0 0.0
    %3587 = vmatpush1.msra.mxu0 %v2886
    %3588 = vmatprep.subr.mxu0 0.0
    %3589 = vmatpush1.msra.mxu0 %v2883
    %3590 = vmatprep.subr.mxu0 0.0
    %3591 = vmatpush1.msra.mxu0 %v2880
    %3592 = vmatprep.subr.mxu0 0.0
    %3593 = vmatpush1.msra.mxu0 %v2877
    %3594 = vmatprep.subr.mxu0 0.0
    %3595 = vmatpush1.msra.mxu0 %v2874
    %3596 = vmatprep.subr.mxu0 0.0
    %3597 = vmatpush1.msra.mxu0 %v2871
    %3598 = vmatprep.subr.mxu0 0.0
    %3599 = vmatpush1.msra.mxu0 %v2868
    %3600 = vmatprep.subr.mxu0 0.0
    %3601 = vmatpush2.msra.mxu0 %v2961
    %3602 = vmatprep.subr.mxu0 0.0
    %3603 = vmatpush2.msra.mxu0 %v2958
    %3604 = vmatprep.subr.mxu0 0.0
    %3605 = vmatpush2.msra.mxu0 %v2955
    %3606 = vmatprep.subr.mxu0 0.0
    %3607 = vmatpush2.msra.mxu0 %v2952
    %3608 = vmatprep.subr.mxu0 0.0
    %3609 = vmatpush2.msra.mxu0 %v2949
    %3610 = vmatprep.subr.mxu0 0.0
    %3611 = vmatpush2.msra.mxu0 %v2946
    %3612 = vmatprep.subr.mxu0 0.0
    %3613 = vmatpush2.msra.mxu0 %v2943
    %3614 = vmatprep.subr.mxu0 0.0
    %3615 = vmatpush2.msra.mxu0 %v2940
    %3616 = vmatprep.subr.mxu0 0.0
    %3617 = vmatpush2.msra.mxu0 %v2937
    %3618 = vmatprep.subr.mxu0 0.0
    %3619 = vmatpush2.msra.mxu0 %v2934
    %3620 = vmatprep.subr.mxu0 0.0
    %3621 = vmatpush2.msra.mxu0 %v2931
    %3622 = vmatprep.subr.mxu0 0.0
    %3623 = vmatpush2.msra.mxu0 %v2928
    %3624 = vmatprep.subr.mxu0 0.0
    %3625 = vmatpush2.msra.mxu0 %v2925
    %3626 = vmatprep.subr.mxu0 0.0
    %3627 = vmatpush2.msra.mxu0 %v2922
    %3628 = vmatprep.subr.mxu0 0.0
    %3629 = vmatpush2.msra.mxu0 %v2919
    %3630 = vmatprep.subr.mxu0 0.0
    %3631 = vmatpush2.msra.mxu0 %v2916
    %3632 = vmatprep.mubr.f32.mxu0 %v2655
    %3633 = vmatmul.mubr.f32.gmra.mxu0 %v2654
    %v3634 = vpop.f32.mrf.mxu0
    %v3635 = vadd.f32 %v3555, %v3634
    %v3636 = vpop.f32.mrf.mxu0
    %3637 = vmatprep.mubr.f32.mxu0 %v2663
    %3638 = vmatmul.mubr.f32.gmra.mxu0 %v2662
    %v3639 = vpop.f32.mrf.mxu0
    %v3640 = vadd.f32 %v3560, %v3639
    %v3641 = vpop.f32.mrf.mxu0
    %3642 = vmatprep.mubr.f32.mxu0 %v2671
    %3643 = vmatmul.mubr.f32.gmra.mxu0 %v2670
    %v3644 = vpop.f32.mrf.mxu0
    %v3645 = vadd.f32 %v3565, %v3644
    %v3646 = vpop.f32.mrf.mxu0
    %3647 = vdwg.mxu0
    %3648 = vmatprep.subr.mxu0 0.0
    %3649 = vmatpush1.msra.mxu0 %v3009
    %3650 = vmatprep.subr.mxu0 0.0
    %3651 = vmatpush1.msra.mxu0 %v3006
    %3652 = vmatprep.subr.mxu0 0.0
    %3653 = vmatpush1.msra.mxu0 %v3003
    %3654 = vmatprep.subr.mxu0 0.0
    %3655 = vmatpush1.msra.mxu0 %v3000
    %3656 = vmatprep.subr.mxu0 0.0
    %3657 = vmatpush1.msra.mxu0 %v2997
    %3658 = vmatprep.subr.mxu0 0.0
    %3659 = vmatpush1.msra.mxu0 %v2994
    %3660 = vmatprep.subr.mxu0 0.0
    %3661 = vmatpush1.msra.mxu0 %v2991
    %3662 = vmatprep.subr.mxu0 0.0
    %3663 = vmatpush1.msra.mxu0 %v2988
    %3664 = vmatprep.subr.mxu0 0.0
    %3665 = vmatpush1.msra.mxu0 %v2985
    %3666 = vmatprep.subr.mxu0 0.0
    %3667 = vmatpush1.msra.mxu0 %v2982
    %3668 = vmatprep.subr.mxu0 0.0
    %3669 = vmatpush1.msra.mxu0 %v2979
    %3670 = vmatprep.subr.mxu0 0.0
    %3671 = vmatpush1.msra.mxu0 %v2976
    %3672 = vmatprep.subr.mxu0 0.0
    %3673 = vmatpush1.msra.mxu0 %v2973
    %3674 = vmatprep.subr.mxu0 0.0
    %3675 = vmatpush1.msra.mxu0 %v2970
    %3676 = vmatprep.subr.mxu0 0.0
    %3677 = vmatpush1.msra.mxu0 %v2967
    %3678 = vmatprep.subr.mxu0 0.0
    %3679 = vmatpush1.msra.mxu0 %v2964
    %3680 = vmatprep.subr.mxu0 0.0
    %3681 = vmatpush2.msra.mxu0 %v3057
    %3682 = vmatprep.subr.mxu0 0.0
    %3683 = vmatpush2.msra.mxu0 %v3054
    %3684 = vmatprep.subr.mxu0 0.0
    %3685 = vmatpush2.msra.mxu0 %v3051
    %3686 = vmatprep.subr.mxu0 0.0
    %3687 = vmatpush2.msra.mxu0 %v3048
    %3688 = vmatprep.subr.mxu0 0.0
    %3689 = vmatpush2.msra.mxu0 %v3045
    %3690 = vmatprep.subr.mxu0 0.0
    %3691 = vmatpush2.msra.mxu0 %v3042
    %3692 = vmatprep.subr.mxu0 0.0
    %3693 = vmatpush2.msra.mxu0 %v3039
    %3694 = vmatprep.subr.mxu0 0.0
    %3695 = vmatpush2.msra.mxu0 %v3036
    %3696 = vmatprep.subr.mxu0 0.0
    %3697 = vmatpush2.msra.mxu0 %v3033
    %3698 = vmatprep.subr.mxu0 0.0
    %3699 = vmatpush2.msra.mxu0 %v3030
    %3700 = vmatprep.subr.mxu0 0.0
    %3701 = vmatpush2.msra.mxu0 %v3027
    %3702 = vmatprep.subr.mxu0 0.0
    %3703 = vmatpush2.msra.mxu0 %v3024
    %3704 = vmatprep.subr.mxu0 0.0
    %3705 = vmatpush2.msra.mxu0 %v3021
    %3706 = vmatprep.subr.mxu0 0.0
    %3707 = vmatpush2.msra.mxu0 %v3018
    %3708 = vmatprep.subr.mxu0 0.0
    %3709 = vmatpush2.msra.mxu0 %v3015
    %3710 = vmatprep.subr.mxu0 0.0
    %3711 = vmatpush2.msra.mxu0 %v3012
    %3712 = vmatprep.mubr.f32.mxu0 %v2657
    %3713 = vmatmul.mubr.f32.gmra.mxu0 %v2656
    %v3714 = vpop.f32.mrf.mxu0
    %v3715 = vadd.f32 %v3635, %v3714
    %v3716 = vpop.f32.mrf.mxu0
    %3717 = vmatprep.mubr.f32.mxu0 %v2665
    %3718 = vmatmul.mubr.f32.gmra.mxu0 %v2664
    %v3719 = vpop.f32.mrf.mxu0
    %v3720 = vadd.f32 %v3640, %v3719
    %v3721 = vpop.f32.mrf.mxu0
    %3722 = vmatprep.mubr.f32.mxu0 %v2673
    %3723 = vmatmul.mubr.f32.gmra.mxu0 %v2672
    %v3724 = vpop.f32.mrf.mxu0
    %v3725 = vadd.f32 %v3645, %v3724
    %v3726 = vpop.f32.mrf.mxu0
    %3727 = vdwg.mxu0
    %v3728 = vmax.f32 %v3392, 0.0
    %v3729 = vmax.f32 %v3394, 0.0
    %v3730 = vmax.f32 %v3715, 0.0
    %v3731 = vmax.f32 %v3398, 0.0
    %v3732 = vmax.f32 %v3400, 0.0
    %v3733 = vmax.f32 %v3720, 0.0
    %v3734 = vmax.f32 %v3404, 0.0
    %v3735 = vmax.f32 %v3406, 0.0
    %v3736 = vmax.f32 %v3725, 0.0
    %v3737 = vadd.f32 %v3728, %v3729
    %v3738 = vsel %vm63, %v3730, 0.0
    %v3739 = vadd.f32 %v3737, %v3738
    %3740 = vadd.xlane.f32.xlu0 %v3739
    %v3741 = vpop.xlane.xlu0 %3740
    %v3742 = vadd.f32 %v3731, %v3732
    %v3743 = vsel %vm63, %v3733, 0.0
    %v3744 = vadd.f32 %v3742, %v3743
    %3745 = vadd.xlane.f32.xlu0 %v3744
    %v3746 = vpop.xlane.xlu0 %3745
    %vm3747 = vcmask 1043456
    %v3748 = vsel %vm3747, %v3734, 0.0
    %v3749 = vsel %vm3747, %v3735, 0.0
    %v3750 = vadd.f32 %v3748, %v3749
    %vm3751 = vcmask 527360
    %v3752 = vsel %vm3751, %v3736, 0.0
    %v3753 = vadd.f32 %v3750, %v3752
    %3754 = vadd.xlane.f32.xlu0 %v3753
    %v3755 = vpop.xlane.xlu0 %3754
    %v3756 = vmul.f32 %v3728, %v3728
    %v3757 = vmul.f32 %v3729, %v3729
    %v3758 = vmul.f32 %v3730, %v3730
    %v3759 = vmul.f32 %v3731, %v3731
    %v3760 = vmul.f32 %v3732, %v3732
    %v3761 = vmul.f32 %v3733, %v3733
    %v3762 = vmul.f32 %v3734, %v3734
    %v3763 = vmul.f32 %v3735, %v3735
    %v3764 = vmul.f32 %v3736, %v3736
    %v3765 = vadd.f32 %v3756, %v3757
    %v3766 = vsel %vm63, %v3758, 0.0
    %v3767 = vadd.f32 %v3765, %v3766
    %3768 = vadd.xlane.f32.xlu0 %v3767
    %v3769 = vpop.xlane.xlu0 %3768
    %v3770 = vadd.f32 %v3759, %v3760
    %v3771 = vsel %vm63, %v3761, 0.0
    %v3772 = vadd.f32 %v3770, %v3771
    %3773 = vadd.xlane.f32.xlu0 %v3772
    %v3774 = vpop.xlane.xlu0 %3773
    %v3775 = vsel %vm3747, %v3762, 0.0
    %v3776 = vsel %vm3747, %v3763, 0.0
    %v3777 = vadd.f32 %v3775, %v3776
    %v3778 = vsel %vm3751, %v3764, 0.0
    %v3779 = vadd.f32 %v3777, %v3778
    %3780 = vadd.xlane.f32.xlu0 %v3779
    %v3781 = vpop.xlane.xlu0 %3780
    %s3782 = scalar_lea.vmem [#allocation3], 48
    %v3783 = vld [vmem:[%s3782] sm:$0xff]
    %v3784 = vld [vmem:[%s3782 + $0x8] sm:$0xff]
    %v3785 = vld [vmem:[%s3782 + $0x10] sm:$0xff]
    %v3786 = vld [vmem:[%s3782 + $0x18] sm:$0xff]
    %v3787 = vld [vmem:[%s3782 + $0x20] sm:$0xff]
    %v3788 = vld [vmem:[%s3782 + $0x28] sm:$0xff]
    %3789 = vst [vmem:[#allocation2] sm:$0xff] %v3783
    %3790 = vst [vmem:[#allocation2 + $0x8] sm:$0xff] %v3784
    %3791 = vst.msk [vmem:[#allocation2 + $0x10] sm:$0xff] %vm63, %v3785
    %3792 = vst [vmem:[#allocation2 + $0x18] sm:$0xff] %v3786
    %3793 = vst [vmem:[#allocation2 + $0x20] sm:$0xff] %v3787
    %3794 = vst.msk [vmem:[#allocation2 + $0x28] sm:$0xff] %vm63, %v3788
    %v3795 = vld [vmem:[%s3782] sm:$0xff]
    %v3796 = vld [vmem:[%s3782 + $0x8] sm:$0xff]
    %v3797 = vld [vmem:[%s3782 + $0x10] sm:$0xff]
    %v3798 = vld [vmem:[%s3782 + $0x18] sm:$0xff]
    %v3799 = vld [vmem:[%s3782 + $0x20] sm:$0xff]
    %v3800 = vld [vmem:[%s3782 + $0x28] sm:$0xff]
    %3807 = vrot.lane.b32.xlu0 %v3795, 127
    %v3808 = vpop.permute.xlu0 %3807
    %3809 = vrot.lane.b32.xlu0 %v3796, 127
    %v3810 = vpop.permute.xlu0 %3809
    %3811 = vrot.lane.b32.xlu0 %v3797, 127
    %v3812 = vpop.permute.xlu0 %3811
    %3813 = vrot.lane.b32.xlu0 %v3798, 127
    %v3814 = vpop.permute.xlu0 %3813
    %3815 = vrot.lane.b32.xlu0 %v3799, 127
    %v3816 = vpop.permute.xlu0 %3815
    %3817 = vrot.lane.b32.xlu0 %v3800, 127
    %v3818 = vpop.permute.xlu0 %3817
    %v3819 = vsel %vm92, %v3808, %v3810
    %v3820 = vsel %vm92, %v3810, %v3812
    %v3821 = vsel %vm92, %v3814, %v3816
    %v3822 = vsel %vm92, %v3816, %v3818
    %3829 = vst [vmem:[#allocation2 + $0x30] sm:$0xff] %v3819
    %3830 = vst [vmem:[#allocation2 + $0x38] sm:$0xff] %v3820
    %3831 = vst.msk [vmem:[#allocation2 + $0x40] sm:$0xff] %vm63, %v3812
    %3832 = vst [vmem:[#allocation2 + $0x48] sm:$0xff] %v3821
    %3833 = vst [vmem:[#allocation2 + $0x50] sm:$0xff] %v3822
    %3834 = vst.msk [vmem:[#allocation2 + $0x58] sm:$0xff] %vm63, %v3818
    %v3835 = vld [vmem:[%s3782] sm:$0xff]
    %v3836 = vld [vmem:[%s3782 + $0x8] sm:$0xff]
    %v3837 = vld [vmem:[%s3782 + $0x10] sm:$0xff]
    %v3838 = vld [vmem:[%s3782 + $0x18] sm:$0xff]
    %v3839 = vld [vmem:[%s3782 + $0x20] sm:$0xff]
    %v3840 = vld [vmem:[%s3782 + $0x28] sm:$0xff]
    %3847 = vrot.lane.b32.xlu0 %v3835, 126
    %v3848 = vpop.permute.xlu0 %3847
    %3849 = vrot.lane.b32.xlu0 %v3836, 126
    %v3850 = vpop.permute.xlu0 %3849
    %3851 = vrot.lane.b32.xlu0 %v3837, 126
    %v3852 = vpop.permute.xlu0 %3851
    %3853 = vrot.lane.b32.xlu0 %v3838, 126
    %v3854 = vpop.permute.xlu0 %3853
    %3855 = vrot.lane.b32.xlu0 %v3839, 126
    %v3856 = vpop.permute.xlu0 %3855
    %3857 = vrot.lane.b32.xlu0 %v3840, 126
    %v3858 = vpop.permute.xlu0 %3857
    %v3859 = vsel %vm133, %v3848, %v3850
    %v3860 = vsel %vm133, %v3850, %v3852
    %v3861 = vsel %vm133, %v3854, %v3856
    %v3862 = vsel %vm133, %v3856, %v3858
    %3869 = vst [vmem:[#allocation2 + $0x60] sm:$0xff] %v3859
    %3870 = vst [vmem:[#allocation2 + $0x68] sm:$0xff] %v3860
    %3871 = vst.msk [vmem:[#allocation2 + $0x70] sm:$0xff] %vm63, %v3852
    %3872 = vst [vmem:[#allocation2 + $0x78] sm:$0xff] %v3861
    %3873 = vst [vmem:[#allocation2 + $0x80] sm:$0xff] %v3862
    %3874 = vst.msk [vmem:[#allocation2 + $0x88] sm:$0xff] %vm63, %v3858
    %v3875 = vld [vmem:[%s3782] sm:$0xff]
    %v3876 = vld [vmem:[%s3782 + $0x8] sm:$0xff]
    %v3877 = vld [vmem:[%s3782 + $0x10] sm:$0xff]
    %v3878 = vld [vmem:[%s3782 + $0x18] sm:$0xff]
    %v3879 = vld [vmem:[%s3782 + $0x20] sm:$0xff]
    %v3880 = vld [vmem:[%s3782 + $0x28] sm:$0xff]
    %3887 = vrot.lane.b32.xlu0 %v3875, 125
    %v3888 = vpop.permute.xlu0 %3887
    %3889 = vrot.lane.b32.xlu0 %v3876, 125
    %v3890 = vpop.permute.xlu0 %3889
    %3891 = vrot.lane.b32.xlu0 %v3877, 125
    %v3892 = vpop.permute.xlu0 %3891
    %3893 = vrot.lane.b32.xlu0 %v3878, 125
    %v3894 = vpop.permute.xlu0 %3893
    %3895 = vrot.lane.b32.xlu0 %v3879, 125
    %v3896 = vpop.permute.xlu0 %3895
    %3897 = vrot.lane.b32.xlu0 %v3880, 125
    %v3898 = vpop.permute.xlu0 %3897
    %v3899 = vsel %vm174, %v3888, %v3890
    %v3900 = vsel %vm174, %v3890, %v3892
    %v3901 = vsel %vm174, %v3894, %v3896
    %v3902 = vsel %vm174, %v3896, %v3898
    %3909 = vst [vmem:[#allocation2 + $0x90] sm:$0xff] %v3899
    %3910 = vst [vmem:[#allocation2 + $0x98] sm:$0xff] %v3900
    %3911 = vst.msk [vmem:[#allocation2 + $0xa0] sm:$0xff] %vm63, %v3892
    %3912 = vst [vmem:[#allocation2 + $0xa8] sm:$0xff] %v3901
    %3913 = vst [vmem:[#allocation2 + $0xb0] sm:$0xff] %v3902
    %3914 = vst.msk [vmem:[#allocation2 + $0xb8] sm:$0xff] %vm63, %v3898
    %v3915 = vld [vmem:[%s3782] sm:$0xff]
    %v3916 = vld [vmem:[%s3782 + $0x8] sm:$0xff]
    %v3917 = vld [vmem:[%s3782 + $0x10] sm:$0xff]
    %v3918 = vld [vmem:[%s3782 + $0x18] sm:$0xff]
    %v3919 = vld [vmem:[%s3782 + $0x20] sm:$0xff]
    %v3920 = vld [vmem:[%s3782 + $0x28] sm:$0xff]
    %3927 = vrot.lane.b32.xlu0 %v3915, 124
    %v3928 = vpop.permute.xlu0 %3927
    %3929 = vrot.lane.b32.xlu0 %v3916, 124
    %v3930 = vpop.permute.xlu0 %3929
    %3931 = vrot.lane.b32.xlu0 %v3917, 124
    %v3932 = vpop.permute.xlu0 %3931
    %3933 = vrot.lane.b32.xlu0 %v3918, 124
    %v3934 = vpop.permute.xlu0 %3933
    %3935 = vrot.lane.b32.xlu0 %v3919, 124
    %v3936 = vpop.permute.xlu0 %3935
    %3937 = vrot.lane.b32.xlu0 %v3920, 124
    %v3938 = vpop.permute.xlu0 %3937
    %v3939 = vsel %vm215, %v3928, %v3930
    %v3940 = vsel %vm215, %v3930, %v3932
    %v3941 = vsel %vm215, %v3934, %v3936
    %v3942 = vsel %vm215, %v3936, %v3938
    %3949 = vst [vmem:[#allocation2 + $0xc0] sm:$0xff] %v3939
    %3950 = vst [vmem:[#allocation2 + $0xc8] sm:$0xff] %v3940
    %3951 = vst.msk [vmem:[#allocation2 + $0xd0] sm:$0xff] %vm63, %v3932
    %3952 = vst [vmem:[#allocation2 + $0xd8] sm:$0xff] %v3941
    %3953 = vst [vmem:[#allocation2 + $0xe0] sm:$0xff] %v3942
    %3954 = vst.msk [vmem:[#allocation2 + $0xe8] sm:$0xff] %vm63, %v3938
    %v3955 = vld [vmem:[%s3782] sm:$0xff]
    %v3956 = vld [vmem:[%s3782 + $0x8] sm:$0xff]
    %v3957 = vld [vmem:[%s3782 + $0x10] sm:$0xff]
    %v3958 = vld [vmem:[%s3782 + $0x18] sm:$0xff]
    %v3959 = vld [vmem:[%s3782 + $0x20] sm:$0xff]
    %v3960 = vld [vmem:[%s3782 + $0x28] sm:$0xff]
    %3967 = vrot.lane.b32.xlu0 %v3955, 123
    %v3968 = vpop.permute.xlu0 %3967
    %3969 = vrot.lane.b32.xlu0 %v3956, 123
    %v3970 = vpop.permute.xlu0 %3969
    %3971 = vrot.lane.b32.xlu0 %v3957, 123
    %v3972 = vpop.permute.xlu0 %3971
    %3973 = vrot.lane.b32.xlu0 %v3958, 123
    %v3974 = vpop.permute.xlu0 %3973
    %3975 = vrot.lane.b32.xlu0 %v3959, 123
    %v3976 = vpop.permute.xlu0 %3975
    %3977 = vrot.lane.b32.xlu0 %v3960, 123
    %v3978 = vpop.permute.xlu0 %3977
    %v3979 = vsel %vm256, %v3968, %v3970
    %v3980 = vsel %vm256, %v3970, %v3972
    %v3981 = vsel %vm256, %v3974, %v3976
    %v3982 = vsel %vm256, %v3976, %v3978
    %3989 = vst [vmem:[#allocation2 + $0xf0] sm:$0xff] %v3979
    %3990 = vst [vmem:[#allocation2 + $0xf8] sm:$0xff] %v3980
    %3991 = vst.msk [vmem:[#allocation2 + $0x100] sm:$0xff] %vm63, %v3972
    %3992 = vst [vmem:[#allocation2 + $0x108] sm:$0xff] %v3981
    %3993 = vst [vmem:[#allocation2 + $0x110] sm:$0xff] %v3982
    %3994 = vst.msk [vmem:[#allocation2 + $0x118] sm:$0xff] %vm63, %v3978
    %v3995 = vld [vmem:[%s3782] sm:$0xff]
    %v3996 = vld [vmem:[%s3782 + $0x8] sm:$0xff]
    %v3997 = vld [vmem:[%s3782 + $0x10] sm:$0xff]
    %v3998 = vld [vmem:[%s3782 + $0x18] sm:$0xff]
    %v3999 = vld [vmem:[%s3782 + $0x20] sm:$0xff]
    %v4000 = vld [vmem:[%s3782 + $0x28] sm:$0xff]
    %4007 = vrot.lane.b32.xlu0 %v3995, 122
    %v4008 = vpop.permute.xlu0 %4007
    %4009 = vrot.lane.b32.xlu0 %v3996, 122
    %v4010 = vpop.permute.xlu0 %4009
    %4011 = vrot.lane.b32.xlu0 %v3997, 122
    %v4012 = vpop.permute.xlu0 %4011
    %4013 = vrot.lane.b32.xlu0 %v3998, 122
    %v4014 = vpop.permute.xlu0 %4013
    %4015 = vrot.lane.b32.xlu0 %v3999, 122
    %v4016 = vpop.permute.xlu0 %4015
    %4017 = vrot.lane.b32.xlu0 %v4000, 122
    %v4018 = vpop.permute.xlu0 %4017
    %v4019 = vsel %vm297, %v4008, %v4010
    %v4020 = vsel %vm297, %v4010, %v4012
    %v4021 = vsel %vm297, %v4014, %v4016
    %v4022 = vsel %vm297, %v4016, %v4018
    %4029 = vst [vmem:[#allocation2 + $0x120] sm:$0xff] %v4019
    %4030 = vst [vmem:[#allocation2 + $0x128] sm:$0xff] %v4020
    %4031 = vst.msk [vmem:[#allocation2 + $0x130] sm:$0xff] %vm63, %v4012
    %4032 = vst [vmem:[#allocation2 + $0x138] sm:$0xff] %v4021
    %4033 = vst [vmem:[#allocation2 + $0x140] sm:$0xff] %v4022
    %4034 = vst.msk [vmem:[#allocation2 + $0x148] sm:$0xff] %vm63, %v4018
    %v4035 = vld [vmem:[%s3782] sm:$0xff]
    %v4036 = vld [vmem:[%s3782 + $0x8] sm:$0xff]
    %v4037 = vld [vmem:[%s3782 + $0x10] sm:$0xff]
    %v4038 = vld [vmem:[%s3782 + $0x18] sm:$0xff]
    %v4039 = vld [vmem:[%s3782 + $0x20] sm:$0xff]
    %v4040 = vld [vmem:[%s3782 + $0x28] sm:$0xff]
    %4047 = vrot.lane.b32.xlu0 %v4035, 121
    %v4048 = vpop.permute.xlu0 %4047
    %4049 = vrot.lane.b32.xlu0 %v4036, 121
    %v4050 = vpop.permute.xlu0 %4049
    %4051 = vrot.lane.b32.xlu0 %v4037, 121
    %v4052 = vpop.permute.xlu0 %4051
    %4053 = vrot.lane.b32.xlu0 %v4038, 121
    %v4054 = vpop.permute.xlu0 %4053
    %4055 = vrot.lane.b32.xlu0 %v4039, 121
    %v4056 = vpop.permute.xlu0 %4055
    %4057 = vrot.lane.b32.xlu0 %v4040, 121
    %v4058 = vpop.permute.xlu0 %4057
    %v4059 = vsel %vm338, %v4048, %v4050
    %v4060 = vsel %vm338, %v4050, %v4052
    %v4061 = vsel %vm338, %v4054, %v4056
    %v4062 = vsel %vm338, %v4056, %v4058
    %4069 = vst [vmem:[#allocation2 + $0x150] sm:$0xff] %v4059
    %4070 = vst [vmem:[#allocation2 + $0x158] sm:$0xff] %v4060
    %4071 = vst.msk [vmem:[#allocation2 + $0x160] sm:$0xff] %vm63, %v4052
    %4072 = vst [vmem:[#allocation2 + $0x168] sm:$0xff] %v4061
    %4073 = vst [vmem:[#allocation2 + $0x170] sm:$0xff] %v4062
    %4074 = vst.msk [vmem:[#allocation2 + $0x178] sm:$0xff] %vm63, %v4058
    %v4075 = vld [vmem:[%s3782] sm:$0xff]
    %v4076 = vld [vmem:[%s3782 + $0x8] sm:$0xff]
    %v4077 = vld [vmem:[%s3782 + $0x10] sm:$0xff]
    %v4078 = vld [vmem:[%s3782 + $0x18] sm:$0xff]
    %v4079 = vld [vmem:[%s3782 + $0x20] sm:$0xff]
    %v4080 = vld [vmem:[%s3782 + $0x28] sm:$0xff]
    %4087 = vrot.lane.b32.xlu0 %v4075, 120
    %v4088 = vpop.permute.xlu0 %4087
    %4089 = vrot.lane.b32.xlu0 %v4076, 120
    %v4090 = vpop.permute.xlu0 %4089
    %4091 = vrot.lane.b32.xlu0 %v4077, 120
    %v4092 = vpop.permute.xlu0 %4091
    %4093 = vrot.lane.b32.xlu0 %v4078, 120
    %v4094 = vpop.permute.xlu0 %4093
    %4095 = vrot.lane.b32.xlu0 %v4079, 120
    %v4096 = vpop.permute.xlu0 %4095
    %4097 = vrot.lane.b32.xlu0 %v4080, 120
    %v4098 = vpop.permute.xlu0 %4097
    %v4099 = vsel %vm379, %v4088, %v4090
    %v4100 = vsel %vm379, %v4090, %v4092
    %v4101 = vsel %vm379, %v4094, %v4096
    %v4102 = vsel %vm379, %v4096, %v4098
    %4109 = vst [vmem:[#allocation2 + $0x180] sm:$0xff] %v4099
    %4110 = vst [vmem:[#allocation2 + $0x188] sm:$0xff] %v4100
    %4111 = vst.msk [vmem:[#allocation2 + $0x190] sm:$0xff] %vm63, %v4092
    %4112 = vst [vmem:[#allocation2 + $0x198] sm:$0xff] %v4101
    %4113 = vst [vmem:[#allocation2 + $0x1a0] sm:$0xff] %v4102
    %4114 = vst.msk [vmem:[#allocation2 + $0x1a8] sm:$0xff] %vm63, %v4098
    %v4115 = vld [vmem:[%s3782] sm:$0xff]
    %v4116 = vld [vmem:[%s3782 + $0x8] sm:$0xff]
    %v4117 = vld [vmem:[%s3782 + $0x10] sm:$0xff]
    %v4118 = vld [vmem:[%s3782 + $0x18] sm:$0xff]
    %v4119 = vld [vmem:[%s3782 + $0x20] sm:$0xff]
    %v4120 = vld [vmem:[%s3782 + $0x28] sm:$0xff]
    %4127 = vrot.lane.b32.xlu0 %v4115, 119
    %v4128 = vpop.permute.xlu0 %4127
    %4129 = vrot.lane.b32.xlu0 %v4116, 119
    %v4130 = vpop.permute.xlu0 %4129
    %4131 = vrot.lane.b32.xlu0 %v4117, 119
    %v4132 = vpop.permute.xlu0 %4131
    %4133 = vrot.lane.b32.xlu0 %v4118, 119
    %v4134 = vpop.permute.xlu0 %4133
    %4135 = vrot.lane.b32.xlu0 %v4119, 119
    %v4136 = vpop.permute.xlu0 %4135
    %4137 = vrot.lane.b32.xlu0 %v4120, 119
    %v4138 = vpop.permute.xlu0 %4137
    %v4139 = vsel %vm420, %v4128, %v4130
    %v4140 = vsel %vm420, %v4130, %v4132
    %v4141 = vsel %vm420, %v4134, %v4136
    %v4142 = vsel %vm420, %v4136, %v4138
    %4149 = vst [vmem:[#allocation2 + $0x1b0] sm:$0xff] %v4139
    %4150 = vst [vmem:[#allocation2 + $0x1b8] sm:$0xff] %v4140
    %4151 = vst.msk [vmem:[#allocation2 + $0x1c0] sm:$0xff] %vm63, %v4132
    %4152 = vst [vmem:[#allocation2 + $0x1c8] sm:$0xff] %v4141
    %4153 = vst [vmem:[#allocation2 + $0x1d0] sm:$0xff] %v4142
    %4154 = vst.msk [vmem:[#allocation2 + $0x1d8] sm:$0xff] %vm63, %v4138
    %v4155 = vld [vmem:[%s3782] sm:$0xff]
    %v4156 = vld [vmem:[%s3782 + $0x8] sm:$0xff]
    %v4157 = vld [vmem:[%s3782 + $0x10] sm:$0xff]
    %v4158 = vld [vmem:[%s3782 + $0x18] sm:$0xff]
    %v4159 = vld [vmem:[%s3782 + $0x20] sm:$0xff]
    %v4160 = vld [vmem:[%s3782 + $0x28] sm:$0xff]
    %4167 = vrot.lane.b32.xlu0 %v4155, 118
    %v4168 = vpop.permute.xlu0 %4167
    %4169 = vrot.lane.b32.xlu0 %v4156, 118
    %v4170 = vpop.permute.xlu0 %4169
    %4171 = vrot.lane.b32.xlu0 %v4157, 118
    %v4172 = vpop.permute.xlu0 %4171
    %4173 = vrot.lane.b32.xlu0 %v4158, 118
    %v4174 = vpop.permute.xlu0 %4173
    %4175 = vrot.lane.b32.xlu0 %v4159, 118
    %v4176 = vpop.permute.xlu0 %4175
    %4177 = vrot.lane.b32.xlu0 %v4160, 118
    %v4178 = vpop.permute.xlu0 %4177
    %v4179 = vsel %vm461, %v4168, %v4170
    %v4180 = vsel %vm461, %v4170, %v4172
    %v4181 = vsel %vm461, %v4174, %v4176
    %v4182 = vsel %vm461, %v4176, %v4178
    %4189 = vst [vmem:[#allocation2 + $0x1e0] sm:$0xff] %v4179
    %4190 = vst [vmem:[#allocation2 + $0x1e8] sm:$0xff] %v4180
    %4191 = vst.msk [vmem:[#allocation2 + $0x1f0] sm:$0xff] %vm63, %v4172
    %4192 = vst [vmem:[#allocation2 + $0x1f8] sm:$0xff] %v4181
    %4193 = vst [vmem:[#allocation2 + $0x200] sm:$0xff] %v4182
    %4194 = vst.msk [vmem:[#allocation2 + $0x208] sm:$0xff] %vm63, %v4178
    %v4195 = vld [vmem:[%s3782] sm:$0xff]
    %v4196 = vld [vmem:[%s3782 + $0x8] sm:$0xff]
    %v4197 = vld [vmem:[%s3782 + $0x10] sm:$0xff]
    %v4198 = vld [vmem:[%s3782 + $0x18] sm:$0xff]
    %v4199 = vld [vmem:[%s3782 + $0x20] sm:$0xff]
    %v4200 = vld [vmem:[%s3782 + $0x28] sm:$0xff]
    %4207 = vrot.lane.b32.xlu0 %v4195, 117
    %v4208 = vpop.permute.xlu0 %4207
    %4209 = vrot.lane.b32.xlu0 %v4196, 117
    %v4210 = vpop.permute.xlu0 %4209
    %4211 = vrot.lane.b32.xlu0 %v4197, 117
    %v4212 = vpop.permute.xlu0 %4211
    %4213 = vrot.lane.b32.xlu0 %v4198, 117
    %v4214 = vpop.permute.xlu0 %4213
    %4215 = vrot.lane.b32.xlu0 %v4199, 117
    %v4216 = vpop.permute.xlu0 %4215
    %4217 = vrot.lane.b32.xlu0 %v4200, 117
    %v4218 = vpop.permute.xlu0 %4217
    %v4219 = vsel %vm502, %v4208, %v4210
    %v4220 = vsel %vm502, %v4210, %v4212
    %v4221 = vsel %vm502, %v4214, %v4216
    %v4222 = vsel %vm502, %v4216, %v4218
    %4229 = vst [vmem:[#allocation2 + $0x210] sm:$0xff] %v4219
    %4230 = vst [vmem:[#allocation2 + $0x218] sm:$0xff] %v4220
    %4231 = vst.msk [vmem:[#allocation2 + $0x220] sm:$0xff] %vm63, %v4212
    %4232 = vst [vmem:[#allocation2 + $0x228] sm:$0xff] %v4221
    %4233 = vst [vmem:[#allocation2 + $0x230] sm:$0xff] %v4222
    %4234 = vst.msk [vmem:[#allocation2 + $0x238] sm:$0xff] %vm63, %v4218
    %v4235 = vld [vmem:[%s3782] sm:$0xff]
    %v4236 = vld [vmem:[%s3782 + $0x8] sm:$0xff]
    %v4237 = vld [vmem:[%s3782 + $0x10] sm:$0xff]
    %v4238 = vld [vmem:[%s3782 + $0x18] sm:$0xff]
    %v4239 = vld [vmem:[%s3782 + $0x20] sm:$0xff]
    %v4240 = vld [vmem:[%s3782 + $0x28] sm:$0xff]
    %4247 = vrot.lane.b32.xlu0 %v4235, 116
    %v4248 = vpop.permute.xlu0 %4247
    %4249 = vrot.lane.b32.xlu0 %v4236, 116
    %v4250 = vpop.permute.xlu0 %4249
    %4251 = vrot.lane.b32.xlu0 %v4237, 116
    %v4252 = vpop.permute.xlu0 %4251
    %4253 = vrot.lane.b32.xlu0 %v4238, 116
    %v4254 = vpop.permute.xlu0 %4253
    %4255 = vrot.lane.b32.xlu0 %v4239, 116
    %v4256 = vpop.permute.xlu0 %4255
    %4257 = vrot.lane.b32.xlu0 %v4240, 116
    %v4258 = vpop.permute.xlu0 %4257
    %v4259 = vsel %vm543, %v4248, %v4250
    %v4260 = vsel %vm543, %v4250, %v4252
    %v4261 = vsel %vm543, %v4254, %v4256
    %v4262 = vsel %vm543, %v4256, %v4258
    %4269 = vst [vmem:[#allocation2 + $0x240] sm:$0xff] %v4259
    %4270 = vst [vmem:[#allocation2 + $0x248] sm:$0xff] %v4260
    %4271 = vst.msk [vmem:[#allocation2 + $0x250] sm:$0xff] %vm63, %v4252
    %4272 = vst [vmem:[#allocation2 + $0x258] sm:$0xff] %v4261
    %4273 = vst [vmem:[#allocation2 + $0x260] sm:$0xff] %v4262
    %4274 = vst.msk [vmem:[#allocation2 + $0x268] sm:$0xff] %vm63, %v4258
    %v4275 = vld [vmem:[%s3782] sm:$0xff]
    %v4276 = vld [vmem:[%s3782 + $0x8] sm:$0xff]
    %v4277 = vld [vmem:[%s3782 + $0x10] sm:$0xff]
    %v4278 = vld [vmem:[%s3782 + $0x18] sm:$0xff]
    %v4279 = vld [vmem:[%s3782 + $0x20] sm:$0xff]
    %v4280 = vld [vmem:[%s3782 + $0x28] sm:$0xff]
    %4287 = vrot.lane.b32.xlu0 %v4275, 115
    %v4288 = vpop.permute.xlu0 %4287
    %4289 = vrot.lane.b32.xlu0 %v4276, 115
    %v4290 = vpop.permute.xlu0 %4289
    %4291 = vrot.lane.b32.xlu0 %v4277, 115
    %v4292 = vpop.permute.xlu0 %4291
    %4293 = vrot.lane.b32.xlu0 %v4278, 115
    %v4294 = vpop.permute.xlu0 %4293
    %4295 = vrot.lane.b32.xlu0 %v4279, 115
    %v4296 = vpop.permute.xlu0 %4295
    %4297 = vrot.lane.b32.xlu0 %v4280, 115
    %v4298 = vpop.permute.xlu0 %4297
    %v4299 = vsel %vm584, %v4288, %v4290
    %v4300 = vsel %vm584, %v4290, %v4292
    %v4301 = vsel %vm584, %v4294, %v4296
    %v4302 = vsel %vm584, %v4296, %v4298
    %4309 = vst [vmem:[#allocation2 + $0x270] sm:$0xff] %v4299
    %4310 = vst [vmem:[#allocation2 + $0x278] sm:$0xff] %v4300
    %4311 = vst.msk [vmem:[#allocation2 + $0x280] sm:$0xff] %vm63, %v4292
    %4312 = vst [vmem:[#allocation2 + $0x288] sm:$0xff] %v4301
    %4313 = vst [vmem:[#allocation2 + $0x290] sm:$0xff] %v4302
    %4314 = vst.msk [vmem:[#allocation2 + $0x298] sm:$0xff] %vm63, %v4298
    %v4315 = vld [vmem:[%s3782] sm:$0xff]
    %v4316 = vld [vmem:[%s3782 + $0x8] sm:$0xff]
    %v4317 = vld [vmem:[%s3782 + $0x10] sm:$0xff]
    %v4318 = vld [vmem:[%s3782 + $0x18] sm:$0xff]
    %v4319 = vld [vmem:[%s3782 + $0x20] sm:$0xff]
    %v4320 = vld [vmem:[%s3782 + $0x28] sm:$0xff]
    %4327 = vrot.lane.b32.xlu0 %v4315, 114
    %v4328 = vpop.permute.xlu0 %4327
    %4329 = vrot.lane.b32.xlu0 %v4316, 114
    %v4330 = vpop.permute.xlu0 %4329
    %4331 = vrot.lane.b32.xlu0 %v4317, 114
    %v4332 = vpop.permute.xlu0 %4331
    %4333 = vrot.lane.b32.xlu0 %v4318, 114
    %v4334 = vpop.permute.xlu0 %4333
    %4335 = vrot.lane.b32.xlu0 %v4319, 114
    %v4336 = vpop.permute.xlu0 %4335
    %4337 = vrot.lane.b32.xlu0 %v4320, 114
    %v4338 = vpop.permute.xlu0 %4337
    %v4339 = vsel %vm625, %v4328, %v4330
    %v4340 = vsel %vm625, %v4330, %v4332
    %v4341 = vsel %vm625, %v4334, %v4336
    %v4342 = vsel %vm625, %v4336, %v4338
    %4349 = vst [vmem:[#allocation2 + $0x2a0] sm:$0xff] %v4339
    %4350 = vst [vmem:[#allocation2 + $0x2a8] sm:$0xff] %v4340
    %4351 = vst.msk [vmem:[#allocation2 + $0x2b0] sm:$0xff] %vm63, %v4332
    %4352 = vst [vmem:[#allocation2 + $0x2b8] sm:$0xff] %v4341
    %4353 = vst [vmem:[#allocation2 + $0x2c0] sm:$0xff] %v4342
    %4354 = vst.msk [vmem:[#allocation2 + $0x2c8] sm:$0xff] %vm63, %v4338
    %v4355 = vld [vmem:[%s3782] sm:$0xff]
    %v4356 = vld [vmem:[%s3782 + $0x8] sm:$0xff]
    %v4357 = vld [vmem:[%s3782 + $0x10] sm:$0xff]
    %v4358 = vld [vmem:[%s3782 + $0x18] sm:$0xff]
    %v4359 = vld [vmem:[%s3782 + $0x20] sm:$0xff]
    %v4360 = vld [vmem:[%s3782 + $0x28] sm:$0xff]
    %4367 = vrot.lane.b32.xlu0 %v4355, 113
    %v4368 = vpop.permute.xlu0 %4367
    %4369 = vrot.lane.b32.xlu0 %v4356, 113
    %v4370 = vpop.permute.xlu0 %4369
    %4371 = vrot.lane.b32.xlu0 %v4357, 113
    %v4372 = vpop.permute.xlu0 %4371
    %4373 = vrot.lane.b32.xlu0 %v4358, 113
    %v4374 = vpop.permute.xlu0 %4373
    %4375 = vrot.lane.b32.xlu0 %v4359, 113
    %v4376 = vpop.permute.xlu0 %4375
    %4377 = vrot.lane.b32.xlu0 %v4360, 113
    %v4378 = vpop.permute.xlu0 %4377
    %v4379 = vsel %vm666, %v4368, %v4370
    %v4380 = vsel %vm666, %v4370, %v4372
    %v4381 = vsel %vm666, %v4374, %v4376
    %v4382 = vsel %vm666, %v4376, %v4378
    %4389 = vst [vmem:[#allocation2 + $0x2d0] sm:$0xff] %v4379
    %4390 = vst [vmem:[#allocation2 + $0x2d8] sm:$0xff] %v4380
    %4391 = vst.msk [vmem:[#allocation2 + $0x2e0] sm:$0xff] %vm63, %v4372
    %4392 = vst [vmem:[#allocation2 + $0x2e8] sm:$0xff] %v4381
    %4393 = vst [vmem:[#allocation2 + $0x2f0] sm:$0xff] %v4382
    %4394 = vst.msk [vmem:[#allocation2 + $0x2f8] sm:$0xff] %vm63, %v4378
    %v4395 = vld [vmem:[%s3782] sm:$0xff]
    %v4396 = vld [vmem:[%s3782 + $0x8] sm:$0xff]
    %v4397 = vld [vmem:[%s3782 + $0x10] sm:$0xff]
    %v4398 = vld [vmem:[%s3782 + $0x18] sm:$0xff]
    %v4399 = vld [vmem:[%s3782 + $0x20] sm:$0xff]
    %v4400 = vld [vmem:[%s3782 + $0x28] sm:$0xff]
    %4407 = vrot.lane.b32.xlu0 %v4395, 112
    %v4408 = vpop.permute.xlu0 %4407
    %4409 = vrot.lane.b32.xlu0 %v4396, 112
    %v4410 = vpop.permute.xlu0 %4409
    %4411 = vrot.lane.b32.xlu0 %v4397, 112
    %v4412 = vpop.permute.xlu0 %4411
    %4413 = vrot.lane.b32.xlu0 %v4398, 112
    %v4414 = vpop.permute.xlu0 %4413
    %4415 = vrot.lane.b32.xlu0 %v4399, 112
    %v4416 = vpop.permute.xlu0 %4415
    %4417 = vrot.lane.b32.xlu0 %v4400, 112
    %v4418 = vpop.permute.xlu0 %4417
    %v4419 = vsel %vm707, %v4408, %v4410
    %v4420 = vsel %vm707, %v4410, %v4412
    %v4421 = vsel %vm707, %v4414, %v4416
    %v4422 = vsel %vm707, %v4416, %v4418
    %4429 = vst [vmem:[#allocation2 + $0x300] sm:$0xff] %v4419
    %4430 = vst [vmem:[#allocation2 + $0x308] sm:$0xff] %v4420
    %4431 = vst.msk [vmem:[#allocation2 + $0x310] sm:$0xff] %vm63, %v4412
    %4432 = vst [vmem:[#allocation2 + $0x318] sm:$0xff] %v4421
    %4433 = vst [vmem:[#allocation2 + $0x320] sm:$0xff] %v4422
    %4434 = vst.msk [vmem:[#allocation2 + $0x328] sm:$0xff] %vm63, %v4418
    %v4435 = vld [vmem:[%s3782] sm:$0xff]
    %v4436 = vld [vmem:[%s3782 + $0x8] sm:$0xff]
    %v4437 = vld [vmem:[%s3782 + $0x10] sm:$0xff]
    %v4438 = vld [vmem:[%s3782 + $0x18] sm:$0xff]
    %v4439 = vld [vmem:[%s3782 + $0x20] sm:$0xff]
    %v4440 = vld [vmem:[%s3782 + $0x28] sm:$0xff]
    %4447 = vrot.lane.b32.xlu0 %v4435, 111
    %v4448 = vpop.permute.xlu0 %4447
    %4449 = vrot.lane.b32.xlu0 %v4436, 111
    %v4450 = vpop.permute.xlu0 %4449
    %4451 = vrot.lane.b32.xlu0 %v4437, 111
    %v4452 = vpop.permute.xlu0 %4451
    %4453 = vrot.lane.b32.xlu0 %v4438, 111
    %v4454 = vpop.permute.xlu0 %4453
    %4455 = vrot.lane.b32.xlu0 %v4439, 111
    %v4456 = vpop.permute.xlu0 %4455
    %4457 = vrot.lane.b32.xlu0 %v4440, 111
    %v4458 = vpop.permute.xlu0 %4457
    %v4459 = vsel %vm748, %v4448, %v4450
    %v4460 = vsel %vm748, %v4450, %v4452
    %v4461 = vsel %vm748, %v4454, %v4456
    %v4462 = vsel %vm748, %v4456, %v4458
    %4469 = vst [vmem:[#allocation2 + $0x330] sm:$0xff] %v4459
    %4470 = vst [vmem:[#allocation2 + $0x338] sm:$0xff] %v4460
    %4471 = vst.msk [vmem:[#allocation2 + $0x340] sm:$0xff] %vm63, %v4452
    %4472 = vst [vmem:[#allocation2 + $0x348] sm:$0xff] %v4461
    %4473 = vst [vmem:[#allocation2 + $0x350] sm:$0xff] %v4462
    %4474 = vst.msk [vmem:[#allocation2 + $0x358] sm:$0xff] %vm63, %v4458
    %v4475 = vld [vmem:[%s3782] sm:$0xff]
    %v4476 = vld [vmem:[%s3782 + $0x8] sm:$0xff]
    %v4477 = vld [vmem:[%s3782 + $0x10] sm:$0xff]
    %v4478 = vld [vmem:[%s3782 + $0x18] sm:$0xff]
    %v4479 = vld [vmem:[%s3782 + $0x20] sm:$0xff]
    %v4480 = vld [vmem:[%s3782 + $0x28] sm:$0xff]
    %4487 = vrot.lane.b32.xlu0 %v4475, 110
    %v4488 = vpop.permute.xlu0 %4487
    %4489 = vrot.lane.b32.xlu0 %v4476, 110
    %v4490 = vpop.permute.xlu0 %4489
    %4491 = vrot.lane.b32.xlu0 %v4477, 110
    %v4492 = vpop.permute.xlu0 %4491
    %4493 = vrot.lane.b32.xlu0 %v4478, 110
    %v4494 = vpop.permute.xlu0 %4493
    %4495 = vrot.lane.b32.xlu0 %v4479, 110
    %v4496 = vpop.permute.xlu0 %4495
    %4497 = vrot.lane.b32.xlu0 %v4480, 110
    %v4498 = vpop.permute.xlu0 %4497
    %v4499 = vsel %vm789, %v4488, %v4490
    %v4500 = vsel %vm789, %v4490, %v4492
    %v4501 = vsel %vm789, %v4494, %v4496
    %v4502 = vsel %vm789, %v4496, %v4498
    %4509 = vst [vmem:[#allocation2 + $0x360] sm:$0xff] %v4499
    %4510 = vst [vmem:[#allocation2 + $0x368] sm:$0xff] %v4500
    %4511 = vst.msk [vmem:[#allocation2 + $0x370] sm:$0xff] %vm63, %v4492
    %4512 = vst [vmem:[#allocation2 + $0x378] sm:$0xff] %v4501
    %4513 = vst [vmem:[#allocation2 + $0x380] sm:$0xff] %v4502
    %4514 = vst.msk [vmem:[#allocation2 + $0x388] sm:$0xff] %vm63, %v4498
    %v4515 = vld [vmem:[%s3782] sm:$0xff]
    %v4516 = vld [vmem:[%s3782 + $0x8] sm:$0xff]
    %v4517 = vld [vmem:[%s3782 + $0x10] sm:$0xff]
    %v4518 = vld [vmem:[%s3782 + $0x18] sm:$0xff]
    %v4519 = vld [vmem:[%s3782 + $0x20] sm:$0xff]
    %v4520 = vld [vmem:[%s3782 + $0x28] sm:$0xff]
    %4527 = vrot.lane.b32.xlu0 %v4515, 109
    %v4528 = vpop.permute.xlu0 %4527
    %4529 = vrot.lane.b32.xlu0 %v4516, 109
    %v4530 = vpop.permute.xlu0 %4529
    %4531 = vrot.lane.b32.xlu0 %v4517, 109
    %v4532 = vpop.permute.xlu0 %4531
    %4533 = vrot.lane.b32.xlu0 %v4518, 109
    %v4534 = vpop.permute.xlu0 %4533
    %4535 = vrot.lane.b32.xlu0 %v4519, 109
    %v4536 = vpop.permute.xlu0 %4535
    %4537 = vrot.lane.b32.xlu0 %v4520, 109
    %v4538 = vpop.permute.xlu0 %4537
    %v4539 = vsel %vm830, %v4528, %v4530
    %v4540 = vsel %vm830, %v4530, %v4532
    %v4541 = vsel %vm830, %v4534, %v4536
    %v4542 = vsel %vm830, %v4536, %v4538
    %4549 = vst [vmem:[#allocation2 + $0x390] sm:$0xff] %v4539
    %4550 = vst [vmem:[#allocation2 + $0x398] sm:$0xff] %v4540
    %4551 = vst.msk [vmem:[#allocation2 + $0x3a0] sm:$0xff] %vm63, %v4532
    %4552 = vst [vmem:[#allocation2 + $0x3a8] sm:$0xff] %v4541
    %4553 = vst [vmem:[#allocation2 + $0x3b0] sm:$0xff] %v4542
    %4554 = vst.msk [vmem:[#allocation2 + $0x3b8] sm:$0xff] %vm63, %v4538
    %v4555 = vld [vmem:[%s3782] sm:$0xff]
    %v4556 = vld [vmem:[%s3782 + $0x8] sm:$0xff]
    %v4557 = vld [vmem:[%s3782 + $0x10] sm:$0xff]
    %v4558 = vld [vmem:[%s3782 + $0x18] sm:$0xff]
    %v4559 = vld [vmem:[%s3782 + $0x20] sm:$0xff]
    %v4560 = vld [vmem:[%s3782 + $0x28] sm:$0xff]
    %4567 = vrot.lane.b32.xlu0 %v4555, 108
    %v4568 = vpop.permute.xlu0 %4567
    %4569 = vrot.lane.b32.xlu0 %v4556, 108
    %v4570 = vpop.permute.xlu0 %4569
    %4571 = vrot.lane.b32.xlu0 %v4557, 108
    %v4572 = vpop.permute.xlu0 %4571
    %4573 = vrot.lane.b32.xlu0 %v4558, 108
    %v4574 = vpop.permute.xlu0 %4573
    %4575 = vrot.lane.b32.xlu0 %v4559, 108
    %v4576 = vpop.permute.xlu0 %4575
    %4577 = vrot.lane.b32.xlu0 %v4560, 108
    %v4578 = vpop.permute.xlu0 %4577
    %v4579 = vsel %vm871, %v4568, %v4570
    %v4580 = vsel %vm871, %v4570, %v4572
    %v4581 = vsel %vm871, %v4574, %v4576
    %v4582 = vsel %vm871, %v4576, %v4578
    %4589 = vst [vmem:[#allocation2 + $0x3c0] sm:$0xff] %v4579
    %4590 = vst [vmem:[#allocation2 + $0x3c8] sm:$0xff] %v4580
    %4591 = vst.msk [vmem:[#allocation2 + $0x3d0] sm:$0xff] %vm63, %v4572
    %4592 = vst [vmem:[#allocation2 + $0x3d8] sm:$0xff] %v4581
    %4593 = vst [vmem:[#allocation2 + $0x3e0] sm:$0xff] %v4582
    %4594 = vst.msk [vmem:[#allocation2 + $0x3e8] sm:$0xff] %vm63, %v4578
    %v4595 = vld [vmem:[%s3782] sm:$0xff]
    %v4596 = vld [vmem:[%s3782 + $0x8] sm:$0xff]
    %v4597 = vld [vmem:[%s3782 + $0x10] sm:$0xff]
    %v4598 = vld [vmem:[%s3782 + $0x18] sm:$0xff]
    %v4599 = vld [vmem:[%s3782 + $0x20] sm:$0xff]
    %v4600 = vld [vmem:[%s3782 + $0x28] sm:$0xff]
    %4607 = vrot.lane.b32.xlu0 %v4595, 107
    %v4608 = vpop.permute.xlu0 %4607
    %4609 = vrot.lane.b32.xlu0 %v4596, 107
    %v4610 = vpop.permute.xlu0 %4609
    %4611 = vrot.lane.b32.xlu0 %v4597, 107
    %v4612 = vpop.permute.xlu0 %4611
    %4613 = vrot.lane.b32.xlu0 %v4598, 107
    %v4614 = vpop.permute.xlu0 %4613
    %4615 = vrot.lane.b32.xlu0 %v4599, 107
    %v4616 = vpop.permute.xlu0 %4615
    %4617 = vrot.lane.b32.xlu0 %v4600, 107
    %v4618 = vpop.permute.xlu0 %4617
    %v4619 = vsel %vm912, %v4608, %v4610
    %v4620 = vsel %vm912, %v4610, %v4612
    %v4621 = vsel %vm912, %v4614, %v4616
    %v4622 = vsel %vm912, %v4616, %v4618
    %4629 = vst [vmem:[#allocation2 + $0x3f0] sm:$0xff] %v4619
    %4630 = vst [vmem:[#allocation2 + $0x3f8] sm:$0xff] %v4620
    %4631 = vst.msk [vmem:[#allocation2 + $0x400] sm:$0xff] %vm63, %v4612
    %4632 = vst [vmem:[#allocation2 + $0x408] sm:$0xff] %v4621
    %4633 = vst [vmem:[#allocation2 + $0x410] sm:$0xff] %v4622
    %4634 = vst.msk [vmem:[#allocation2 + $0x418] sm:$0xff] %vm63, %v4618
    %v4635 = vld [vmem:[%s3782] sm:$0xff]
    %v4636 = vld [vmem:[%s3782 + $0x8] sm:$0xff]
    %v4637 = vld [vmem:[%s3782 + $0x10] sm:$0xff]
    %v4638 = vld [vmem:[%s3782 + $0x18] sm:$0xff]
    %v4639 = vld [vmem:[%s3782 + $0x20] sm:$0xff]
    %v4640 = vld [vmem:[%s3782 + $0x28] sm:$0xff]
    %4647 = vrot.lane.b32.xlu0 %v4635, 106
    %v4648 = vpop.permute.xlu0 %4647
    %4649 = vrot.lane.b32.xlu0 %v4636, 106
    %v4650 = vpop.permute.xlu0 %4649
    %4651 = vrot.lane.b32.xlu0 %v4637, 106
    %v4652 = vpop.permute.xlu0 %4651
    %4653 = vrot.lane.b32.xlu0 %v4638, 106
    %v4654 = vpop.permute.xlu0 %4653
    %4655 = vrot.lane.b32.xlu0 %v4639, 106
    %v4656 = vpop.permute.xlu0 %4655
    %4657 = vrot.lane.b32.xlu0 %v4640, 106
    %v4658 = vpop.permute.xlu0 %4657
    %v4659 = vsel %vm953, %v4648, %v4650
    %v4660 = vsel %vm953, %v4650, %v4652
    %v4661 = vsel %vm953, %v4654, %v4656
    %v4662 = vsel %vm953, %v4656, %v4658
    %4669 = vst [vmem:[#allocation2 + $0x420] sm:$0xff] %v4659
    %4670 = vst [vmem:[#allocation2 + $0x428] sm:$0xff] %v4660
    %4671 = vst.msk [vmem:[#allocation2 + $0x430] sm:$0xff] %vm63, %v4652
    %4672 = vst [vmem:[#allocation2 + $0x438] sm:$0xff] %v4661
    %4673 = vst [vmem:[#allocation2 + $0x440] sm:$0xff] %v4662
    %4674 = vst.msk [vmem:[#allocation2 + $0x448] sm:$0xff] %vm63, %v4658
    %v4675 = vld [vmem:[%s3782] sm:$0xff]
    %v4676 = vld [vmem:[%s3782 + $0x8] sm:$0xff]
    %v4677 = vld [vmem:[%s3782 + $0x10] sm:$0xff]
    %v4678 = vld [vmem:[%s3782 + $0x18] sm:$0xff]
    %v4679 = vld [vmem:[%s3782 + $0x20] sm:$0xff]
    %v4680 = vld [vmem:[%s3782 + $0x28] sm:$0xff]
    %4687 = vrot.lane.b32.xlu0 %v4675, 105
    %v4688 = vpop.permute.xlu0 %4687
    %4689 = vrot.lane.b32.xlu0 %v4676, 105
    %v4690 = vpop.permute.xlu0 %4689
    %4691 = vrot.lane.b32.xlu0 %v4677, 105
    %v4692 = vpop.permute.xlu0 %4691
    %4693 = vrot.lane.b32.xlu0 %v4678, 105
    %v4694 = vpop.permute.xlu0 %4693
    %4695 = vrot.lane.b32.xlu0 %v4679, 105
    %v4696 = vpop.permute.xlu0 %4695
    %4697 = vrot.lane.b32.xlu0 %v4680, 105
    %v4698 = vpop.permute.xlu0 %4697
    %v4699 = vsel %vm994, %v4688, %v4690
    %v4700 = vsel %vm994, %v4690, %v4692
    %v4701 = vsel %vm994, %v4694, %v4696
    %v4702 = vsel %vm994, %v4696, %v4698
    %4709 = vst [vmem:[#allocation2 + $0x450] sm:$0xff] %v4699
    %4710 = vst [vmem:[#allocation2 + $0x458] sm:$0xff] %v4700
    %4711 = vst.msk [vmem:[#allocation2 + $0x460] sm:$0xff] %vm63, %v4692
    %4712 = vst [vmem:[#allocation2 + $0x468] sm:$0xff] %v4701
    %4713 = vst [vmem:[#allocation2 + $0x470] sm:$0xff] %v4702
    %4714 = vst.msk [vmem:[#allocation2 + $0x478] sm:$0xff] %vm63, %v4698
    %v4715 = vld [vmem:[%s3782] sm:$0xff]
    %v4716 = vld [vmem:[%s3782 + $0x8] sm:$0xff]
    %v4717 = vld [vmem:[%s3782 + $0x10] sm:$0xff]
    %v4718 = vld [vmem:[%s3782 + $0x18] sm:$0xff]
    %v4719 = vld [vmem:[%s3782 + $0x20] sm:$0xff]
    %v4720 = vld [vmem:[%s3782 + $0x28] sm:$0xff]
    %4727 = vrot.lane.b32.xlu0 %v4715, 104
    %v4728 = vpop.permute.xlu0 %4727
    %4729 = vrot.lane.b32.xlu0 %v4716, 104
    %v4730 = vpop.permute.xlu0 %4729
    %4731 = vrot.lane.b32.xlu0 %v4717, 104
    %v4732 = vpop.permute.xlu0 %4731
    %4733 = vrot.lane.b32.xlu0 %v4718, 104
    %v4734 = vpop.permute.xlu0 %4733
    %4735 = vrot.lane.b32.xlu0 %v4719, 104
    %v4736 = vpop.permute.xlu0 %4735
    %4737 = vrot.lane.b32.xlu0 %v4720, 104
    %v4738 = vpop.permute.xlu0 %4737
    %v4739 = vsel %vm1035, %v4728, %v4730
    %v4740 = vsel %vm1035, %v4730, %v4732
    %v4741 = vsel %vm1035, %v4734, %v4736
    %v4742 = vsel %vm1035, %v4736, %v4738
    %4749 = vst [vmem:[#allocation2 + $0x480] sm:$0xff] %v4739
    %4750 = vst [vmem:[#allocation2 + $0x488] sm:$0xff] %v4740
    %4751 = vst.msk [vmem:[#allocation2 + $0x490] sm:$0xff] %vm63, %v4732
    %4752 = vst [vmem:[#allocation2 + $0x498] sm:$0xff] %v4741
    %4753 = vst [vmem:[#allocation2 + $0x4a0] sm:$0xff] %v4742
    %4754 = vst.msk [vmem:[#allocation2 + $0x4a8] sm:$0xff] %vm63, %v4738
    %v4755 = vld [vmem:[%s3782] sm:$0xff]
    %v4756 = vld [vmem:[%s3782 + $0x8] sm:$0xff]
    %v4757 = vld [vmem:[%s3782 + $0x10] sm:$0xff]
    %v4758 = vld [vmem:[%s3782 + $0x18] sm:$0xff]
    %v4759 = vld [vmem:[%s3782 + $0x20] sm:$0xff]
    %v4760 = vld [vmem:[%s3782 + $0x28] sm:$0xff]
    %4767 = vrot.lane.b32.xlu0 %v4755, 103
    %v4768 = vpop.permute.xlu0 %4767
    %4769 = vrot.lane.b32.xlu0 %v4756, 103
    %v4770 = vpop.permute.xlu0 %4769
    %4771 = vrot.lane.b32.xlu0 %v4757, 103
    %v4772 = vpop.permute.xlu0 %4771
    %4773 = vrot.lane.b32.xlu0 %v4758, 103
    %v4774 = vpop.permute.xlu0 %4773
    %4775 = vrot.lane.b32.xlu0 %v4759, 103
    %v4776 = vpop.permute.xlu0 %4775
    %4777 = vrot.lane.b32.xlu0 %v4760, 103
    %v4778 = vpop.permute.xlu0 %4777
    %v4779 = vsel %vm1076, %v4768, %v4770
    %v4780 = vsel %vm1076, %v4770, %v4772
    %v4781 = vsel %vm1076, %v4774, %v4776
    %v4782 = vsel %vm1076, %v4776, %v4778
    %4789 = vst [vmem:[#allocation2 + $0x4b0] sm:$0xff] %v4779
    %4790 = vst [vmem:[#allocation2 + $0x4b8] sm:$0xff] %v4780
    %4791 = vst.msk [vmem:[#allocation2 + $0x4c0] sm:$0xff] %vm63, %v4772
    %4792 = vst [vmem:[#allocation2 + $0x4c8] sm:$0xff] %v4781
    %4793 = vst [vmem:[#allocation2 + $0x4d0] sm:$0xff] %v4782
    %4794 = vst.msk [vmem:[#allocation2 + $0x4d8] sm:$0xff] %vm63, %v4778
    %v4795 = vld [vmem:[%s3782] sm:$0xff]
    %v4796 = vld [vmem:[%s3782 + $0x8] sm:$0xff]
    %v4797 = vld [vmem:[%s3782 + $0x10] sm:$0xff]
    %v4798 = vld [vmem:[%s3782 + $0x18] sm:$0xff]
    %v4799 = vld [vmem:[%s3782 + $0x20] sm:$0xff]
    %v4800 = vld [vmem:[%s3782 + $0x28] sm:$0xff]
    %4807 = vrot.lane.b32.xlu0 %v4795, 102
    %v4808 = vpop.permute.xlu0 %4807
    %4809 = vrot.lane.b32.xlu0 %v4796, 102
    %v4810 = vpop.permute.xlu0 %4809
    %4811 = vrot.lane.b32.xlu0 %v4797, 102
    %v4812 = vpop.permute.xlu0 %4811
    %4813 = vrot.lane.b32.xlu0 %v4798, 102
    %v4814 = vpop.permute.xlu0 %4813
    %4815 = vrot.lane.b32.xlu0 %v4799, 102
    %v4816 = vpop.permute.xlu0 %4815
    %4817 = vrot.lane.b32.xlu0 %v4800, 102
    %v4818 = vpop.permute.xlu0 %4817
    %v4819 = vsel %vm1117, %v4808, %v4810
    %v4820 = vsel %vm1117, %v4810, %v4812
    %v4821 = vsel %vm1117, %v4814, %v4816
    %v4822 = vsel %vm1117, %v4816, %v4818
    %4829 = vst [vmem:[#allocation2 + $0x4e0] sm:$0xff] %v4819
    %4830 = vst [vmem:[#allocation2 + $0x4e8] sm:$0xff] %v4820
    %4831 = vst.msk [vmem:[#allocation2 + $0x4f0] sm:$0xff] %vm63, %v4812
    %4832 = vst [vmem:[#allocation2 + $0x4f8] sm:$0xff] %v4821
    %4833 = vst [vmem:[#allocation2 + $0x500] sm:$0xff] %v4822
    %4834 = vst.msk [vmem:[#allocation2 + $0x508] sm:$0xff] %vm63, %v4818
    %v4835 = vld [vmem:[%s3782] sm:$0xff]
    %v4836 = vld [vmem:[%s3782 + $0x8] sm:$0xff]
    %v4837 = vld [vmem:[%s3782 + $0x10] sm:$0xff]
    %v4838 = vld [vmem:[%s3782 + $0x18] sm:$0xff]
    %v4839 = vld [vmem:[%s3782 + $0x20] sm:$0xff]
    %v4840 = vld [vmem:[%s3782 + $0x28] sm:$0xff]
    %4847 = vrot.lane.b32.xlu0 %v4835, 101
    %v4848 = vpop.permute.xlu0 %4847
    %4849 = vrot.lane.b32.xlu0 %v4836, 101
    %v4850 = vpop.permute.xlu0 %4849
    %4851 = vrot.lane.b32.xlu0 %v4837, 101
    %v4852 = vpop.permute.xlu0 %4851
    %4853 = vrot.lane.b32.xlu0 %v4838, 101
    %v4854 = vpop.permute.xlu0 %4853
    %4855 = vrot.lane.b32.xlu0 %v4839, 101
    %v4856 = vpop.permute.xlu0 %4855
    %4857 = vrot.lane.b32.xlu0 %v4840, 101
    %v4858 = vpop.permute.xlu0 %4857
    %v4859 = vsel %vm1158, %v4848, %v4850
    %v4860 = vsel %vm1158, %v4850, %v4852
    %v4861 = vsel %vm1158, %v4854, %v4856
    %v4862 = vsel %vm1158, %v4856, %v4858
    %4869 = vst [vmem:[#allocation2 + $0x510] sm:$0xff] %v4859
    %4870 = vst [vmem:[#allocation2 + $0x518] sm:$0xff] %v4860
    %4871 = vst.msk [vmem:[#allocation2 + $0x520] sm:$0xff] %vm63, %v4852
    %4872 = vst [vmem:[#allocation2 + $0x528] sm:$0xff] %v4861
    %4873 = vst [vmem:[#allocation2 + $0x530] sm:$0xff] %v4862
    %4874 = vst.msk [vmem:[#allocation2 + $0x538] sm:$0xff] %vm63, %v4858
    %v4875 = vld [vmem:[%s3782] sm:$0xff]
    %v4876 = vld [vmem:[%s3782 + $0x8] sm:$0xff]
    %v4877 = vld [vmem:[%s3782 + $0x10] sm:$0xff]
    %v4878 = vld [vmem:[%s3782 + $0x18] sm:$0xff]
    %v4879 = vld [vmem:[%s3782 + $0x20] sm:$0xff]
    %v4880 = vld [vmem:[%s3782 + $0x28] sm:$0xff]
    %4887 = vrot.lane.b32.xlu0 %v4875, 100
    %v4888 = vpop.permute.xlu0 %4887
    %4889 = vrot.lane.b32.xlu0 %v4876, 100
    %v4890 = vpop.permute.xlu0 %4889
    %4891 = vrot.lane.b32.xlu0 %v4877, 100
    %v4892 = vpop.permute.xlu0 %4891
    %4893 = vrot.lane.b32.xlu0 %v4878, 100
    %v4894 = vpop.permute.xlu0 %4893
    %4895 = vrot.lane.b32.xlu0 %v4879, 100
    %v4896 = vpop.permute.xlu0 %4895
    %4897 = vrot.lane.b32.xlu0 %v4880, 100
    %v4898 = vpop.permute.xlu0 %4897
    %v4899 = vsel %vm1199, %v4888, %v4890
    %v4900 = vsel %vm1199, %v4890, %v4892
    %v4901 = vsel %vm1199, %v4894, %v4896
    %v4902 = vsel %vm1199, %v4896, %v4898
    %4909 = vst [vmem:[#allocation2 + $0x540] sm:$0xff] %v4899
    %4910 = vst [vmem:[#allocation2 + $0x548] sm:$0xff] %v4900
    %4911 = vst.msk [vmem:[#allocation2 + $0x550] sm:$0xff] %vm63, %v4892
    %4912 = vst [vmem:[#allocation2 + $0x558] sm:$0xff] %v4901
    %4913 = vst [vmem:[#allocation2 + $0x560] sm:$0xff] %v4902
    %4914 = vst.msk [vmem:[#allocation2 + $0x568] sm:$0xff] %vm63, %v4898
    %v4915 = vld [vmem:[%s3782] sm:$0xff]
    %v4916 = vld [vmem:[%s3782 + $0x8] sm:$0xff]
    %v4917 = vld [vmem:[%s3782 + $0x10] sm:$0xff]
    %v4918 = vld [vmem:[%s3782 + $0x18] sm:$0xff]
    %v4919 = vld [vmem:[%s3782 + $0x20] sm:$0xff]
    %v4920 = vld [vmem:[%s3782 + $0x28] sm:$0xff]
    %4927 = vrot.lane.b32.xlu0 %v4915, 99
    %v4928 = vpop.permute.xlu0 %4927
    %4929 = vrot.lane.b32.xlu0 %v4916, 99
    %v4930 = vpop.permute.xlu0 %4929
    %4931 = vrot.lane.b32.xlu0 %v4917, 99
    %v4932 = vpop.permute.xlu0 %4931
    %4933 = vrot.lane.b32.xlu0 %v4918, 99
    %v4934 = vpop.permute.xlu0 %4933
    %4935 = vrot.lane.b32.xlu0 %v4919, 99
    %v4936 = vpop.permute.xlu0 %4935
    %4937 = vrot.lane.b32.xlu0 %v4920, 99
    %v4938 = vpop.permute.xlu0 %4937
    %v4939 = vsel %vm1240, %v4928, %v4930
    %v4940 = vsel %vm1240, %v4930, %v4932
    %v4941 = vsel %vm1240, %v4934, %v4936
    %v4942 = vsel %vm1240, %v4936, %v4938
    %4949 = vst [vmem:[#allocation2 + $0x570] sm:$0xff] %v4939
    %4950 = vst [vmem:[#allocation2 + $0x578] sm:$0xff] %v4940
    %4951 = vst.msk [vmem:[#allocation2 + $0x580] sm:$0xff] %vm63, %v4932
    %4952 = vst [vmem:[#allocation2 + $0x588] sm:$0xff] %v4941
    %4953 = vst [vmem:[#allocation2 + $0x590] sm:$0xff] %v4942
    %4954 = vst.msk [vmem:[#allocation2 + $0x598] sm:$0xff] %vm63, %v4938
    %v4955 = vld [vmem:[%s3782] sm:$0xff]
    %v4956 = vld [vmem:[%s3782 + $0x8] sm:$0xff]
    %v4957 = vld [vmem:[%s3782 + $0x10] sm:$0xff]
    %v4958 = vld [vmem:[%s3782 + $0x18] sm:$0xff]
    %v4959 = vld [vmem:[%s3782 + $0x20] sm:$0xff]
    %v4960 = vld [vmem:[%s3782 + $0x28] sm:$0xff]
    %4967 = vrot.lane.b32.xlu0 %v4955, 98
    %v4968 = vpop.permute.xlu0 %4967
    %4969 = vrot.lane.b32.xlu0 %v4956, 98
    %v4970 = vpop.permute.xlu0 %4969
    %4971 = vrot.lane.b32.xlu0 %v4957, 98
    %v4972 = vpop.permute.xlu0 %4971
    %4973 = vrot.lane.b32.xlu0 %v4958, 98
    %v4974 = vpop.permute.xlu0 %4973
    %4975 = vrot.lane.b32.xlu0 %v4959, 98
    %v4976 = vpop.permute.xlu0 %4975
    %4977 = vrot.lane.b32.xlu0 %v4960, 98
    %v4978 = vpop.permute.xlu0 %4977
    %v4979 = vsel %vm1281, %v4968, %v4970
    %v4980 = vsel %vm1281, %v4970, %v4972
    %v4981 = vsel %vm1281, %v4974, %v4976
    %v4982 = vsel %vm1281, %v4976, %v4978
    %4989 = vst [vmem:[#allocation2 + $0x5a0] sm:$0xff] %v4979
    %4990 = vst [vmem:[#allocation2 + $0x5a8] sm:$0xff] %v4980
    %4991 = vst.msk [vmem:[#allocation2 + $0x5b0] sm:$0xff] %vm63, %v4972
    %4992 = vst [vmem:[#allocation2 + $0x5b8] sm:$0xff] %v4981
    %4993 = vst [vmem:[#allocation2 + $0x5c0] sm:$0xff] %v4982
    %4994 = vst.msk [vmem:[#allocation2 + $0x5c8] sm:$0xff] %vm63, %v4978
    %v4995 = vld [vmem:[%s3782] sm:$0xff]
    %v4996 = vld [vmem:[%s3782 + $0x8] sm:$0xff]
    %v4997 = vld [vmem:[%s3782 + $0x10] sm:$0xff]
    %v4998 = vld [vmem:[%s3782 + $0x18] sm:$0xff]
    %v4999 = vld [vmem:[%s3782 + $0x20] sm:$0xff]
    %v5000 = vld [vmem:[%s3782 + $0x28] sm:$0xff]
    %5007 = vrot.lane.b32.xlu0 %v4995, 97
    %v5008 = vpop.permute.xlu0 %5007
    %5009 = vrot.lane.b32.xlu0 %v4996, 97
    %v5010 = vpop.permute.xlu0 %5009
    %5011 = vrot.lane.b32.xlu0 %v4997, 97
    %v5012 = vpop.permute.xlu0 %5011
    %5013 = vrot.lane.b32.xlu0 %v4998, 97
    %v5014 = vpop.permute.xlu0 %5013
    %5015 = vrot.lane.b32.xlu0 %v4999, 97
    %v5016 = vpop.permute.xlu0 %5015
    %5017 = vrot.lane.b32.xlu0 %v5000, 97
    %v5018 = vpop.permute.xlu0 %5017
    %v5019 = vsel %vm1322, %v5008, %v5010
    %v5020 = vsel %vm1322, %v5010, %v5012
    %v5021 = vsel %vm1322, %v5014, %v5016
    %v5022 = vsel %vm1322, %v5016, %v5018
    %5029 = vst [vmem:[#allocation2 + $0x5d0] sm:$0xff] %v5019
    %5030 = vst [vmem:[#allocation2 + $0x5d8] sm:$0xff] %v5020
    %5031 = vst.msk [vmem:[#allocation2 + $0x5e0] sm:$0xff] %vm63, %v5012
    %5032 = vst [vmem:[#allocation2 + $0x5e8] sm:$0xff] %v5021
    %5033 = vst [vmem:[#allocation2 + $0x5f0] sm:$0xff] %v5022
    %5034 = vst.msk [vmem:[#allocation2 + $0x5f8] sm:$0xff] %vm63, %v5018
    %v5035 = vld [vmem:[%s3782] sm:$0xff]
    %v5036 = vld [vmem:[%s3782 + $0x8] sm:$0xff]
    %v5037 = vld [vmem:[%s3782 + $0x10] sm:$0xff]
    %v5038 = vld [vmem:[%s3782 + $0x18] sm:$0xff]
    %v5039 = vld [vmem:[%s3782 + $0x20] sm:$0xff]
    %v5040 = vld [vmem:[%s3782 + $0x28] sm:$0xff]
    %5047 = vrot.lane.b32.xlu0 %v5035, 96
    %v5048 = vpop.permute.xlu0 %5047
    %5049 = vrot.lane.b32.xlu0 %v5036, 96
    %v5050 = vpop.permute.xlu0 %5049
    %5051 = vrot.lane.b32.xlu0 %v5037, 96
    %v5052 = vpop.permute.xlu0 %5051
    %5053 = vrot.lane.b32.xlu0 %v5038, 96
    %v5054 = vpop.permute.xlu0 %5053
    %5055 = vrot.lane.b32.xlu0 %v5039, 96
    %v5056 = vpop.permute.xlu0 %5055
    %5057 = vrot.lane.b32.xlu0 %v5040, 96
    %v5058 = vpop.permute.xlu0 %5057
    %v5059 = vsel %vm1363, %v5048, %v5050
    %v5060 = vsel %vm1363, %v5050, %v5052
    %v5061 = vsel %vm1363, %v5054, %v5056
    %v5062 = vsel %vm1363, %v5056, %v5058
    %5069 = vst [vmem:[#allocation2 + $0x600] sm:$0xff] %v5059
    %5070 = vst [vmem:[#allocation2 + $0x608] sm:$0xff] %v5060
    %5071 = vst.msk [vmem:[#allocation2 + $0x610] sm:$0xff] %vm63, %v5052
    %5072 = vst [vmem:[#allocation2 + $0x618] sm:$0xff] %v5061
    %5073 = vst [vmem:[#allocation2 + $0x620] sm:$0xff] %v5062
    %5074 = vst.msk [vmem:[#allocation2 + $0x628] sm:$0xff] %vm63, %v5058
    %v5075 = vld [vmem:[%s3782] sm:$0xff]
    %v5076 = vld [vmem:[%s3782 + $0x8] sm:$0xff]
    %v5077 = vld [vmem:[%s3782 + $0x10] sm:$0xff]
    %v5078 = vld [vmem:[%s3782 + $0x18] sm:$0xff]
    %v5079 = vld [vmem:[%s3782 + $0x20] sm:$0xff]
    %v5080 = vld [vmem:[%s3782 + $0x28] sm:$0xff]
    %5087 = vrot.lane.b32.xlu0 %v5075, 95
    %v5088 = vpop.permute.xlu0 %5087
    %5089 = vrot.lane.b32.xlu0 %v5076, 95
    %v5090 = vpop.permute.xlu0 %5089
    %5091 = vrot.lane.b32.xlu0 %v5077, 95
    %v5092 = vpop.permute.xlu0 %5091
    %5093 = vrot.lane.b32.xlu0 %v5078, 95
    %v5094 = vpop.permute.xlu0 %5093
    %5095 = vrot.lane.b32.xlu0 %v5079, 95
    %v5096 = vpop.permute.xlu0 %5095
    %5097 = vrot.lane.b32.xlu0 %v5080, 95
    %v5098 = vpop.permute.xlu0 %5097
    %v5099 = vsel %vm1404, %v5088, %v5090
    %v5100 = vsel %vm1404, %v5090, %v5092
    %v5101 = vsel %vm1404, %v5094, %v5096
    %v5102 = vsel %vm1404, %v5096, %v5098
    %5109 = vst [vmem:[#allocation2 + $0x630] sm:$0xff] %v5099
    %5110 = vst [vmem:[#allocation2 + $0x638] sm:$0xff] %v5100
    %5111 = vst.msk [vmem:[#allocation2 + $0x640] sm:$0xff] %vm63, %v5092
    %5112 = vst [vmem:[#allocation2 + $0x648] sm:$0xff] %v5101
    %5113 = vst [vmem:[#allocation2 + $0x650] sm:$0xff] %v5102
    %5114 = vst.msk [vmem:[#allocation2 + $0x658] sm:$0xff] %vm63, %v5098
    %v5115 = vld [vmem:[%s3782] sm:$0xff]
    %v5116 = vld [vmem:[%s3782 + $0x8] sm:$0xff]
    %v5117 = vld [vmem:[%s3782 + $0x10] sm:$0xff]
    %v5118 = vld [vmem:[%s3782 + $0x18] sm:$0xff]
    %v5119 = vld [vmem:[%s3782 + $0x20] sm:$0xff]
    %v5120 = vld [vmem:[%s3782 + $0x28] sm:$0xff]
    %5127 = vrot.lane.b32.xlu0 %v5115, 94
    %v5128 = vpop.permute.xlu0 %5127
    %5129 = vrot.lane.b32.xlu0 %v5116, 94
    %v5130 = vpop.permute.xlu0 %5129
    %5131 = vrot.lane.b32.xlu0 %v5117, 94
    %v5132 = vpop.permute.xlu0 %5131
    %5133 = vrot.lane.b32.xlu0 %v5118, 94
    %v5134 = vpop.permute.xlu0 %5133
    %5135 = vrot.lane.b32.xlu0 %v5119, 94
    %v5136 = vpop.permute.xlu0 %5135
    %5137 = vrot.lane.b32.xlu0 %v5120, 94
    %v5138 = vpop.permute.xlu0 %5137
    %v5139 = vsel %vm1445, %v5128, %v5130
    %v5140 = vsel %vm1445, %v5130, %v5132
    %v5141 = vsel %vm1445, %v5134, %v5136
    %v5142 = vsel %vm1445, %v5136, %v5138
    %5149 = vst [vmem:[#allocation2 + $0x660] sm:$0xff] %v5139
    %5150 = vst [vmem:[#allocation2 + $0x668] sm:$0xff] %v5140
    %5151 = vst.msk [vmem:[#allocation2 + $0x670] sm:$0xff] %vm63, %v5132
    %5152 = vst [vmem:[#allocation2 + $0x678] sm:$0xff] %v5141
    %5153 = vst [vmem:[#allocation2 + $0x680] sm:$0xff] %v5142
    %5154 = vst.msk [vmem:[#allocation2 + $0x688] sm:$0xff] %vm63, %v5138
    %v5155 = vld [vmem:[%s3782] sm:$0xff]
    %v5156 = vld [vmem:[%s3782 + $0x8] sm:$0xff]
    %v5157 = vld [vmem:[%s3782 + $0x10] sm:$0xff]
    %v5158 = vld [vmem:[%s3782 + $0x18] sm:$0xff]
    %v5159 = vld [vmem:[%s3782 + $0x20] sm:$0xff]
    %v5160 = vld [vmem:[%s3782 + $0x28] sm:$0xff]
    %5167 = vrot.lane.b32.xlu0 %v5155, 93
    %v5168 = vpop.permute.xlu0 %5167
    %5169 = vrot.lane.b32.xlu0 %v5156, 93
    %v5170 = vpop.permute.xlu0 %5169
    %5171 = vrot.lane.b32.xlu0 %v5157, 93
    %v5172 = vpop.permute.xlu0 %5171
    %5173 = vrot.lane.b32.xlu0 %v5158, 93
    %v5174 = vpop.permute.xlu0 %5173
    %5175 = vrot.lane.b32.xlu0 %v5159, 93
    %v5176 = vpop.permute.xlu0 %5175
    %5177 = vrot.lane.b32.xlu0 %v5160, 93
    %v5178 = vpop.permute.xlu0 %5177
    %v5179 = vsel %vm1486, %v5168, %v5170
    %v5180 = vsel %vm1486, %v5170, %v5172
    %v5181 = vsel %vm1486, %v5174, %v5176
    %v5182 = vsel %vm1486, %v5176, %v5178
    %5189 = vst [vmem:[#allocation2 + $0x690] sm:$0xff] %v5179
    %5190 = vst [vmem:[#allocation2 + $0x698] sm:$0xff] %v5180
    %5191 = vst.msk [vmem:[#allocation2 + $0x6a0] sm:$0xff] %vm63, %v5172
    %5192 = vst [vmem:[#allocation2 + $0x6a8] sm:$0xff] %v5181
    %5193 = vst [vmem:[#allocation2 + $0x6b0] sm:$0xff] %v5182
    %5194 = vst.msk [vmem:[#allocation2 + $0x6b8] sm:$0xff] %vm63, %v5178
    %v5195 = vld [vmem:[%s3782] sm:$0xff]
    %v5196 = vld [vmem:[%s3782 + $0x8] sm:$0xff]
    %v5197 = vld [vmem:[%s3782 + $0x10] sm:$0xff]
    %v5198 = vld [vmem:[%s3782 + $0x18] sm:$0xff]
    %v5199 = vld [vmem:[%s3782 + $0x20] sm:$0xff]
    %v5200 = vld [vmem:[%s3782 + $0x28] sm:$0xff]
    %5207 = vrot.lane.b32.xlu0 %v5195, 92
    %v5208 = vpop.permute.xlu0 %5207
    %5209 = vrot.lane.b32.xlu0 %v5196, 92
    %v5210 = vpop.permute.xlu0 %5209
    %5211 = vrot.lane.b32.xlu0 %v5197, 92
    %v5212 = vpop.permute.xlu0 %5211
    %5213 = vrot.lane.b32.xlu0 %v5198, 92
    %v5214 = vpop.permute.xlu0 %5213
    %5215 = vrot.lane.b32.xlu0 %v5199, 92
    %v5216 = vpop.permute.xlu0 %5215
    %5217 = vrot.lane.b32.xlu0 %v5200, 92
    %v5218 = vpop.permute.xlu0 %5217
    %v5219 = vsel %vm1527, %v5208, %v5210
    %v5220 = vsel %vm1527, %v5210, %v5212
    %v5221 = vsel %vm1527, %v5214, %v5216
    %v5222 = vsel %vm1527, %v5216, %v5218
    %5229 = vst [vmem:[#allocation2 + $0x6c0] sm:$0xff] %v5219
    %5230 = vst [vmem:[#allocation2 + $0x6c8] sm:$0xff] %v5220
    %5231 = vst.msk [vmem:[#allocation2 + $0x6d0] sm:$0xff] %vm63, %v5212
    %5232 = vst [vmem:[#allocation2 + $0x6d8] sm:$0xff] %v5221
    %5233 = vst [vmem:[#allocation2 + $0x6e0] sm:$0xff] %v5222
    %5234 = vst.msk [vmem:[#allocation2 + $0x6e8] sm:$0xff] %vm63, %v5218
    %v5235 = vld [vmem:[%s3782] sm:$0xff]
    %v5236 = vld [vmem:[%s3782 + $0x8] sm:$0xff]
    %v5237 = vld [vmem:[%s3782 + $0x10] sm:$0xff]
    %v5238 = vld [vmem:[%s3782 + $0x18] sm:$0xff]
    %v5239 = vld [vmem:[%s3782 + $0x20] sm:$0xff]
    %v5240 = vld [vmem:[%s3782 + $0x28] sm:$0xff]
    %5247 = vrot.lane.b32.xlu0 %v5235, 91
    %v5248 = vpop.permute.xlu0 %5247
    %5249 = vrot.lane.b32.xlu0 %v5236, 91
    %v5250 = vpop.permute.xlu0 %5249
    %5251 = vrot.lane.b32.xlu0 %v5237, 91
    %v5252 = vpop.permute.xlu0 %5251
    %5253 = vrot.lane.b32.xlu0 %v5238, 91
    %v5254 = vpop.permute.xlu0 %5253
    %5255 = vrot.lane.b32.xlu0 %v5239, 91
    %v5256 = vpop.permute.xlu0 %5255
    %5257 = vrot.lane.b32.xlu0 %v5240, 91
    %v5258 = vpop.permute.xlu0 %5257
    %v5259 = vsel %vm1568, %v5248, %v5250
    %v5260 = vsel %vm1568, %v5250, %v5252
    %v5261 = vsel %vm1568, %v5254, %v5256
    %v5262 = vsel %vm1568, %v5256, %v5258
    %5269 = vst [vmem:[#allocation2 + $0x6f0] sm:$0xff] %v5259
    %5270 = vst [vmem:[#allocation2 + $0x6f8] sm:$0xff] %v5260
    %5271 = vst.msk [vmem:[#allocation2 + $0x700] sm:$0xff] %vm63, %v5252
    %5272 = vst [vmem:[#allocation2 + $0x708] sm:$0xff] %v5261
    %5273 = vst [vmem:[#allocation2 + $0x710] sm:$0xff] %v5262
    %5274 = vst.msk [vmem:[#allocation2 + $0x718] sm:$0xff] %vm63, %v5258
    %v5275 = vld [vmem:[%s3782] sm:$0xff]
    %v5276 = vld [vmem:[%s3782 + $0x8] sm:$0xff]
    %v5277 = vld [vmem:[%s3782 + $0x10] sm:$0xff]
    %v5278 = vld [vmem:[%s3782 + $0x18] sm:$0xff]
    %v5279 = vld [vmem:[%s3782 + $0x20] sm:$0xff]
    %v5280 = vld [vmem:[%s3782 + $0x28] sm:$0xff]
    %5287 = vrot.lane.b32.xlu0 %v5275, 90
    %v5288 = vpop.permute.xlu0 %5287
    %5289 = vrot.lane.b32.xlu0 %v5276, 90
    %v5290 = vpop.permute.xlu0 %5289
    %5291 = vrot.lane.b32.xlu0 %v5277, 90
    %v5292 = vpop.permute.xlu0 %5291
    %5293 = vrot.lane.b32.xlu0 %v5278, 90
    %v5294 = vpop.permute.xlu0 %5293
    %5295 = vrot.lane.b32.xlu0 %v5279, 90
    %v5296 = vpop.permute.xlu0 %5295
    %5297 = vrot.lane.b32.xlu0 %v5280, 90
    %v5298 = vpop.permute.xlu0 %5297
    %v5299 = vsel %vm1609, %v5288, %v5290
    %v5300 = vsel %vm1609, %v5290, %v5292
    %v5301 = vsel %vm1609, %v5294, %v5296
    %v5302 = vsel %vm1609, %v5296, %v5298
    %5309 = vst [vmem:[#allocation2 + $0x720] sm:$0xff] %v5299
    %5310 = vst [vmem:[#allocation2 + $0x728] sm:$0xff] %v5300
    %5311 = vst.msk [vmem:[#allocation2 + $0x730] sm:$0xff] %vm63, %v5292
    %5312 = vst [vmem:[#allocation2 + $0x738] sm:$0xff] %v5301
    %5313 = vst [vmem:[#allocation2 + $0x740] sm:$0xff] %v5302
    %5314 = vst.msk [vmem:[#allocation2 + $0x748] sm:$0xff] %vm63, %v5298
    %v5315 = vld [vmem:[%s3782] sm:$0xff]
    %v5316 = vld [vmem:[%s3782 + $0x8] sm:$0xff]
    %v5317 = vld [vmem:[%s3782 + $0x10] sm:$0xff]
    %v5318 = vld [vmem:[%s3782 + $0x18] sm:$0xff]
    %v5319 = vld [vmem:[%s3782 + $0x20] sm:$0xff]
    %v5320 = vld [vmem:[%s3782 + $0x28] sm:$0xff]
    %5327 = vrot.lane.b32.xlu0 %v5315, 89
    %v5328 = vpop.permute.xlu0 %5327
    %5329 = vrot.lane.b32.xlu0 %v5316, 89
    %v5330 = vpop.permute.xlu0 %5329
    %5331 = vrot.lane.b32.xlu0 %v5317, 89
    %v5332 = vpop.permute.xlu0 %5331
    %5333 = vrot.lane.b32.xlu0 %v5318, 89
    %v5334 = vpop.permute.xlu0 %5333
    %5335 = vrot.lane.b32.xlu0 %v5319, 89
    %v5336 = vpop.permute.xlu0 %5335
    %5337 = vrot.lane.b32.xlu0 %v5320, 89
    %v5338 = vpop.permute.xlu0 %5337
    %v5339 = vsel %vm1650, %v5328, %v5330
    %v5340 = vsel %vm1650, %v5330, %v5332
    %v5341 = vsel %vm1650, %v5334, %v5336
    %v5342 = vsel %vm1650, %v5336, %v5338
    %5349 = vst [vmem:[#allocation2 + $0x750] sm:$0xff] %v5339
    %5350 = vst [vmem:[#allocation2 + $0x758] sm:$0xff] %v5340
    %5351 = vst.msk [vmem:[#allocation2 + $0x760] sm:$0xff] %vm63, %v5332
    %5352 = vst [vmem:[#allocation2 + $0x768] sm:$0xff] %v5341
    %5353 = vst [vmem:[#allocation2 + $0x770] sm:$0xff] %v5342
    %5354 = vst.msk [vmem:[#allocation2 + $0x778] sm:$0xff] %vm63, %v5338
    %v5355 = vld [vmem:[%s3782] sm:$0xff]
    %v5356 = vld [vmem:[%s3782 + $0x8] sm:$0xff]
    %v5357 = vld [vmem:[%s3782 + $0x10] sm:$0xff]
    %v5358 = vld [vmem:[%s3782 + $0x18] sm:$0xff]
    %v5359 = vld [vmem:[%s3782 + $0x20] sm:$0xff]
    %v5360 = vld [vmem:[%s3782 + $0x28] sm:$0xff]
    %5367 = vrot.lane.b32.xlu0 %v5355, 88
    %v5368 = vpop.permute.xlu0 %5367
    %5369 = vrot.lane.b32.xlu0 %v5356, 88
    %v5370 = vpop.permute.xlu0 %5369
    %5371 = vrot.lane.b32.xlu0 %v5357, 88
    %v5372 = vpop.permute.xlu0 %5371
    %5373 = vrot.lane.b32.xlu0 %v5358, 88
    %v5374 = vpop.permute.xlu0 %5373
    %5375 = vrot.lane.b32.xlu0 %v5359, 88
    %v5376 = vpop.permute.xlu0 %5375
    %5377 = vrot.lane.b32.xlu0 %v5360, 88
    %v5378 = vpop.permute.xlu0 %5377
    %v5379 = vsel %vm1691, %v5368, %v5370
    %v5380 = vsel %vm1691, %v5370, %v5372
    %v5381 = vsel %vm1691, %v5374, %v5376
    %v5382 = vsel %vm1691, %v5376, %v5378
    %5389 = vst [vmem:[#allocation2 + $0x780] sm:$0xff] %v5379
    %5390 = vst [vmem:[#allocation2 + $0x788] sm:$0xff] %v5380
    %5391 = vst.msk [vmem:[#allocation2 + $0x790] sm:$0xff] %vm63, %v5372
    %5392 = vst [vmem:[#allocation2 + $0x798] sm:$0xff] %v5381
    %5393 = vst [vmem:[#allocation2 + $0x7a0] sm:$0xff] %v5382
    %5394 = vst.msk [vmem:[#allocation2 + $0x7a8] sm:$0xff] %vm63, %v5378
    %v5395 = vld [vmem:[%s3782] sm:$0xff]
    %v5396 = vld [vmem:[%s3782 + $0x8] sm:$0xff]
    %v5397 = vld [vmem:[%s3782 + $0x10] sm:$0xff]
    %v5398 = vld [vmem:[%s3782 + $0x18] sm:$0xff]
    %v5399 = vld [vmem:[%s3782 + $0x20] sm:$0xff]
    %v5400 = vld [vmem:[%s3782 + $0x28] sm:$0xff]
    %5407 = vrot.lane.b32.xlu0 %v5395, 87
    %v5408 = vpop.permute.xlu0 %5407
    %5409 = vrot.lane.b32.xlu0 %v5396, 87
    %v5410 = vpop.permute.xlu0 %5409
    %5411 = vrot.lane.b32.xlu0 %v5397, 87
    %v5412 = vpop.permute.xlu0 %5411
    %5413 = vrot.lane.b32.xlu0 %v5398, 87
    %v5414 = vpop.permute.xlu0 %5413
    %5415 = vrot.lane.b32.xlu0 %v5399, 87
    %v5416 = vpop.permute.xlu0 %5415
    %5417 = vrot.lane.b32.xlu0 %v5400, 87
    %v5418 = vpop.permute.xlu0 %5417
    %v5419 = vsel %vm1732, %v5408, %v5410
    %v5420 = vsel %vm1732, %v5410, %v5412
    %v5421 = vsel %vm1732, %v5414, %v5416
    %v5422 = vsel %vm1732, %v5416, %v5418
    %5429 = vst [vmem:[#allocation2 + $0x7b0] sm:$0xff] %v5419
    %5430 = vst [vmem:[#allocation2 + $0x7b8] sm:$0xff] %v5420
    %5431 = vst.msk [vmem:[#allocation2 + $0x7c0] sm:$0xff] %vm63, %v5412
    %5432 = vst [vmem:[#allocation2 + $0x7c8] sm:$0xff] %v5421
    %5433 = vst [vmem:[#allocation2 + $0x7d0] sm:$0xff] %v5422
    %5434 = vst.msk [vmem:[#allocation2 + $0x7d8] sm:$0xff] %vm63, %v5418
    %v5435 = vld [vmem:[%s3782] sm:$0xff]
    %v5436 = vld [vmem:[%s3782 + $0x8] sm:$0xff]
    %v5437 = vld [vmem:[%s3782 + $0x10] sm:$0xff]
    %v5438 = vld [vmem:[%s3782 + $0x18] sm:$0xff]
    %v5439 = vld [vmem:[%s3782 + $0x20] sm:$0xff]
    %v5440 = vld [vmem:[%s3782 + $0x28] sm:$0xff]
    %5447 = vrot.lane.b32.xlu0 %v5435, 86
    %v5448 = vpop.permute.xlu0 %5447
    %5449 = vrot.lane.b32.xlu0 %v5436, 86
    %v5450 = vpop.permute.xlu0 %5449
    %5451 = vrot.lane.b32.xlu0 %v5437, 86
    %v5452 = vpop.permute.xlu0 %5451
    %5453 = vrot.lane.b32.xlu0 %v5438, 86
    %v5454 = vpop.permute.xlu0 %5453
    %5455 = vrot.lane.b32.xlu0 %v5439, 86
    %v5456 = vpop.permute.xlu0 %5455
    %5457 = vrot.lane.b32.xlu0 %v5440, 86
    %v5458 = vpop.permute.xlu0 %5457
    %v5459 = vsel %vm1773, %v5448, %v5450
    %v5460 = vsel %vm1773, %v5450, %v5452
    %v5461 = vsel %vm1773, %v5454, %v5456
    %v5462 = vsel %vm1773, %v5456, %v5458
    %5469 = vst [vmem:[#allocation2 + $0x7e0] sm:$0xff] %v5459
    %5470 = vst [vmem:[#allocation2 + $0x7e8] sm:$0xff] %v5460
    %5471 = vst.msk [vmem:[#allocation2 + $0x7f0] sm:$0xff] %vm63, %v5452
    %5472 = vst [vmem:[#allocation2 + $0x7f8] sm:$0xff] %v5461
    %5473 = vst [vmem:[#allocation2 + $0x800] sm:$0xff] %v5462
    %5474 = vst.msk [vmem:[#allocation2 + $0x808] sm:$0xff] %vm63, %v5458
    %v5475 = vld [vmem:[%s3782] sm:$0xff]
    %v5476 = vld [vmem:[%s3782 + $0x8] sm:$0xff]
    %v5477 = vld [vmem:[%s3782 + $0x10] sm:$0xff]
    %v5478 = vld [vmem:[%s3782 + $0x18] sm:$0xff]
    %v5479 = vld [vmem:[%s3782 + $0x20] sm:$0xff]
    %v5480 = vld [vmem:[%s3782 + $0x28] sm:$0xff]
    %5487 = vrot.lane.b32.xlu0 %v5475, 85
    %v5488 = vpop.permute.xlu0 %5487
    %5489 = vrot.lane.b32.xlu0 %v5476, 85
    %v5490 = vpop.permute.xlu0 %5489
    %5491 = vrot.lane.b32.xlu0 %v5477, 85
    %v5492 = vpop.permute.xlu0 %5491
    %5493 = vrot.lane.b32.xlu0 %v5478, 85
    %v5494 = vpop.permute.xlu0 %5493
    %5495 = vrot.lane.b32.xlu0 %v5479, 85
    %v5496 = vpop.permute.xlu0 %5495
    %5497 = vrot.lane.b32.xlu0 %v5480, 85
    %v5498 = vpop.permute.xlu0 %5497
    %v5499 = vsel %vm1814, %v5488, %v5490
    %v5500 = vsel %vm1814, %v5490, %v5492
    %v5501 = vsel %vm1814, %v5494, %v5496
    %v5502 = vsel %vm1814, %v5496, %v5498
    %5509 = vst [vmem:[#allocation2 + $0x810] sm:$0xff] %v5499
    %5510 = vst [vmem:[#allocation2 + $0x818] sm:$0xff] %v5500
    %5511 = vst.msk [vmem:[#allocation2 + $0x820] sm:$0xff] %vm63, %v5492
    %5512 = vst [vmem:[#allocation2 + $0x828] sm:$0xff] %v5501
    %5513 = vst [vmem:[#allocation2 + $0x830] sm:$0xff] %v5502
    %5514 = vst.msk [vmem:[#allocation2 + $0x838] sm:$0xff] %vm63, %v5498
    %v5515 = vld [vmem:[%s3782] sm:$0xff]
    %v5516 = vld [vmem:[%s3782 + $0x8] sm:$0xff]
    %v5517 = vld [vmem:[%s3782 + $0x10] sm:$0xff]
    %v5518 = vld [vmem:[%s3782 + $0x18] sm:$0xff]
    %v5519 = vld [vmem:[%s3782 + $0x20] sm:$0xff]
    %v5520 = vld [vmem:[%s3782 + $0x28] sm:$0xff]
    %5527 = vrot.lane.b32.xlu0 %v5515, 84
    %v5528 = vpop.permute.xlu0 %5527
    %5529 = vrot.lane.b32.xlu0 %v5516, 84
    %v5530 = vpop.permute.xlu0 %5529
    %5531 = vrot.lane.b32.xlu0 %v5517, 84
    %v5532 = vpop.permute.xlu0 %5531
    %5533 = vrot.lane.b32.xlu0 %v5518, 84
    %v5534 = vpop.permute.xlu0 %5533
    %5535 = vrot.lane.b32.xlu0 %v5519, 84
    %v5536 = vpop.permute.xlu0 %5535
    %5537 = vrot.lane.b32.xlu0 %v5520, 84
    %v5538 = vpop.permute.xlu0 %5537
    %v5539 = vsel %vm1855, %v5528, %v5530
    %v5540 = vsel %vm1855, %v5530, %v5532
    %v5541 = vsel %vm1855, %v5534, %v5536
    %v5542 = vsel %vm1855, %v5536, %v5538
    %5549 = vst [vmem:[#allocation2 + $0x840] sm:$0xff] %v5539
    %5550 = vst [vmem:[#allocation2 + $0x848] sm:$0xff] %v5540
    %5551 = vst.msk [vmem:[#allocation2 + $0x850] sm:$0xff] %vm63, %v5532
    %5552 = vst [vmem:[#allocation2 + $0x858] sm:$0xff] %v5541
    %5553 = vst [vmem:[#allocation2 + $0x860] sm:$0xff] %v5542
    %5554 = vst.msk [vmem:[#allocation2 + $0x868] sm:$0xff] %vm63, %v5538
    %v5555 = vld [vmem:[%s3782] sm:$0xff]
    %v5556 = vld [vmem:[%s3782 + $0x8] sm:$0xff]
    %v5557 = vld [vmem:[%s3782 + $0x10] sm:$0xff]
    %v5558 = vld [vmem:[%s3782 + $0x18] sm:$0xff]
    %v5559 = vld [vmem:[%s3782 + $0x20] sm:$0xff]
    %v5560 = vld [vmem:[%s3782 + $0x28] sm:$0xff]
    %5567 = vrot.lane.b32.xlu0 %v5555, 83
    %v5568 = vpop.permute.xlu0 %5567
    %5569 = vrot.lane.b32.xlu0 %v5556, 83
    %v5570 = vpop.permute.xlu0 %5569
    %5571 = vrot.lane.b32.xlu0 %v5557, 83
    %v5572 = vpop.permute.xlu0 %5571
    %5573 = vrot.lane.b32.xlu0 %v5558, 83
    %v5574 = vpop.permute.xlu0 %5573
    %5575 = vrot.lane.b32.xlu0 %v5559, 83
    %v5576 = vpop.permute.xlu0 %5575
    %5577 = vrot.lane.b32.xlu0 %v5560, 83
    %v5578 = vpop.permute.xlu0 %5577
    %v5579 = vsel %vm1896, %v5568, %v5570
    %v5580 = vsel %vm1896, %v5570, %v5572
    %v5581 = vsel %vm1896, %v5574, %v5576
    %v5582 = vsel %vm1896, %v5576, %v5578
    %5589 = vst [vmem:[#allocation2 + $0x870] sm:$0xff] %v5579
    %5590 = vst [vmem:[#allocation2 + $0x878] sm:$0xff] %v5580
    %5591 = vst.msk [vmem:[#allocation2 + $0x880] sm:$0xff] %vm63, %v5572
    %5592 = vst [vmem:[#allocation2 + $0x888] sm:$0xff] %v5581
    %5593 = vst [vmem:[#allocation2 + $0x890] sm:$0xff] %v5582
    %5594 = vst.msk [vmem:[#allocation2 + $0x898] sm:$0xff] %vm63, %v5578
    %v5595 = vld [vmem:[%s3782] sm:$0xff]
    %v5596 = vld [vmem:[%s3782 + $0x8] sm:$0xff]
    %v5597 = vld [vmem:[%s3782 + $0x10] sm:$0xff]
    %v5598 = vld [vmem:[%s3782 + $0x18] sm:$0xff]
    %v5599 = vld [vmem:[%s3782 + $0x20] sm:$0xff]
    %v5600 = vld [vmem:[%s3782 + $0x28] sm:$0xff]
    %5607 = vrot.lane.b32.xlu0 %v5595, 82
    %v5608 = vpop.permute.xlu0 %5607
    %5609 = vrot.lane.b32.xlu0 %v5596, 82
    %v5610 = vpop.permute.xlu0 %5609
    %5611 = vrot.lane.b32.xlu0 %v5597, 82
    %v5612 = vpop.permute.xlu0 %5611
    %5613 = vrot.lane.b32.xlu0 %v5598, 82
    %v5614 = vpop.permute.xlu0 %5613
    %5615 = vrot.lane.b32.xlu0 %v5599, 82
    %v5616 = vpop.permute.xlu0 %5615
    %5617 = vrot.lane.b32.xlu0 %v5600, 82
    %v5618 = vpop.permute.xlu0 %5617
    %v5619 = vsel %vm1937, %v5608, %v5610
    %v5620 = vsel %vm1937, %v5610, %v5612
    %v5621 = vsel %vm1937, %v5614, %v5616
    %v5622 = vsel %vm1937, %v5616, %v5618
    %5629 = vst [vmem:[#allocation2 + $0x8a0] sm:$0xff] %v5619
    %5630 = vst [vmem:[#allocation2 + $0x8a8] sm:$0xff] %v5620
    %5631 = vst.msk [vmem:[#allocation2 + $0x8b0] sm:$0xff] %vm63, %v5612
    %5632 = vst [vmem:[#allocation2 + $0x8b8] sm:$0xff] %v5621
    %5633 = vst [vmem:[#allocation2 + $0x8c0] sm:$0xff] %v5622
    %5634 = vst.msk [vmem:[#allocation2 + $0x8c8] sm:$0xff] %vm63, %v5618
    %v5635 = vld [vmem:[%s3782] sm:$0xff]
    %v5636 = vld [vmem:[%s3782 + $0x8] sm:$0xff]
    %v5637 = vld [vmem:[%s3782 + $0x10] sm:$0xff]
    %v5638 = vld [vmem:[%s3782 + $0x18] sm:$0xff]
    %v5639 = vld [vmem:[%s3782 + $0x20] sm:$0xff]
    %v5640 = vld [vmem:[%s3782 + $0x28] sm:$0xff]
    %5647 = vrot.lane.b32.xlu0 %v5635, 81
    %v5648 = vpop.permute.xlu0 %5647
    %5649 = vrot.lane.b32.xlu0 %v5636, 81
    %v5650 = vpop.permute.xlu0 %5649
    %5651 = vrot.lane.b32.xlu0 %v5637, 81
    %v5652 = vpop.permute.xlu0 %5651
    %5653 = vrot.lane.b32.xlu0 %v5638, 81
    %v5654 = vpop.permute.xlu0 %5653
    %5655 = vrot.lane.b32.xlu0 %v5639, 81
    %v5656 = vpop.permute.xlu0 %5655
    %5657 = vrot.lane.b32.xlu0 %v5640, 81
    %v5658 = vpop.permute.xlu0 %5657
    %v5659 = vsel %vm1978, %v5648, %v5650
    %v5660 = vsel %vm1978, %v5650, %v5652
    %v5661 = vsel %vm1978, %v5654, %v5656
    %v5662 = vsel %vm1978, %v5656, %v5658
    %5669 = vst [vmem:[#allocation2 + $0x8d0] sm:$0xff] %v5659
    %5670 = vst [vmem:[#allocation2 + $0x8d8] sm:$0xff] %v5660
    %5671 = vst.msk [vmem:[#allocation2 + $0x8e0] sm:$0xff] %vm63, %v5652
    %5672 = vst [vmem:[#allocation2 + $0x8e8] sm:$0xff] %v5661
    %5673 = vst [vmem:[#allocation2 + $0x8f0] sm:$0xff] %v5662
    %5674 = vst.msk [vmem:[#allocation2 + $0x8f8] sm:$0xff] %vm63, %v5658
    %v5675 = vld [vmem:[%s3782] sm:$0xff]
    %v5676 = vld [vmem:[%s3782 + $0x8] sm:$0xff]
    %v5677 = vld [vmem:[%s3782 + $0x10] sm:$0xff]
    %v5678 = vld [vmem:[%s3782 + $0x18] sm:$0xff]
    %v5679 = vld [vmem:[%s3782 + $0x20] sm:$0xff]
    %v5680 = vld [vmem:[%s3782 + $0x28] sm:$0xff]
    %5687 = vrot.lane.b32.xlu0 %v5675, 80
    %v5688 = vpop.permute.xlu0 %5687
    %5689 = vrot.lane.b32.xlu0 %v5676, 80
    %v5690 = vpop.permute.xlu0 %5689
    %5691 = vrot.lane.b32.xlu0 %v5677, 80
    %v5692 = vpop.permute.xlu0 %5691
    %5693 = vrot.lane.b32.xlu0 %v5678, 80
    %v5694 = vpop.permute.xlu0 %5693
    %5695 = vrot.lane.b32.xlu0 %v5679, 80
    %v5696 = vpop.permute.xlu0 %5695
    %5697 = vrot.lane.b32.xlu0 %v5680, 80
    %v5698 = vpop.permute.xlu0 %5697
    %v5699 = vsel %vm2019, %v5688, %v5690
    %v5700 = vsel %vm2019, %v5690, %v5692
    %v5701 = vsel %vm2019, %v5694, %v5696
    %v5702 = vsel %vm2019, %v5696, %v5698
    %5709 = vst [vmem:[#allocation2 + $0x900] sm:$0xff] %v5699
    %5710 = vst [vmem:[#allocation2 + $0x908] sm:$0xff] %v5700
    %5711 = vst.msk [vmem:[#allocation2 + $0x910] sm:$0xff] %vm63, %v5692
    %5712 = vst [vmem:[#allocation2 + $0x918] sm:$0xff] %v5701
    %5713 = vst [vmem:[#allocation2 + $0x920] sm:$0xff] %v5702
    %5714 = vst.msk [vmem:[#allocation2 + $0x928] sm:$0xff] %vm63, %v5698
    %v5715 = vld [vmem:[%s3782] sm:$0xff]
    %v5716 = vld [vmem:[%s3782 + $0x8] sm:$0xff]
    %v5717 = vld [vmem:[%s3782 + $0x10] sm:$0xff]
    %v5718 = vld [vmem:[%s3782 + $0x18] sm:$0xff]
    %v5719 = vld [vmem:[%s3782 + $0x20] sm:$0xff]
    %v5720 = vld [vmem:[%s3782 + $0x28] sm:$0xff]
    %5727 = vrot.lane.b32.xlu0 %v5715, 79
    %v5728 = vpop.permute.xlu0 %5727
    %5729 = vrot.lane.b32.xlu0 %v5716, 79
    %v5730 = vpop.permute.xlu0 %5729
    %5731 = vrot.lane.b32.xlu0 %v5717, 79
    %v5732 = vpop.permute.xlu0 %5731
    %5733 = vrot.lane.b32.xlu0 %v5718, 79
    %v5734 = vpop.permute.xlu0 %5733
    %5735 = vrot.lane.b32.xlu0 %v5719, 79
    %v5736 = vpop.permute.xlu0 %5735
    %5737 = vrot.lane.b32.xlu0 %v5720, 79
    %v5738 = vpop.permute.xlu0 %5737
    %v5739 = vsel %vm2060, %v5728, %v5730
    %v5740 = vsel %vm2060, %v5730, %v5732
    %v5741 = vsel %vm2060, %v5734, %v5736
    %v5742 = vsel %vm2060, %v5736, %v5738
    %5749 = vst [vmem:[#allocation2 + $0x930] sm:$0xff] %v5739
    %5750 = vst [vmem:[#allocation2 + $0x938] sm:$0xff] %v5740
    %5751 = vst.msk [vmem:[#allocation2 + $0x940] sm:$0xff] %vm63, %v5732
    %5752 = vst [vmem:[#allocation2 + $0x948] sm:$0xff] %v5741
    %5753 = vst [vmem:[#allocation2 + $0x950] sm:$0xff] %v5742
    %5754 = vst.msk [vmem:[#allocation2 + $0x958] sm:$0xff] %vm63, %v5738
    %v5755 = vld [vmem:[%s3782] sm:$0xff]
    %v5756 = vld [vmem:[%s3782 + $0x8] sm:$0xff]
    %v5757 = vld [vmem:[%s3782 + $0x10] sm:$0xff]
    %v5758 = vld [vmem:[%s3782 + $0x18] sm:$0xff]
    %v5759 = vld [vmem:[%s3782 + $0x20] sm:$0xff]
    %v5760 = vld [vmem:[%s3782 + $0x28] sm:$0xff]
    %5767 = vrot.lane.b32.xlu0 %v5755, 78
    %v5768 = vpop.permute.xlu0 %5767
    %5769 = vrot.lane.b32.xlu0 %v5756, 78
    %v5770 = vpop.permute.xlu0 %5769
    %5771 = vrot.lane.b32.xlu0 %v5757, 78
    %v5772 = vpop.permute.xlu0 %5771
    %5773 = vrot.lane.b32.xlu0 %v5758, 78
    %v5774 = vpop.permute.xlu0 %5773
    %5775 = vrot.lane.b32.xlu0 %v5759, 78
    %v5776 = vpop.permute.xlu0 %5775
    %5777 = vrot.lane.b32.xlu0 %v5760, 78
    %v5778 = vpop.permute.xlu0 %5777
    %v5779 = vsel %vm2101, %v5768, %v5770
    %v5780 = vsel %vm2101, %v5770, %v5772
    %v5781 = vsel %vm2101, %v5774, %v5776
    %v5782 = vsel %vm2101, %v5776, %v5778
    %5789 = vst [vmem:[#allocation2 + $0x960] sm:$0xff] %v5779
    %5790 = vst [vmem:[#allocation2 + $0x968] sm:$0xff] %v5780
    %5791 = vst.msk [vmem:[#allocation2 + $0x970] sm:$0xff] %vm63, %v5772
    %5792 = vst [vmem:[#allocation2 + $0x978] sm:$0xff] %v5781
    %5793 = vst [vmem:[#allocation2 + $0x980] sm:$0xff] %v5782
    %5794 = vst.msk [vmem:[#allocation2 + $0x988] sm:$0xff] %vm63, %v5778
    %v5795 = vld [vmem:[%s3782] sm:$0xff]
    %v5796 = vld [vmem:[%s3782 + $0x8] sm:$0xff]
    %v5797 = vld [vmem:[%s3782 + $0x10] sm:$0xff]
    %v5798 = vld [vmem:[%s3782 + $0x18] sm:$0xff]
    %v5799 = vld [vmem:[%s3782 + $0x20] sm:$0xff]
    %v5800 = vld [vmem:[%s3782 + $0x28] sm:$0xff]
    %5807 = vrot.lane.b32.xlu0 %v5795, 77
    %v5808 = vpop.permute.xlu0 %5807
    %5809 = vrot.lane.b32.xlu0 %v5796, 77
    %v5810 = vpop.permute.xlu0 %5809
    %5811 = vrot.lane.b32.xlu0 %v5797, 77
    %v5812 = vpop.permute.xlu0 %5811
    %5813 = vrot.lane.b32.xlu0 %v5798, 77
    %v5814 = vpop.permute.xlu0 %5813
    %5815 = vrot.lane.b32.xlu0 %v5799, 77
    %v5816 = vpop.permute.xlu0 %5815
    %5817 = vrot.lane.b32.xlu0 %v5800, 77
    %v5818 = vpop.permute.xlu0 %5817
    %v5819 = vsel %vm2142, %v5808, %v5810
    %v5820 = vsel %vm2142, %v5810, %v5812
    %v5821 = vsel %vm2142, %v5814, %v5816
    %v5822 = vsel %vm2142, %v5816, %v5818
    %5829 = vst [vmem:[#allocation2 + $0x990] sm:$0xff] %v5819
    %5830 = vst [vmem:[#allocation2 + $0x998] sm:$0xff] %v5820
    %5831 = vst.msk [vmem:[#allocation2 + $0x9a0] sm:$0xff] %vm63, %v5812
    %5832 = vst [vmem:[#allocation2 + $0x9a8] sm:$0xff] %v5821
    %5833 = vst [vmem:[#allocation2 + $0x9b0] sm:$0xff] %v5822
    %5834 = vst.msk [vmem:[#allocation2 + $0x9b8] sm:$0xff] %vm63, %v5818
    %v5835 = vld [vmem:[%s3782] sm:$0xff]
    %v5836 = vld [vmem:[%s3782 + $0x8] sm:$0xff]
    %v5837 = vld [vmem:[%s3782 + $0x10] sm:$0xff]
    %v5838 = vld [vmem:[%s3782 + $0x18] sm:$0xff]
    %v5839 = vld [vmem:[%s3782 + $0x20] sm:$0xff]
    %v5840 = vld [vmem:[%s3782 + $0x28] sm:$0xff]
    %5847 = vrot.lane.b32.xlu0 %v5835, 76
    %v5848 = vpop.permute.xlu0 %5847
    %5849 = vrot.lane.b32.xlu0 %v5836, 76
    %v5850 = vpop.permute.xlu0 %5849
    %5851 = vrot.lane.b32.xlu0 %v5837, 76
    %v5852 = vpop.permute.xlu0 %5851
    %5853 = vrot.lane.b32.xlu0 %v5838, 76
    %v5854 = vpop.permute.xlu0 %5853
    %5855 = vrot.lane.b32.xlu0 %v5839, 76
    %v5856 = vpop.permute.xlu0 %5855
    %5857 = vrot.lane.b32.xlu0 %v5840, 76
    %v5858 = vpop.permute.xlu0 %5857
    %v5859 = vsel %vm2183, %v5848, %v5850
    %v5860 = vsel %vm2183, %v5850, %v5852
    %v5861 = vsel %vm2183, %v5854, %v5856
    %v5862 = vsel %vm2183, %v5856, %v5858
    %5869 = vst [vmem:[#allocation2 + $0x9c0] sm:$0xff] %v5859
    %5870 = vst [vmem:[#allocation2 + $0x9c8] sm:$0xff] %v5860
    %5871 = vst.msk [vmem:[#allocation2 + $0x9d0] sm:$0xff] %vm63, %v5852
    %5872 = vst [vmem:[#allocation2 + $0x9d8] sm:$0xff] %v5861
    %5873 = vst [vmem:[#allocation2 + $0x9e0] sm:$0xff] %v5862
    %5874 = vst.msk [vmem:[#allocation2 + $0x9e8] sm:$0xff] %vm63, %v5858
    %v5875 = vld [vmem:[%s3782] sm:$0xff]
    %v5876 = vld [vmem:[%s3782 + $0x8] sm:$0xff]
    %v5877 = vld [vmem:[%s3782 + $0x10] sm:$0xff]
    %v5878 = vld [vmem:[%s3782 + $0x18] sm:$0xff]
    %v5879 = vld [vmem:[%s3782 + $0x20] sm:$0xff]
    %v5880 = vld [vmem:[%s3782 + $0x28] sm:$0xff]
    %5887 = vrot.lane.b32.xlu0 %v5875, 75
    %v5888 = vpop.permute.xlu0 %5887
    %5889 = vrot.lane.b32.xlu0 %v5876, 75
    %v5890 = vpop.permute.xlu0 %5889
    %5891 = vrot.lane.b32.xlu0 %v5877, 75
    %v5892 = vpop.permute.xlu0 %5891
    %5893 = vrot.lane.b32.xlu0 %v5878, 75
    %v5894 = vpop.permute.xlu0 %5893
    %5895 = vrot.lane.b32.xlu0 %v5879, 75
    %v5896 = vpop.permute.xlu0 %5895
    %5897 = vrot.lane.b32.xlu0 %v5880, 75
    %v5898 = vpop.permute.xlu0 %5897
    %v5899 = vsel %vm2224, %v5888, %v5890
    %v5900 = vsel %vm2224, %v5890, %v5892
    %v5901 = vsel %vm2224, %v5894, %v5896
    %v5902 = vsel %vm2224, %v5896, %v5898
    %5909 = vst [vmem:[#allocation2 + $0x9f0] sm:$0xff] %v5899
    %5910 = vst [vmem:[#allocation2 + $0x9f8] sm:$0xff] %v5900
    %5911 = vst.msk [vmem:[#allocation2 + $0xa00] sm:$0xff] %vm63, %v5892
    %5912 = vst [vmem:[#allocation2 + $0xa08] sm:$0xff] %v5901
    %5913 = vst [vmem:[#allocation2 + $0xa10] sm:$0xff] %v5902
    %5914 = vst.msk [vmem:[#allocation2 + $0xa18] sm:$0xff] %vm63, %v5898
    %v5915 = vld [vmem:[%s3782] sm:$0xff]
    %v5916 = vld [vmem:[%s3782 + $0x8] sm:$0xff]
    %v5917 = vld [vmem:[%s3782 + $0x10] sm:$0xff]
    %v5918 = vld [vmem:[%s3782 + $0x18] sm:$0xff]
    %v5919 = vld [vmem:[%s3782 + $0x20] sm:$0xff]
    %v5920 = vld [vmem:[%s3782 + $0x28] sm:$0xff]
    %5927 = vrot.lane.b32.xlu0 %v5915, 74
    %v5928 = vpop.permute.xlu0 %5927
    %5929 = vrot.lane.b32.xlu0 %v5916, 74
    %v5930 = vpop.permute.xlu0 %5929
    %5931 = vrot.lane.b32.xlu0 %v5917, 74
    %v5932 = vpop.permute.xlu0 %5931
    %5933 = vrot.lane.b32.xlu0 %v5918, 74
    %v5934 = vpop.permute.xlu0 %5933
    %5935 = vrot.lane.b32.xlu0 %v5919, 74
    %v5936 = vpop.permute.xlu0 %5935
    %5937 = vrot.lane.b32.xlu0 %v5920, 74
    %v5938 = vpop.permute.xlu0 %5937
    %v5939 = vsel %vm2265, %v5928, %v5930
    %v5940 = vsel %vm2265, %v5930, %v5932
    %v5941 = vsel %vm2265, %v5934, %v5936
    %v5942 = vsel %vm2265, %v5936, %v5938
    %5949 = vst [vmem:[#allocation2 + $0xa20] sm:$0xff] %v5939
    %5950 = vst [vmem:[#allocation2 + $0xa28] sm:$0xff] %v5940
    %5951 = vst.msk [vmem:[#allocation2 + $0xa30] sm:$0xff] %vm63, %v5932
    %5952 = vst [vmem:[#allocation2 + $0xa38] sm:$0xff] %v5941
    %5953 = vst [vmem:[#allocation2 + $0xa40] sm:$0xff] %v5942
    %5954 = vst.msk [vmem:[#allocation2 + $0xa48] sm:$0xff] %vm63, %v5938
    %v5955 = vld [vmem:[%s3782] sm:$0xff]
    %v5956 = vld [vmem:[%s3782 + $0x8] sm:$0xff]
    %v5957 = vld [vmem:[%s3782 + $0x10] sm:$0xff]
    %v5958 = vld [vmem:[%s3782 + $0x18] sm:$0xff]
    %v5959 = vld [vmem:[%s3782 + $0x20] sm:$0xff]
    %v5960 = vld [vmem:[%s3782 + $0x28] sm:$0xff]
    %5967 = vrot.lane.b32.xlu0 %v5955, 73
    %v5968 = vpop.permute.xlu0 %5967
    %5969 = vrot.lane.b32.xlu0 %v5956, 73
    %v5970 = vpop.permute.xlu0 %5969
    %5971 = vrot.lane.b32.xlu0 %v5957, 73
    %v5972 = vpop.permute.xlu0 %5971
    %5973 = vrot.lane.b32.xlu0 %v5958, 73
    %v5974 = vpop.permute.xlu0 %5973
    %5975 = vrot.lane.b32.xlu0 %v5959, 73
    %v5976 = vpop.permute.xlu0 %5975
    %5977 = vrot.lane.b32.xlu0 %v5960, 73
    %v5978 = vpop.permute.xlu0 %5977
    %v5979 = vsel %vm2306, %v5968, %v5970
    %v5980 = vsel %vm2306, %v5970, %v5972
    %v5981 = vsel %vm2306, %v5974, %v5976
    %v5982 = vsel %vm2306, %v5976, %v5978
    %5989 = vst [vmem:[#allocation2 + $0xa50] sm:$0xff] %v5979
    %5990 = vst [vmem:[#allocation2 + $0xa58] sm:$0xff] %v5980
    %5991 = vst.msk [vmem:[#allocation2 + $0xa60] sm:$0xff] %vm63, %v5972
    %5992 = vst [vmem:[#allocation2 + $0xa68] sm:$0xff] %v5981
    %5993 = vst [vmem:[#allocation2 + $0xa70] sm:$0xff] %v5982
    %5994 = vst.msk [vmem:[#allocation2 + $0xa78] sm:$0xff] %vm63, %v5978
    %v5995 = vld [vmem:[%s3782] sm:$0xff]
    %v5996 = vld [vmem:[%s3782 + $0x8] sm:$0xff]
    %v5997 = vld [vmem:[%s3782 + $0x10] sm:$0xff]
    %v5998 = vld [vmem:[%s3782 + $0x18] sm:$0xff]
    %v5999 = vld [vmem:[%s3782 + $0x20] sm:$0xff]
    %v6000 = vld [vmem:[%s3782 + $0x28] sm:$0xff]
    %6007 = vrot.lane.b32.xlu0 %v5995, 72
    %v6008 = vpop.permute.xlu0 %6007
    %6009 = vrot.lane.b32.xlu0 %v5996, 72
    %v6010 = vpop.permute.xlu0 %6009
    %6011 = vrot.lane.b32.xlu0 %v5997, 72
    %v6012 = vpop.permute.xlu0 %6011
    %6013 = vrot.lane.b32.xlu0 %v5998, 72
    %v6014 = vpop.permute.xlu0 %6013
    %6015 = vrot.lane.b32.xlu0 %v5999, 72
    %v6016 = vpop.permute.xlu0 %6015
    %6017 = vrot.lane.b32.xlu0 %v6000, 72
    %v6018 = vpop.permute.xlu0 %6017
    %v6019 = vsel %vm2347, %v6008, %v6010
    %v6020 = vsel %vm2347, %v6010, %v6012
    %v6021 = vsel %vm2347, %v6014, %v6016
    %v6022 = vsel %vm2347, %v6016, %v6018
    %6029 = vst [vmem:[#allocation2 + $0xa80] sm:$0xff] %v6019
    %6030 = vst [vmem:[#allocation2 + $0xa88] sm:$0xff] %v6020
    %6031 = vst.msk [vmem:[#allocation2 + $0xa90] sm:$0xff] %vm63, %v6012
    %6032 = vst [vmem:[#allocation2 + $0xa98] sm:$0xff] %v6021
    %6033 = vst [vmem:[#allocation2 + $0xaa0] sm:$0xff] %v6022
    %6034 = vst.msk [vmem:[#allocation2 + $0xaa8] sm:$0xff] %vm63, %v6018
    %v6035 = vld [vmem:[%s3782] sm:$0xff]
    %v6036 = vld [vmem:[%s3782 + $0x8] sm:$0xff]
    %v6037 = vld [vmem:[%s3782 + $0x10] sm:$0xff]
    %v6038 = vld [vmem:[%s3782 + $0x18] sm:$0xff]
    %v6039 = vld [vmem:[%s3782 + $0x20] sm:$0xff]
    %v6040 = vld [vmem:[%s3782 + $0x28] sm:$0xff]
    %6047 = vrot.lane.b32.xlu0 %v6035, 71
    %v6048 = vpop.permute.xlu0 %6047
    %6049 = vrot.lane.b32.xlu0 %v6036, 71
    %v6050 = vpop.permute.xlu0 %6049
    %6051 = vrot.lane.b32.xlu0 %v6037, 71
    %v6052 = vpop.permute.xlu0 %6051
    %6053 = vrot.lane.b32.xlu0 %v6038, 71
    %v6054 = vpop.permute.xlu0 %6053
    %6055 = vrot.lane.b32.xlu0 %v6039, 71
    %v6056 = vpop.permute.xlu0 %6055
    %6057 = vrot.lane.b32.xlu0 %v6040, 71
    %v6058 = vpop.permute.xlu0 %6057
    %v6059 = vsel %vm2388, %v6048, %v6050
    %v6060 = vsel %vm2388, %v6050, %v6052
    %v6061 = vsel %vm2388, %v6054, %v6056
    %v6062 = vsel %vm2388, %v6056, %v6058
    %6069 = vst [vmem:[#allocation2 + $0xab0] sm:$0xff] %v6059
    %6070 = vst [vmem:[#allocation2 + $0xab8] sm:$0xff] %v6060
    %6071 = vst.msk [vmem:[#allocation2 + $0xac0] sm:$0xff] %vm63, %v6052
    %6072 = vst [vmem:[#allocation2 + $0xac8] sm:$0xff] %v6061
    %6073 = vst [vmem:[#allocation2 + $0xad0] sm:$0xff] %v6062
    %6074 = vst.msk [vmem:[#allocation2 + $0xad8] sm:$0xff] %vm63, %v6058
    %v6075 = vld [vmem:[%s3782] sm:$0xff]
    %v6076 = vld [vmem:[%s3782 + $0x8] sm:$0xff]
    %v6077 = vld [vmem:[%s3782 + $0x10] sm:$0xff]
    %v6078 = vld [vmem:[%s3782 + $0x18] sm:$0xff]
    %v6079 = vld [vmem:[%s3782 + $0x20] sm:$0xff]
    %v6080 = vld [vmem:[%s3782 + $0x28] sm:$0xff]
    %6087 = vrot.lane.b32.xlu0 %v6075, 70
    %v6088 = vpop.permute.xlu0 %6087
    %6089 = vrot.lane.b32.xlu0 %v6076, 70
    %v6090 = vpop.permute.xlu0 %6089
    %6091 = vrot.lane.b32.xlu0 %v6077, 70
    %v6092 = vpop.permute.xlu0 %6091
    %6093 = vrot.lane.b32.xlu0 %v6078, 70
    %v6094 = vpop.permute.xlu0 %6093
    %6095 = vrot.lane.b32.xlu0 %v6079, 70
    %v6096 = vpop.permute.xlu0 %6095
    %6097 = vrot.lane.b32.xlu0 %v6080, 70
    %v6098 = vpop.permute.xlu0 %6097
    %v6099 = vsel %vm2429, %v6088, %v6090
    %v6100 = vsel %vm2429, %v6090, %v6092
    %v6101 = vsel %vm2429, %v6094, %v6096
    %v6102 = vsel %vm2429, %v6096, %v6098
    %6109 = vst [vmem:[#allocation2 + $0xae0] sm:$0xff] %v6099
    %6110 = vst [vmem:[#allocation2 + $0xae8] sm:$0xff] %v6100
    %6111 = vst.msk [vmem:[#allocation2 + $0xaf0] sm:$0xff] %vm63, %v6092
    %6112 = vst [vmem:[#allocation2 + $0xaf8] sm:$0xff] %v6101
    %6113 = vst [vmem:[#allocation2 + $0xb00] sm:$0xff] %v6102
    %6114 = vst.msk [vmem:[#allocation2 + $0xb08] sm:$0xff] %vm63, %v6098
    %v6115 = vld [vmem:[%s3782] sm:$0xff]
    %v6116 = vld [vmem:[%s3782 + $0x8] sm:$0xff]
    %v6117 = vld [vmem:[%s3782 + $0x10] sm:$0xff]
    %v6118 = vld [vmem:[%s3782 + $0x18] sm:$0xff]
    %v6119 = vld [vmem:[%s3782 + $0x20] sm:$0xff]
    %v6120 = vld [vmem:[%s3782 + $0x28] sm:$0xff]
    %6127 = vrot.lane.b32.xlu0 %v6115, 69
    %v6128 = vpop.permute.xlu0 %6127
    %6129 = vrot.lane.b32.xlu0 %v6116, 69
    %v6130 = vpop.permute.xlu0 %6129
    %6131 = vrot.lane.b32.xlu0 %v6117, 69
    %v6132 = vpop.permute.xlu0 %6131
    %6133 = vrot.lane.b32.xlu0 %v6118, 69
    %v6134 = vpop.permute.xlu0 %6133
    %6135 = vrot.lane.b32.xlu0 %v6119, 69
    %v6136 = vpop.permute.xlu0 %6135
    %6137 = vrot.lane.b32.xlu0 %v6120, 69
    %v6138 = vpop.permute.xlu0 %6137
    %v6139 = vsel %vm2470, %v6128, %v6130
    %v6140 = vsel %vm2470, %v6130, %v6132
    %v6141 = vsel %vm2470, %v6134, %v6136
    %v6142 = vsel %vm2470, %v6136, %v6138
    %6149 = vst [vmem:[#allocation2 + $0xb10] sm:$0xff] %v6139
    %6150 = vst [vmem:[#allocation2 + $0xb18] sm:$0xff] %v6140
    %6151 = vst.msk [vmem:[#allocation2 + $0xb20] sm:$0xff] %vm63, %v6132
    %6152 = vst [vmem:[#allocation2 + $0xb28] sm:$0xff] %v6141
    %6153 = vst [vmem:[#allocation2 + $0xb30] sm:$0xff] %v6142
    %6154 = vst.msk [vmem:[#allocation2 + $0xb38] sm:$0xff] %vm63, %v6138
    %v6155 = vld [vmem:[%s3782] sm:$0xff]
    %v6156 = vld [vmem:[%s3782 + $0x8] sm:$0xff]
    %v6157 = vld [vmem:[%s3782 + $0x10] sm:$0xff]
    %v6158 = vld [vmem:[%s3782 + $0x18] sm:$0xff]
    %v6159 = vld [vmem:[%s3782 + $0x20] sm:$0xff]
    %v6160 = vld [vmem:[%s3782 + $0x28] sm:$0xff]
    %6167 = vrot.lane.b32.xlu0 %v6155, 68
    %v6168 = vpop.permute.xlu0 %6167
    %6169 = vrot.lane.b32.xlu0 %v6156, 68
    %v6170 = vpop.permute.xlu0 %6169
    %6171 = vrot.lane.b32.xlu0 %v6157, 68
    %v6172 = vpop.permute.xlu0 %6171
    %6173 = vrot.lane.b32.xlu0 %v6158, 68
    %v6174 = vpop.permute.xlu0 %6173
    %6175 = vrot.lane.b32.xlu0 %v6159, 68
    %v6176 = vpop.permute.xlu0 %6175
    %6177 = vrot.lane.b32.xlu0 %v6160, 68
    %v6178 = vpop.permute.xlu0 %6177
    %v6179 = vsel %vm2511, %v6168, %v6170
    %v6180 = vsel %vm2511, %v6170, %v6172
    %v6181 = vsel %vm2511, %v6174, %v6176
    %v6182 = vsel %vm2511, %v6176, %v6178
    %6189 = vst [vmem:[#allocation2 + $0xb40] sm:$0xff] %v6179
    %6190 = vst [vmem:[#allocation2 + $0xb48] sm:$0xff] %v6180
    %6191 = vst.msk [vmem:[#allocation2 + $0xb50] sm:$0xff] %vm63, %v6172
    %6192 = vst [vmem:[#allocation2 + $0xb58] sm:$0xff] %v6181
    %6193 = vst [vmem:[#allocation2 + $0xb60] sm:$0xff] %v6182
    %6194 = vst.msk [vmem:[#allocation2 + $0xb68] sm:$0xff] %vm63, %v6178
    %v6195 = vld [vmem:[%s3782] sm:$0xff]
    %v6196 = vld [vmem:[%s3782 + $0x8] sm:$0xff]
    %v6197 = vld [vmem:[%s3782 + $0x10] sm:$0xff]
    %v6198 = vld [vmem:[%s3782 + $0x18] sm:$0xff]
    %v6199 = vld [vmem:[%s3782 + $0x20] sm:$0xff]
    %v6200 = vld [vmem:[%s3782 + $0x28] sm:$0xff]
    %6207 = vrot.lane.b32.xlu0 %v6195, 67
    %v6208 = vpop.permute.xlu0 %6207
    %6209 = vrot.lane.b32.xlu0 %v6196, 67
    %v6210 = vpop.permute.xlu0 %6209
    %6211 = vrot.lane.b32.xlu0 %v6197, 67
    %v6212 = vpop.permute.xlu0 %6211
    %6213 = vrot.lane.b32.xlu0 %v6198, 67
    %v6214 = vpop.permute.xlu0 %6213
    %6215 = vrot.lane.b32.xlu0 %v6199, 67
    %v6216 = vpop.permute.xlu0 %6215
    %6217 = vrot.lane.b32.xlu0 %v6200, 67
    %v6218 = vpop.permute.xlu0 %6217
    %v6219 = vsel %vm2552, %v6208, %v6210
    %v6220 = vsel %vm2552, %v6210, %v6212
    %v6221 = vsel %vm2552, %v6214, %v6216
    %v6222 = vsel %vm2552, %v6216, %v6218
    %6229 = vst [vmem:[#allocation2 + $0xb70] sm:$0xff] %v6219
    %6230 = vst [vmem:[#allocation2 + $0xb78] sm:$0xff] %v6220
    %6231 = vst.msk [vmem:[#allocation2 + $0xb80] sm:$0xff] %vm63, %v6212
    %6232 = vst [vmem:[#allocation2 + $0xb88] sm:$0xff] %v6221
    %6233 = vst [vmem:[#allocation2 + $0xb90] sm:$0xff] %v6222
    %6234 = vst.msk [vmem:[#allocation2 + $0xb98] sm:$0xff] %vm63, %v6218
    %v6235 = vld [vmem:[%s3782] sm:$0xff]
    %v6236 = vld [vmem:[%s3782 + $0x8] sm:$0xff]
    %v6237 = vld [vmem:[%s3782 + $0x10] sm:$0xff]
    %v6238 = vld [vmem:[%s3782 + $0x18] sm:$0xff]
    %v6239 = vld [vmem:[%s3782 + $0x20] sm:$0xff]
    %v6240 = vld [vmem:[%s3782 + $0x28] sm:$0xff]
    %6247 = vrot.lane.b32.xlu0 %v6235, 66
    %v6248 = vpop.permute.xlu0 %6247
    %6249 = vrot.lane.b32.xlu0 %v6236, 66
    %v6250 = vpop.permute.xlu0 %6249
    %6251 = vrot.lane.b32.xlu0 %v6237, 66
    %v6252 = vpop.permute.xlu0 %6251
    %6253 = vrot.lane.b32.xlu0 %v6238, 66
    %v6254 = vpop.permute.xlu0 %6253
    %6255 = vrot.lane.b32.xlu0 %v6239, 66
    %v6256 = vpop.permute.xlu0 %6255
    %6257 = vrot.lane.b32.xlu0 %v6240, 66
    %v6258 = vpop.permute.xlu0 %6257
    %v6259 = vsel %vm2593, %v6248, %v6250
    %v6260 = vsel %vm2593, %v6250, %v6252
    %v6261 = vsel %vm2593, %v6254, %v6256
    %v6262 = vsel %vm2593, %v6256, %v6258
    %6269 = vst [vmem:[#allocation2 + $0xba0] sm:$0xff] %v6259
    %6270 = vst [vmem:[#allocation2 + $0xba8] sm:$0xff] %v6260
    %6271 = vst.msk [vmem:[#allocation2 + $0xbb0] sm:$0xff] %vm63, %v6252
    %6272 = vst [vmem:[#allocation2 + $0xbb8] sm:$0xff] %v6261
    %6273 = vst [vmem:[#allocation2 + $0xbc0] sm:$0xff] %v6262
    %6274 = vst.msk [vmem:[#allocation2 + $0xbc8] sm:$0xff] %vm63, %v6258
    %v6275 = vld [vmem:[%s3782] sm:$0xff]
    %v6276 = vld [vmem:[%s3782 + $0x8] sm:$0xff]
    %v6277 = vld [vmem:[%s3782 + $0x10] sm:$0xff]
    %v6278 = vld [vmem:[%s3782 + $0x18] sm:$0xff]
    %v6279 = vld [vmem:[%s3782 + $0x20] sm:$0xff]
    %v6280 = vld [vmem:[%s3782 + $0x28] sm:$0xff]
    %6287 = vrot.lane.b32.xlu0 %v6275, 65
    %v6288 = vpop.permute.xlu0 %6287
    %6289 = vrot.lane.b32.xlu0 %v6276, 65
    %v6290 = vpop.permute.xlu0 %6289
    %6291 = vrot.lane.b32.xlu0 %v6277, 65
    %v6292 = vpop.permute.xlu0 %6291
    %6293 = vrot.lane.b32.xlu0 %v6278, 65
    %v6294 = vpop.permute.xlu0 %6293
    %6295 = vrot.lane.b32.xlu0 %v6279, 65
    %v6296 = vpop.permute.xlu0 %6295
    %6297 = vrot.lane.b32.xlu0 %v6280, 65
    %v6298 = vpop.permute.xlu0 %6297
    %v6299 = vsel %vm63, %v6288, %v6290
    %v6300 = vsel %vm63, %v6290, %v6292
    %v6301 = vsel %vm63, %v6294, %v6296
    %v6302 = vsel %vm63, %v6296, %v6298
    %6309 = vst [vmem:[#allocation2 + $0xbd0] sm:$0xff] %v6299
    %6310 = vst [vmem:[#allocation2 + $0xbd8] sm:$0xff] %v6300
    %6311 = vst.msk [vmem:[#allocation2 + $0xbe0] sm:$0xff] %vm63, %v6292
    %6312 = vst [vmem:[#allocation2 + $0xbe8] sm:$0xff] %v6301
    %6313 = vst [vmem:[#allocation2 + $0xbf0] sm:$0xff] %v6302
    %6314 = vst.msk [vmem:[#allocation2 + $0xbf8] sm:$0xff] %vm63, %v6298
    %v6315 = vld [vmem:[#allocation6] sm:$0xff]
    %v6316 = vld [vmem:[#allocation6 + $0x8] sm:$0xff]
    %v6317 = vld [vmem:[#allocation6 + $0x10] sm:$0xff]
    %v6318 = vld [vmem:[#allocation6 + $0x18] sm:$0xff]
    %v6319 = vld [vmem:[#allocation6 + $0x20] sm:$0xff]
    %v6320 = vld [vmem:[#allocation6 + $0x28] sm:$0xff]
    %v6321 = vld [vmem:[#allocation6 + $0x30] sm:$0xff]
    %v6322 = vld [vmem:[#allocation6 + $0x38] sm:$0xff]
    %v6323 = vld [vmem:[#allocation6 + $0x40] sm:$0xff]
    %v6324 = vld [vmem:[#allocation6 + $0x48] sm:$0xff]
    %v6325 = vld [vmem:[#allocation6 + $0x50] sm:$0xff]
    %v6326 = vld [vmem:[#allocation6 + $0x58] sm:$0xff]
    %v6327 = vld [vmem:[#allocation6 + $0x60] sm:$0xff]
    %v6328 = vld [vmem:[#allocation6 + $0x68] sm:$0xff]
    %v6329 = vld [vmem:[#allocation6 + $0x70] sm:$0xff]
    %v6330 = vld [vmem:[#allocation6 + $0x78] sm:$0xff]
    %v6331 = vld [vmem:[#allocation6 + $0x80] sm:$0xf]
    %v6332 = vld [vmem:[#allocation6 + $0x88] sm:$0xf]
    %v6333 = vld [vmem:[#allocation6 + $0x90] sm:$0xf]
    %v6334 = vld [vmem:[#allocation6 + $0x98] sm:$0xf]
    %v6335 = vld [vmem:[#allocation6 + $0xa0] sm:$0xf]
    %v6336 = vld [vmem:[#allocation6 + $0xa8] sm:$0xf]
    %v6337 = vld [vmem:[#allocation6 + $0xb0] sm:$0xf]
    %v6338 = vld [vmem:[#allocation6 + $0xb8] sm:$0xf]
    %v6339 = vld [vmem:[#allocation2] sm:$0xff]
    %v6340 = vld [vmem:[#allocation2 + $0x8] sm:$0xff]
    %v6341 = vld [vmem:[#allocation2 + $0x10] sm:$0xff]
    %v6342 = vld [vmem:[#allocation2 + $0x18] sm:$0xff]
    %v6343 = vld [vmem:[#allocation2 + $0x20] sm:$0xff]
    %v6344 = vld [vmem:[#allocation2 + $0x28] sm:$0xff]
    %v6345 = vld [vmem:[#allocation2 + $0x30] sm:$0xff]
    %v6346 = vld [vmem:[#allocation2 + $0x38] sm:$0xff]
    %v6347 = vld [vmem:[#allocation2 + $0x40] sm:$0xff]
    %v6348 = vld [vmem:[#allocation2 + $0x48] sm:$0xff]
    %v6349 = vld [vmem:[#allocation2 + $0x50] sm:$0xff]
    %v6350 = vld [vmem:[#allocation2 + $0x58] sm:$0xff]
    %v6351 = vld [vmem:[#allocation2 + $0x60] sm:$0xff]
    %v6352 = vld [vmem:[#allocation2 + $0x68] sm:$0xff]
    %v6353 = vld [vmem:[#allocation2 + $0x70] sm:$0xff]
    %v6354 = vld [vmem:[#allocation2 + $0x78] sm:$0xff]
    %v6355 = vld [vmem:[#allocation2 + $0x80] sm:$0xff]
    %v6356 = vld [vmem:[#allocation2 + $0x88] sm:$0xff]
    %v6357 = vld [vmem:[#allocation2 + $0x90] sm:$0xff]
    %v6358 = vld [vmem:[#allocation2 + $0x98] sm:$0xff]
    %v6359 = vld [vmem:[#allocation2 + $0xa0] sm:$0xff]
    %v6360 = vld [vmem:[#allocation2 + $0xa8] sm:$0xff]
    %v6361 = vld [vmem:[#allocation2 + $0xb0] sm:$0xff]
    %v6362 = vld [vmem:[#allocation2 + $0xb8] sm:$0xff]
    %v6363 = vld [vmem:[#allocation2 + $0xc0] sm:$0xff]
    %v6364 = vld [vmem:[#allocation2 + $0xc8] sm:$0xff]
    %v6365 = vld [vmem:[#allocation2 + $0xd0] sm:$0xff]
    %v6366 = vld [vmem:[#allocation2 + $0xd8] sm:$0xff]
    %v6367 = vld [vmem:[#allocation2 + $0xe0] sm:$0xff]
    %v6368 = vld [vmem:[#allocation2 + $0xe8] sm:$0xff]
    %v6369 = vld [vmem:[#allocation2 + $0xf0] sm:$0xff]
    %v6370 = vld [vmem:[#allocation2 + $0xf8] sm:$0xff]
    %v6371 = vld [vmem:[#allocation2 + $0x100] sm:$0xff]
    %v6372 = vld [vmem:[#allocation2 + $0x108] sm:$0xff]
    %v6373 = vld [vmem:[#allocation2 + $0x110] sm:$0xff]
    %v6374 = vld [vmem:[#allocation2 + $0x118] sm:$0xff]
    %v6375 = vld [vmem:[#allocation2 + $0x120] sm:$0xff]
    %v6376 = vld [vmem:[#allocation2 + $0x128] sm:$0xff]
    %v6377 = vld [vmem:[#allocation2 + $0x130] sm:$0xff]
    %v6378 = vld [vmem:[#allocation2 + $0x138] sm:$0xff]
    %v6379 = vld [vmem:[#allocation2 + $0x140] sm:$0xff]
    %v6380 = vld [vmem:[#allocation2 + $0x148] sm:$0xff]
    %v6381 = vld [vmem:[#allocation2 + $0x150] sm:$0xff]
    %v6382 = vld [vmem:[#allocation2 + $0x158] sm:$0xff]
    %v6383 = vld [vmem:[#allocation2 + $0x160] sm:$0xff]
    %v6384 = vld [vmem:[#allocation2 + $0x168] sm:$0xff]
    %v6385 = vld [vmem:[#allocation2 + $0x170] sm:$0xff]
    %v6386 = vld [vmem:[#allocation2 + $0x178] sm:$0xff]
    %v6387 = vld [vmem:[#allocation2 + $0x180] sm:$0xff]
    %v6388 = vld [vmem:[#allocation2 + $0x188] sm:$0xff]
    %v6389 = vld [vmem:[#allocation2 + $0x190] sm:$0xff]
    %v6390 = vld [vmem:[#allocation2 + $0x198] sm:$0xff]
    %v6391 = vld [vmem:[#allocation2 + $0x1a0] sm:$0xff]
    %v6392 = vld [vmem:[#allocation2 + $0x1a8] sm:$0xff]
    %v6393 = vld [vmem:[#allocation2 + $0x1b0] sm:$0xff]
    %v6394 = vld [vmem:[#allocation2 + $0x1b8] sm:$0xff]
    %v6395 = vld [vmem:[#allocation2 + $0x1c0] sm:$0xff]
    %v6396 = vld [vmem:[#allocation2 + $0x1c8] sm:$0xff]
    %v6397 = vld [vmem:[#allocation2 + $0x1d0] sm:$0xff]
    %v6398 = vld [vmem:[#allocation2 + $0x1d8] sm:$0xff]
    %v6399 = vld [vmem:[#allocation2 + $0x1e0] sm:$0xff]
    %v6400 = vld [vmem:[#allocation2 + $0x1e8] sm:$0xff]
    %v6401 = vld [vmem:[#allocation2 + $0x1f0] sm:$0xff]
    %v6402 = vld [vmem:[#allocation2 + $0x1f8] sm:$0xff]
    %v6403 = vld [vmem:[#allocation2 + $0x200] sm:$0xff]
    %v6404 = vld [vmem:[#allocation2 + $0x208] sm:$0xff]
    %v6405 = vld [vmem:[#allocation2 + $0x210] sm:$0xff]
    %v6406 = vld [vmem:[#allocation2 + $0x218] sm:$0xff]
    %v6407 = vld [vmem:[#allocation2 + $0x220] sm:$0xff]
    %v6408 = vld [vmem:[#allocation2 + $0x228] sm:$0xff]
    %v6409 = vld [vmem:[#allocation2 + $0x230] sm:$0xff]
    %v6410 = vld [vmem:[#allocation2 + $0x238] sm:$0xff]
    %v6411 = vld [vmem:[#allocation2 + $0x240] sm:$0xff]
    %v6412 = vld [vmem:[#allocation2 + $0x248] sm:$0xff]
    %v6413 = vld [vmem:[#allocation2 + $0x250] sm:$0xff]
    %v6414 = vld [vmem:[#allocation2 + $0x258] sm:$0xff]
    %v6415 = vld [vmem:[#allocation2 + $0x260] sm:$0xff]
    %v6416 = vld [vmem:[#allocation2 + $0x268] sm:$0xff]
    %v6417 = vld [vmem:[#allocation2 + $0x270] sm:$0xff]
    %v6418 = vld [vmem:[#allocation2 + $0x278] sm:$0xff]
    %v6419 = vld [vmem:[#allocation2 + $0x280] sm:$0xff]
    %v6420 = vld [vmem:[#allocation2 + $0x288] sm:$0xff]
    %v6421 = vld [vmem:[#allocation2 + $0x290] sm:$0xff]
    %v6422 = vld [vmem:[#allocation2 + $0x298] sm:$0xff]
    %v6423 = vld [vmem:[#allocation2 + $0x2a0] sm:$0xff]
    %v6424 = vld [vmem:[#allocation2 + $0x2a8] sm:$0xff]
    %v6425 = vld [vmem:[#allocation2 + $0x2b0] sm:$0xff]
    %v6426 = vld [vmem:[#allocation2 + $0x2b8] sm:$0xff]
    %v6427 = vld [vmem:[#allocation2 + $0x2c0] sm:$0xff]
    %v6428 = vld [vmem:[#allocation2 + $0x2c8] sm:$0xff]
    %v6429 = vld [vmem:[#allocation2 + $0x2d0] sm:$0xff]
    %v6430 = vld [vmem:[#allocation2 + $0x2d8] sm:$0xff]
    %v6431 = vld [vmem:[#allocation2 + $0x2e0] sm:$0xff]
    %v6432 = vld [vmem:[#allocation2 + $0x2e8] sm:$0xff]
    %v6433 = vld [vmem:[#allocation2 + $0x2f0] sm:$0xff]
    %v6434 = vld [vmem:[#allocation2 + $0x2f8] sm:$0xff]
    %v6435 = vld [vmem:[#allocation2 + $0x300] sm:$0xff]
    %v6436 = vld [vmem:[#allocation2 + $0x308] sm:$0xff]
    %v6437 = vld [vmem:[#allocation2 + $0x310] sm:$0xff]
    %v6438 = vld [vmem:[#allocation2 + $0x318] sm:$0xff]
    %v6439 = vld [vmem:[#allocation2 + $0x320] sm:$0xff]
    %v6440 = vld [vmem:[#allocation2 + $0x328] sm:$0xff]
    %v6441 = vld [vmem:[#allocation2 + $0x330] sm:$0xff]
    %v6442 = vld [vmem:[#allocation2 + $0x338] sm:$0xff]
    %v6443 = vld [vmem:[#allocation2 + $0x340] sm:$0xff]
    %v6444 = vld [vmem:[#allocation2 + $0x348] sm:$0xff]
    %v6445 = vld [vmem:[#allocation2 + $0x350] sm:$0xff]
    %v6446 = vld [vmem:[#allocation2 + $0x358] sm:$0xff]
    %v6447 = vld [vmem:[#allocation2 + $0x360] sm:$0xff]
    %v6448 = vld [vmem:[#allocation2 + $0x368] sm:$0xff]
    %v6449 = vld [vmem:[#allocation2 + $0x370] sm:$0xff]
    %v6450 = vld [vmem:[#allocation2 + $0x378] sm:$0xff]
    %v6451 = vld [vmem:[#allocation2 + $0x380] sm:$0xff]
    %v6452 = vld [vmem:[#allocation2 + $0x388] sm:$0xff]
    %v6453 = vld [vmem:[#allocation2 + $0x390] sm:$0xff]
    %v6454 = vld [vmem:[#allocation2 + $0x398] sm:$0xff]
    %v6455 = vld [vmem:[#allocation2 + $0x3a0] sm:$0xff]
    %v6456 = vld [vmem:[#allocation2 + $0x3a8] sm:$0xff]
    %v6457 = vld [vmem:[#allocation2 + $0x3b0] sm:$0xff]
    %v6458 = vld [vmem:[#allocation2 + $0x3b8] sm:$0xff]
    %v6459 = vld [vmem:[#allocation2 + $0x3c0] sm:$0xff]
    %v6460 = vld [vmem:[#allocation2 + $0x3c8] sm:$0xff]
    %v6461 = vld [vmem:[#allocation2 + $0x3d0] sm:$0xff]
    %v6462 = vld [vmem:[#allocation2 + $0x3d8] sm:$0xff]
    %v6463 = vld [vmem:[#allocation2 + $0x3e0] sm:$0xff]
    %v6464 = vld [vmem:[#allocation2 + $0x3e8] sm:$0xff]
    %v6465 = vld [vmem:[#allocation2 + $0x3f0] sm:$0xff]
    %v6466 = vld [vmem:[#allocation2 + $0x3f8] sm:$0xff]
    %v6467 = vld [vmem:[#allocation2 + $0x400] sm:$0xff]
    %v6468 = vld [vmem:[#allocation2 + $0x408] sm:$0xff]
    %v6469 = vld [vmem:[#allocation2 + $0x410] sm:$0xff]
    %v6470 = vld [vmem:[#allocation2 + $0x418] sm:$0xff]
    %v6471 = vld [vmem:[#allocation2 + $0x420] sm:$0xff]
    %v6472 = vld [vmem:[#allocation2 + $0x428] sm:$0xff]
    %v6473 = vld [vmem:[#allocation2 + $0x430] sm:$0xff]
    %v6474 = vld [vmem:[#allocation2 + $0x438] sm:$0xff]
    %v6475 = vld [vmem:[#allocation2 + $0x440] sm:$0xff]
    %v6476 = vld [vmem:[#allocation2 + $0x448] sm:$0xff]
    %v6477 = vld [vmem:[#allocation2 + $0x450] sm:$0xff]
    %v6478 = vld [vmem:[#allocation2 + $0x458] sm:$0xff]
    %v6479 = vld [vmem:[#allocation2 + $0x460] sm:$0xff]
    %v6480 = vld [vmem:[#allocation2 + $0x468] sm:$0xff]
    %v6481 = vld [vmem:[#allocation2 + $0x470] sm:$0xff]
    %v6482 = vld [vmem:[#allocation2 + $0x478] sm:$0xff]
    %v6483 = vld [vmem:[#allocation2 + $0x480] sm:$0xff]
    %v6484 = vld [vmem:[#allocation2 + $0x488] sm:$0xff]
    %v6485 = vld [vmem:[#allocation2 + $0x490] sm:$0xff]
    %v6486 = vld [vmem:[#allocation2 + $0x498] sm:$0xff]
    %v6487 = vld [vmem:[#allocation2 + $0x4a0] sm:$0xff]
    %v6488 = vld [vmem:[#allocation2 + $0x4a8] sm:$0xff]
    %v6489 = vld [vmem:[#allocation2 + $0x4b0] sm:$0xff]
    %v6490 = vld [vmem:[#allocation2 + $0x4b8] sm:$0xff]
    %v6491 = vld [vmem:[#allocation2 + $0x4c0] sm:$0xff]
    %v6492 = vld [vmem:[#allocation2 + $0x4c8] sm:$0xff]
    %v6493 = vld [vmem:[#allocation2 + $0x4d0] sm:$0xff]
    %v6494 = vld [vmem:[#allocation2 + $0x4d8] sm:$0xff]
    %v6495 = vld [vmem:[#allocation2 + $0x4e0] sm:$0xff]
    %v6496 = vld [vmem:[#allocation2 + $0x4e8] sm:$0xff]
    %v6497 = vld [vmem:[#allocation2 + $0x4f0] sm:$0xff]
    %v6498 = vld [vmem:[#allocation2 + $0x4f8] sm:$0xff]
    %v6499 = vld [vmem:[#allocation2 + $0x500] sm:$0xff]
    %v6500 = vld [vmem:[#allocation2 + $0x508] sm:$0xff]
    %v6501 = vld [vmem:[#allocation2 + $0x510] sm:$0xff]
    %v6502 = vld [vmem:[#allocation2 + $0x518] sm:$0xff]
    %v6503 = vld [vmem:[#allocation2 + $0x520] sm:$0xff]
    %v6504 = vld [vmem:[#allocation2 + $0x528] sm:$0xff]
    %v6505 = vld [vmem:[#allocation2 + $0x530] sm:$0xff]
    %v6506 = vld [vmem:[#allocation2 + $0x538] sm:$0xff]
    %v6507 = vld [vmem:[#allocation2 + $0x540] sm:$0xff]
    %v6508 = vld [vmem:[#allocation2 + $0x548] sm:$0xff]
    %v6509 = vld [vmem:[#allocation2 + $0x550] sm:$0xff]
    %v6510 = vld [vmem:[#allocation2 + $0x558] sm:$0xff]
    %v6511 = vld [vmem:[#allocation2 + $0x560] sm:$0xff]
    %v6512 = vld [vmem:[#allocation2 + $0x568] sm:$0xff]
    %v6513 = vld [vmem:[#allocation2 + $0x570] sm:$0xff]
    %v6514 = vld [vmem:[#allocation2 + $0x578] sm:$0xff]
    %v6515 = vld [vmem:[#allocation2 + $0x580] sm:$0xff]
    %v6516 = vld [vmem:[#allocation2 + $0x588] sm:$0xff]
    %v6517 = vld [vmem:[#allocation2 + $0x590] sm:$0xff]
    %v6518 = vld [vmem:[#allocation2 + $0x598] sm:$0xff]
    %v6519 = vld [vmem:[#allocation2 + $0x5a0] sm:$0xff]
    %v6520 = vld [vmem:[#allocation2 + $0x5a8] sm:$0xff]
    %v6521 = vld [vmem:[#allocation2 + $0x5b0] sm:$0xff]
    %v6522 = vld [vmem:[#allocation2 + $0x5b8] sm:$0xff]
    %v6523 = vld [vmem:[#allocation2 + $0x5c0] sm:$0xff]
    %v6524 = vld [vmem:[#allocation2 + $0x5c8] sm:$0xff]
    %v6525 = vld [vmem:[#allocation2 + $0x5d0] sm:$0xff]
    %v6526 = vld [vmem:[#allocation2 + $0x5d8] sm:$0xff]
    %v6527 = vld [vmem:[#allocation2 + $0x5e0] sm:$0xff]
    %v6528 = vld [vmem:[#allocation2 + $0x5e8] sm:$0xff]
    %v6529 = vld [vmem:[#allocation2 + $0x5f0] sm:$0xff]
    %v6530 = vld [vmem:[#allocation2 + $0x5f8] sm:$0xff]
    %v6531 = vld [vmem:[#allocation2 + $0x600] sm:$0xff]
    %v6532 = vld [vmem:[#allocation2 + $0x608] sm:$0xff]
    %v6533 = vld [vmem:[#allocation2 + $0x610] sm:$0xff]
    %v6534 = vld [vmem:[#allocation2 + $0x618] sm:$0xff]
    %v6535 = vld [vmem:[#allocation2 + $0x620] sm:$0xff]
    %v6536 = vld [vmem:[#allocation2 + $0x628] sm:$0xff]
    %v6537 = vld [vmem:[#allocation2 + $0x630] sm:$0xff]
    %v6538 = vld [vmem:[#allocation2 + $0x638] sm:$0xff]
    %v6539 = vld [vmem:[#allocation2 + $0x640] sm:$0xff]
    %v6540 = vld [vmem:[#allocation2 + $0x648] sm:$0xff]
    %v6541 = vld [vmem:[#allocation2 + $0x650] sm:$0xff]
    %v6542 = vld [vmem:[#allocation2 + $0x658] sm:$0xff]
    %v6543 = vld [vmem:[#allocation2 + $0x660] sm:$0xff]
    %v6544 = vld [vmem:[#allocation2 + $0x668] sm:$0xff]
    %v6545 = vld [vmem:[#allocation2 + $0x670] sm:$0xff]
    %v6546 = vld [vmem:[#allocation2 + $0x678] sm:$0xff]
    %v6547 = vld [vmem:[#allocation2 + $0x680] sm:$0xff]
    %v6548 = vld [vmem:[#allocation2 + $0x688] sm:$0xff]
    %v6549 = vld [vmem:[#allocation2 + $0x690] sm:$0xff]
    %v6550 = vld [vmem:[#allocation2 + $0x698] sm:$0xff]
    %v6551 = vld [vmem:[#allocation2 + $0x6a0] sm:$0xff]
    %v6552 = vld [vmem:[#allocation2 + $0x6a8] sm:$0xff]
    %v6553 = vld [vmem:[#allocation2 + $0x6b0] sm:$0xff]
    %v6554 = vld [vmem:[#allocation2 + $0x6b8] sm:$0xff]
    %v6555 = vld [vmem:[#allocation2 + $0x6c0] sm:$0xff]
    %v6556 = vld [vmem:[#allocation2 + $0x6c8] sm:$0xff]
    %v6557 = vld [vmem:[#allocation2 + $0x6d0] sm:$0xff]
    %v6558 = vld [vmem:[#allocation2 + $0x6d8] sm:$0xff]
    %v6559 = vld [vmem:[#allocation2 + $0x6e0] sm:$0xff]
    %v6560 = vld [vmem:[#allocation2 + $0x6e8] sm:$0xff]
    %v6561 = vld [vmem:[#allocation2 + $0x6f0] sm:$0xff]
    %v6562 = vld [vmem:[#allocation2 + $0x6f8] sm:$0xff]
    %v6563 = vld [vmem:[#allocation2 + $0x700] sm:$0xff]
    %v6564 = vld [vmem:[#allocation2 + $0x708] sm:$0xff]
    %v6565 = vld [vmem:[#allocation2 + $0x710] sm:$0xff]
    %v6566 = vld [vmem:[#allocation2 + $0x718] sm:$0xff]
    %v6567 = vld [vmem:[#allocation2 + $0x720] sm:$0xff]
    %v6568 = vld [vmem:[#allocation2 + $0x728] sm:$0xff]
    %v6569 = vld [vmem:[#allocation2 + $0x730] sm:$0xff]
    %v6570 = vld [vmem:[#allocation2 + $0x738] sm:$0xff]
    %v6571 = vld [vmem:[#allocation2 + $0x740] sm:$0xff]
    %v6572 = vld [vmem:[#allocation2 + $0x748] sm:$0xff]
    %v6573 = vld [vmem:[#allocation2 + $0x750] sm:$0xff]
    %v6574 = vld [vmem:[#allocation2 + $0x758] sm:$0xff]
    %v6575 = vld [vmem:[#allocation2 + $0x760] sm:$0xff]
    %v6576 = vld [vmem:[#allocation2 + $0x768] sm:$0xff]
    %v6577 = vld [vmem:[#allocation2 + $0x770] sm:$0xff]
    %v6578 = vld [vmem:[#allocation2 + $0x778] sm:$0xff]
    %v6579 = vld [vmem:[#allocation2 + $0x780] sm:$0xff]
    %v6580 = vld [vmem:[#allocation2 + $0x788] sm:$0xff]
    %v6581 = vld [vmem:[#allocation2 + $0x790] sm:$0xff]
    %v6582 = vld [vmem:[#allocation2 + $0x798] sm:$0xff]
    %v6583 = vld [vmem:[#allocation2 + $0x7a0] sm:$0xff]
    %v6584 = vld [vmem:[#allocation2 + $0x7a8] sm:$0xff]
    %v6585 = vld [vmem:[#allocation2 + $0x7b0] sm:$0xff]
    %v6586 = vld [vmem:[#allocation2 + $0x7b8] sm:$0xff]
    %v6587 = vld [vmem:[#allocation2 + $0x7c0] sm:$0xff]
    %v6588 = vld [vmem:[#allocation2 + $0x7c8] sm:$0xff]
    %v6589 = vld [vmem:[#allocation2 + $0x7d0] sm:$0xff]
    %v6590 = vld [vmem:[#allocation2 + $0x7d8] sm:$0xff]
    %v6591 = vld [vmem:[#allocation2 + $0x7e0] sm:$0xff]
    %v6592 = vld [vmem:[#allocation2 + $0x7e8] sm:$0xff]
    %v6593 = vld [vmem:[#allocation2 + $0x7f0] sm:$0xff]
    %v6594 = vld [vmem:[#allocation2 + $0x7f8] sm:$0xff]
    %v6595 = vld [vmem:[#allocation2 + $0x800] sm:$0xff]
    %v6596 = vld [vmem:[#allocation2 + $0x808] sm:$0xff]
    %v6597 = vld [vmem:[#allocation2 + $0x810] sm:$0xff]
    %v6598 = vld [vmem:[#allocation2 + $0x818] sm:$0xff]
    %v6599 = vld [vmem:[#allocation2 + $0x820] sm:$0xff]
    %v6600 = vld [vmem:[#allocation2 + $0x828] sm:$0xff]
    %v6601 = vld [vmem:[#allocation2 + $0x830] sm:$0xff]
    %v6602 = vld [vmem:[#allocation2 + $0x838] sm:$0xff]
    %v6603 = vld [vmem:[#allocation2 + $0x840] sm:$0xff]
    %v6604 = vld [vmem:[#allocation2 + $0x848] sm:$0xff]
    %v6605 = vld [vmem:[#allocation2 + $0x850] sm:$0xff]
    %v6606 = vld [vmem:[#allocation2 + $0x858] sm:$0xff]
    %v6607 = vld [vmem:[#allocation2 + $0x860] sm:$0xff]
    %v6608 = vld [vmem:[#allocation2 + $0x868] sm:$0xff]
    %v6609 = vld [vmem:[#allocation2 + $0x870] sm:$0xff]
    %v6610 = vld [vmem:[#allocation2 + $0x878] sm:$0xff]
    %v6611 = vld [vmem:[#allocation2 + $0x880] sm:$0xff]
    %v6612 = vld [vmem:[#allocation2 + $0x888] sm:$0xff]
    %v6613 = vld [vmem:[#allocation2 + $0x890] sm:$0xff]
    %v6614 = vld [vmem:[#allocation2 + $0x898] sm:$0xff]
    %v6615 = vld [vmem:[#allocation2 + $0x8a0] sm:$0xff]
    %v6616 = vld [vmem:[#allocation2 + $0x8a8] sm:$0xff]
    %v6617 = vld [vmem:[#allocation2 + $0x8b0] sm:$0xff]
    %v6618 = vld [vmem:[#allocation2 + $0x8b8] sm:$0xff]
    %v6619 = vld [vmem:[#allocation2 + $0x8c0] sm:$0xff]
    %v6620 = vld [vmem:[#allocation2 + $0x8c8] sm:$0xff]
    %v6621 = vld [vmem:[#allocation2 + $0x8d0] sm:$0xff]
    %v6622 = vld [vmem:[#allocation2 + $0x8d8] sm:$0xff]
    %v6623 = vld [vmem:[#allocation2 + $0x8e0] sm:$0xff]
    %v6624 = vld [vmem:[#allocation2 + $0x8e8] sm:$0xff]
    %v6625 = vld [vmem:[#allocation2 + $0x8f0] sm:$0xff]
    %v6626 = vld [vmem:[#allocation2 + $0x8f8] sm:$0xff]
    %v6627 = vld [vmem:[#allocation2 + $0x900] sm:$0xff]
    %v6628 = vld [vmem:[#allocation2 + $0x908] sm:$0xff]
    %v6629 = vld [vmem:[#allocation2 + $0x910] sm:$0xff]
    %v6630 = vld [vmem:[#allocation2 + $0x918] sm:$0xff]
    %v6631 = vld [vmem:[#allocation2 + $0x920] sm:$0xff]
    %v6632 = vld [vmem:[#allocation2 + $0x928] sm:$0xff]
    %v6633 = vld [vmem:[#allocation2 + $0x930] sm:$0xff]
    %v6634 = vld [vmem:[#allocation2 + $0x938] sm:$0xff]
    %v6635 = vld [vmem:[#allocation2 + $0x940] sm:$0xff]
    %v6636 = vld [vmem:[#allocation2 + $0x948] sm:$0xff]
    %v6637 = vld [vmem:[#allocation2 + $0x950] sm:$0xff]
    %v6638 = vld [vmem:[#allocation2 + $0x958] sm:$0xff]
    %v6639 = vld [vmem:[#allocation2 + $0x960] sm:$0xff]
    %v6640 = vld [vmem:[#allocation2 + $0x968] sm:$0xff]
    %v6641 = vld [vmem:[#allocation2 + $0x970] sm:$0xff]
    %v6642 = vld [vmem:[#allocation2 + $0x978] sm:$0xff]
    %v6643 = vld [vmem:[#allocation2 + $0x980] sm:$0xff]
    %v6644 = vld [vmem:[#allocation2 + $0x988] sm:$0xff]
    %v6645 = vld [vmem:[#allocation2 + $0x990] sm:$0xff]
    %v6646 = vld [vmem:[#allocation2 + $0x998] sm:$0xff]
    %v6647 = vld [vmem:[#allocation2 + $0x9a0] sm:$0xff]
    %v6648 = vld [vmem:[#allocation2 + $0x9a8] sm:$0xff]
    %v6649 = vld [vmem:[#allocation2 + $0x9b0] sm:$0xff]
    %v6650 = vld [vmem:[#allocation2 + $0x9b8] sm:$0xff]
    %v6651 = vld [vmem:[#allocation2 + $0x9c0] sm:$0xff]
    %v6652 = vld [vmem:[#allocation2 + $0x9c8] sm:$0xff]
    %v6653 = vld [vmem:[#allocation2 + $0x9d0] sm:$0xff]
    %v6654 = vld [vmem:[#allocation2 + $0x9d8] sm:$0xff]
    %v6655 = vld [vmem:[#allocation2 + $0x9e0] sm:$0xff]
    %v6656 = vld [vmem:[#allocation2 + $0x9e8] sm:$0xff]
    %v6657 = vld [vmem:[#allocation2 + $0x9f0] sm:$0xff]
    %v6658 = vld [vmem:[#allocation2 + $0x9f8] sm:$0xff]
    %v6659 = vld [vmem:[#allocation2 + $0xa00] sm:$0xff]
    %v6660 = vld [vmem:[#allocation2 + $0xa08] sm:$0xff]
    %v6661 = vld [vmem:[#allocation2 + $0xa10] sm:$0xff]
    %v6662 = vld [vmem:[#allocation2 + $0xa18] sm:$0xff]
    %v6663 = vld [vmem:[#allocation2 + $0xa20] sm:$0xff]
    %v6664 = vld [vmem:[#allocation2 + $0xa28] sm:$0xff]
    %v6665 = vld [vmem:[#allocation2 + $0xa30] sm:$0xff]
    %v6666 = vld [vmem:[#allocation2 + $0xa38] sm:$0xff]
    %v6667 = vld [vmem:[#allocation2 + $0xa40] sm:$0xff]
    %v6668 = vld [vmem:[#allocation2 + $0xa48] sm:$0xff]
    %v6669 = vld [vmem:[#allocation2 + $0xa50] sm:$0xff]
    %v6670 = vld [vmem:[#allocation2 + $0xa58] sm:$0xff]
    %v6671 = vld [vmem:[#allocation2 + $0xa60] sm:$0xff]
    %v6672 = vld [vmem:[#allocation2 + $0xa68] sm:$0xff]
    %v6673 = vld [vmem:[#allocation2 + $0xa70] sm:$0xff]
    %v6674 = vld [vmem:[#allocation2 + $0xa78] sm:$0xff]
    %v6675 = vld [vmem:[#allocation2 + $0xa80] sm:$0xff]
    %v6676 = vld [vmem:[#allocation2 + $0xa88] sm:$0xff]
    %v6677 = vld [vmem:[#allocation2 + $0xa90] sm:$0xff]
    %v6678 = vld [vmem:[#allocation2 + $0xa98] sm:$0xff]
    %v6679 = vld [vmem:[#allocation2 + $0xaa0] sm:$0xff]
    %v6680 = vld [vmem:[#allocation2 + $0xaa8] sm:$0xff]
    %v6681 = vld [vmem:[#allocation2 + $0xab0] sm:$0xff]
    %v6682 = vld [vmem:[#allocation2 + $0xab8] sm:$0xff]
    %v6683 = vld [vmem:[#allocation2 + $0xac0] sm:$0xff]
    %v6684 = vld [vmem:[#allocation2 + $0xac8] sm:$0xff]
    %v6685 = vld [vmem:[#allocation2 + $0xad0] sm:$0xff]
    %v6686 = vld [vmem:[#allocation2 + $0xad8] sm:$0xff]
    %v6687 = vld [vmem:[#allocation2 + $0xae0] sm:$0xff]
    %v6688 = vld [vmem:[#allocation2 + $0xae8] sm:$0xff]
    %v6689 = vld [vmem:[#allocation2 + $0xaf0] sm:$0xff]
    %v6690 = vld [vmem:[#allocation2 + $0xaf8] sm:$0xff]
    %v6691 = vld [vmem:[#allocation2 + $0xb00] sm:$0xff]
    %v6692 = vld [vmem:[#allocation2 + $0xb08] sm:$0xff]
    %v6693 = vld [vmem:[#allocation2 + $0xb10] sm:$0xff]
    %v6694 = vld [vmem:[#allocation2 + $0xb18] sm:$0xff]
    %v6695 = vld [vmem:[#allocation2 + $0xb20] sm:$0xff]
    %v6696 = vld [vmem:[#allocation2 + $0xb28] sm:$0xff]
    %v6697 = vld [vmem:[#allocation2 + $0xb30] sm:$0xff]
    %v6698 = vld [vmem:[#allocation2 + $0xb38] sm:$0xff]
    %v6699 = vld [vmem:[#allocation2 + $0xb40] sm:$0xff]
    %v6700 = vld [vmem:[#allocation2 + $0xb48] sm:$0xff]
    %v6701 = vld [vmem:[#allocation2 + $0xb50] sm:$0xff]
    %v6702 = vld [vmem:[#allocation2 + $0xb58] sm:$0xff]
    %v6703 = vld [vmem:[#allocation2 + $0xb60] sm:$0xff]
    %v6704 = vld [vmem:[#allocation2 + $0xb68] sm:$0xff]
    %v6705 = vld [vmem:[#allocation2 + $0xb70] sm:$0xff]
    %v6706 = vld [vmem:[#allocation2 + $0xb78] sm:$0xff]
    %v6707 = vld [vmem:[#allocation2 + $0xb80] sm:$0xff]
    %v6708 = vld [vmem:[#allocation2 + $0xb88] sm:$0xff]
    %v6709 = vld [vmem:[#allocation2 + $0xb90] sm:$0xff]
    %v6710 = vld [vmem:[#allocation2 + $0xb98] sm:$0xff]
    %v6711 = vld [vmem:[#allocation2 + $0xba0] sm:$0xff]
    %v6712 = vld [vmem:[#allocation2 + $0xba8] sm:$0xff]
    %v6713 = vld [vmem:[#allocation2 + $0xbb0] sm:$0xff]
    %v6714 = vld [vmem:[#allocation2 + $0xbb8] sm:$0xff]
    %v6715 = vld [vmem:[#allocation2 + $0xbc0] sm:$0xff]
    %v6716 = vld [vmem:[#allocation2 + $0xbc8] sm:$0xff]
    %v6717 = vld [vmem:[#allocation2 + $0xbd0] sm:$0xff]
    %v6718 = vld [vmem:[#allocation2 + $0xbd8] sm:$0xff]
    %v6719 = vld [vmem:[#allocation2 + $0xbe0] sm:$0xff]
    %v6720 = vld [vmem:[#allocation2 + $0xbe8] sm:$0xff]
    %v6721 = vld [vmem:[#allocation2 + $0xbf0] sm:$0xff]
    %v6722 = vld [vmem:[#allocation2 + $0xbf8] sm:$0xff]
    %v6723 = vld [vmem:[%s2] sm:$0xff]
    %v6724 = vld [vmem:[%s2 + $0x8] sm:$0xff]
    %v6725 = vld [vmem:[%s2 + $0x10] sm:$0xf]
    %6727 = vset.pattern.permute.xlu0 0
    %6728 = vperm.xlu0 %6727, %v6723
    %v6729 = vpop.permute.xlu0 %6728
    %6732 = vset.pattern.permute.xlu0 0
    %6733 = vperm.xlu0 %6732, %v6724
    %v6734 = vpop.permute.xlu0 %6733
    %6737 = vset.pattern.permute.xlu0 0
    %6738 = vperm.xlu0 %6737, %v6725
    %v6739 = vpop.permute.xlu0 %6738
    %6741 = vmatprep.subr.mxu0 %v6385
    %6742 = vmatpush1.msra.mxu0 %v6384
    %6743 = vmatprep.subr.mxu0 %v6382
    %6744 = vmatpush1.msra.mxu0 %v6381
    %6745 = vmatprep.subr.mxu0 %v6379
    %6746 = vmatpush1.msra.mxu0 %v6378
    %6747 = vmatprep.subr.mxu0 %v6376
    %6748 = vmatpush1.msra.mxu0 %v6375
    %6749 = vmatprep.subr.mxu0 %v6373
    %6750 = vmatpush1.msra.mxu0 %v6372
    %6751 = vmatprep.subr.mxu0 %v6370
    %6752 = vmatpush1.msra.mxu0 %v6369
    %6753 = vmatprep.subr.mxu0 %v6367
    %6754 = vmatpush1.msra.mxu0 %v6366
    %6755 = vmatprep.subr.mxu0 %v6364
    %6756 = vmatpush1.msra.mxu0 %v6363
    %6757 = vmatprep.subr.mxu0 %v6361
    %6758 = vmatpush1.msra.mxu0 %v6360
    %6759 = vmatprep.subr.mxu0 %v6358
    %6760 = vmatpush1.msra.mxu0 %v6357
    %6761 = vmatprep.subr.mxu0 %v6355
    %6762 = vmatpush1.msra.mxu0 %v6354
    %6763 = vmatprep.subr.mxu0 %v6352
    %6764 = vmatpush1.msra.mxu0 %v6351
    %6765 = vmatprep.subr.mxu0 %v6349
    %6766 = vmatpush1.msra.mxu0 %v6348
    %6767 = vmatprep.subr.mxu0 %v6346
    %6768 = vmatpush1.msra.mxu0 %v6345
    %6769 = vmatprep.subr.mxu0 %v6343
    %6770 = vmatpush1.msra.mxu0 %v6342
    %6771 = vmatprep.subr.mxu0 %v6340
    %6772 = vmatpush1.msra.mxu0 %v6339
    %6773 = vmatprep.subr.mxu0 %v6433
    %6774 = vmatpush2.msra.mxu0 %v6432
    %6775 = vmatprep.subr.mxu0 %v6430
    %6776 = vmatpush2.msra.mxu0 %v6429
    %6777 = vmatprep.subr.mxu0 %v6427
    %6778 = vmatpush2.msra.mxu0 %v6426
    %6779 = vmatprep.subr.mxu0 %v6424
    %6780 = vmatpush2.msra.mxu0 %v6423
    %6781 = vmatprep.subr.mxu0 %v6421
    %6782 = vmatpush2.msra.mxu0 %v6420
    %6783 = vmatprep.subr.mxu0 %v6418
    %6784 = vmatpush2.msra.mxu0 %v6417
    %6785 = vmatprep.subr.mxu0 %v6415
    %6786 = vmatpush2.msra.mxu0 %v6414
    %6787 = vmatprep.subr.mxu0 %v6412
    %6788 = vmatpush2.msra.mxu0 %v6411
    %6789 = vmatprep.subr.mxu0 %v6409
    %6790 = vmatpush2.msra.mxu0 %v6408
    %6791 = vmatprep.subr.mxu0 %v6406
    %6792 = vmatpush2.msra.mxu0 %v6405
    %6793 = vmatprep.subr.mxu0 %v6403
    %6794 = vmatpush2.msra.mxu0 %v6402
    %6795 = vmatprep.subr.mxu0 %v6400
    %6796 = vmatpush2.msra.mxu0 %v6399
    %6797 = vmatprep.subr.mxu0 %v6397
    %6798 = vmatpush2.msra.mxu0 %v6396
    %6799 = vmatprep.subr.mxu0 %v6394
    %6800 = vmatpush2.msra.mxu0 %v6393
    %6801 = vmatprep.subr.mxu0 %v6391
    %6802 = vmatpush2.msra.mxu0 %v6390
    %6803 = vmatprep.subr.mxu0 %v6388
    %6804 = vmatpush2.msra.mxu0 %v6387
    %6805 = vmatprep.mubr.f32.mxu0 %v6316
    %6806 = vmatmul.mubr.f32.gmra.mxu0 %v6315
    %v6807 = vpop.f32.mrf.mxu0
    %v6808 = vadd.f32 %v6729, %v6807
    %v6809 = vpop.f32.mrf.mxu0
    %v6810 = vadd.f32 %v6729, %v6809
    %6811 = vmatprep.mubr.f32.mxu0 %v6324
    %6812 = vmatmul.mubr.f32.gmra.mxu0 %v6323
    %v6813 = vpop.f32.mrf.mxu0
    %v6814 = vadd.f32 %v6734, %v6813
    %v6815 = vpop.f32.mrf.mxu0
    %v6816 = vadd.f32 %v6734, %v6815
    %6817 = vmatprep.mubr.f32.mxu0 %v6332
    %6818 = vmatmul.mubr.f32.gmra.mxu0 %v6331
    %v6819 = vpop.f32.mrf.mxu0
    %v6820 = vadd.f32 %v6739, %v6819
    %v6821 = vpop.f32.mrf.mxu0
    %v6822 = vadd.f32 %v6739, %v6821
    %6823 = vdwg.mxu0
    %6824 = vmatprep.subr.mxu0 %v6481
    %6825 = vmatpush1.msra.mxu0 %v6480
    %6826 = vmatprep.subr.mxu0 %v6478
    %6827 = vmatpush1.msra.mxu0 %v6477
    %6828 = vmatprep.subr.mxu0 %v6475
    %6829 = vmatpush1.msra.mxu0 %v6474
    %6830 = vmatprep.subr.mxu0 %v6472
    %6831 = vmatpush1.msra.mxu0 %v6471
    %6832 = vmatprep.subr.mxu0 %v6469
    %6833 = vmatpush1.msra.mxu0 %v6468
    %6834 = vmatprep.subr.mxu0 %v6466
    %6835 = vmatpush1.msra.mxu0 %v6465
    %6836 = vmatprep.subr.mxu0 %v6463
    %6837 = vmatpush1.msra.mxu0 %v6462
    %6838 = vmatprep.subr.mxu0 %v6460
    %6839 = vmatpush1.msra.mxu0 %v6459
    %6840 = vmatprep.subr.mxu0 %v6457
    %6841 = vmatpush1.msra.mxu0 %v6456
    %6842 = vmatprep.subr.mxu0 %v6454
    %6843 = vmatpush1.msra.mxu0 %v6453
    %6844 = vmatprep.subr.mxu0 %v6451
    %6845 = vmatpush1.msra.mxu0 %v6450
    %6846 = vmatprep.subr.mxu0 %v6448
    %6847 = vmatpush1.msra.mxu0 %v6447
    %6848 = vmatprep.subr.mxu0 %v6445
    %6849 = vmatpush1.msra.mxu0 %v6444
    %6850 = vmatprep.subr.mxu0 %v6442
    %6851 = vmatpush1.msra.mxu0 %v6441
    %6852 = vmatprep.subr.mxu0 %v6439
    %6853 = vmatpush1.msra.mxu0 %v6438
    %6854 = vmatprep.subr.mxu0 %v6436
    %6855 = vmatpush1.msra.mxu0 %v6435
    %6856 = vmatprep.subr.mxu0 %v6529
    %6857 = vmatpush2.msra.mxu0 %v6528
    %6858 = vmatprep.subr.mxu0 %v6526
    %6859 = vmatpush2.msra.mxu0 %v6525
    %6860 = vmatprep.subr.mxu0 %v6523
    %6861 = vmatpush2.msra.mxu0 %v6522
    %6862 = vmatprep.subr.mxu0 %v6520
    %6863 = vmatpush2.msra.mxu0 %v6519
    %6864 = vmatprep.subr.mxu0 %v6517
    %6865 = vmatpush2.msra.mxu0 %v6516
    %6866 = vmatprep.subr.mxu0 %v6514
    %6867 = vmatpush2.msra.mxu0 %v6513
    %6868 = vmatprep.subr.mxu0 %v6511
    %6869 = vmatpush2.msra.mxu0 %v6510
    %6870 = vmatprep.subr.mxu0 %v6508
    %6871 = vmatpush2.msra.mxu0 %v6507
    %6872 = vmatprep.subr.mxu0 %v6505
    %6873 = vmatpush2.msra.mxu0 %v6504
    %6874 = vmatprep.subr.mxu0 %v6502
    %6875 = vmatpush2.msra.mxu0 %v6501
    %6876 = vmatprep.subr.mxu0 %v6499
    %6877 = vmatpush2.msra.mxu0 %v6498
    %6878 = vmatprep.subr.mxu0 %v6496
    %6879 = vmatpush2.msra.mxu0 %v6495
    %6880 = vmatprep.subr.mxu0 %v6493
    %6881 = vmatpush2.msra.mxu0 %v6492
    %6882 = vmatprep.subr.mxu0 %v6490
    %6883 = vmatpush2.msra.mxu0 %v6489
    %6884 = vmatprep.subr.mxu0 %v6487
    %6885 = vmatpush2.msra.mxu0 %v6486
    %6886 = vmatprep.subr.mxu0 %v6484
    %6887 = vmatpush2.msra.mxu0 %v6483
    %6888 = vmatprep.mubr.f32.mxu0 %v6318
    %6889 = vmatmul.mubr.f32.gmra.mxu0 %v6317
    %v6890 = vpop.f32.mrf.mxu0
    %v6891 = vadd.f32 %v6808, %v6890
    %v6892 = vpop.f32.mrf.mxu0
    %v6893 = vadd.f32 %v6810, %v6892
    %6894 = vmatprep.mubr.f32.mxu0 %v6326
    %6895 = vmatmul.mubr.f32.gmra.mxu0 %v6325
    %v6896 = vpop.f32.mrf.mxu0
    %v6897 = vadd.f32 %v6814, %v6896
    %v6898 = vpop.f32.mrf.mxu0
    %v6899 = vadd.f32 %v6816, %v6898
    %6900 = vmatprep.mubr.f32.mxu0 %v6334
    %6901 = vmatmul.mubr.f32.gmra.mxu0 %v6333
    %v6902 = vpop.f32.mrf.mxu0
    %v6903 = vadd.f32 %v6820, %v6902
    %v6904 = vpop.f32.mrf.mxu0
    %v6905 = vadd.f32 %v6822, %v6904
    %6906 = vdwg.mxu0
    %6907 = vmatprep.subr.mxu0 %v6577
    %6908 = vmatpush1.msra.mxu0 %v6576
    %6909 = vmatprep.subr.mxu0 %v6574
    %6910 = vmatpush1.msra.mxu0 %v6573
    %6911 = vmatprep.subr.mxu0 %v6571
    %6912 = vmatpush1.msra.mxu0 %v6570
    %6913 = vmatprep.subr.mxu0 %v6568
    %6914 = vmatpush1.msra.mxu0 %v6567
    %6915 = vmatprep.subr.mxu0 %v6565
    %6916 = vmatpush1.msra.mxu0 %v6564
    %6917 = vmatprep.subr.mxu0 %v6562
    %6918 = vmatpush1.msra.mxu0 %v6561
    %6919 = vmatprep.subr.mxu0 %v6559
    %6920 = vmatpush1.msra.mxu0 %v6558
    %6921 = vmatprep.subr.mxu0 %v6556
    %6922 = vmatpush1.msra.mxu0 %v6555
    %6923 = vmatprep.subr.mxu0 %v6553
    %6924 = vmatpush1.msra.mxu0 %v6552
    %6925 = vmatprep.subr.mxu0 %v6550
    %6926 = vmatpush1.msra.mxu0 %v6549
    %6927 = vmatprep.subr.mxu0 %v6547
    %6928 = vmatpush1.msra.mxu0 %v6546
    %6929 = vmatprep.subr.mxu0 %v6544
    %6930 = vmatpush1.msra.mxu0 %v6543
    %6931 = vmatprep.subr.mxu0 %v6541
    %6932 = vmatpush1.msra.mxu0 %v6540
    %6933 = vmatprep.subr.mxu0 %v6538
    %6934 = vmatpush1.msra.mxu0 %v6537
    %6935 = vmatprep.subr.mxu0 %v6535
    %6936 = vmatpush1.msra.mxu0 %v6534
    %6937 = vmatprep.subr.mxu0 %v6532
    %6938 = vmatpush1.msra.mxu0 %v6531
    %6939 = vmatprep.subr.mxu0 %v6625
    %6940 = vmatpush2.msra.mxu0 %v6624
    %6941 = vmatprep.subr.mxu0 %v6622
    %6942 = vmatpush2.msra.mxu0 %v6621
    %6943 = vmatprep.subr.mxu0 %v6619
    %6944 = vmatpush2.msra.mxu0 %v6618
    %6945 = vmatprep.subr.mxu0 %v6616
    %6946 = vmatpush2.msra.mxu0 %v6615
    %6947 = vmatprep.subr.mxu0 %v6613
    %6948 = vmatpush2.msra.mxu0 %v6612
    %6949 = vmatprep.subr.mxu0 %v6610
    %6950 = vmatpush2.msra.mxu0 %v6609
    %6951 = vmatprep.subr.mxu0 %v6607
    %6952 = vmatpush2.msra.mxu0 %v6606
    %6953 = vmatprep.subr.mxu0 %v6604
    %6954 = vmatpush2.msra.mxu0 %v6603
    %6955 = vmatprep.subr.mxu0 %v6601
    %6956 = vmatpush2.msra.mxu0 %v6600
    %6957 = vmatprep.subr.mxu0 %v6598
    %6958 = vmatpush2.msra.mxu0 %v6597
    %6959 = vmatprep.subr.mxu0 %v6595
    %6960 = vmatpush2.msra.mxu0 %v6594
    %6961 = vmatprep.subr.mxu0 %v6592
    %6962 = vmatpush2.msra.mxu0 %v6591
    %6963 = vmatprep.subr.mxu0 %v6589
    %6964 = vmatpush2.msra.mxu0 %v6588
    %6965 = vmatprep.subr.mxu0 %v6586
    %6966 = vmatpush2.msra.mxu0 %v6585
    %6967 = vmatprep.subr.mxu0 %v6583
    %6968 = vmatpush2.msra.mxu0 %v6582
    %6969 = vmatprep.subr.mxu0 %v6580
    %6970 = vmatpush2.msra.mxu0 %v6579
    %6971 = vmatprep.mubr.f32.mxu0 %v6320
    %6972 = vmatmul.mubr.f32.gmra.mxu0 %v6319
    %v6973 = vpop.f32.mrf.mxu0
    %v6974 = vadd.f32 %v6891, %v6973
    %v6975 = vpop.f32.mrf.mxu0
    %v6976 = vadd.f32 %v6893, %v6975
    %6977 = vmatprep.mubr.f32.mxu0 %v6328
    %6978 = vmatmul.mubr.f32.gmra.mxu0 %v6327
    %v6979 = vpop.f32.mrf.mxu0
    %v6980 = vadd.f32 %v6897, %v6979
    %v6981 = vpop.f32.mrf.mxu0
    %v6982 = vadd.f32 %v6899, %v6981
    %6983 = vmatprep.mubr.f32.mxu0 %v6336
    %6984 = vmatmul.mubr.f32.gmra.mxu0 %v6335
    %v6985 = vpop.f32.mrf.mxu0
    %v6986 = vadd.f32 %v6903, %v6985
    %v6987 = vpop.f32.mrf.mxu0
    %v6988 = vadd.f32 %v6905, %v6987
    %6989 = vdwg.mxu0
    %6990 = vmatprep.subr.mxu0 %v6673
    %6991 = vmatpush1.msra.mxu0 %v6672
    %6992 = vmatprep.subr.mxu0 %v6670
    %6993 = vmatpush1.msra.mxu0 %v6669
    %6994 = vmatprep.subr.mxu0 %v6667
    %6995 = vmatpush1.msra.mxu0 %v6666
    %6996 = vmatprep.subr.mxu0 %v6664
    %6997 = vmatpush1.msra.mxu0 %v6663
    %6998 = vmatprep.subr.mxu0 %v6661
    %6999 = vmatpush1.msra.mxu0 %v6660
    %7000 = vmatprep.subr.mxu0 %v6658
    %7001 = vmatpush1.msra.mxu0 %v6657
    %7002 = vmatprep.subr.mxu0 %v6655
    %7003 = vmatpush1.msra.mxu0 %v6654
    %7004 = vmatprep.subr.mxu0 %v6652
    %7005 = vmatpush1.msra.mxu0 %v6651
    %7006 = vmatprep.subr.mxu0 %v6649
    %7007 = vmatpush1.msra.mxu0 %v6648
    %7008 = vmatprep.subr.mxu0 %v6646
    %7009 = vmatpush1.msra.mxu0 %v6645
    %7010 = vmatprep.subr.mxu0 %v6643
    %7011 = vmatpush1.msra.mxu0 %v6642
    %7012 = vmatprep.subr.mxu0 %v6640
    %7013 = vmatpush1.msra.mxu0 %v6639
    %7014 = vmatprep.subr.mxu0 %v6637
    %7015 = vmatpush1.msra.mxu0 %v6636
    %7016 = vmatprep.subr.mxu0 %v6634
    %7017 = vmatpush1.msra.mxu0 %v6633
    %7018 = vmatprep.subr.mxu0 %v6631
    %7019 = vmatpush1.msra.mxu0 %v6630
    %7020 = vmatprep.subr.mxu0 %v6628
    %7021 = vmatpush1.msra.mxu0 %v6627
    %7022 = vmatprep.subr.mxu0 %v6721
    %7023 = vmatpush2.msra.mxu0 %v6720
    %7024 = vmatprep.subr.mxu0 %v6718
    %7025 = vmatpush2.msra.mxu0 %v6717
    %7026 = vmatprep.subr.mxu0 %v6715
    %7027 = vmatpush2.msra.mxu0 %v6714
    %7028 = vmatprep.subr.mxu0 %v6712
    %7029 = vmatpush2.msra.mxu0 %v6711
    %7030 = vmatprep.subr.mxu0 %v6709
    %7031 = vmatpush2.msra.mxu0 %v6708
    %7032 = vmatprep.subr.mxu0 %v6706
    %7033 = vmatpush2.msra.mxu0 %v6705
    %7034 = vmatprep.subr.mxu0 %v6703
    %7035 = vmatpush2.msra.mxu0 %v6702
    %7036 = vmatprep.subr.mxu0 %v6700
    %7037 = vmatpush2.msra.mxu0 %v6699
    %7038 = vmatprep.subr.mxu0 %v6697
    %7039 = vmatpush2.msra.mxu0 %v6696
    %7040 = vmatprep.subr.mxu0 %v6694
    %7041 = vmatpush2.msra.mxu0 %v6693
    %7042 = vmatprep.subr.mxu0 %v6691
    %7043 = vmatpush2.msra.mxu0 %v6690
    %7044 = vmatprep.subr.mxu0 %v6688
    %7045 = vmatpush2.msra.mxu0 %v6687
    %7046 = vmatprep.subr.mxu0 %v6685
    %7047 = vmatpush2.msra.mxu0 %v6684
    %7048 = vmatprep.subr.mxu0 %v6682
    %7049 = vmatpush2.msra.mxu0 %v6681
    %7050 = vmatprep.subr.mxu0 %v6679
    %7051 = vmatpush2.msra.mxu0 %v6678
    %7052 = vmatprep.subr.mxu0 %v6676
    %7053 = vmatpush2.msra.mxu0 %v6675
    %7054 = vmatprep.mubr.f32.mxu0 %v6322
    %7055 = vmatmul.mubr.f32.gmra.mxu0 %v6321
    %v7056 = vpop.f32.mrf.mxu0
    %v7057 = vadd.f32 %v6974, %v7056
    %v7058 = vpop.f32.mrf.mxu0
    %v7059 = vadd.f32 %v6976, %v7058
    %7060 = vmatprep.mubr.f32.mxu0 %v6330
    %7061 = vmatmul.mubr.f32.gmra.mxu0 %v6329
    %v7062 = vpop.f32.mrf.mxu0
    %v7063 = vadd.f32 %v6980, %v7062
    %v7064 = vpop.f32.mrf.mxu0
    %v7065 = vadd.f32 %v6982, %v7064
    %7066 = vmatprep.mubr.f32.mxu0 %v6338
    %7067 = vmatmul.mubr.f32.gmra.mxu0 %v6337
    %v7068 = vpop.f32.mrf.mxu0
    %v7069 = vadd.f32 %v6986, %v7068
    %v7070 = vpop.f32.mrf.mxu0
    %v7071 = vadd.f32 %v6988, %v7070
    %7072 = vdwg.mxu0
    %7073 = vmatprep.subr.mxu0 0.0
    %7074 = vmatpush1.msra.mxu0 %v6386
    %7075 = vmatprep.subr.mxu0 0.0
    %7076 = vmatpush1.msra.mxu0 %v6383
    %7077 = vmatprep.subr.mxu0 0.0
    %7078 = vmatpush1.msra.mxu0 %v6380
    %7079 = vmatprep.subr.mxu0 0.0
    %7080 = vmatpush1.msra.mxu0 %v6377
    %7081 = vmatprep.subr.mxu0 0.0
    %7082 = vmatpush1.msra.mxu0 %v6374
    %7083 = vmatprep.subr.mxu0 0.0
    %7084 = vmatpush1.msra.mxu0 %v6371
    %7085 = vmatprep.subr.mxu0 0.0
    %7086 = vmatpush1.msra.mxu0 %v6368
    %7087 = vmatprep.subr.mxu0 0.0
    %7088 = vmatpush1.msra.mxu0 %v6365
    %7089 = vmatprep.subr.mxu0 0.0
    %7090 = vmatpush1.msra.mxu0 %v6362
    %7091 = vmatprep.subr.mxu0 0.0
    %7092 = vmatpush1.msra.mxu0 %v6359
    %7093 = vmatprep.subr.mxu0 0.0
    %7094 = vmatpush1.msra.mxu0 %v6356
    %7095 = vmatprep.subr.mxu0 0.0
    %7096 = vmatpush1.msra.mxu0 %v6353
    %7097 = vmatprep.subr.mxu0 0.0
    %7098 = vmatpush1.msra.mxu0 %v6350
    %7099 = vmatprep.subr.mxu0 0.0
    %7100 = vmatpush1.msra.mxu0 %v6347
    %7101 = vmatprep.subr.mxu0 0.0
    %7102 = vmatpush1.msra.mxu0 %v6344
    %7103 = vmatprep.subr.mxu0 0.0
    %7104 = vmatpush1.msra.mxu0 %v6341
    %7105 = vmatprep.subr.mxu0 0.0
    %7106 = vmatpush2.msra.mxu0 %v6434
    %7107 = vmatprep.subr.mxu0 0.0
    %7108 = vmatpush2.msra.mxu0 %v6431
    %7109 = vmatprep.subr.mxu0 0.0
    %7110 = vmatpush2.msra.mxu0 %v6428
    %7111 = vmatprep.subr.mxu0 0.0
    %7112 = vmatpush2.msra.mxu0 %v6425
    %7113 = vmatprep.subr.mxu0 0.0
    %7114 = vmatpush2.msra.mxu0 %v6422
    %7115 = vmatprep.subr.mxu0 0.0
    %7116 = vmatpush2.msra.mxu0 %v6419
    %7117 = vmatprep.subr.mxu0 0.0
    %7118 = vmatpush2.msra.mxu0 %v6416
    %7119 = vmatprep.subr.mxu0 0.0
    %7120 = vmatpush2.msra.mxu0 %v6413
    %7121 = vmatprep.subr.mxu0 0.0
    %7122 = vmatpush2.msra.mxu0 %v6410
    %7123 = vmatprep.subr.mxu0 0.0
    %7124 = vmatpush2.msra.mxu0 %v6407
    %7125 = vmatprep.subr.mxu0 0.0
    %7126 = vmatpush2.msra.mxu0 %v6404
    %7127 = vmatprep.subr.mxu0 0.0
    %7128 = vmatpush2.msra.mxu0 %v6401
    %7129 = vmatprep.subr.mxu0 0.0
    %7130 = vmatpush2.msra.mxu0 %v6398
    %7131 = vmatprep.subr.mxu0 0.0
    %7132 = vmatpush2.msra.mxu0 %v6395
    %7133 = vmatprep.subr.mxu0 0.0
    %7134 = vmatpush2.msra.mxu0 %v6392
    %7135 = vmatprep.subr.mxu0 0.0
    %7136 = vmatpush2.msra.mxu0 %v6389
    %7137 = vmatprep.mubr.f32.mxu0 %v6316
    %7138 = vmatmul.mubr.f32.gmra.mxu0 %v6315
    %v7139 = vpop.f32.mrf.mxu0
    %v7140 = vadd.f32 %v6729, %v7139
    %v7141 = vpop.f32.mrf.mxu0
    %7142 = vmatprep.mubr.f32.mxu0 %v6324
    %7143 = vmatmul.mubr.f32.gmra.mxu0 %v6323
    %v7144 = vpop.f32.mrf.mxu0
    %v7145 = vadd.f32 %v6734, %v7144
    %v7146 = vpop.f32.mrf.mxu0
    %7147 = vmatprep.mubr.f32.mxu0 %v6332
    %7148 = vmatmul.mubr.f32.gmra.mxu0 %v6331
    %v7149 = vpop.f32.mrf.mxu0
    %v7150 = vadd.f32 %v6739, %v7149
    %v7151 = vpop.f32.mrf.mxu0
    %7152 = vdwg.mxu0
    %7153 = vmatprep.subr.mxu0 0.0
    %7154 = vmatpush1.msra.mxu0 %v6482
    %7155 = vmatprep.subr.mxu0 0.0
    %7156 = vmatpush1.msra.mxu0 %v6479
    %7157 = vmatprep.subr.mxu0 0.0
    %7158 = vmatpush1.msra.mxu0 %v6476
    %7159 = vmatprep.subr.mxu0 0.0
    %7160 = vmatpush1.msra.mxu0 %v6473
    %7161 = vmatprep.subr.mxu0 0.0
    %7162 = vmatpush1.msra.mxu0 %v6470
    %7163 = vmatprep.subr.mxu0 0.0
    %7164 = vmatpush1.msra.mxu0 %v6467
    %7165 = vmatprep.subr.mxu0 0.0
    %7166 = vmatpush1.msra.mxu0 %v6464
    %7167 = vmatprep.subr.mxu0 0.0
    %7168 = vmatpush1.msra.mxu0 %v6461
    %7169 = vmatprep.subr.mxu0 0.0
    %7170 = vmatpush1.msra.mxu0 %v6458
    %7171 = vmatprep.subr.mxu0 0.0
    %7172 = vmatpush1.msra.mxu0 %v6455
    %7173 = vmatprep.subr.mxu0 0.0
    %7174 = vmatpush1.msra.mxu0 %v6452
    %7175 = vmatprep.subr.mxu0 0.0
    %7176 = vmatpush1.msra.mxu0 %v6449
    %7177 = vmatprep.subr.mxu0 0.0
    %7178 = vmatpush1.msra.mxu0 %v6446
    %7179 = vmatprep.subr.mxu0 0.0
    %7180 = vmatpush1.msra.mxu0 %v6443
    %7181 = vmatprep.subr.mxu0 0.0
    %7182 = vmatpush1.msra.mxu0 %v6440
    %7183 = vmatprep.subr.mxu0 0.0
    %7184 = vmatpush1.msra.mxu0 %v6437
    %7185 = vmatprep.subr.mxu0 0.0
    %7186 = vmatpush2.msra.mxu0 %v6530
    %7187 = vmatprep.subr.mxu0 0.0
    %7188 = vmatpush2.msra.mxu0 %v6527
    %7189 = vmatprep.subr.mxu0 0.0
    %7190 = vmatpush2.msra.mxu0 %v6524
    %7191 = vmatprep.subr.mxu0 0.0
    %7192 = vmatpush2.msra.mxu0 %v6521
    %7193 = vmatprep.subr.mxu0 0.0
    %7194 = vmatpush2.msra.mxu0 %v6518
    %7195 = vmatprep.subr.mxu0 0.0
    %7196 = vmatpush2.msra.mxu0 %v6515
    %7197 = vmatprep.subr.mxu0 0.0
    %7198 = vmatpush2.msra.mxu0 %v6512
    %7199 = vmatprep.subr.mxu0 0.0
    %7200 = vmatpush2.msra.mxu0 %v6509
    %7201 = vmatprep.subr.mxu0 0.0
    %7202 = vmatpush2.msra.mxu0 %v6506
    %7203 = vmatprep.subr.mxu0 0.0
    %7204 = vmatpush2.msra.mxu0 %v6503
    %7205 = vmatprep.subr.mxu0 0.0
    %7206 = vmatpush2.msra.mxu0 %v6500
    %7207 = vmatprep.subr.mxu0 0.0
    %7208 = vmatpush2.msra.mxu0 %v6497
    %7209 = vmatprep.subr.mxu0 0.0
    %7210 = vmatpush2.msra.mxu0 %v6494
    %7211 = vmatprep.subr.mxu0 0.0
    %7212 = vmatpush2.msra.mxu0 %v6491
    %7213 = vmatprep.subr.mxu0 0.0
    %7214 = vmatpush2.msra.mxu0 %v6488
    %7215 = vmatprep.subr.mxu0 0.0
    %7216 = vmatpush2.msra.mxu0 %v6485
    %7217 = vmatprep.mubr.f32.mxu0 %v6318
    %7218 = vmatmul.mubr.f32.gmra.mxu0 %v6317
    %v7219 = vpop.f32.mrf.mxu0
    %v7220 = vadd.f32 %v7140, %v7219
    %v7221 = vpop.f32.mrf.mxu0
    %7222 = vmatprep.mubr.f32.mxu0 %v6326
    %7223 = vmatmul.mubr.f32.gmra.mxu0 %v6325
    %v7224 = vpop.f32.mrf.mxu0
    %v7225 = vadd.f32 %v7145, %v7224
    %v7226 = vpop.f32.mrf.mxu0
    %7227 = vmatprep.mubr.f32.mxu0 %v6334
    %7228 = vmatmul.mubr.f32.gmra.mxu0 %v6333
    %v7229 = vpop.f32.mrf.mxu0
    %v7230 = vadd.f32 %v7150, %v7229
    %v7231 = vpop.f32.mrf.mxu0
    %7232 = vdwg.mxu0
    %7233 = vmatprep.subr.mxu0 0.0
    %7234 = vmatpush1.msra.mxu0 %v6578
    %7235 = vmatprep.subr.mxu0 0.0
    %7236 = vmatpush1.msra.mxu0 %v6575
    %7237 = vmatprep.subr.mxu0 0.0
    %7238 = vmatpush1.msra.mxu0 %v6572
    %7239 = vmatprep.subr.mxu0 0.0
    %7240 = vmatpush1.msra.mxu0 %v6569
    %7241 = vmatprep.subr.mxu0 0.0
    %7242 = vmatpush1.msra.mxu0 %v6566
    %7243 = vmatprep.subr.mxu0 0.0
    %7244 = vmatpush1.msra.mxu0 %v6563
    %7245 = vmatprep.subr.mxu0 0.0
    %7246 = vmatpush1.msra.mxu0 %v6560
    %7247 = vmatprep.subr.mxu0 0.0
    %7248 = vmatpush1.msra.mxu0 %v6557
    %7249 = vmatprep.subr.mxu0 0.0
    %7250 = vmatpush1.msra.mxu0 %v6554
    %7251 = vmatprep.subr.mxu0 0.0
    %7252 = vmatpush1.msra.mxu0 %v6551
    %7253 = vmatprep.subr.mxu0 0.0
    %7254 = vmatpush1.msra.mxu0 %v6548
    %7255 = vmatprep.subr.mxu0 0.0
    %7256 = vmatpush1.msra.mxu0 %v6545
    %7257 = vmatprep.subr.mxu0 0.0
    %7258 = vmatpush1.msra.mxu0 %v6542
    %7259 = vmatprep.subr.mxu0 0.0
    %7260 = vmatpush1.msra.mxu0 %v6539
    %7261 = vmatprep.subr.mxu0 0.0
    %7262 = vmatpush1.msra.mxu0 %v6536
    %7263 = vmatprep.subr.mxu0 0.0
    %7264 = vmatpush1.msra.mxu0 %v6533
    %7265 = vmatprep.subr.mxu0 0.0
    %7266 = vmatpush2.msra.mxu0 %v6626
    %7267 = vmatprep.subr.mxu0 0.0
    %7268 = vmatpush2.msra.mxu0 %v6623
    %7269 = vmatprep.subr.mxu0 0.0
    %7270 = vmatpush2.msra.mxu0 %v6620
    %7271 = vmatprep.subr.mxu0 0.0
    %7272 = vmatpush2.msra.mxu0 %v6617
    %7273 = vmatprep.subr.mxu0 0.0
    %7274 = vmatpush2.msra.mxu0 %v6614
    %7275 = vmatprep.subr.mxu0 0.0
    %7276 = vmatpush2.msra.mxu0 %v6611
    %7277 = vmatprep.subr.mxu0 0.0
    %7278 = vmatpush2.msra.mxu0 %v6608
    %7279 = vmatprep.subr.mxu0 0.0
    %7280 = vmatpush2.msra.mxu0 %v6605
    %7281 = vmatprep.subr.mxu0 0.0
    %7282 = vmatpush2.msra.mxu0 %v6602
    %7283 = vmatprep.subr.mxu0 0.0
    %7284 = vmatpush2.msra.mxu0 %v6599
    %7285 = vmatprep.subr.mxu0 0.0
    %7286 = vmatpush2.msra.mxu0 %v6596
    %7287 = vmatprep.subr.mxu0 0.0
    %7288 = vmatpush2.msra.mxu0 %v6593
    %7289 = vmatprep.subr.mxu0 0.0
    %7290 = vmatpush2.msra.mxu0 %v6590
    %7291 = vmatprep.subr.mxu0 0.0
    %7292 = vmatpush2.msra.mxu0 %v6587
    %7293 = vmatprep.subr.mxu0 0.0
    %7294 = vmatpush2.msra.mxu0 %v6584
    %7295 = vmatprep.subr.mxu0 0.0
    %7296 = vmatpush2.msra.mxu0 %v6581
    %7297 = vmatprep.mubr.f32.mxu0 %v6320
    %7298 = vmatmul.mubr.f32.gmra.mxu0 %v6319
    %v7299 = vpop.f32.mrf.mxu0
    %v7300 = vadd.f32 %v7220, %v7299
    %v7301 = vpop.f32.mrf.mxu0
    %7302 = vmatprep.mubr.f32.mxu0 %v6328
    %7303 = vmatmul.mubr.f32.gmra.mxu0 %v6327
    %v7304 = vpop.f32.mrf.mxu0
    %v7305 = vadd.f32 %v7225, %v7304
    %v7306 = vpop.f32.mrf.mxu0
    %7307 = vmatprep.mubr.f32.mxu0 %v6336
    %7308 = vmatmul.mubr.f32.gmra.mxu0 %v6335
    %v7309 = vpop.f32.mrf.mxu0
    %v7310 = vadd.f32 %v7230, %v7309
    %v7311 = vpop.f32.mrf.mxu0
    %7312 = vdwg.mxu0
    %7313 = vmatprep.subr.mxu0 0.0
    %7314 = vmatpush1.msra.mxu0 %v6674
    %7315 = vmatprep.subr.mxu0 0.0
    %7316 = vmatpush1.msra.mxu0 %v6671
    %7317 = vmatprep.subr.mxu0 0.0
    %7318 = vmatpush1.msra.mxu0 %v6668
    %7319 = vmatprep.subr.mxu0 0.0
    %7320 = vmatpush1.msra.mxu0 %v6665
    %7321 = vmatprep.subr.mxu0 0.0
    %7322 = vmatpush1.msra.mxu0 %v6662
    %7323 = vmatprep.subr.mxu0 0.0
    %7324 = vmatpush1.msra.mxu0 %v6659
    %7325 = vmatprep.subr.mxu0 0.0
    %7326 = vmatpush1.msra.mxu0 %v6656
    %7327 = vmatprep.subr.mxu0 0.0
    %7328 = vmatpush1.msra.mxu0 %v6653
    %7329 = vmatprep.subr.mxu0 0.0
    %7330 = vmatpush1.msra.mxu0 %v6650
    %7331 = vmatprep.subr.mxu0 0.0
    %7332 = vmatpush1.msra.mxu0 %v6647
    %7333 = vmatprep.subr.mxu0 0.0
    %7334 = vmatpush1.msra.mxu0 %v6644
    %7335 = vmatprep.subr.mxu0 0.0
    %7336 = vmatpush1.msra.mxu0 %v6641
    %7337 = vmatprep.subr.mxu0 0.0
    %7338 = vmatpush1.msra.mxu0 %v6638
    %7339 = vmatprep.subr.mxu0 0.0
    %7340 = vmatpush1.msra.mxu0 %v6635
    %7341 = vmatprep.subr.mxu0 0.0
    %7342 = vmatpush1.msra.mxu0 %v6632
    %7343 = vmatprep.subr.mxu0 0.0
    %7344 = vmatpush1.msra.mxu0 %v6629
    %7345 = vmatprep.subr.mxu0 0.0
    %7346 = vmatpush2.msra.mxu0 %v6722
    %7347 = vmatprep.subr.mxu0 0.0
    %7348 = vmatpush2.msra.mxu0 %v6719
    %7349 = vmatprep.subr.mxu0 0.0
    %7350 = vmatpush2.msra.mxu0 %v6716
    %7351 = vmatprep.subr.mxu0 0.0
    %7352 = vmatpush2.msra.mxu0 %v6713
    %7353 = vmatprep.subr.mxu0 0.0
    %7354 = vmatpush2.msra.mxu0 %v6710
    %7355 = vmatprep.subr.mxu0 0.0
    %7356 = vmatpush2.msra.mxu0 %v6707
    %7357 = vmatprep.subr.mxu0 0.0
    %7358 = vmatpush2.msra.mxu0 %v6704
    %7359 = vmatprep.subr.mxu0 0.0
    %7360 = vmatpush2.msra.mxu0 %v6701
    %7361 = vmatprep.subr.mxu0 0.0
    %7362 = vmatpush2.msra.mxu0 %v6698
    %7363 = vmatprep.subr.mxu0 0.0
    %7364 = vmatpush2.msra.mxu0 %v6695
    %7365 = vmatprep.subr.mxu0 0.0
    %7366 = vmatpush2.msra.mxu0 %v6692
    %7367 = vmatprep.subr.mxu0 0.0
    %7368 = vmatpush2.msra.mxu0 %v6689
    %7369 = vmatprep.subr.mxu0 0.0
    %7370 = vmatpush2.msra.mxu0 %v6686
    %7371 = vmatprep.subr.mxu0 0.0
    %7372 = vmatpush2.msra.mxu0 %v6683
    %7373 = vmatprep.subr.mxu0 0.0
    %7374 = vmatpush2.msra.mxu0 %v6680
    %7375 = vmatprep.subr.mxu0 0.0
    %7376 = vmatpush2.msra.mxu0 %v6677
    %7377 = vmatprep.mubr.f32.mxu0 %v6322
    %7378 = vmatmul.mubr.f32.gmra.mxu0 %v6321
    %v7379 = vpop.f32.mrf.mxu0
    %v7380 = vadd.f32 %v7300, %v7379
    %v7381 = vpop.f32.mrf.mxu0
    %7382 = vmatprep.mubr.f32.mxu0 %v6330
    %7383 = vmatmul.mubr.f32.gmra.mxu0 %v6329
    %v7384 = vpop.f32.mrf.mxu0
    %v7385 = vadd.f32 %v7305, %v7384
    %v7386 = vpop.f32.mrf.mxu0
    %7387 = vmatprep.mubr.f32.mxu0 %v6338
    %7388 = vmatmul.mubr.f32.gmra.mxu0 %v6337
    %v7389 = vpop.f32.mrf.mxu0
    %v7390 = vadd.f32 %v7310, %v7389
    %v7391 = vpop.f32.mrf.mxu0
    %7392 = vdwg.mxu0
    %v7393 = vmax.f32 %v7057, 0.0
    %v7394 = vmax.f32 %v7059, 0.0
    %v7395 = vmax.f32 %v7380, 0.0
    %v7396 = vmax.f32 %v7063, 0.0
    %v7397 = vmax.f32 %v7065, 0.0
    %v7398 = vmax.f32 %v7385, 0.0
    %v7399 = vmax.f32 %v7069, 0.0
    %v7400 = vmax.f32 %v7071, 0.0
    %v7401 = vmax.f32 %v7390, 0.0
    %v7402 = vadd.f32 %v7393, %v7394
    %v7403 = vsel %vm63, %v7395, 0.0
    %v7404 = vadd.f32 %v7402, %v7403
    %7405 = vadd.xlane.f32.xlu0 %v7404
    %v7406 = vpop.xlane.xlu0 %7405
    %v7407 = vadd.f32 %v7396, %v7397
    %v7408 = vsel %vm63, %v7398, 0.0
    %v7409 = vadd.f32 %v7407, %v7408
    %7410 = vadd.xlane.f32.xlu0 %v7409
    %v7411 = vpop.xlane.xlu0 %7410
    %v7412 = vsel %vm3747, %v7399, 0.0
    %v7413 = vsel %vm3747, %v7400, 0.0
    %v7414 = vadd.f32 %v7412, %v7413
    %v7415 = vsel %vm3751, %v7401, 0.0
    %v7416 = vadd.f32 %v7414, %v7415
    %7417 = vadd.xlane.f32.xlu0 %v7416
    %v7418 = vpop.xlane.xlu0 %7417
    %v7419 = vmul.f32 %v7393, %v7393
    %v7420 = vmul.f32 %v7394, %v7394
    %v7421 = vmul.f32 %v7395, %v7395
    %v7422 = vmul.f32 %v7396, %v7396
    %v7423 = vmul.f32 %v7397, %v7397
    %v7424 = vmul.f32 %v7398, %v7398
    %v7425 = vmul.f32 %v7399, %v7399
    %v7426 = vmul.f32 %v7400, %v7400
    %v7427 = vmul.f32 %v7401, %v7401
    %v7428 = vadd.f32 %v7419, %v7420
    %v7429 = vsel %vm63, %v7421, 0.0
    %v7430 = vadd.f32 %v7428, %v7429
    %7431 = vadd.xlane.f32.xlu0 %v7430
    %v7432 = vpop.xlane.xlu0 %7431
    %v7433 = vadd.f32 %v7422, %v7423
    %v7434 = vsel %vm63, %v7424, 0.0
    %v7435 = vadd.f32 %v7433, %v7434
    %7436 = vadd.xlane.f32.xlu0 %v7435
    %v7437 = vpop.xlane.xlu0 %7436
    %v7438 = vsel %vm3747, %v7425, 0.0
    %v7439 = vsel %vm3747, %v7426, 0.0
    %v7440 = vadd.f32 %v7438, %v7439
    %v7441 = vsel %vm3751, %v7427, 0.0
    %v7442 = vadd.f32 %v7440, %v7441
    %7443 = vadd.xlane.f32.xlu0 %v7442
    %v7444 = vpop.xlane.xlu0 %7443
    %vm7445 = vcmask 7168
    %v7446 = vsel %vm7445, %v3741, %v7406
    %v7447 = vsel %vm7445, %v3746, %v7411
    %v7448 = vsel %vm7445, %v3755, %v7418
    %v7449 = vsel %vm7445, %v3769, %v7432
    %v7450 = vsel %vm7445, %v3774, %v7437
    %v7451 = vsel %vm7445, %v3781, %v7444
    %vm7452 = vcmask 15360
    %v7453 = vsel %vm7452, %v7446, 0.0
    %7454 = vadd.xlane.f32.xlu0 %v7453
    %v7455 = vpop.xlane.xlu0 %7454
    %v7456 = vsel %vm7452, %v7447, 0.0
    %7457 = vadd.xlane.f32.xlu0 %v7456
    %v7458 = vpop.xlane.xlu0 %7457
    %vm7459 = vcmask 11264
    %v7460 = vsel %vm7459, %v7448, 0.0
    %7461 = vadd.xlane.f32.xlu0 %v7460
    %v7462 = vpop.xlane.xlu0 %7461
    %v7463 = vmul.f32 %v7455, 0.0015576323
    %v7464 = vmul.f32 %v7458, 0.0015576323
    %v7465 = vmul.f32 %v7462, 0.0015576323
    %v7466 = vsel %vm7452, %v7449, 0.0
    %7467 = vadd.xlane.f32.xlu0 %v7466
    %v7468 = vpop.xlane.xlu0 %7467
    %v7469 = vsel %vm7452, %v7450, 0.0
    %7470 = vadd.xlane.f32.xlu0 %v7469
    %v7471 = vpop.xlane.xlu0 %7470
    %v7472 = vsel %vm7459, %v7451, 0.0
    %7473 = vadd.xlane.f32.xlu0 %v7472
    %v7474 = vpop.xlane.xlu0 %7473
    %v7475 = vmul.f32 %v7468, 0.0015576323
    %v7476 = vmul.f32 %v7471, 0.0015576323
    %v7477 = vmul.f32 %v7474, 0.0015576323
    %v7478 = vmul.f32 %v7463, %v7463
    %v7479 = vmul.f32 %v7464, %v7464
    %v7480 = vmul.f32 %v7465, %v7465
    %v7481 = vsub.f32 %v7475, %v7478
    %v7482 = vsub.f32 %v7476, %v7479
    %v7483 = vsub.f32 %v7477, %v7480
    %v7484 = vld [vmem:[%s3] sm:$0xff]
    %v7485 = vld [vmem:[%s3 + $0x8] sm:$0xff]
    %v7486 = vld [vmem:[%s3 + $0x10] sm:$0xf]
    %v7487 = vadd.f32 %v7481, 1e-05
    %v7488 = vadd.f32 %v7482, 1e-05
    %v7489 = vadd.f32 %v7483, 1e-05
    %v7490 = vrsqrt.pop %v7487
    %v7491 = vrsqrt.pop %v7488
    %v7492 = vrsqrt.pop %v7489
    %v7493 = vmul.f32 %v7484, %v7490
    %v7494 = vmul.f32 %v7485, %v7491
    %v7495 = vmul.f32 %v7486, %v7492
    %v7496 = vmul.f32 %v7446, 0.0031152647
    %v7497 = vmul.f32 %v7447, 0.0031152647
    %v7498 = vmul.f32 %v7448, 0.0031152647
    %v7499 = vsub.f32 %v7496, %v7463
    %v7500 = vsub.f32 %v7497, %v7464
    %v7501 = vsub.f32 %v7498, %v7465
    %7503 = vset.pattern.permute.xlu0 0
    %7504 = vperm.xlu0 %7503, %v7493
    %v7505 = vpop.permute.xlu0 %7504
    %7508 = vset.pattern.permute.xlu0 0
    %7509 = vperm.xlu0 %7508, %v7494
    %v7510 = vpop.permute.xlu0 %7509
    %7513 = vset.pattern.permute.xlu0 0
    %7514 = vperm.xlu0 %7513, %v7495
    %v7515 = vpop.permute.xlu0 %7514
    %v7517 = vmul.f32 %v7499, %v7505
    %v7518 = vmul.f32 %v7500, %v7510
    %v7519 = vmul.f32 %v7501, %v7515
    %v7520 = vld [vmem:[%s4] sm:$0xff]
    %v7521 = vld [vmem:[%s4 + $0x8] sm:$0xff]
    %v7522 = vld [vmem:[%s4 + $0x10] sm:$0xf]
    %7524 = vset.pattern.permute.xlu0 0
    %7525 = vperm.xlu0 %7524, %v7520
    %v7526 = vpop.permute.xlu0 %7525
    %7529 = vset.pattern.permute.xlu0 0
    %7530 = vperm.xlu0 %7529, %v7521
    %v7531 = vpop.permute.xlu0 %7530
    %7534 = vset.pattern.permute.xlu0 0
    %7535 = vperm.xlu0 %7534, %v7522
    %v7536 = vpop.permute.xlu0 %7535
    %v7538 = vadd.f32 %v7517, %v7526
    %v7539 = vadd.f32 %v7518, %v7531
    %v7540 = vadd.f32 %v7519, %v7536
    %v7541 = vld [vmem:[%s5] sm:$0x3]
    %v7542 = vld [vmem:[%s6] sm:$0x3]
    %7544 = vset.pattern.permute.xlu0 0
    %7545 = vperm.xlu0 %7544, %v7542
    %v7546 = vpop.permute.xlu0 %7545
    %vm7548 = vcmask 162816
    %v7550 = vsel %vm7548, %v7541, 0
    %v7553 = vsel %vm3747, %v7540, 0
    %7555 = vmatprep.subr.mxu0 0.0
    %7556 = vmatpush1.msra.mxu0 0.0
    %7557 = vmatprep.subr.mxu0 0.0
    %7558 = vmatpush1.msra.mxu0 0.0
    %7559 = vmatprep.subr.mxu0 0.0
    %7560 = vmatpush1.msra.mxu0 0.0
    %7561 = vmatprep.subr.mxu0 0.0
    %7562 = vmatpush1.msra.mxu0 0.0
    %7563 = vmatprep.subr.mxu0 0.0
    %7564 = vmatpush1.msra.mxu0 0.0
    %7565 = vmatprep.subr.mxu0 0.0
    %7566 = vmatpush1.msra.mxu0 0.0
    %7567 = vmatprep.subr.mxu0 0.0
    %7568 = vmatpush1.msra.mxu0 0.0
    %7569 = vmatprep.subr.mxu0 0.0
    %7570 = vmatpush1.msra.mxu0 0.0
    %7571 = vmatprep.subr.mxu0 0.0
    %7572 = vmatpush1.msra.mxu0 0.0
    %7573 = vmatprep.subr.mxu0 0.0
    %7574 = vmatpush1.msra.mxu0 0.0
    %7575 = vmatprep.subr.mxu0 0.0
    %7576 = vmatpush1.msra.mxu0 0.0
    %7577 = vmatprep.subr.mxu0 0.0
    %7578 = vmatpush1.msra.mxu0 0.0
    %7579 = vmatprep.subr.mxu0 0.0
    %7580 = vmatpush1.msra.mxu0 0.0
    %7581 = vmatprep.subr.mxu0 0.0
    %7582 = vmatpush1.msra.mxu0 %v7553
    %7583 = vmatprep.subr.mxu0 0.0
    %7584 = vmatpush1.msra.mxu0 %v7539
    %7585 = vmatprep.subr.mxu0 0.0
    %7586 = vmatpush1.msra.mxu0 %v7538
    %7587 = vmatprep.subr.mxu0 0.0
    %7588 = vmatpush2.msra.mxu0 0.0
    %7589 = vmatprep.subr.mxu0 0.0
    %7590 = vmatpush2.msra.mxu0 0.0
    %7591 = vmatprep.subr.mxu0 0.0
    %7592 = vmatpush2.msra.mxu0 0.0
    %7593 = vmatprep.subr.mxu0 0.0
    %7594 = vmatpush2.msra.mxu0 0.0
    %7595 = vmatprep.subr.mxu0 0.0
    %7596 = vmatpush2.msra.mxu0 0.0
    %7597 = vmatprep.subr.mxu0 0.0
    %7598 = vmatpush2.msra.mxu0 0.0
    %7599 = vmatprep.subr.mxu0 0.0
    %7600 = vmatpush2.msra.mxu0 0.0
    %7601 = vmatprep.subr.mxu0 0.0
    %7602 = vmatpush2.msra.mxu0 0.0
    %7603 = vmatprep.subr.mxu0 0.0
    %7604 = vmatpush2.msra.mxu0 0.0
    %7605 = vmatprep.subr.mxu0 0.0
    %7606 = vmatpush2.msra.mxu0 0.0
    %7607 = vmatprep.subr.mxu0 0.0
    %7608 = vmatpush2.msra.mxu0 0.0
    %7609 = vmatprep.subr.mxu0 0.0
    %7610 = vmatpush2.msra.mxu0 0.0
    %7611 = vmatprep.subr.mxu0 0.0
    %7612 = vmatpush2.msra.mxu0 0.0
    %7613 = vmatprep.subr.mxu0 0.0
    %7614 = vmatpush2.msra.mxu0 0.0
    %7615 = vmatprep.subr.mxu0 0.0
    %7616 = vmatpush2.msra.mxu0 0.0
    %7617 = vmatprep.subr.mxu0 0.0
    %7618 = vmatpush2.msra.mxu0 0.0
    %7619 = vmatprep.mubr.f32.mxu0 0.0
    %7620 = vmatmul.mubr.f32.gmra.mxu0 %v7550
    %v7621 = vpop.f32.mrf.mxu0
    %v7622 = vadd.f32 %v7546, %v7621
    %v7623 = vpop.f32.mrf.mxu0
    %7624 = vdwg.mxu0
    %vm7625 = vcmask 9216
    %v7626 = vsel %vm7625, %v7622, -inf
    %v7627 = vrot.slane %v7626, 4
    %v7628 = vmax.f32 %v7626, %v7627
    %v7629 = vrot.slane %v7628, 2
    %v7630 = vmax.f32 %v7628, %v7629
    %v7631 = vrot.slane %v7630, 1
    %v7632 = vmax.f32 %v7630, %v7631
    %v7633 = vsub.f32 %v7622, %v7632
    %v7634 = vmul.f32 %v7633, 1.442695
    %v7635 = vpow.pop %v7634
    %v7636 = vsel %vm7625, %v7635, 0.0
    %v7637 = vrot.slane %v7636, 4
    %v7638 = vadd.f32 %v7636, %v7637
    %v7639 = vrot.slane %v7638, 2
    %v7640 = vadd.f32 %v7638, %v7639
    %v7641 = vrot.slane %v7640, 1
    %v7642 = vadd.f32 %v7640, %v7641
    %v7643 = vrcp.pop %v7642
    %v7644 = vmul.f32 %v7635, %v7643
    %7645 = vst.msk [vmem:[#allocation8] sm:$0x3] %vm7625, %v7644
    // Predicated region
    $region38: #{tpu_custom_call.1} parent=1 // pred_check
      _
    $region39: #{tpu_custom_call.1} parent=1 // pred_check_branch
      %7647 = sbr.rel (0) target = $region41
    $region40: #{tpu_custom_call.1} parent=1 // pred_region
      %s7649 = ssub.s32 32, 32
      %7650 = vsyncadd [#allocation5], %s7649
      %s7652 = sshll.u32 [#allocation8], 4
      %s7653 = int_to_ptr.vmem [resolvable:$true] %s7652
      %7655 = dma.vmem_to_hbm [thread:$0]  %s7653, 32, %s7, [#allocation5]
    $region41: #{tpu_custom_call.1} parent=1 // pred_fallthru
      _
    // Predicated region
    $region42: #{tpu_custom_call.1} parent=1 // pred_check
      _
    $region43: #{tpu_custom_call.1} parent=1 // pred_check_branch
      %7657 = sbr.rel (0) target = $region45
    $region44: #{tpu_custom_call.1} parent=1 // pred_region
      %7658 = dma.done [#allocation5], 32
    $region45: #{tpu_custom_call.1} parent=1 // pred_fallthru
      _
    %7659 = vsyncpa [#allocation4], 1
    %7660 = vsyncpa [#allocation7], 1
    %7661 = vsyncpa [#allocation5], 1

</llo_original>
